<compile_context>
chip_gen: v7x
topology: tpu7x:2x2x1
jax: 0.10.0
libtpu: 0.0.40
codegen_flags: <defaults>
</compile_context>

<pallas_src>
import functools
import math

import numpy as np
import jax
import jax.numpy as jnp
from jax.experimental import pallas as pl
from jax.experimental.pallas import tpu as pltpu


# ----------------------------- helpers -----------------------------

def _const_spec(shape):
    """BlockSpec for a weight that stays fully VMEM-resident across the batch grid."""
    n = len(shape)
    return pl.BlockSpec(shape, lambda i, _n=n: (0,) * _n)


def _layernorm(y, g, b, eps):
    mu = jnp.mean(y, axis=-1, keepdims=True)
    var = jnp.mean((y - mu) ** 2, axis=-1, keepdims=True)
    return (y - mu) * jax.lax.rsqrt(var + eps) * g + b


def sinusoid_pe(length, dim):
    pos = np.arange(length, dtype=np.float32)[:, None]
    div = np.exp(np.arange(0, dim, 2, dtype=np.float32) * (-(math.log(10000.0) / dim)))
    pe = np.zeros((length, dim), np.float32)
    pe[:, 0::2] = np.sin(pos * div)
    pe[:, 1::2] = np.cos(pos * div)
    return jnp.asarray(pe)


# ----------------------------- fused encoder + prediction kernel -----------------------------

def _visionlan_eval_kernel(tok_ref, pe_ref,
                           wq_ref, wk_ref, wv_ref, bq_ref, bk_ref, bv_ref,
                           fcw_ref, fcb_ref, ln1g_ref, ln1b_ref,
                           w1w_ref, w1b_ref, w2w_ref, w2b_ref, ln2g_ref, ln2b_ref,
                           lnfg_ref, lnfb_ref,
                           pos_ref, pvw_ref, pvb_ref, pew_ref, peb_ref,
                           pcw_ref, pcb_ref,
                           out_ref,
                           *, n_layers, n_head, eps_blk, eps_fin):
    # One grid step == one batch block; all weights are VMEM-resident, activations
    # live in vregs/VMEM only (no HBM round trip between encoder and head).
    Bb, S, D = tok_ref.shape
    dk = D // n_head
    scale = 1.0 / math.sqrt(dk)

    # positional encoding folded in once for the whole batch block
    x2 = (tok_ref[...] + pe_ref[...][None]).reshape(Bb * S, D)          # (Bb*S, D) f32

    for l in range(n_layers):
        # ---------------- multi-head self attention ----------------
        xb = x2.astype(jnp.bfloat16)
        head_outs = []
        for h in range(n_head):
            idx = l * n_head + h                                        # static leading index
            q = jnp.dot(xb, wq_ref[idx], preferred_element_type=jnp.float32) + bq_ref[idx]
            k = jnp.dot(xb, wk_ref[idx], preferred_element_type=jnp.float32) + bk_ref[idx]
            v = jnp.dot(xb, wv_ref[idx], preferred_element_type=jnp.float32) + bv_ref[idx]
            q3 = q.reshape(Bb, S, dk).astype(jnp.bfloat16)
            k3 = k.reshape(Bb, S, dk).astype(jnp.bfloat16)
            v3 = v.reshape(Bb, S, dk).astype(jnp.bfloat16)
            s = jax.lax.dot_general(q3, k3, (((2,), (2,)), ((0,), (0,))),
                                    preferred_element_type=jnp.float32) * scale   # (Bb,S,S)
            s = s - jnp.max(s, axis=-1, keepdims=True)
            p = jnp.exp(s)
            p = p * pl.reciprocal(jnp.sum(p, axis=-1, keepdims=True), approx=True)
            oh = jax.lax.dot_general(p.astype(jnp.bfloat16), v3,
                                     (((2,), (1,)), ((0,), (0,))),
                                     preferred_element_type=jnp.float32)          # (Bb,S,dk)
            head_outs.append(oh.reshape(Bb * S, dk))
        # concat heads once, single K=D output projection (better MXU fill than K=dk sums)
        o_cat = jnp.concatenate(head_outs, axis=-1)                                # (Bb*S, D)
        attn = jnp.dot(o_cat.astype(jnp.bfloat16), fcw_ref[l],
                       preferred_element_type=jnp.float32) + fcb_ref[l]
        x2 = _layernorm(attn + x2, ln1g_ref[l], ln1b_ref[l], eps_blk)

        # ---------------- position-wise FFN ----------------
        h1 = jnp.maximum(jnp.dot(x2.astype(jnp.bfloat16), w1w_ref[l],
                                 preferred_element_type=jnp.float32) + w1b_ref[l], 0.0)
        h2 = jnp.dot(h1.astype(jnp.bfloat16), w2w_ref[l],
                     preferred_element_type=jnp.float32) + w2b_ref[l]
        x2 = _layernorm(h2 + x2, ln2g_ref[l], ln2b_ref[l], eps_blk)

    # final encoder LayerNorm (eps = 1e-6)
    enc2 = _layernorm(x2, lnfg_ref[...], lnfb_ref[...], eps_fin)                   # (Bb*S, D)

    # ---------------- prediction head: PP_layer + w_vrm classifier ----------------
    encb = enc2.astype(jnp.bfloat16)
    t = jnp.dot(encb, pvw_ref[...], preferred_element_type=jnp.float32) + pvb_ref[...]
    t = jnp.tanh(t.reshape(Bb, S, D) + pos_ref[...][None])                         # (Bb,S,D)
    sc = jnp.dot(t.reshape(Bb * S, D).astype(jnp.bfloat16), pew_ref[...],
                 preferred_element_type=jnp.float32) + peb_ref[...]                # (Bb*S,NCp)
    ncp = sc.shape[-1]
    sc = sc.reshape(Bb, S, ncp)
    # softmax over tokens; exact divide since it directly feeds the classifier/argmax
    sc = sc - jnp.max(sc, axis=1, keepdims=True)
    pp = jnp.exp(sc)
    pp = pp / jnp.sum(pp, axis=1, keepdims=True)
    g = jax.lax.dot_general(pp.astype(jnp.bfloat16), encb.reshape(Bb, S, D),
                            (((1,), (1,)), ((0,), (0,))),
                            preferred_element_type=jnp.float32)                    # (Bb,NCp,D)
    logits = jnp.dot(g.reshape(Bb * ncp, D).astype(jnp.bfloat16), pcw_ref[...],
                     preferred_element_type=jnp.float32) + pcb_ref[...]            # (Bb*NCp,NCLp)
    out_ref[...] = logits.reshape(Bb, ncp, pcw_ref.shape[-1]).astype(out_ref.dtype)


def visionlan_eval_logits(x, params, n_head, n_char, n_class, block_b=None):
    """Eval-path forward up to the (B, N_max_character, n_class) logits (one pallas_call)."""
    B, C, H, W = x.shape
    S, D = H * W, C
    tokens = x.reshape(B, C, S).transpose(0, 2, 1)                     # (B, S, D)

    sm, pr = params["seq_model"], params["pred"]
    L = sm["fc_w"].shape[0]
    Di = sm["w1_w"].shape[-1]
    Hh = n_head
    dk = D // Hh
    NCp = pr["we_w"].shape[-1]          # padded N_max_character
    NCLp = pr["w_vrm_w"].shape[-1]      # padded n_class

    bb = B if block_b is None else block_b
    assert B % bb == 0, "batch must be divisible by the batch block"
    grid = (B // bb,)

    pe = sinusoid_pe(S, D)

    kernel = functools.partial(_visionlan_eval_kernel, n_layers=L, n_head=Hh,
                               eps_blk=1e-5, eps_fin=1e-6)

    logits_pad = pl.pallas_call(
        kernel,
        out_shape=jax.ShapeDtypeStruct((B, NCp, NCLp), jnp.float32),
        grid=grid,
        in_specs=[
            pl.BlockSpec((bb, S, D), lambda i: (i, 0, 0)),
            _const_spec((S, D)),
            _const_spec((L * Hh, D, dk)), _const_spec((L * Hh, D, dk)),
            _const_spec((L * Hh, D, dk)),
            _const_spec((L * Hh, 1, dk)), _const_spec((L * Hh, 1, dk)),
            _const_spec((L * Hh, 1, dk)),
            _const_spec((L, D, D)), _const_spec((L, 1, D)),
            _const_spec((L, 1, D)), _const_spec((L, 1, D)),
            _const_spec((L, D, Di)), _const_spec((L, 1, Di)),
            _const_spec((L, Di, D)), _const_spec((L, 1, D)),
            _const_spec((L, 1, D)), _const_spec((L, 1, D)),
            _const_spec((1, D)), _const_spec((1, D)),
            _const_spec((S, D)),
            _const_spec((D, D)), _const_spec((1, D)),
            _const_spec((D, NCp)), _const_spec((1, NCp)),
            _const_spec((D, NCLp)), _const_spec((1, NCLp)),
        ],
        out_specs=pl.BlockSpec((bb, NCp, NCLp), lambda i: (i, 0, 0)),
        compiler_params=pltpu.CompilerParams(
            dimension_semantics=("parallel",),
            vmem_limit_bytes=32 * 1024 * 1024),
    )(tokens, pe,
      sm["wq"], sm["wk"], sm["wv"], sm["bq"], sm["bk"], sm["bv"],
      sm["fc_w"], sm["fc_b"], sm["ln1_g"], sm["ln1_b"],
      sm["w1_w"], sm["w1_b"], sm["w2_w"], sm["w2_b"], sm["ln2_g"], sm["ln2_b"],
      sm["lnf_g"], sm["lnf_b"],
      pr["pos"], pr["wv_w"], pr["wv_b"], pr["we_w"], pr["we_b"],
      pr["w_vrm_w"], pr["w_vrm_b"])

    return logits_pad[:, :n_char, :n_class]                            # strip lane padding


# ----------------------------- host-side greedy decode -----------------------------

def greedy_decode(logits_np, n_T, n_class):
    """Host-side reproduction of the data-dependent eval while-loop of MLM_VRM."""
    b = logits_np.shape[0]
    C = np.transpose(logits_np, (1, 0, 2))                             # (N_char, b, n_class)
    out_res = np.zeros((n_T, b, n_class), dtype=np.float32)
    out_length = np.zeros((b,), dtype=np.float32)
    now_step = 0
    while (0.0 in out_length) and now_step < n_T:
        tmp = C[now_step]
        out_res[now_step] = tmp
        pred = tmp.argmax(axis=1)
        for j in range(b):
            if out_length[j] == 0 and pred[j] == 0:
                out_length[j] = now_step + 1
        now_step += 1
    for j in range(b):
        if int(out_length[j]) == 0:
            out_length[j] = n_T
    total = int(out_length.sum())
    output = np.zeros((total, n_class), dtype=np.float32)
    start = 0
    for i in range(b):
        cur = int(out_length[i])
        output[start:start + cur] = out_res[0:cur, i, :]
        start += cur
    return output, out_length


# ----------------------------- deterministic parameter init -----------------------------

class ParamGen:
    def __init__(self, key):
        self.key = key

    def normal(self, shape, std=0.02):
        self.key, sub = jax.random.split(self.key)
        return (std * jax.random.normal(sub, shape)).astype(jnp.float32)

    def zeros(self, shape):
        return jnp.zeros(shape, jnp.float32)

    def ones(self, shape):
        return jnp.ones(shape, jnp.float32)


def init_params(key, d_model, d_inner, n_layers, n_head, n_position,
                n_char, n_class, nc_pad, ncls_pad):
    pg = ParamGen(key)
    D, Di, L, Hh = d_model, d_inner, n_layers, n_head
    dk = D // Hh

    def bf16w(shape, std=0.02):
        return pg.normal(shape, std).astype(jnp.bfloat16)

    # Per-head Q/K/V weights pre-split host-side -> kernel indexes leading dims only.
    seq_model = dict(
        wq=bf16w((L * Hh, D, dk)), wk=bf16w((L * Hh, D, dk)), wv=bf16w((L * Hh, D, dk)),
        bq=pg.zeros((L * Hh, 1, dk)), bk=pg.zeros((L * Hh, 1, dk)), bv=pg.zeros((L * Hh, 1, dk)),
        fc_w=bf16w((L, D, D)), fc_b=pg.zeros((L, 1, D)),
        ln1_g=pg.ones((L, 1, D)), ln1_b=pg.zeros((L, 1, D)),
        w1_w=bf16w((L, D, Di)), w1_b=pg.zeros((L, 1, Di)),
        w2_w=bf16w((L, Di, D)), w2_b=pg.zeros((L, 1, D)),
        ln2_g=pg.ones((L, 1, D)), ln2_b=pg.zeros((L, 1, D)),
        lnf_g=pg.ones((1, D)), lnf_b=pg.zeros((1, D)),
    )

    # Prediction head.  pos_t = W0 @ f0_emb + b0 is batch-independent -> precomputed here.
    f0 = pg.normal((n_char, D), std=1.0)
    w0_w = pg.normal((n_position, n_char))
    w0_b = pg.zeros((n_position,))
    pos = jnp.dot(w0_w, f0) + w0_b[:, None]                            # (n_position, D) f32

    we_w = pg.normal((D, n_char))
    we_b = pg.zeros((1, n_char))
    wvrm_w = pg.normal((D, n_class))
    wvrm_b = pg.zeros((1, n_class))
    pred = dict(
        pos=pos,
        wv_w=bf16w((D, D)), wv_b=pg.zeros((1, D)),
        we_w=jnp.pad(we_w, ((0, 0), (0, nc_pad - n_char))).astype(jnp.bfloat16),
        we_b=jnp.pad(we_b, ((0, 0), (0, nc_pad - n_char))),
        w_vrm_w=jnp.pad(wvrm_w, ((0, 0), (0, ncls_pad - n_class))).astype(jnp.bfloat16),
        w_vrm_b=jnp.pad(wvrm_b, ((0, 0), (0, ncls_pad - n_class))),
    )
    return dict(seq_model=seq_model, pred=pred)


# ----------------------------- main -----------------------------

if __name__ == "__main__":
    key = jax.random.PRNGKey(0)

    # Small VisionLANDecoder config:
    in_channels, out_channels = 64, 36
    B, H, W = 2, 8, 8
    n_position = H * W                      # 64 tokens (== S)
    max_text_length = 25
    n_layers = 3
    n_head = in_channels // 32              # 2 heads, dk = 32
    d_inner = in_channels * 4               # 256
    n_class = out_channels + 1              # 37
    n_char = max_text_length + 1            # 26 (N_max_character in Prediction)
    NC_PAD = 32                             # char axis padded for lane density
    NCLS_PAD = 128                          # class axis padded for lane-dense store

    kp, kx = jax.random.split(key)
    params = init_params(kp, in_channels, d_inner, n_layers, n_head, n_position,
                         n_char, n_class, NC_PAD, NCLS_PAD)
    x = jax.random.normal(kx, (B, in_channels, H, W), dtype=jnp.float32)

    fwd = jax.jit(lambda xx: visionlan_eval_logits(xx, params, n_head, n_char, n_class))
    logits = fwd(x)
    jax.block_until_ready(logits)

    output, out_length = greedy_decode(np.asarray(logits), max_text_length, n_class)
    assert logits.shape == (B, n_char, n_class)
    assert output.shape == (int(out_length.sum()), n_class)
    assert out_length.shape == (B,)

    print("KERNEL_OK")
</pallas_src>

<mosaic_0001>
module attributes {stable_mosaic.version = 11 : i64} {
  func.func @_visionlan_eval_kernel(%arg0: i32, %arg1: memref<2x64x64xf32, #tpu.memory_space<vmem>>, %arg2: memref<64x64xf32, #tpu.memory_space<vmem>>, %arg3: memref<6x64x32xbf16, #tpu.memory_space<vmem>>, %arg4: memref<6x64x32xbf16, #tpu.memory_space<vmem>>, %arg5: memref<6x64x32xbf16, #tpu.memory_space<vmem>>, %arg6: memref<6x1x32xf32, #tpu.memory_space<vmem>>, %arg7: memref<6x1x32xf32, #tpu.memory_space<vmem>>, %arg8: memref<6x1x32xf32, #tpu.memory_space<vmem>>, %arg9: memref<3x64x64xbf16, #tpu.memory_space<vmem>>, %arg10: memref<3x1x64xf32, #tpu.memory_space<vmem>>, %arg11: memref<3x1x64xf32, #tpu.memory_space<vmem>>, %arg12: memref<3x1x64xf32, #tpu.memory_space<vmem>>, %arg13: memref<3x64x256xbf16, #tpu.memory_space<vmem>>, %arg14: memref<3x1x256xf32, #tpu.memory_space<vmem>>, %arg15: memref<3x256x64xbf16, #tpu.memory_space<vmem>>, %arg16: memref<3x1x64xf32, #tpu.memory_space<vmem>>, %arg17: memref<3x1x64xf32, #tpu.memory_space<vmem>>, %arg18: memref<3x1x64xf32, #tpu.memory_space<vmem>>, %arg19: memref<1x64xf32, #tpu.memory_space<vmem>>, %arg20: memref<1x64xf32, #tpu.memory_space<vmem>>, %arg21: memref<64x64xf32, #tpu.memory_space<vmem>>, %arg22: memref<64x64xbf16, #tpu.memory_space<vmem>>, %arg23: memref<1x64xf32, #tpu.memory_space<vmem>>, %arg24: memref<64x32xbf16, #tpu.memory_space<vmem>>, %arg25: memref<1x32xf32, #tpu.memory_space<vmem>>, %arg26: memref<64x128xbf16, #tpu.memory_space<vmem>>, %arg27: memref<1x128xf32, #tpu.memory_space<vmem>>, %arg28: memref<2x32x128xf32, #tpu.memory_space<vmem>>) attributes {dimension_semantics = [#tpu.dimension_semantics<parallel>], iteration_bounds = array<i64: 1>, scalar_prefetch = 0 : i64, scratch_operands = 0 : i64, tpu.core_type = #tpu.core_type<tc>, window_params = [{transform_indices = @transform_0, window_bounds = array<i64: 2, 64, 64>}, {pipeline_mode = #tpu.pipeline_mode<synchronous>, transform_indices = @transform_1, window_bounds = array<i64: 64, 64>}, {pipeline_mode = #tpu.pipeline_mode<synchronous>, transform_indices = @transform_2, window_bounds = array<i64: 6, 64, 32>}, {pipeline_mode = #tpu.pipeline_mode<synchronous>, transform_indices = @transform_3, window_bounds = array<i64: 6, 64, 32>}, {pipeline_mode = #tpu.pipeline_mode<synchronous>, transform_indices = @transform_4, window_bounds = array<i64: 6, 64, 32>}, {pipeline_mode = #tpu.pipeline_mode<synchronous>, transform_indices = @transform_5, window_bounds = array<i64: 6, 1, 32>}, {pipeline_mode = #tpu.pipeline_mode<synchronous>, transform_indices = @transform_6, window_bounds = array<i64: 6, 1, 32>}, {pipeline_mode = #tpu.pipeline_mode<synchronous>, transform_indices = @transform_7, window_bounds = array<i64: 6, 1, 32>}, {pipeline_mode = #tpu.pipeline_mode<synchronous>, transform_indices = @transform_8, window_bounds = array<i64: 3, 64, 64>}, {pipeline_mode = #tpu.pipeline_mode<synchronous>, transform_indices = @transform_9, window_bounds = array<i64: 3, 1, 64>}, {pipeline_mode = #tpu.pipeline_mode<synchronous>, transform_indices = @transform_10, window_bounds = array<i64: 3, 1, 64>}, {pipeline_mode = #tpu.pipeline_mode<synchronous>, transform_indices = @transform_11, window_bounds = array<i64: 3, 1, 64>}, {pipeline_mode = #tpu.pipeline_mode<synchronous>, transform_indices = @transform_12, window_bounds = array<i64: 3, 64, 256>}, {pipeline_mode = #tpu.pipeline_mode<synchronous>, transform_indices = @transform_13, window_bounds = array<i64: 3, 1, 256>}, {pipeline_mode = #tpu.pipeline_mode<synchronous>, transform_indices = @transform_14, window_bounds = array<i64: 3, 256, 64>}, {pipeline_mode = #tpu.pipeline_mode<synchronous>, transform_indices = @transform_15, window_bounds = array<i64: 3, 1, 64>}, {pipeline_mode = #tpu.pipeline_mode<synchronous>, transform_indices = @transform_16, window_bounds = array<i64: 3, 1, 64>}, {pipeline_mode = #tpu.pipeline_mode<synchronous>, transform_indices = @transform_17, window_bounds = array<i64: 3, 1, 64>}, {pipeline_mode = #tpu.pipeline_mode<synchronous>, transform_indices = @transform_18, window_bounds = array<i64: 1, 64>}, {pipeline_mode = #tpu.pipeline_mode<synchronous>, transform_indices = @transform_19, window_bounds = array<i64: 1, 64>}, {pipeline_mode = #tpu.pipeline_mode<synchronous>, transform_indices = @transform_20, window_bounds = array<i64: 64, 64>}, {pipeline_mode = #tpu.pipeline_mode<synchronous>, transform_indices = @transform_21, window_bounds = array<i64: 64, 64>}, {pipeline_mode = #tpu.pipeline_mode<synchronous>, transform_indices = @transform_22, window_bounds = array<i64: 1, 64>}, {pipeline_mode = #tpu.pipeline_mode<synchronous>, transform_indices = @transform_23, window_bounds = array<i64: 64, 32>}, {pipeline_mode = #tpu.pipeline_mode<synchronous>, transform_indices = @transform_24, window_bounds = array<i64: 1, 32>}, {pipeline_mode = #tpu.pipeline_mode<synchronous>, transform_indices = @transform_25, window_bounds = array<i64: 64, 128>}, {pipeline_mode = #tpu.pipeline_mode<synchronous>, transform_indices = @transform_26, window_bounds = array<i64: 1, 128>}, {transform_indices = @transform_27, window_bounds = array<i64: 2, 32, 128>}]} {
    %c0 = arith.constant 0 : index
    %c0_0 = arith.constant 0 : index
    %c0_1 = arith.constant 0 : index
    %0 = vector.load %arg1[%c0, %c0_0, %c0_1] : memref<2x64x64xf32, #tpu.memory_space<vmem>>, vector<2x64x64xf32>
    %c0_2 = arith.constant 0 : index
    %c0_3 = arith.constant 0 : index
    %1 = vector.load %arg2[%c0_2, %c0_3] : memref<64x64xf32, #tpu.memory_space<vmem>>, vector<64x64xf32>
    %2 = vector.shape_cast %1 : vector<64x64xf32> to vector<1x64x64xf32>
    %3 = vector.broadcast %2 : vector<1x64x64xf32> to vector<2x64x64xf32>
    %4 = arith.addf %0, %3 : vector<2x64x64xf32>
    %5 = vector.shape_cast %4 : vector<2x64x64xf32> to vector<128x64xf32>
    %6 = arith.truncf %5 : vector<128x64xf32> to vector<128x64xbf16>
    %c0_4 = arith.constant 0 : index
    %c0_5 = arith.constant 0 : index
    %c0_6 = arith.constant 0 : index
    %7 = vector.load %arg3[%c0_4, %c0_5, %c0_6] : memref<6x64x32xbf16, #tpu.memory_space<vmem>>, vector<1x64x32xbf16>
    %8 = vector.shape_cast %7 : vector<1x64x32xbf16> to vector<64x32xbf16>
    %cst = arith.constant dense<0.000000e+00> : vector<128x32xf32>
    %9 = tpu.matmul %6, %8, %cst {dimension_numbers = #tpu.dot_dimension_numbers<[1], [0], [0], [1], [0, 0, 1, 1], [], []>} : vector<128x64xbf16>, vector<64x32xbf16>, vector<128x32xf32> -> vector<128x32xf32>
    %c0_7 = arith.constant 0 : index
    %c0_8 = arith.constant 0 : index
    %c0_9 = arith.constant 0 : index
    %10 = vector.load %arg6[%c0_7, %c0_8, %c0_9] : memref<6x1x32xf32, #tpu.memory_space<vmem>>, vector<1x1x32xf32>
    %11 = vector.shape_cast %10 : vector<1x1x32xf32> to vector<1x32xf32>
    %12 = vector.broadcast %11 : vector<1x32xf32> to vector<128x32xf32>
    %13 = arith.addf %9, %12 : vector<128x32xf32>
    %c0_10 = arith.constant 0 : index
    %c0_11 = arith.constant 0 : index
    %c0_12 = arith.constant 0 : index
    %14 = vector.load %arg4[%c0_10, %c0_11, %c0_12] : memref<6x64x32xbf16, #tpu.memory_space<vmem>>, vector<1x64x32xbf16>
    %15 = vector.shape_cast %14 : vector<1x64x32xbf16> to vector<64x32xbf16>
    %cst_13 = arith.constant dense<0.000000e+00> : vector<128x32xf32>
    %16 = tpu.matmul %6, %15, %cst_13 {dimension_numbers = #tpu.dot_dimension_numbers<[1], [0], [0], [1], [0, 0, 1, 1], [], []>} : vector<128x64xbf16>, vector<64x32xbf16>, vector<128x32xf32> -> vector<128x32xf32>
    %c0_14 = arith.constant 0 : index
    %c0_15 = arith.constant 0 : index
    %c0_16 = arith.constant 0 : index
    %17 = vector.load %arg7[%c0_14, %c0_15, %c0_16] : memref<6x1x32xf32, #tpu.memory_space<vmem>>, vector<1x1x32xf32>
    %18 = vector.shape_cast %17 : vector<1x1x32xf32> to vector<1x32xf32>
    %19 = vector.broadcast %18 : vector<1x32xf32> to vector<128x32xf32>
    %20 = arith.addf %16, %19 : vector<128x32xf32>
    %c0_17 = arith.constant 0 : index
    %c0_18 = arith.constant 0 : index
    %c0_19 = arith.constant 0 : index
    %21 = vector.load %arg5[%c0_17, %c0_18, %c0_19] : memref<6x64x32xbf16, #tpu.memory_space<vmem>>, vector<1x64x32xbf16>
    %22 = vector.shape_cast %21 : vector<1x64x32xbf16> to vector<64x32xbf16>
    %cst_20 = arith.constant dense<0.000000e+00> : vector<128x32xf32>
    %23 = tpu.matmul %6, %22, %cst_20 {dimension_numbers = #tpu.dot_dimension_numbers<[1], [0], [0], [1], [0, 0, 1, 1], [], []>} : vector<128x64xbf16>, vector<64x32xbf16>, vector<128x32xf32> -> vector<128x32xf32>
    %c0_21 = arith.constant 0 : index
    %c0_22 = arith.constant 0 : index
    %c0_23 = arith.constant 0 : index
    %24 = vector.load %arg8[%c0_21, %c0_22, %c0_23] : memref<6x1x32xf32, #tpu.memory_space<vmem>>, vector<1x1x32xf32>
    %25 = vector.shape_cast %24 : vector<1x1x32xf32> to vector<1x32xf32>
    %26 = vector.broadcast %25 : vector<1x32xf32> to vector<128x32xf32>
    %27 = arith.addf %23, %26 : vector<128x32xf32>
    %28 = vector.shape_cast %13 : vector<128x32xf32> to vector<2x64x32xf32>
    %29 = arith.truncf %28 : vector<2x64x32xf32> to vector<2x64x32xbf16>
    %30 = vector.shape_cast %20 : vector<128x32xf32> to vector<2x64x32xf32>
    %31 = arith.truncf %30 : vector<2x64x32xf32> to vector<2x64x32xbf16>
    %32 = vector.shape_cast %27 : vector<128x32xf32> to vector<2x64x32xf32>
    %33 = arith.truncf %32 : vector<2x64x32xf32> to vector<2x64x32xbf16>
    %cst_24 = arith.constant dense<0.000000e+00> : vector<2x64x64xf32>
    %34 = tpu.matmul %29, %31, %cst_24 {dimension_numbers = #tpu.dot_dimension_numbers<[2], [2], [1], [1], [0, 0, 0, 1, 1, 1], [0], [0]>} : vector<2x64x32xbf16>, vector<2x64x32xbf16>, vector<2x64x64xf32> -> vector<2x64x64xf32>
    %cst_25 = arith.constant 0.176776692 : f32
    %35 = vector.broadcast %cst_25 : f32 to vector<2x64x64xf32>
    %36 = arith.mulf %34, %35 : vector<2x64x64xf32>
    %cst_26 = arith.constant dense<0xFF800000> : vector<2x64xf32>
    %37 = vector.multi_reduction <maximumf>, %36, %cst_26 [2] : vector<2x64x64xf32> to vector<2x64xf32>
    %38 = vector.shape_cast %37 : vector<2x64xf32> to vector<2x64x1xf32>
    %39 = vector.broadcast %38 : vector<2x64x1xf32> to vector<2x64x64xf32>
    %40 = arith.subf %36, %39 : vector<2x64x64xf32>
    %41 = math.exp %40 : vector<2x64x64xf32>
    %cst_27 = arith.constant dense<0.000000e+00> : vector<2x64xf32>
    %42 = vector.multi_reduction <add>, %41, %cst_27 [2] : vector<2x64x64xf32> to vector<2x64xf32>
    %43 = vector.shape_cast %42 : vector<2x64xf32> to vector<2x64x1xf32>
    %44 = tpu.reciprocal %43 {approx = true} : vector<2x64x1xf32> -> vector<2x64x1xf32>
    %45 = vector.broadcast %44 : vector<2x64x1xf32> to vector<2x64x64xf32>
    %46 = arith.mulf %41, %45 : vector<2x64x64xf32>
    %47 = arith.truncf %46 : vector<2x64x64xf32> to vector<2x64x64xbf16>
    %cst_28 = arith.constant dense<0.000000e+00> : vector<2x64x32xf32>
    %48 = tpu.matmul %47, %33, %cst_28 {dimension_numbers = #tpu.dot_dimension_numbers<[2], [1], [1], [2], [0, 0, 0, 1, 1, 2], [0], [0]>} : vector<2x64x64xbf16>, vector<2x64x32xbf16>, vector<2x64x32xf32> -> vector<2x64x32xf32>
    %49 = vector.shape_cast %48 : vector<2x64x32xf32> to vector<128x32xf32>
    %c1 = arith.constant 1 : index
    %c0_29 = arith.constant 0 : index
    %c0_30 = arith.constant 0 : index
    %50 = vector.load %arg3[%c1, %c0_29, %c0_30] : memref<6x64x32xbf16, #tpu.memory_space<vmem>>, vector<1x64x32xbf16>
    %51 = vector.shape_cast %50 : vector<1x64x32xbf16> to vector<64x32xbf16>
    %cst_31 = arith.constant dense<0.000000e+00> : vector<128x32xf32>
    %52 = tpu.matmul %6, %51, %cst_31 {dimension_numbers = #tpu.dot_dimension_numbers<[1], [0], [0], [1], [0, 0, 1, 1], [], []>} : vector<128x64xbf16>, vector<64x32xbf16>, vector<128x32xf32> -> vector<128x32xf32>
    %c1_32 = arith.constant 1 : index
    %c0_33 = arith.constant 0 : index
    %c0_34 = arith.constant 0 : index
    %53 = vector.load %arg6[%c1_32, %c0_33, %c0_34] : memref<6x1x32xf32, #tpu.memory_space<vmem>>, vector<1x1x32xf32>
    %54 = vector.shape_cast %53 : vector<1x1x32xf32> to vector<1x32xf32>
    %55 = vector.broadcast %54 : vector<1x32xf32> to vector<128x32xf32>
    %56 = arith.addf %52, %55 : vector<128x32xf32>
    %c1_35 = arith.constant 1 : index
    %c0_36 = arith.constant 0 : index
    %c0_37 = arith.constant 0 : index
    %57 = vector.load %arg4[%c1_35, %c0_36, %c0_37] : memref<6x64x32xbf16, #tpu.memory_space<vmem>>, vector<1x64x32xbf16>
    %58 = vector.shape_cast %57 : vector<1x64x32xbf16> to vector<64x32xbf16>
    %cst_38 = arith.constant dense<0.000000e+00> : vector<128x32xf32>
    %59 = tpu.matmul %6, %58, %cst_38 {dimension_numbers = #tpu.dot_dimension_numbers<[1], [0], [0], [1], [0, 0, 1, 1], [], []>} : vector<128x64xbf16>, vector<64x32xbf16>, vector<128x32xf32> -> vector<128x32xf32>
    %c1_39 = arith.constant 1 : index
    %c0_40 = arith.constant 0 : index
    %c0_41 = arith.constant 0 : index
    %60 = vector.load %arg7[%c1_39, %c0_40, %c0_41] : memref<6x1x32xf32, #tpu.memory_space<vmem>>, vector<1x1x32xf32>
    %61 = vector.shape_cast %60 : vector<1x1x32xf32> to vector<1x32xf32>
    %62 = vector.broadcast %61 : vector<1x32xf32> to vector<128x32xf32>
    %63 = arith.addf %59, %62 : vector<128x32xf32>
    %c1_42 = arith.constant 1 : index
    %c0_43 = arith.constant 0 : index
    %c0_44 = arith.constant 0 : index
    %64 = vector.load %arg5[%c1_42, %c0_43, %c0_44] : memref<6x64x32xbf16, #tpu.memory_space<vmem>>, vector<1x64x32xbf16>
    %65 = vector.shape_cast %64 : vector<1x64x32xbf16> to vector<64x32xbf16>
    %cst_45 = arith.constant dense<0.000000e+00> : vector<128x32xf32>
    %66 = tpu.matmul %6, %65, %cst_45 {dimension_numbers = #tpu.dot_dimension_numbers<[1], [0], [0], [1], [0, 0, 1, 1], [], []>} : vector<128x64xbf16>, vector<64x32xbf16>, vector<128x32xf32> -> vector<128x32xf32>
    %c1_46 = arith.constant 1 : index
    %c0_47 = arith.constant 0 : index
    %c0_48 = arith.constant 0 : index
    %67 = vector.load %arg8[%c1_46, %c0_47, %c0_48] : memref<6x1x32xf32, #tpu.memory_space<vmem>>, vector<1x1x32xf32>
    %68 = vector.shape_cast %67 : vector<1x1x32xf32> to vector<1x32xf32>
    %69 = vector.broadcast %68 : vector<1x32xf32> to vector<128x32xf32>
    %70 = arith.addf %66, %69 : vector<128x32xf32>
    %71 = vector.shape_cast %56 : vector<128x32xf32> to vector<2x64x32xf32>
    %72 = arith.truncf %71 : vector<2x64x32xf32> to vector<2x64x32xbf16>
    %73 = vector.shape_cast %63 : vector<128x32xf32> to vector<2x64x32xf32>
    %74 = arith.truncf %73 : vector<2x64x32xf32> to vector<2x64x32xbf16>
    %75 = vector.shape_cast %70 : vector<128x32xf32> to vector<2x64x32xf32>
    %76 = arith.truncf %75 : vector<2x64x32xf32> to vector<2x64x32xbf16>
    %cst_49 = arith.constant dense<0.000000e+00> : vector<2x64x64xf32>
    %77 = tpu.matmul %72, %74, %cst_49 {dimension_numbers = #tpu.dot_dimension_numbers<[2], [2], [1], [1], [0, 0, 0, 1, 1, 1], [0], [0]>} : vector<2x64x32xbf16>, vector<2x64x32xbf16>, vector<2x64x64xf32> -> vector<2x64x64xf32>
    %cst_50 = arith.constant 0.176776692 : f32
    %78 = vector.broadcast %cst_50 : f32 to vector<2x64x64xf32>
    %79 = arith.mulf %77, %78 : vector<2x64x64xf32>
    %cst_51 = arith.constant dense<0xFF800000> : vector<2x64xf32>
    %80 = vector.multi_reduction <maximumf>, %79, %cst_51 [2] : vector<2x64x64xf32> to vector<2x64xf32>
    %81 = vector.shape_cast %80 : vector<2x64xf32> to vector<2x64x1xf32>
    %82 = vector.broadcast %81 : vector<2x64x1xf32> to vector<2x64x64xf32>
    %83 = arith.subf %79, %82 : vector<2x64x64xf32>
    %84 = math.exp %83 : vector<2x64x64xf32>
    %cst_52 = arith.constant dense<0.000000e+00> : vector<2x64xf32>
    %85 = vector.multi_reduction <add>, %84, %cst_52 [2] : vector<2x64x64xf32> to vector<2x64xf32>
    %86 = vector.shape_cast %85 : vector<2x64xf32> to vector<2x64x1xf32>
    %87 = tpu.reciprocal %86 {approx = true} : vector<2x64x1xf32> -> vector<2x64x1xf32>
    %88 = vector.broadcast %87 : vector<2x64x1xf32> to vector<2x64x64xf32>
    %89 = arith.mulf %84, %88 : vector<2x64x64xf32>
    %90 = arith.truncf %89 : vector<2x64x64xf32> to vector<2x64x64xbf16>
    %cst_53 = arith.constant dense<0.000000e+00> : vector<2x64x32xf32>
    %91 = tpu.matmul %90, %76, %cst_53 {dimension_numbers = #tpu.dot_dimension_numbers<[2], [1], [1], [2], [0, 0, 0, 1, 1, 2], [0], [0]>} : vector<2x64x64xbf16>, vector<2x64x32xbf16>, vector<2x64x32xf32> -> vector<2x64x32xf32>
    %92 = vector.shape_cast %91 : vector<2x64x32xf32> to vector<128x32xf32>
    %93 = tpu.concatenate %49, %92 in 1 : vector<128x32xf32>, vector<128x32xf32> -> vector<128x64xf32>
    %94 = arith.truncf %93 : vector<128x64xf32> to vector<128x64xbf16>
    %c0_54 = arith.constant 0 : index
    %c0_55 = arith.constant 0 : index
    %c0_56 = arith.constant 0 : index
    %95 = vector.load %arg9[%c0_54, %c0_55, %c0_56] : memref<3x64x64xbf16, #tpu.memory_space<vmem>>, vector<1x64x64xbf16>
    %96 = vector.shape_cast %95 : vector<1x64x64xbf16> to vector<64x64xbf16>
    %cst_57 = arith.constant dense<0.000000e+00> : vector<128x64xf32>
    %97 = tpu.matmul %94, %96, %cst_57 {dimension_numbers = #tpu.dot_dimension_numbers<[1], [0], [0], [1], [0, 0, 1, 1], [], []>} : vector<128x64xbf16>, vector<64x64xbf16>, vector<128x64xf32> -> vector<128x64xf32>
    %c0_58 = arith.constant 0 : index
    %c0_59 = arith.constant 0 : index
    %c0_60 = arith.constant 0 : index
    %98 = vector.load %arg10[%c0_58, %c0_59, %c0_60] : memref<3x1x64xf32, #tpu.memory_space<vmem>>, vector<1x1x64xf32>
    %99 = vector.shape_cast %98 : vector<1x1x64xf32> to vector<1x64xf32>
    %100 = vector.broadcast %99 : vector<1x64xf32> to vector<128x64xf32>
    %101 = arith.addf %97, %100 : vector<128x64xf32>
    %102 = arith.addf %101, %5 : vector<128x64xf32>
    %c0_61 = arith.constant 0 : index
    %c0_62 = arith.constant 0 : index
    %c0_63 = arith.constant 0 : index
    %103 = vector.load %arg11[%c0_61, %c0_62, %c0_63] : memref<3x1x64xf32, #tpu.memory_space<vmem>>, vector<1x1x64xf32>
    %104 = vector.shape_cast %103 : vector<1x1x64xf32> to vector<1x64xf32>
    %c0_64 = arith.constant 0 : index
    %c0_65 = arith.constant 0 : index
    %c0_66 = arith.constant 0 : index
    %105 = vector.load %arg12[%c0_64, %c0_65, %c0_66] : memref<3x1x64xf32, #tpu.memory_space<vmem>>, vector<1x1x64xf32>
    %106 = vector.shape_cast %105 : vector<1x1x64xf32> to vector<1x64xf32>
    %cst_67 = arith.constant dense<0.000000e+00> : vector<128xf32>
    %107 = vector.multi_reduction <add>, %102, %cst_67 [1] : vector<128x64xf32> to vector<128xf32>
    %108 = vector.shape_cast %107 : vector<128xf32> to vector<128x1xf32>
    %cst_68 = arith.constant 6.400000e+01 : f32
    %109 = vector.broadcast %cst_68 : f32 to vector<128x1xf32>
    %110 = arith.divf %108, %109 : vector<128x1xf32>
    %111 = vector.broadcast %110 : vector<128x1xf32> to vector<128x64xf32>
    %112 = arith.subf %102, %111 : vector<128x64xf32>
    %113 = arith.mulf %112, %112 : vector<128x64xf32>
    %cst_69 = arith.constant dense<0.000000e+00> : vector<128xf32>
    %114 = vector.multi_reduction <add>, %113, %cst_69 [1] : vector<128x64xf32> to vector<128xf32>
    %115 = vector.shape_cast %114 : vector<128xf32> to vector<128x1xf32>
    %cst_70 = arith.constant 6.400000e+01 : f32
    %116 = vector.broadcast %cst_70 : f32 to vector<128x1xf32>
    %117 = arith.divf %115, %116 : vector<128x1xf32>
    %118 = vector.broadcast %110 : vector<128x1xf32> to vector<128x64xf32>
    %119 = arith.subf %102, %118 : vector<128x64xf32>
    %cst_71 = arith.constant 9.99999974E-6 : f32
    %120 = vector.broadcast %cst_71 : f32 to vector<128x1xf32>
    %121 = arith.addf %117, %120 : vector<128x1xf32>
    %122 = math.rsqrt %121 : vector<128x1xf32>
    %123 = vector.broadcast %122 : vector<128x1xf32> to vector<128x64xf32>
    %124 = arith.mulf %119, %123 : vector<128x64xf32>
    %125 = vector.broadcast %104 : vector<1x64xf32> to vector<128x64xf32>
    %126 = arith.mulf %124, %125 : vector<128x64xf32>
    %127 = vector.broadcast %106 : vector<1x64xf32> to vector<128x64xf32>
    %128 = arith.addf %126, %127 : vector<128x64xf32>
    %129 = arith.truncf %128 : vector<128x64xf32> to vector<128x64xbf16>
    %c0_72 = arith.constant 0 : index
    %c0_73 = arith.constant 0 : index
    %c0_74 = arith.constant 0 : index
    %130 = vector.load %arg13[%c0_72, %c0_73, %c0_74] : memref<3x64x256xbf16, #tpu.memory_space<vmem>>, vector<1x64x256xbf16>
    %131 = vector.shape_cast %130 : vector<1x64x256xbf16> to vector<64x256xbf16>
    %cst_75 = arith.constant dense<0.000000e+00> : vector<128x256xf32>
    %132 = tpu.matmul %129, %131, %cst_75 {dimension_numbers = #tpu.dot_dimension_numbers<[1], [0], [0], [1], [0, 0, 1, 1], [], []>} : vector<128x64xbf16>, vector<64x256xbf16>, vector<128x256xf32> -> vector<128x256xf32>
    %c0_76 = arith.constant 0 : index
    %c0_77 = arith.constant 0 : index
    %c0_78 = arith.constant 0 : index
    %133 = vector.load %arg14[%c0_76, %c0_77, %c0_78] : memref<3x1x256xf32, #tpu.memory_space<vmem>>, vector<1x1x256xf32>
    %134 = vector.shape_cast %133 : vector<1x1x256xf32> to vector<1x256xf32>
    %135 = vector.broadcast %134 : vector<1x256xf32> to vector<128x256xf32>
    %136 = arith.addf %132, %135 : vector<128x256xf32>
    %cst_79 = arith.constant 0.000000e+00 : f32
    %137 = vector.broadcast %cst_79 : f32 to vector<128x256xf32>
    %138 = arith.maximumf %136, %137 : vector<128x256xf32>
    %139 = arith.truncf %138 : vector<128x256xf32> to vector<128x256xbf16>
    %c0_80 = arith.constant 0 : index
    %c0_81 = arith.constant 0 : index
    %c0_82 = arith.constant 0 : index
    %140 = vector.load %arg15[%c0_80, %c0_81, %c0_82] : memref<3x256x64xbf16, #tpu.memory_space<vmem>>, vector<1x256x64xbf16>
    %141 = vector.shape_cast %140 : vector<1x256x64xbf16> to vector<256x64xbf16>
    %cst_83 = arith.constant dense<0.000000e+00> : vector<128x64xf32>
    %142 = tpu.matmul %139, %141, %cst_83 {dimension_numbers = #tpu.dot_dimension_numbers<[1], [0], [0], [1], [0, 0, 1, 1], [], []>} : vector<128x256xbf16>, vector<256x64xbf16>, vector<128x64xf32> -> vector<128x64xf32>
    %c0_84 = arith.constant 0 : index
    %c0_85 = arith.constant 0 : index
    %c0_86 = arith.constant 0 : index
    %143 = vector.load %arg16[%c0_84, %c0_85, %c0_86] : memref<3x1x64xf32, #tpu.memory_space<vmem>>, vector<1x1x64xf32>
    %144 = vector.shape_cast %143 : vector<1x1x64xf32> to vector<1x64xf32>
    %145 = vector.broadcast %144 : vector<1x64xf32> to vector<128x64xf32>
    %146 = arith.addf %142, %145 : vector<128x64xf32>
    %147 = arith.addf %146, %128 : vector<128x64xf32>
    %c0_87 = arith.constant 0 : index
    %c0_88 = arith.constant 0 : index
    %c0_89 = arith.constant 0 : index
    %148 = vector.load %arg17[%c0_87, %c0_88, %c0_89] : memref<3x1x64xf32, #tpu.memory_space<vmem>>, vector<1x1x64xf32>
    %149 = vector.shape_cast %148 : vector<1x1x64xf32> to vector<1x64xf32>
    %c0_90 = arith.constant 0 : index
    %c0_91 = arith.constant 0 : index
    %c0_92 = arith.constant 0 : index
    %150 = vector.load %arg18[%c0_90, %c0_91, %c0_92] : memref<3x1x64xf32, #tpu.memory_space<vmem>>, vector<1x1x64xf32>
    %151 = vector.shape_cast %150 : vector<1x1x64xf32> to vector<1x64xf32>
    %cst_93 = arith.constant dense<0.000000e+00> : vector<128xf32>
    %152 = vector.multi_reduction <add>, %147, %cst_93 [1] : vector<128x64xf32> to vector<128xf32>
    %153 = vector.shape_cast %152 : vector<128xf32> to vector<128x1xf32>
    %cst_94 = arith.constant 6.400000e+01 : f32
    %154 = vector.broadcast %cst_94 : f32 to vector<128x1xf32>
    %155 = arith.divf %153, %154 : vector<128x1xf32>
    %156 = vector.broadcast %155 : vector<128x1xf32> to vector<128x64xf32>
    %157 = arith.subf %147, %156 : vector<128x64xf32>
    %158 = arith.mulf %157, %157 : vector<128x64xf32>
    %cst_95 = arith.constant dense<0.000000e+00> : vector<128xf32>
    %159 = vector.multi_reduction <add>, %158, %cst_95 [1] : vector<128x64xf32> to vector<128xf32>
    %160 = vector.shape_cast %159 : vector<128xf32> to vector<128x1xf32>
    %cst_96 = arith.constant 6.400000e+01 : f32
    %161 = vector.broadcast %cst_96 : f32 to vector<128x1xf32>
    %162 = arith.divf %160, %161 : vector<128x1xf32>
    %163 = vector.broadcast %155 : vector<128x1xf32> to vector<128x64xf32>
    %164 = arith.subf %147, %163 : vector<128x64xf32>
    %cst_97 = arith.constant 9.99999974E-6 : f32
    %165 = vector.broadcast %cst_97 : f32 to vector<128x1xf32>
    %166 = arith.addf %162, %165 : vector<128x1xf32>
    %167 = math.rsqrt %166 : vector<128x1xf32>
    %168 = vector.broadcast %167 : vector<128x1xf32> to vector<128x64xf32>
    %169 = arith.mulf %164, %168 : vector<128x64xf32>
    %170 = vector.broadcast %149 : vector<1x64xf32> to vector<128x64xf32>
    %171 = arith.mulf %169, %170 : vector<128x64xf32>
    %172 = vector.broadcast %151 : vector<1x64xf32> to vector<128x64xf32>
    %173 = arith.addf %171, %172 : vector<128x64xf32>
    %174 = arith.truncf %173 : vector<128x64xf32> to vector<128x64xbf16>
    %c2 = arith.constant 2 : index
    %c0_98 = arith.constant 0 : index
    %c0_99 = arith.constant 0 : index
    %175 = vector.load %arg3[%c2, %c0_98, %c0_99] : memref<6x64x32xbf16, #tpu.memory_space<vmem>>, vector<1x64x32xbf16>
    %176 = vector.shape_cast %175 : vector<1x64x32xbf16> to vector<64x32xbf16>
    %cst_100 = arith.constant dense<0.000000e+00> : vector<128x32xf32>
    %177 = tpu.matmul %174, %176, %cst_100 {dimension_numbers = #tpu.dot_dimension_numbers<[1], [0], [0], [1], [0, 0, 1, 1], [], []>} : vector<128x64xbf16>, vector<64x32xbf16>, vector<128x32xf32> -> vector<128x32xf32>
    %c2_101 = arith.constant 2 : index
    %c0_102 = arith.constant 0 : index
    %c0_103 = arith.constant 0 : index
    %178 = vector.load %arg6[%c2_101, %c0_102, %c0_103] : memref<6x1x32xf32, #tpu.memory_space<vmem>>, vector<1x1x32xf32>
    %179 = vector.shape_cast %178 : vector<1x1x32xf32> to vector<1x32xf32>
    %180 = vector.broadcast %179 : vector<1x32xf32> to vector<128x32xf32>
    %181 = arith.addf %177, %180 : vector<128x32xf32>
    %c2_104 = arith.constant 2 : index
    %c0_105 = arith.constant 0 : index
    %c0_106 = arith.constant 0 : index
    %182 = vector.load %arg4[%c2_104, %c0_105, %c0_106] : memref<6x64x32xbf16, #tpu.memory_space<vmem>>, vector<1x64x32xbf16>
    %183 = vector.shape_cast %182 : vector<1x64x32xbf16> to vector<64x32xbf16>
    %cst_107 = arith.constant dense<0.000000e+00> : vector<128x32xf32>
    %184 = tpu.matmul %174, %183, %cst_107 {dimension_numbers = #tpu.dot_dimension_numbers<[1], [0], [0], [1], [0, 0, 1, 1], [], []>} : vector<128x64xbf16>, vector<64x32xbf16>, vector<128x32xf32> -> vector<128x32xf32>
    %c2_108 = arith.constant 2 : index
    %c0_109 = arith.constant 0 : index
    %c0_110 = arith.constant 0 : index
    %185 = vector.load %arg7[%c2_108, %c0_109, %c0_110] : memref<6x1x32xf32, #tpu.memory_space<vmem>>, vector<1x1x32xf32>
    %186 = vector.shape_cast %185 : vector<1x1x32xf32> to vector<1x32xf32>
    %187 = vector.broadcast %186 : vector<1x32xf32> to vector<128x32xf32>
    %188 = arith.addf %184, %187 : vector<128x32xf32>
    %c2_111 = arith.constant 2 : index
    %c0_112 = arith.constant 0 : index
    %c0_113 = arith.constant 0 : index
    %189 = vector.load %arg5[%c2_111, %c0_112, %c0_113] : memref<6x64x32xbf16, #tpu.memory_space<vmem>>, vector<1x64x32xbf16>
    %190 = vector.shape_cast %189 : vector<1x64x32xbf16> to vector<64x32xbf16>
    %cst_114 = arith.constant dense<0.000000e+00> : vector<128x32xf32>
    %191 = tpu.matmul %174, %190, %cst_114 {dimension_numbers = #tpu.dot_dimension_numbers<[1], [0], [0], [1], [0, 0, 1, 1], [], []>} : vector<128x64xbf16>, vector<64x32xbf16>, vector<128x32xf32> -> vector<128x32xf32>
    %c2_115 = arith.constant 2 : index
    %c0_116 = arith.constant 0 : index
    %c0_117 = arith.constant 0 : index
    %192 = vector.load %arg8[%c2_115, %c0_116, %c0_117] : memref<6x1x32xf32, #tpu.memory_space<vmem>>, vector<1x1x32xf32>
    %193 = vector.shape_cast %192 : vector<1x1x32xf32> to vector<1x32xf32>
    %194 = vector.broadcast %193 : vector<1x32xf32> to vector<128x32xf32>
    %195 = arith.addf %191, %194 : vector<128x32xf32>
    %196 = vector.shape_cast %181 : vector<128x32xf32> to vector<2x64x32xf32>
    %197 = arith.truncf %196 : vector<2x64x32xf32> to vector<2x64x32xbf16>
    %198 = vector.shape_cast %188 : vector<128x32xf32> to vector<2x64x32xf32>
    %199 = arith.truncf %198 : vector<2x64x32xf32> to vector<2x64x32xbf16>
    %200 = vector.shape_cast %195 : vector<128x32xf32> to vector<2x64x32xf32>
    %201 = arith.truncf %200 : vector<2x64x32xf32> to vector<2x64x32xbf16>
    %cst_118 = arith.constant dense<0.000000e+00> : vector<2x64x64xf32>
    %202 = tpu.matmul %197, %199, %cst_118 {dimension_numbers = #tpu.dot_dimension_numbers<[2], [2], [1], [1], [0, 0, 0, 1, 1, 1], [0], [0]>} : vector<2x64x32xbf16>, vector<2x64x32xbf16>, vector<2x64x64xf32> -> vector<2x64x64xf32>
    %cst_119 = arith.constant 0.176776692 : f32
    %203 = vector.broadcast %cst_119 : f32 to vector<2x64x64xf32>
    %204 = arith.mulf %202, %203 : vector<2x64x64xf32>
    %cst_120 = arith.constant dense<0xFF800000> : vector<2x64xf32>
    %205 = vector.multi_reduction <maximumf>, %204, %cst_120 [2] : vector<2x64x64xf32> to vector<2x64xf32>
    %206 = vector.shape_cast %205 : vector<2x64xf32> to vector<2x64x1xf32>
    %207 = vector.broadcast %206 : vector<2x64x1xf32> to vector<2x64x64xf32>
    %208 = arith.subf %204, %207 : vector<2x64x64xf32>
    %209 = math.exp %208 : vector<2x64x64xf32>
    %cst_121 = arith.constant dense<0.000000e+00> : vector<2x64xf32>
    %210 = vector.multi_reduction <add>, %209, %cst_121 [2] : vector<2x64x64xf32> to vector<2x64xf32>
    %211 = vector.shape_cast %210 : vector<2x64xf32> to vector<2x64x1xf32>
    %212 = tpu.reciprocal %211 {approx = true} : vector<2x64x1xf32> -> vector<2x64x1xf32>
    %213 = vector.broadcast %212 : vector<2x64x1xf32> to vector<2x64x64xf32>
    %214 = arith.mulf %209, %213 : vector<2x64x64xf32>
    %215 = arith.truncf %214 : vector<2x64x64xf32> to vector<2x64x64xbf16>
    %cst_122 = arith.constant dense<0.000000e+00> : vector<2x64x32xf32>
    %216 = tpu.matmul %215, %201, %cst_122 {dimension_numbers = #tpu.dot_dimension_numbers<[2], [1], [1], [2], [0, 0, 0, 1, 1, 2], [0], [0]>} : vector<2x64x64xbf16>, vector<2x64x32xbf16>, vector<2x64x32xf32> -> vector<2x64x32xf32>
    %217 = vector.shape_cast %216 : vector<2x64x32xf32> to vector<128x32xf32>
    %c3 = arith.constant 3 : index
    %c0_123 = arith.constant 0 : index
    %c0_124 = arith.constant 0 : index
    %218 = vector.load %arg3[%c3, %c0_123, %c0_124] : memref<6x64x32xbf16, #tpu.memory_space<vmem>>, vector<1x64x32xbf16>
    %219 = vector.shape_cast %218 : vector<1x64x32xbf16> to vector<64x32xbf16>
    %cst_125 = arith.constant dense<0.000000e+00> : vector<128x32xf32>
    %220 = tpu.matmul %174, %219, %cst_125 {dimension_numbers = #tpu.dot_dimension_numbers<[1], [0], [0], [1], [0, 0, 1, 1], [], []>} : vector<128x64xbf16>, vector<64x32xbf16>, vector<128x32xf32> -> vector<128x32xf32>
    %c3_126 = arith.constant 3 : index
    %c0_127 = arith.constant 0 : index
    %c0_128 = arith.constant 0 : index
    %221 = vector.load %arg6[%c3_126, %c0_127, %c0_128] : memref<6x1x32xf32, #tpu.memory_space<vmem>>, vector<1x1x32xf32>
    %222 = vector.shape_cast %221 : vector<1x1x32xf32> to vector<1x32xf32>
    %223 = vector.broadcast %222 : vector<1x32xf32> to vector<128x32xf32>
    %224 = arith.addf %220, %223 : vector<128x32xf32>
    %c3_129 = arith.constant 3 : index
    %c0_130 = arith.constant 0 : index
    %c0_131 = arith.constant 0 : index
    %225 = vector.load %arg4[%c3_129, %c0_130, %c0_131] : memref<6x64x32xbf16, #tpu.memory_space<vmem>>, vector<1x64x32xbf16>
    %226 = vector.shape_cast %225 : vector<1x64x32xbf16> to vector<64x32xbf16>
    %cst_132 = arith.constant dense<0.000000e+00> : vector<128x32xf32>
    %227 = tpu.matmul %174, %226, %cst_132 {dimension_numbers = #tpu.dot_dimension_numbers<[1], [0], [0], [1], [0, 0, 1, 1], [], []>} : vector<128x64xbf16>, vector<64x32xbf16>, vector<128x32xf32> -> vector<128x32xf32>
    %c3_133 = arith.constant 3 : index
    %c0_134 = arith.constant 0 : index
    %c0_135 = arith.constant 0 : index
    %228 = vector.load %arg7[%c3_133, %c0_134, %c0_135] : memref<6x1x32xf32, #tpu.memory_space<vmem>>, vector<1x1x32xf32>
    %229 = vector.shape_cast %228 : vector<1x1x32xf32> to vector<1x32xf32>
    %230 = vector.broadcast %229 : vector<1x32xf32> to vector<128x32xf32>
    %231 = arith.addf %227, %230 : vector<128x32xf32>
    %c3_136 = arith.constant 3 : index
    %c0_137 = arith.constant 0 : index
    %c0_138 = arith.constant 0 : index
    %232 = vector.load %arg5[%c3_136, %c0_137, %c0_138] : memref<6x64x32xbf16, #tpu.memory_space<vmem>>, vector<1x64x32xbf16>
    %233 = vector.shape_cast %232 : vector<1x64x32xbf16> to vector<64x32xbf16>
    %cst_139 = arith.constant dense<0.000000e+00> : vector<128x32xf32>
    %234 = tpu.matmul %174, %233, %cst_139 {dimension_numbers = #tpu.dot_dimension_numbers<[1], [0], [0], [1], [0, 0, 1, 1], [], []>} : vector<128x64xbf16>, vector<64x32xbf16>, vector<128x32xf32> -> vector<128x32xf32>
    %c3_140 = arith.constant 3 : index
    %c0_141 = arith.constant 0 : index
    %c0_142 = arith.constant 0 : index
    %235 = vector.load %arg8[%c3_140, %c0_141, %c0_142] : memref<6x1x32xf32, #tpu.memory_space<vmem>>, vector<1x1x32xf32>
    %236 = vector.shape_cast %235 : vector<1x1x32xf32> to vector<1x32xf32>
    %237 = vector.broadcast %236 : vector<1x32xf32> to vector<128x32xf32>
    %238 = arith.addf %234, %237 : vector<128x32xf32>
    %239 = vector.shape_cast %224 : vector<128x32xf32> to vector<2x64x32xf32>
    %240 = arith.truncf %239 : vector<2x64x32xf32> to vector<2x64x32xbf16>
    %241 = vector.shape_cast %231 : vector<128x32xf32> to vector<2x64x32xf32>
    %242 = arith.truncf %241 : vector<2x64x32xf32> to vector<2x64x32xbf16>
    %243 = vector.shape_cast %238 : vector<128x32xf32> to vector<2x64x32xf32>
    %244 = arith.truncf %243 : vector<2x64x32xf32> to vector<2x64x32xbf16>
    %cst_143 = arith.constant dense<0.000000e+00> : vector<2x64x64xf32>
    %245 = tpu.matmul %240, %242, %cst_143 {dimension_numbers = #tpu.dot_dimension_numbers<[2], [2], [1], [1], [0, 0, 0, 1, 1, 1], [0], [0]>} : vector<2x64x32xbf16>, vector<2x64x32xbf16>, vector<2x64x64xf32> -> vector<2x64x64xf32>
    %cst_144 = arith.constant 0.176776692 : f32
    %246 = vector.broadcast %cst_144 : f32 to vector<2x64x64xf32>
    %247 = arith.mulf %245, %246 : vector<2x64x64xf32>
    %cst_145 = arith.constant dense<0xFF800000> : vector<2x64xf32>
    %248 = vector.multi_reduction <maximumf>, %247, %cst_145 [2] : vector<2x64x64xf32> to vector<2x64xf32>
    %249 = vector.shape_cast %248 : vector<2x64xf32> to vector<2x64x1xf32>
    %250 = vector.broadcast %249 : vector<2x64x1xf32> to vector<2x64x64xf32>
    %251 = arith.subf %247, %250 : vector<2x64x64xf32>
    %252 = math.exp %251 : vector<2x64x64xf32>
    %cst_146 = arith.constant dense<0.000000e+00> : vector<2x64xf32>
    %253 = vector.multi_reduction <add>, %252, %cst_146 [2] : vector<2x64x64xf32> to vector<2x64xf32>
    %254 = vector.shape_cast %253 : vector<2x64xf32> to vector<2x64x1xf32>
    %255 = tpu.reciprocal %254 {approx = true} : vector<2x64x1xf32> -> vector<2x64x1xf32>
    %256 = vector.broadcast %255 : vector<2x64x1xf32> to vector<2x64x64xf32>
    %257 = arith.mulf %252, %256 : vector<2x64x64xf32>
    %258 = arith.truncf %257 : vector<2x64x64xf32> to vector<2x64x64xbf16>
    %cst_147 = arith.constant dense<0.000000e+00> : vector<2x64x32xf32>
    %259 = tpu.matmul %258, %244, %cst_147 {dimension_numbers = #tpu.dot_dimension_numbers<[2], [1], [1], [2], [0, 0, 0, 1, 1, 2], [0], [0]>} : vector<2x64x64xbf16>, vector<2x64x32xbf16>, vector<2x64x32xf32> -> vector<2x64x32xf32>
    %260 = vector.shape_cast %259 : vector<2x64x32xf32> to vector<128x32xf32>
    %261 = tpu.concatenate %217, %260 in 1 : vector<128x32xf32>, vector<128x32xf32> -> vector<128x64xf32>
    %262 = arith.truncf %261 : vector<128x64xf32> to vector<128x64xbf16>
    %c1_148 = arith.constant 1 : index
    %c0_149 = arith.constant 0 : index
    %c0_150 = arith.constant 0 : index
    %263 = vector.load %arg9[%c1_148, %c0_149, %c0_150] : memref<3x64x64xbf16, #tpu.memory_space<vmem>>, vector<1x64x64xbf16>
    %264 = vector.shape_cast %263 : vector<1x64x64xbf16> to vector<64x64xbf16>
    %cst_151 = arith.constant dense<0.000000e+00> : vector<128x64xf32>
    %265 = tpu.matmul %262, %264, %cst_151 {dimension_numbers = #tpu.dot_dimension_numbers<[1], [0], [0], [1], [0, 0, 1, 1], [], []>} : vector<128x64xbf16>, vector<64x64xbf16>, vector<128x64xf32> -> vector<128x64xf32>
    %c1_152 = arith.constant 1 : index
    %c0_153 = arith.constant 0 : index
    %c0_154 = arith.constant 0 : index
    %266 = vector.load %arg10[%c1_152, %c0_153, %c0_154] : memref<3x1x64xf32, #tpu.memory_space<vmem>>, vector<1x1x64xf32>
    %267 = vector.shape_cast %266 : vector<1x1x64xf32> to vector<1x64xf32>
    %268 = vector.broadcast %267 : vector<1x64xf32> to vector<128x64xf32>
    %269 = arith.addf %265, %268 : vector<128x64xf32>
    %270 = arith.addf %269, %173 : vector<128x64xf32>
    %c1_155 = arith.constant 1 : index
    %c0_156 = arith.constant 0 : index
    %c0_157 = arith.constant 0 : index
    %271 = vector.load %arg11[%c1_155, %c0_156, %c0_157] : memref<3x1x64xf32, #tpu.memory_space<vmem>>, vector<1x1x64xf32>
    %272 = vector.shape_cast %271 : vector<1x1x64xf32> to vector<1x64xf32>
    %c1_158 = arith.constant 1 : index
    %c0_159 = arith.constant 0 : index
    %c0_160 = arith.constant 0 : index
    %273 = vector.load %arg12[%c1_158, %c0_159, %c0_160] : memref<3x1x64xf32, #tpu.memory_space<vmem>>, vector<1x1x64xf32>
    %274 = vector.shape_cast %273 : vector<1x1x64xf32> to vector<1x64xf32>
    %cst_161 = arith.constant dense<0.000000e+00> : vector<128xf32>
    %275 = vector.multi_reduction <add>, %270, %cst_161 [1] : vector<128x64xf32> to vector<128xf32>
    %276 = vector.shape_cast %275 : vector<128xf32> to vector<128x1xf32>
    %cst_162 = arith.constant 6.400000e+01 : f32
    %277 = vector.broadcast %cst_162 : f32 to vector<128x1xf32>
    %278 = arith.divf %276, %277 : vector<128x1xf32>
    %279 = vector.broadcast %278 : vector<128x1xf32> to vector<128x64xf32>
    %280 = arith.subf %270, %279 : vector<128x64xf32>
    %281 = arith.mulf %280, %280 : vector<128x64xf32>
    %cst_163 = arith.constant dense<0.000000e+00> : vector<128xf32>
    %282 = vector.multi_reduction <add>, %281, %cst_163 [1] : vector<128x64xf32> to vector<128xf32>
    %283 = vector.shape_cast %282 : vector<128xf32> to vector<128x1xf32>
    %cst_164 = arith.constant 6.400000e+01 : f32
    %284 = vector.broadcast %cst_164 : f32 to vector<128x1xf32>
    %285 = arith.divf %283, %284 : vector<128x1xf32>
    %286 = vector.broadcast %278 : vector<128x1xf32> to vector<128x64xf32>
    %287 = arith.subf %270, %286 : vector<128x64xf32>
    %cst_165 = arith.constant 9.99999974E-6 : f32
    %288 = vector.broadcast %cst_165 : f32 to vector<128x1xf32>
    %289 = arith.addf %285, %288 : vector<128x1xf32>
    %290 = math.rsqrt %289 : vector<128x1xf32>
    %291 = vector.broadcast %290 : vector<128x1xf32> to vector<128x64xf32>
    %292 = arith.mulf %287, %291 : vector<128x64xf32>
    %293 = vector.broadcast %272 : vector<1x64xf32> to vector<128x64xf32>
    %294 = arith.mulf %292, %293 : vector<128x64xf32>
    %295 = vector.broadcast %274 : vector<1x64xf32> to vector<128x64xf32>
    %296 = arith.addf %294, %295 : vector<128x64xf32>
    %297 = arith.truncf %296 : vector<128x64xf32> to vector<128x64xbf16>
    %c1_166 = arith.constant 1 : index
    %c0_167 = arith.constant 0 : index
    %c0_168 = arith.constant 0 : index
    %298 = vector.load %arg13[%c1_166, %c0_167, %c0_168] : memref<3x64x256xbf16, #tpu.memory_space<vmem>>, vector<1x64x256xbf16>
    %299 = vector.shape_cast %298 : vector<1x64x256xbf16> to vector<64x256xbf16>
    %cst_169 = arith.constant dense<0.000000e+00> : vector<128x256xf32>
    %300 = tpu.matmul %297, %299, %cst_169 {dimension_numbers = #tpu.dot_dimension_numbers<[1], [0], [0], [1], [0, 0, 1, 1], [], []>} : vector<128x64xbf16>, vector<64x256xbf16>, vector<128x256xf32> -> vector<128x256xf32>
    %c1_170 = arith.constant 1 : index
    %c0_171 = arith.constant 0 : index
    %c0_172 = arith.constant 0 : index
    %301 = vector.load %arg14[%c1_170, %c0_171, %c0_172] : memref<3x1x256xf32, #tpu.memory_space<vmem>>, vector<1x1x256xf32>
    %302 = vector.shape_cast %301 : vector<1x1x256xf32> to vector<1x256xf32>
    %303 = vector.broadcast %302 : vector<1x256xf32> to vector<128x256xf32>
    %304 = arith.addf %300, %303 : vector<128x256xf32>
    %cst_173 = arith.constant 0.000000e+00 : f32
    %305 = vector.broadcast %cst_173 : f32 to vector<128x256xf32>
    %306 = arith.maximumf %304, %305 : vector<128x256xf32>
    %307 = arith.truncf %306 : vector<128x256xf32> to vector<128x256xbf16>
    %c1_174 = arith.constant 1 : index
    %c0_175 = arith.constant 0 : index
    %c0_176 = arith.constant 0 : index
    %308 = vector.load %arg15[%c1_174, %c0_175, %c0_176] : memref<3x256x64xbf16, #tpu.memory_space<vmem>>, vector<1x256x64xbf16>
    %309 = vector.shape_cast %308 : vector<1x256x64xbf16> to vector<256x64xbf16>
    %cst_177 = arith.constant dense<0.000000e+00> : vector<128x64xf32>
    %310 = tpu.matmul %307, %309, %cst_177 {dimension_numbers = #tpu.dot_dimension_numbers<[1], [0], [0], [1], [0, 0, 1, 1], [], []>} : vector<128x256xbf16>, vector<256x64xbf16>, vector<128x64xf32> -> vector<128x64xf32>
    %c1_178 = arith.constant 1 : index
    %c0_179 = arith.constant 0 : index
    %c0_180 = arith.constant 0 : index
    %311 = vector.load %arg16[%c1_178, %c0_179, %c0_180] : memref<3x1x64xf32, #tpu.memory_space<vmem>>, vector<1x1x64xf32>
    %312 = vector.shape_cast %311 : vector<1x1x64xf32> to vector<1x64xf32>
    %313 = vector.broadcast %312 : vector<1x64xf32> to vector<128x64xf32>
    %314 = arith.addf %310, %313 : vector<128x64xf32>
    %315 = arith.addf %314, %296 : vector<128x64xf32>
    %c1_181 = arith.constant 1 : index
    %c0_182 = arith.constant 0 : index
    %c0_183 = arith.constant 0 : index
    %316 = vector.load %arg17[%c1_181, %c0_182, %c0_183] : memref<3x1x64xf32, #tpu.memory_space<vmem>>, vector<1x1x64xf32>
    %317 = vector.shape_cast %316 : vector<1x1x64xf32> to vector<1x64xf32>
    %c1_184 = arith.constant 1 : index
    %c0_185 = arith.constant 0 : index
    %c0_186 = arith.constant 0 : index
    %318 = vector.load %arg18[%c1_184, %c0_185, %c0_186] : memref<3x1x64xf32, #tpu.memory_space<vmem>>, vector<1x1x64xf32>
    %319 = vector.shape_cast %318 : vector<1x1x64xf32> to vector<1x64xf32>
    %cst_187 = arith.constant dense<0.000000e+00> : vector<128xf32>
    %320 = vector.multi_reduction <add>, %315, %cst_187 [1] : vector<128x64xf32> to vector<128xf32>
    %321 = vector.shape_cast %320 : vector<128xf32> to vector<128x1xf32>
    %cst_188 = arith.constant 6.400000e+01 : f32
    %322 = vector.broadcast %cst_188 : f32 to vector<128x1xf32>
    %323 = arith.divf %321, %322 : vector<128x1xf32>
    %324 = vector.broadcast %323 : vector<128x1xf32> to vector<128x64xf32>
    %325 = arith.subf %315, %324 : vector<128x64xf32>
    %326 = arith.mulf %325, %325 : vector<128x64xf32>
    %cst_189 = arith.constant dense<0.000000e+00> : vector<128xf32>
    %327 = vector.multi_reduction <add>, %326, %cst_189 [1] : vector<128x64xf32> to vector<128xf32>
    %328 = vector.shape_cast %327 : vector<128xf32> to vector<128x1xf32>
    %cst_190 = arith.constant 6.400000e+01 : f32
    %329 = vector.broadcast %cst_190 : f32 to vector<128x1xf32>
    %330 = arith.divf %328, %329 : vector<128x1xf32>
    %331 = vector.broadcast %323 : vector<128x1xf32> to vector<128x64xf32>
    %332 = arith.subf %315, %331 : vector<128x64xf32>
    %cst_191 = arith.constant 9.99999974E-6 : f32
    %333 = vector.broadcast %cst_191 : f32 to vector<128x1xf32>
    %334 = arith.addf %330, %333 : vector<128x1xf32>
    %335 = math.rsqrt %334 : vector<128x1xf32>
    %336 = vector.broadcast %335 : vector<128x1xf32> to vector<128x64xf32>
    %337 = arith.mulf %332, %336 : vector<128x64xf32>
    %338 = vector.broadcast %317 : vector<1x64xf32> to vector<128x64xf32>
    %339 = arith.mulf %337, %338 : vector<128x64xf32>
    %340 = vector.broadcast %319 : vector<1x64xf32> to vector<128x64xf32>
    %341 = arith.addf %339, %340 : vector<128x64xf32>
    %342 = arith.truncf %341 : vector<128x64xf32> to vector<128x64xbf16>
    %c4 = arith.constant 4 : index
    %c0_192 = arith.constant 0 : index
    %c0_193 = arith.constant 0 : index
    %343 = vector.load %arg3[%c4, %c0_192, %c0_193] : memref<6x64x32xbf16, #tpu.memory_space<vmem>>, vector<1x64x32xbf16>
    %344 = vector.shape_cast %343 : vector<1x64x32xbf16> to vector<64x32xbf16>
    %cst_194 = arith.constant dense<0.000000e+00> : vector<128x32xf32>
    %345 = tpu.matmul %342, %344, %cst_194 {dimension_numbers = #tpu.dot_dimension_numbers<[1], [0], [0], [1], [0, 0, 1, 1], [], []>} : vector<128x64xbf16>, vector<64x32xbf16>, vector<128x32xf32> -> vector<128x32xf32>
    %c4_195 = arith.constant 4 : index
    %c0_196 = arith.constant 0 : index
    %c0_197 = arith.constant 0 : index
    %346 = vector.load %arg6[%c4_195, %c0_196, %c0_197] : memref<6x1x32xf32, #tpu.memory_space<vmem>>, vector<1x1x32xf32>
    %347 = vector.shape_cast %346 : vector<1x1x32xf32> to vector<1x32xf32>
    %348 = vector.broadcast %347 : vector<1x32xf32> to vector<128x32xf32>
    %349 = arith.addf %345, %348 : vector<128x32xf32>
    %c4_198 = arith.constant 4 : index
    %c0_199 = arith.constant 0 : index
    %c0_200 = arith.constant 0 : index
    %350 = vector.load %arg4[%c4_198, %c0_199, %c0_200] : memref<6x64x32xbf16, #tpu.memory_space<vmem>>, vector<1x64x32xbf16>
    %351 = vector.shape_cast %350 : vector<1x64x32xbf16> to vector<64x32xbf16>
    %cst_201 = arith.constant dense<0.000000e+00> : vector<128x32xf32>
    %352 = tpu.matmul %342, %351, %cst_201 {dimension_numbers = #tpu.dot_dimension_numbers<[1], [0], [0], [1], [0, 0, 1, 1], [], []>} : vector<128x64xbf16>, vector<64x32xbf16>, vector<128x32xf32> -> vector<128x32xf32>
    %c4_202 = arith.constant 4 : index
    %c0_203 = arith.constant 0 : index
    %c0_204 = arith.constant 0 : index
    %353 = vector.load %arg7[%c4_202, %c0_203, %c0_204] : memref<6x1x32xf32, #tpu.memory_space<vmem>>, vector<1x1x32xf32>
    %354 = vector.shape_cast %353 : vector<1x1x32xf32> to vector<1x32xf32>
    %355 = vector.broadcast %354 : vector<1x32xf32> to vector<128x32xf32>
    %356 = arith.addf %352, %355 : vector<128x32xf32>
    %c4_205 = arith.constant 4 : index
    %c0_206 = arith.constant 0 : index
    %c0_207 = arith.constant 0 : index
    %357 = vector.load %arg5[%c4_205, %c0_206, %c0_207] : memref<6x64x32xbf16, #tpu.memory_space<vmem>>, vector<1x64x32xbf16>
    %358 = vector.shape_cast %357 : vector<1x64x32xbf16> to vector<64x32xbf16>
    %cst_208 = arith.constant dense<0.000000e+00> : vector<128x32xf32>
    %359 = tpu.matmul %342, %358, %cst_208 {dimension_numbers = #tpu.dot_dimension_numbers<[1], [0], [0], [1], [0, 0, 1, 1], [], []>} : vector<128x64xbf16>, vector<64x32xbf16>, vector<128x32xf32> -> vector<128x32xf32>
    %c4_209 = arith.constant 4 : index
    %c0_210 = arith.constant 0 : index
    %c0_211 = arith.constant 0 : index
    %360 = vector.load %arg8[%c4_209, %c0_210, %c0_211] : memref<6x1x32xf32, #tpu.memory_space<vmem>>, vector<1x1x32xf32>
    %361 = vector.shape_cast %360 : vector<1x1x32xf32> to vector<1x32xf32>
    %362 = vector.broadcast %361 : vector<1x32xf32> to vector<128x32xf32>
    %363 = arith.addf %359, %362 : vector<128x32xf32>
    %364 = vector.shape_cast %349 : vector<128x32xf32> to vector<2x64x32xf32>
    %365 = arith.truncf %364 : vector<2x64x32xf32> to vector<2x64x32xbf16>
    %366 = vector.shape_cast %356 : vector<128x32xf32> to vector<2x64x32xf32>
    %367 = arith.truncf %366 : vector<2x64x32xf32> to vector<2x64x32xbf16>
    %368 = vector.shape_cast %363 : vector<128x32xf32> to vector<2x64x32xf32>
    %369 = arith.truncf %368 : vector<2x64x32xf32> to vector<2x64x32xbf16>
    %cst_212 = arith.constant dense<0.000000e+00> : vector<2x64x64xf32>
    %370 = tpu.matmul %365, %367, %cst_212 {dimension_numbers = #tpu.dot_dimension_numbers<[2], [2], [1], [1], [0, 0, 0, 1, 1, 1], [0], [0]>} : vector<2x64x32xbf16>, vector<2x64x32xbf16>, vector<2x64x64xf32> -> vector<2x64x64xf32>
    %cst_213 = arith.constant 0.176776692 : f32
    %371 = vector.broadcast %cst_213 : f32 to vector<2x64x64xf32>
    %372 = arith.mulf %370, %371 : vector<2x64x64xf32>
    %cst_214 = arith.constant dense<0xFF800000> : vector<2x64xf32>
    %373 = vector.multi_reduction <maximumf>, %372, %cst_214 [2] : vector<2x64x64xf32> to vector<2x64xf32>
    %374 = vector.shape_cast %373 : vector<2x64xf32> to vector<2x64x1xf32>
    %375 = vector.broadcast %374 : vector<2x64x1xf32> to vector<2x64x64xf32>
    %376 = arith.subf %372, %375 : vector<2x64x64xf32>
    %377 = math.exp %376 : vector<2x64x64xf32>
    %cst_215 = arith.constant dense<0.000000e+00> : vector<2x64xf32>
    %378 = vector.multi_reduction <add>, %377, %cst_215 [2] : vector<2x64x64xf32> to vector<2x64xf32>
    %379 = vector.shape_cast %378 : vector<2x64xf32> to vector<2x64x1xf32>
    %380 = tpu.reciprocal %379 {approx = true} : vector<2x64x1xf32> -> vector<2x64x1xf32>
    %381 = vector.broadcast %380 : vector<2x64x1xf32> to vector<2x64x64xf32>
    %382 = arith.mulf %377, %381 : vector<2x64x64xf32>
    %383 = arith.truncf %382 : vector<2x64x64xf32> to vector<2x64x64xbf16>
    %cst_216 = arith.constant dense<0.000000e+00> : vector<2x64x32xf32>
    %384 = tpu.matmul %383, %369, %cst_216 {dimension_numbers = #tpu.dot_dimension_numbers<[2], [1], [1], [2], [0, 0, 0, 1, 1, 2], [0], [0]>} : vector<2x64x64xbf16>, vector<2x64x32xbf16>, vector<2x64x32xf32> -> vector<2x64x32xf32>
    %385 = vector.shape_cast %384 : vector<2x64x32xf32> to vector<128x32xf32>
    %c5 = arith.constant 5 : index
    %c0_217 = arith.constant 0 : index
    %c0_218 = arith.constant 0 : index
    %386 = vector.load %arg3[%c5, %c0_217, %c0_218] : memref<6x64x32xbf16, #tpu.memory_space<vmem>>, vector<1x64x32xbf16>
    %387 = vector.shape_cast %386 : vector<1x64x32xbf16> to vector<64x32xbf16>
    %cst_219 = arith.constant dense<0.000000e+00> : vector<128x32xf32>
    %388 = tpu.matmul %342, %387, %cst_219 {dimension_numbers = #tpu.dot_dimension_numbers<[1], [0], [0], [1], [0, 0, 1, 1], [], []>} : vector<128x64xbf16>, vector<64x32xbf16>, vector<128x32xf32> -> vector<128x32xf32>
    %c5_220 = arith.constant 5 : index
    %c0_221 = arith.constant 0 : index
    %c0_222 = arith.constant 0 : index
    %389 = vector.load %arg6[%c5_220, %c0_221, %c0_222] : memref<6x1x32xf32, #tpu.memory_space<vmem>>, vector<1x1x32xf32>
    %390 = vector.shape_cast %389 : vector<1x1x32xf32> to vector<1x32xf32>
    %391 = vector.broadcast %390 : vector<1x32xf32> to vector<128x32xf32>
    %392 = arith.addf %388, %391 : vector<128x32xf32>
    %c5_223 = arith.constant 5 : index
    %c0_224 = arith.constant 0 : index
    %c0_225 = arith.constant 0 : index
    %393 = vector.load %arg4[%c5_223, %c0_224, %c0_225] : memref<6x64x32xbf16, #tpu.memory_space<vmem>>, vector<1x64x32xbf16>
    %394 = vector.shape_cast %393 : vector<1x64x32xbf16> to vector<64x32xbf16>
    %cst_226 = arith.constant dense<0.000000e+00> : vector<128x32xf32>
    %395 = tpu.matmul %342, %394, %cst_226 {dimension_numbers = #tpu.dot_dimension_numbers<[1], [0], [0], [1], [0, 0, 1, 1], [], []>} : vector<128x64xbf16>, vector<64x32xbf16>, vector<128x32xf32> -> vector<128x32xf32>
    %c5_227 = arith.constant 5 : index
    %c0_228 = arith.constant 0 : index
    %c0_229 = arith.constant 0 : index
    %396 = vector.load %arg7[%c5_227, %c0_228, %c0_229] : memref<6x1x32xf32, #tpu.memory_space<vmem>>, vector<1x1x32xf32>
    %397 = vector.shape_cast %396 : vector<1x1x32xf32> to vector<1x32xf32>
    %398 = vector.broadcast %397 : vector<1x32xf32> to vector<128x32xf32>
    %399 = arith.addf %395, %398 : vector<128x32xf32>
    %c5_230 = arith.constant 5 : index
    %c0_231 = arith.constant 0 : index
    %c0_232 = arith.constant 0 : index
    %400 = vector.load %arg5[%c5_230, %c0_231, %c0_232] : memref<6x64x32xbf16, #tpu.memory_space<vmem>>, vector<1x64x32xbf16>
    %401 = vector.shape_cast %400 : vector<1x64x32xbf16> to vector<64x32xbf16>
    %cst_233 = arith.constant dense<0.000000e+00> : vector<128x32xf32>
    %402 = tpu.matmul %342, %401, %cst_233 {dimension_numbers = #tpu.dot_dimension_numbers<[1], [0], [0], [1], [0, 0, 1, 1], [], []>} : vector<128x64xbf16>, vector<64x32xbf16>, vector<128x32xf32> -> vector<128x32xf32>
    %c5_234 = arith.constant 5 : index
    %c0_235 = arith.constant 0 : index
    %c0_236 = arith.constant 0 : index
    %403 = vector.load %arg8[%c5_234, %c0_235, %c0_236] : memref<6x1x32xf32, #tpu.memory_space<vmem>>, vector<1x1x32xf32>
    %404 = vector.shape_cast %403 : vector<1x1x32xf32> to vector<1x32xf32>
    %405 = vector.broadcast %404 : vector<1x32xf32> to vector<128x32xf32>
    %406 = arith.addf %402, %405 : vector<128x32xf32>
    %407 = vector.shape_cast %392 : vector<128x32xf32> to vector<2x64x32xf32>
    %408 = arith.truncf %407 : vector<2x64x32xf32> to vector<2x64x32xbf16>
    %409 = vector.shape_cast %399 : vector<128x32xf32> to vector<2x64x32xf32>
    %410 = arith.truncf %409 : vector<2x64x32xf32> to vector<2x64x32xbf16>
    %411 = vector.shape_cast %406 : vector<128x32xf32> to vector<2x64x32xf32>
    %412 = arith.truncf %411 : vector<2x64x32xf32> to vector<2x64x32xbf16>
    %cst_237 = arith.constant dense<0.000000e+00> : vector<2x64x64xf32>
    %413 = tpu.matmul %408, %410, %cst_237 {dimension_numbers = #tpu.dot_dimension_numbers<[2], [2], [1], [1], [0, 0, 0, 1, 1, 1], [0], [0]>} : vector<2x64x32xbf16>, vector<2x64x32xbf16>, vector<2x64x64xf32> -> vector<2x64x64xf32>
    %cst_238 = arith.constant 0.176776692 : f32
    %414 = vector.broadcast %cst_238 : f32 to vector<2x64x64xf32>
    %415 = arith.mulf %413, %414 : vector<2x64x64xf32>
    %cst_239 = arith.constant dense<0xFF800000> : vector<2x64xf32>
    %416 = vector.multi_reduction <maximumf>, %415, %cst_239 [2] : vector<2x64x64xf32> to vector<2x64xf32>
    %417 = vector.shape_cast %416 : vector<2x64xf32> to vector<2x64x1xf32>
    %418 = vector.broadcast %417 : vector<2x64x1xf32> to vector<2x64x64xf32>
    %419 = arith.subf %415, %418 : vector<2x64x64xf32>
    %420 = math.exp %419 : vector<2x64x64xf32>
    %cst_240 = arith.constant dense<0.000000e+00> : vector<2x64xf32>
    %421 = vector.multi_reduction <add>, %420, %cst_240 [2] : vector<2x64x64xf32> to vector<2x64xf32>
    %422 = vector.shape_cast %421 : vector<2x64xf32> to vector<2x64x1xf32>
    %423 = tpu.reciprocal %422 {approx = true} : vector<2x64x1xf32> -> vector<2x64x1xf32>
    %424 = vector.broadcast %423 : vector<2x64x1xf32> to vector<2x64x64xf32>
    %425 = arith.mulf %420, %424 : vector<2x64x64xf32>
    %426 = arith.truncf %425 : vector<2x64x64xf32> to vector<2x64x64xbf16>
    %cst_241 = arith.constant dense<0.000000e+00> : vector<2x64x32xf32>
    %427 = tpu.matmul %426, %412, %cst_241 {dimension_numbers = #tpu.dot_dimension_numbers<[2], [1], [1], [2], [0, 0, 0, 1, 1, 2], [0], [0]>} : vector<2x64x64xbf16>, vector<2x64x32xbf16>, vector<2x64x32xf32> -> vector<2x64x32xf32>
    %428 = vector.shape_cast %427 : vector<2x64x32xf32> to vector<128x32xf32>
    %429 = tpu.concatenate %385, %428 in 1 : vector<128x32xf32>, vector<128x32xf32> -> vector<128x64xf32>
    %430 = arith.truncf %429 : vector<128x64xf32> to vector<128x64xbf16>
    %c2_242 = arith.constant 2 : index
    %c0_243 = arith.constant 0 : index
    %c0_244 = arith.constant 0 : index
    %431 = vector.load %arg9[%c2_242, %c0_243, %c0_244] : memref<3x64x64xbf16, #tpu.memory_space<vmem>>, vector<1x64x64xbf16>
    %432 = vector.shape_cast %431 : vector<1x64x64xbf16> to vector<64x64xbf16>
    %cst_245 = arith.constant dense<0.000000e+00> : vector<128x64xf32>
    %433 = tpu.matmul %430, %432, %cst_245 {dimension_numbers = #tpu.dot_dimension_numbers<[1], [0], [0], [1], [0, 0, 1, 1], [], []>} : vector<128x64xbf16>, vector<64x64xbf16>, vector<128x64xf32> -> vector<128x64xf32>
    %c2_246 = arith.constant 2 : index
    %c0_247 = arith.constant 0 : index
    %c0_248 = arith.constant 0 : index
    %434 = vector.load %arg10[%c2_246, %c0_247, %c0_248] : memref<3x1x64xf32, #tpu.memory_space<vmem>>, vector<1x1x64xf32>
    %435 = vector.shape_cast %434 : vector<1x1x64xf32> to vector<1x64xf32>
    %436 = vector.broadcast %435 : vector<1x64xf32> to vector<128x64xf32>
    %437 = arith.addf %433, %436 : vector<128x64xf32>
    %438 = arith.addf %437, %341 : vector<128x64xf32>
    %c2_249 = arith.constant 2 : index
    %c0_250 = arith.constant 0 : index
    %c0_251 = arith.constant 0 : index
    %439 = vector.load %arg11[%c2_249, %c0_250, %c0_251] : memref<3x1x64xf32, #tpu.memory_space<vmem>>, vector<1x1x64xf32>
    %440 = vector.shape_cast %439 : vector<1x1x64xf32> to vector<1x64xf32>
    %c2_252 = arith.constant 2 : index
    %c0_253 = arith.constant 0 : index
    %c0_254 = arith.constant 0 : index
    %441 = vector.load %arg12[%c2_252, %c0_253, %c0_254] : memref<3x1x64xf32, #tpu.memory_space<vmem>>, vector<1x1x64xf32>
    %442 = vector.shape_cast %441 : vector<1x1x64xf32> to vector<1x64xf32>
    %cst_255 = arith.constant dense<0.000000e+00> : vector<128xf32>
    %443 = vector.multi_reduction <add>, %438, %cst_255 [1] : vector<128x64xf32> to vector<128xf32>
    %444 = vector.shape_cast %443 : vector<128xf32> to vector<128x1xf32>
    %cst_256 = arith.constant 6.400000e+01 : f32
    %445 = vector.broadcast %cst_256 : f32 to vector<128x1xf32>
    %446 = arith.divf %444, %445 : vector<128x1xf32>
    %447 = vector.broadcast %446 : vector<128x1xf32> to vector<128x64xf32>
    %448 = arith.subf %438, %447 : vector<128x64xf32>
    %449 = arith.mulf %448, %448 : vector<128x64xf32>
    %cst_257 = arith.constant dense<0.000000e+00> : vector<128xf32>
    %450 = vector.multi_reduction <add>, %449, %cst_257 [1] : vector<128x64xf32> to vector<128xf32>
    %451 = vector.shape_cast %450 : vector<128xf32> to vector<128x1xf32>
    %cst_258 = arith.constant 6.400000e+01 : f32
    %452 = vector.broadcast %cst_258 : f32 to vector<128x1xf32>
    %453 = arith.divf %451, %452 : vector<128x1xf32>
    %454 = vector.broadcast %446 : vector<128x1xf32> to vector<128x64xf32>
    %455 = arith.subf %438, %454 : vector<128x64xf32>
    %cst_259 = arith.constant 9.99999974E-6 : f32
    %456 = vector.broadcast %cst_259 : f32 to vector<128x1xf32>
    %457 = arith.addf %453, %456 : vector<128x1xf32>
    %458 = math.rsqrt %457 : vector<128x1xf32>
    %459 = vector.broadcast %458 : vector<128x1xf32> to vector<128x64xf32>
    %460 = arith.mulf %455, %459 : vector<128x64xf32>
    %461 = vector.broadcast %440 : vector<1x64xf32> to vector<128x64xf32>
    %462 = arith.mulf %460, %461 : vector<128x64xf32>
    %463 = vector.broadcast %442 : vector<1x64xf32> to vector<128x64xf32>
    %464 = arith.addf %462, %463 : vector<128x64xf32>
    %465 = arith.truncf %464 : vector<128x64xf32> to vector<128x64xbf16>
    %c2_260 = arith.constant 2 : index
    %c0_261 = arith.constant 0 : index
    %c0_262 = arith.constant 0 : index
    %466 = vector.load %arg13[%c2_260, %c0_261, %c0_262] : memref<3x64x256xbf16, #tpu.memory_space<vmem>>, vector<1x64x256xbf16>
    %467 = vector.shape_cast %466 : vector<1x64x256xbf16> to vector<64x256xbf16>
    %cst_263 = arith.constant dense<0.000000e+00> : vector<128x256xf32>
    %468 = tpu.matmul %465, %467, %cst_263 {dimension_numbers = #tpu.dot_dimension_numbers<[1], [0], [0], [1], [0, 0, 1, 1], [], []>} : vector<128x64xbf16>, vector<64x256xbf16>, vector<128x256xf32> -> vector<128x256xf32>
    %c2_264 = arith.constant 2 : index
    %c0_265 = arith.constant 0 : index
    %c0_266 = arith.constant 0 : index
    %469 = vector.load %arg14[%c2_264, %c0_265, %c0_266] : memref<3x1x256xf32, #tpu.memory_space<vmem>>, vector<1x1x256xf32>
    %470 = vector.shape_cast %469 : vector<1x1x256xf32> to vector<1x256xf32>
    %471 = vector.broadcast %470 : vector<1x256xf32> to vector<128x256xf32>
    %472 = arith.addf %468, %471 : vector<128x256xf32>
    %cst_267 = arith.constant 0.000000e+00 : f32
    %473 = vector.broadcast %cst_267 : f32 to vector<128x256xf32>
    %474 = arith.maximumf %472, %473 : vector<128x256xf32>
    %475 = arith.truncf %474 : vector<128x256xf32> to vector<128x256xbf16>
    %c2_268 = arith.constant 2 : index
    %c0_269 = arith.constant 0 : index
    %c0_270 = arith.constant 0 : index
    %476 = vector.load %arg15[%c2_268, %c0_269, %c0_270] : memref<3x256x64xbf16, #tpu.memory_space<vmem>>, vector<1x256x64xbf16>
    %477 = vector.shape_cast %476 : vector<1x256x64xbf16> to vector<256x64xbf16>
    %cst_271 = arith.constant dense<0.000000e+00> : vector<128x64xf32>
    %478 = tpu.matmul %475, %477, %cst_271 {dimension_numbers = #tpu.dot_dimension_numbers<[1], [0], [0], [1], [0, 0, 1, 1], [], []>} : vector<128x256xbf16>, vector<256x64xbf16>, vector<128x64xf32> -> vector<128x64xf32>
    %c2_272 = arith.constant 2 : index
    %c0_273 = arith.constant 0 : index
    %c0_274 = arith.constant 0 : index
    %479 = vector.load %arg16[%c2_272, %c0_273, %c0_274] : memref<3x1x64xf32, #tpu.memory_space<vmem>>, vector<1x1x64xf32>
    %480 = vector.shape_cast %479 : vector<1x1x64xf32> to vector<1x64xf32>
    %481 = vector.broadcast %480 : vector<1x64xf32> to vector<128x64xf32>
    %482 = arith.addf %478, %481 : vector<128x64xf32>
    %483 = arith.addf %482, %464 : vector<128x64xf32>
    %c2_275 = arith.constant 2 : index
    %c0_276 = arith.constant 0 : index
    %c0_277 = arith.constant 0 : index
    %484 = vector.load %arg17[%c2_275, %c0_276, %c0_277] : memref<3x1x64xf32, #tpu.memory_space<vmem>>, vector<1x1x64xf32>
    %485 = vector.shape_cast %484 : vector<1x1x64xf32> to vector<1x64xf32>
    %c2_278 = arith.constant 2 : index
    %c0_279 = arith.constant 0 : index
    %c0_280 = arith.constant 0 : index
    %486 = vector.load %arg18[%c2_278, %c0_279, %c0_280] : memref<3x1x64xf32, #tpu.memory_space<vmem>>, vector<1x1x64xf32>
    %487 = vector.shape_cast %486 : vector<1x1x64xf32> to vector<1x64xf32>
    %cst_281 = arith.constant dense<0.000000e+00> : vector<128xf32>
    %488 = vector.multi_reduction <add>, %483, %cst_281 [1] : vector<128x64xf32> to vector<128xf32>
    %489 = vector.shape_cast %488 : vector<128xf32> to vector<128x1xf32>
    %cst_282 = arith.constant 6.400000e+01 : f32
    %490 = vector.broadcast %cst_282 : f32 to vector<128x1xf32>
    %491 = arith.divf %489, %490 : vector<128x1xf32>
    %492 = vector.broadcast %491 : vector<128x1xf32> to vector<128x64xf32>
    %493 = arith.subf %483, %492 : vector<128x64xf32>
    %494 = arith.mulf %493, %493 : vector<128x64xf32>
    %cst_283 = arith.constant dense<0.000000e+00> : vector<128xf32>
    %495 = vector.multi_reduction <add>, %494, %cst_283 [1] : vector<128x64xf32> to vector<128xf32>
    %496 = vector.shape_cast %495 : vector<128xf32> to vector<128x1xf32>
    %cst_284 = arith.constant 6.400000e+01 : f32
    %497 = vector.broadcast %cst_284 : f32 to vector<128x1xf32>
    %498 = arith.divf %496, %497 : vector<128x1xf32>
    %499 = vector.broadcast %491 : vector<128x1xf32> to vector<128x64xf32>
    %500 = arith.subf %483, %499 : vector<128x64xf32>
    %cst_285 = arith.constant 9.99999974E-6 : f32
    %501 = vector.broadcast %cst_285 : f32 to vector<128x1xf32>
    %502 = arith.addf %498, %501 : vector<128x1xf32>
    %503 = math.rsqrt %502 : vector<128x1xf32>
    %504 = vector.broadcast %503 : vector<128x1xf32> to vector<128x64xf32>
    %505 = arith.mulf %500, %504 : vector<128x64xf32>
    %506 = vector.broadcast %485 : vector<1x64xf32> to vector<128x64xf32>
    %507 = arith.mulf %505, %506 : vector<128x64xf32>
    %508 = vector.broadcast %487 : vector<1x64xf32> to vector<128x64xf32>
    %509 = arith.addf %507, %508 : vector<128x64xf32>
    %c0_286 = arith.constant 0 : index
    %c0_287 = arith.constant 0 : index
    %510 = vector.load %arg19[%c0_286, %c0_287] : memref<1x64xf32, #tpu.memory_space<vmem>>, vector<1x64xf32>
    %c0_288 = arith.constant 0 : index
    %c0_289 = arith.constant 0 : index
    %511 = vector.load %arg20[%c0_288, %c0_289] : memref<1x64xf32, #tpu.memory_space<vmem>>, vector<1x64xf32>
    %cst_290 = arith.constant dense<0.000000e+00> : vector<128xf32>
    %512 = vector.multi_reduction <add>, %509, %cst_290 [1] : vector<128x64xf32> to vector<128xf32>
    %513 = vector.shape_cast %512 : vector<128xf32> to vector<128x1xf32>
    %cst_291 = arith.constant 6.400000e+01 : f32
    %514 = vector.broadcast %cst_291 : f32 to vector<128x1xf32>
    %515 = arith.divf %513, %514 : vector<128x1xf32>
    %516 = vector.broadcast %515 : vector<128x1xf32> to vector<128x64xf32>
    %517 = arith.subf %509, %516 : vector<128x64xf32>
    %518 = arith.mulf %517, %517 : vector<128x64xf32>
    %cst_292 = arith.constant dense<0.000000e+00> : vector<128xf32>
    %519 = vector.multi_reduction <add>, %518, %cst_292 [1] : vector<128x64xf32> to vector<128xf32>
    %520 = vector.shape_cast %519 : vector<128xf32> to vector<128x1xf32>
    %cst_293 = arith.constant 6.400000e+01 : f32
    %521 = vector.broadcast %cst_293 : f32 to vector<128x1xf32>
    %522 = arith.divf %520, %521 : vector<128x1xf32>
    %523 = vector.broadcast %515 : vector<128x1xf32> to vector<128x64xf32>
    %524 = arith.subf %509, %523 : vector<128x64xf32>
    %cst_294 = arith.constant 9.99999997E-7 : f32
    %525 = vector.broadcast %cst_294 : f32 to vector<128x1xf32>
    %526 = arith.addf %522, %525 : vector<128x1xf32>
    %527 = math.rsqrt %526 : vector<128x1xf32>
    %528 = vector.broadcast %527 : vector<128x1xf32> to vector<128x64xf32>
    %529 = arith.mulf %524, %528 : vector<128x64xf32>
    %530 = vector.broadcast %510 : vector<1x64xf32> to vector<128x64xf32>
    %531 = arith.mulf %529, %530 : vector<128x64xf32>
    %532 = vector.broadcast %511 : vector<1x64xf32> to vector<128x64xf32>
    %533 = arith.addf %531, %532 : vector<128x64xf32>
    %534 = arith.truncf %533 : vector<128x64xf32> to vector<128x64xbf16>
    %c0_295 = arith.constant 0 : index
    %c0_296 = arith.constant 0 : index
    %535 = vector.load %arg22[%c0_295, %c0_296] : memref<64x64xbf16, #tpu.memory_space<vmem>>, vector<64x64xbf16>
    %cst_297 = arith.constant dense<0.000000e+00> : vector<128x64xf32>
    %536 = tpu.matmul %534, %535, %cst_297 {dimension_numbers = #tpu.dot_dimension_numbers<[1], [0], [0], [1], [0, 0, 1, 1], [], []>} : vector<128x64xbf16>, vector<64x64xbf16>, vector<128x64xf32> -> vector<128x64xf32>
    %c0_298 = arith.constant 0 : index
    %c0_299 = arith.constant 0 : index
    %537 = vector.load %arg23[%c0_298, %c0_299] : memref<1x64xf32, #tpu.memory_space<vmem>>, vector<1x64xf32>
    %538 = vector.broadcast %537 : vector<1x64xf32> to vector<128x64xf32>
    %539 = arith.addf %536, %538 : vector<128x64xf32>
    %540 = vector.shape_cast %539 : vector<128x64xf32> to vector<2x64x64xf32>
    %c0_300 = arith.constant 0 : index
    %c0_301 = arith.constant 0 : index
    %541 = vector.load %arg21[%c0_300, %c0_301] : memref<64x64xf32, #tpu.memory_space<vmem>>, vector<64x64xf32>
    %542 = vector.shape_cast %541 : vector<64x64xf32> to vector<1x64x64xf32>
    %543 = vector.broadcast %542 : vector<1x64x64xf32> to vector<2x64x64xf32>
    %544 = arith.addf %540, %543 : vector<2x64x64xf32>
    %545 = math.tanh %544 : vector<2x64x64xf32>
    %546 = vector.shape_cast %545 : vector<2x64x64xf32> to vector<128x64xf32>
    %547 = arith.truncf %546 : vector<128x64xf32> to vector<128x64xbf16>
    %c0_302 = arith.constant 0 : index
    %c0_303 = arith.constant 0 : index
    %548 = vector.load %arg24[%c0_302, %c0_303] : memref<64x32xbf16, #tpu.memory_space<vmem>>, vector<64x32xbf16>
    %cst_304 = arith.constant dense<0.000000e+00> : vector<128x32xf32>
    %549 = tpu.matmul %547, %548, %cst_304 {dimension_numbers = #tpu.dot_dimension_numbers<[1], [0], [0], [1], [0, 0, 1, 1], [], []>} : vector<128x64xbf16>, vector<64x32xbf16>, vector<128x32xf32> -> vector<128x32xf32>
    %c0_305 = arith.constant 0 : index
    %c0_306 = arith.constant 0 : index
    %550 = vector.load %arg25[%c0_305, %c0_306] : memref<1x32xf32, #tpu.memory_space<vmem>>, vector<1x32xf32>
    %551 = vector.broadcast %550 : vector<1x32xf32> to vector<128x32xf32>
    %552 = arith.addf %549, %551 : vector<128x32xf32>
    %553 = vector.shape_cast %552 : vector<128x32xf32> to vector<2x64x32xf32>
    %cst_307 = arith.constant dense<0xFF800000> : vector<2x32xf32>
    %554 = vector.multi_reduction <maximumf>, %553, %cst_307 [1] : vector<2x64x32xf32> to vector<2x32xf32>
    %555 = vector.shape_cast %554 : vector<2x32xf32> to vector<2x1x32xf32>
    %556 = vector.broadcast %555 : vector<2x1x32xf32> to vector<2x64x32xf32>
    %557 = arith.subf %553, %556 : vector<2x64x32xf32>
    %558 = math.exp %557 : vector<2x64x32xf32>
    %cst_308 = arith.constant dense<0.000000e+00> : vector<2x32xf32>
    %559 = vector.multi_reduction <add>, %558, %cst_308 [1] : vector<2x64x32xf32> to vector<2x32xf32>
    %560 = vector.shape_cast %559 : vector<2x32xf32> to vector<2x1x32xf32>
    %561 = vector.broadcast %560 : vector<2x1x32xf32> to vector<2x64x32xf32>
    %562 = arith.divf %558, %561 : vector<2x64x32xf32>
    %563 = arith.truncf %562 : vector<2x64x32xf32> to vector<2x64x32xbf16>
    %564 = vector.shape_cast %534 : vector<128x64xbf16> to vector<2x64x64xbf16>
    %cst_309 = arith.constant dense<0.000000e+00> : vector<2x32x64xf32>
    %565 = tpu.matmul %563, %564, %cst_309 {dimension_numbers = #tpu.dot_dimension_numbers<[1], [1], [2], [2], [0, 0, 0, 2, 1, 2], [0], [0]>} : vector<2x64x32xbf16>, vector<2x64x64xbf16>, vector<2x32x64xf32> -> vector<2x32x64xf32>
    %566 = vector.shape_cast %565 : vector<2x32x64xf32> to vector<64x64xf32>
    %567 = arith.truncf %566 : vector<64x64xf32> to vector<64x64xbf16>
    %c0_310 = arith.constant 0 : index
    %c0_311 = arith.constant 0 : index
    %568 = vector.load %arg26[%c0_310, %c0_311] : memref<64x128xbf16, #tpu.memory_space<vmem>>, vector<64x128xbf16>
    %cst_312 = arith.constant dense<0.000000e+00> : vector<64x128xf32>
    %569 = tpu.matmul %567, %568, %cst_312 {dimension_numbers = #tpu.dot_dimension_numbers<[1], [0], [0], [1], [0, 0, 1, 1], [], []>} : vector<64x64xbf16>, vector<64x128xbf16>, vector<64x128xf32> -> vector<64x128xf32>
    %c0_313 = arith.constant 0 : index
    %c0_314 = arith.constant 0 : index
    %570 = vector.load %arg27[%c0_313, %c0_314] : memref<1x128xf32, #tpu.memory_space<vmem>>, vector<1x128xf32>
    %571 = vector.broadcast %570 : vector<1x128xf32> to vector<64x128xf32>
    %572 = arith.addf %569, %571 : vector<64x128xf32>
    %573 = vector.shape_cast %572 : vector<64x128xf32> to vector<2x32x128xf32>
    %c0_315 = arith.constant 0 : index
    %c0_316 = arith.constant 0 : index
    %c0_317 = arith.constant 0 : index
    %574 = vector.load %arg28[%c0_315, %c0_316, %c0_317] : memref<2x32x128xf32, #tpu.memory_space<vmem>>, vector<2x32x128xf32>
    tpu.vector_store %arg28[%c0_315, %c0_316, %c0_317], %573 {strides = array<i32>} : memref<2x32x128xf32, #tpu.memory_space<vmem>>, vector<2x32x128xf32>,
    return
  }
  func.func @transform_0(%arg0: i32) -> (i32, i32, i32) {
    %c0_i32 = arith.constant 0 : i32
    %c0_i32_0 = arith.constant 0 : i32
    %c0_i32_1 = arith.constant 0 : i32
    return %arg0, %c0_i32, %c0_i32_0 : i32, i32, i32
  }
  func.func @transform_1(%arg0: i32) -> (i32, i32) {
    %c0_i32 = arith.constant 0 : i32
    %c0_i32_0 = arith.constant 0 : i32
    %c0_i32_1 = arith.constant 0 : i32
    return %c0_i32, %c0_i32_0 : i32, i32
  }
  func.func @transform_2(%arg0: i32) -> (i32, i32, i32) {
    %c0_i32 = arith.constant 0 : i32
    %c0_i32_0 = arith.constant 0 : i32
    %c0_i32_1 = arith.constant 0 : i32
    %c0_i32_2 = arith.constant 0 : i32
    return %c0_i32, %c0_i32_0, %c0_i32_1 : i32, i32, i32
  }
  func.func @transform_3(%arg0: i32) -> (i32, i32, i32) {
    %c0_i32 = arith.constant 0 : i32
    %c0_i32_0 = arith.constant 0 : i32
    %c0_i32_1 = arith.constant 0 : i32
    %c0_i32_2 = arith.constant 0 : i32
    return %c0_i32, %c0_i32_0, %c0_i32_1 : i32, i32, i32
  }
  func.func @transform_4(%arg0: i32) -> (i32, i32, i32) {
    %c0_i32 = arith.constant 0 : i32
    %c0_i32_0 = arith.constant 0 : i32
    %c0_i32_1 = arith.constant 0 : i32
    %c0_i32_2 = arith.constant 0 : i32
    return %c0_i32, %c0_i32_0, %c0_i32_1 : i32, i32, i32
  }
  func.func @transform_5(%arg0: i32) -> (i32, i32, i32) {
    %c0_i32 = arith.constant 0 : i32
    %c0_i32_0 = arith.constant 0 : i32
    %c0_i32_1 = arith.constant 0 : i32
    %c0_i32_2 = arith.constant 0 : i32
    return %c0_i32, %c0_i32_0, %c0_i32_1 : i32, i32, i32
  }
  func.func @transform_6(%arg0: i32) -> (i32, i32, i32) {
    %c0_i32 = arith.constant 0 : i32
    %c0_i32_0 = arith.constant 0 : i32
    %c0_i32_1 = arith.constant 0 : i32
    %c0_i32_2 = arith.constant 0 : i32
    return %c0_i32, %c0_i32_0, %c0_i32_1 : i32, i32, i32
  }
  func.func @transform_7(%arg0: i32) -> (i32, i32, i32) {
    %c0_i32 = arith.constant 0 : i32
    %c0_i32_0 = arith.constant 0 : i32
    %c0_i32_1 = arith.constant 0 : i32
    %c0_i32_2 = arith.constant 0 : i32
    return %c0_i32, %c0_i32_0, %c0_i32_1 : i32, i32, i32
  }
  func.func @transform_8(%arg0: i32) -> (i32, i32, i32) {
    %c0_i32 = arith.constant 0 : i32
    %c0_i32_0 = arith.constant 0 : i32
    %c0_i32_1 = arith.constant 0 : i32
    %c0_i32_2 = arith.constant 0 : i32
    return %c0_i32, %c0_i32_0, %c0_i32_1 : i32, i32, i32
  }
  func.func @transform_9(%arg0: i32) -> (i32, i32, i32) {
    %c0_i32 = arith.constant 0 : i32
    %c0_i32_0 = arith.constant 0 : i32
    %c0_i32_1 = arith.constant 0 : i32
    %c0_i32_2 = arith.constant 0 : i32
    return %c0_i32, %c0_i32_0, %c0_i32_1 : i32, i32, i32
  }
  func.func @transform_10(%arg0: i32) -> (i32, i32, i32) {
    %c0_i32 = arith.constant 0 : i32
    %c0_i32_0 = arith.constant 0 : i32
    %c0_i32_1 = arith.constant 0 : i32
    %c0_i32_2 = arith.constant 0 : i32
    return %c0_i32, %c0_i32_0, %c0_i32_1 : i32, i32, i32
  }
  func.func @transform_11(%arg0: i32) -> (i32, i32, i32) {
    %c0_i32 = arith.constant 0 : i32
    %c0_i32_0 = arith.constant 0 : i32
    %c0_i32_1 = arith.constant 0 : i32
    %c0_i32_2 = arith.constant 0 : i32
    return %c0_i32, %c0_i32_0, %c0_i32_1 : i32, i32, i32
  }
  func.func @transform_12(%arg0: i32) -> (i32, i32, i32) {
    %c0_i32 = arith.constant 0 : i32
    %c0_i32_0 = arith.constant 0 : i32
    %c0_i32_1 = arith.constant 0 : i32
    %c0_i32_2 = arith.constant 0 : i32
    return %c0_i32, %c0_i32_0, %c0_i32_1 : i32, i32, i32
  }
  func.func @transform_13(%arg0: i32) -> (i32, i32, i32) {
    %c0_i32 = arith.constant 0 : i32
    %c0_i32_0 = arith.constant 0 : i32
    %c0_i32_1 = arith.constant 0 : i32
    %c0_i32_2 = arith.constant 0 : i32
    return %c0_i32, %c0_i32_0, %c0_i32_1 : i32, i32, i32
  }
  func.func @transform_14(%arg0: i32) -> (i32, i32, i32) {
    %c0_i32 = arith.constant 0 : i32
    %c0_i32_0 = arith.constant 0 : i32
    %c0_i32_1 = arith.constant 0 : i32
    %c0_i32_2 = arith.constant 0 : i32
    return %c0_i32, %c0_i32_0, %c0_i32_1 : i32, i32, i32
  }
  func.func @transform_15(%arg0: i32) -> (i32, i32, i32) {
    %c0_i32 = arith.constant 0 : i32
    %c0_i32_0 = arith.constant 0 : i32
    %c0_i32_1 = arith.constant 0 : i32
    %c0_i32_2 = arith.constant 0 : i32
    return %c0_i32, %c0_i32_0, %c0_i32_1 : i32, i32, i32
  }
  func.func @transform_16(%arg0: i32) -> (i32, i32, i32) {
    %c0_i32 = arith.constant 0 : i32
    %c0_i32_0 = arith.constant 0 : i32
    %c0_i32_1 = arith.constant 0 : i32
    %c0_i32_2 = arith.constant 0 : i32
    return %c0_i32, %c0_i32_0, %c0_i32_1 : i32, i32, i32
  }
  func.func @transform_17(%arg0: i32) -> (i32, i32, i32) {
    %c0_i32 = arith.constant 0 : i32
    %c0_i32_0 = arith.constant 0 : i32
    %c0_i32_1 = arith.constant 0 : i32
    %c0_i32_2 = arith.constant 0 : i32
    return %c0_i32, %c0_i32_0, %c0_i32_1 : i32, i32, i32
  }
  func.func @transform_18(%arg0: i32) -> (i32, i32) {
    %c0_i32 = arith.constant 0 : i32
    %c0_i32_0 = arith.constant 0 : i32
    %c0_i32_1 = arith.constant 0 : i32
    return %c0_i32, %c0_i32_0 : i32, i32
  }
  func.func @transform_19(%arg0: i32) -> (i32, i32) {
    %c0_i32 = arith.constant 0 : i32
    %c0_i32_0 = arith.constant 0 : i32
    %c0_i32_1 = arith.constant 0 : i32
    return %c0_i32, %c0_i32_0 : i32, i32
  }
  func.func @transform_20(%arg0: i32) -> (i32, i32) {
    %c0_i32 = arith.constant 0 : i32
    %c0_i32_0 = arith.constant 0 : i32
    %c0_i32_1 = arith.constant 0 : i32
    return %c0_i32, %c0_i32_0 : i32, i32
  }
  func.func @transform_21(%arg0: i32) -> (i32, i32) {
    %c0_i32 = arith.constant 0 : i32
    %c0_i32_0 = arith.constant 0 : i32
    %c0_i32_1 = arith.constant 0 : i32
    return %c0_i32, %c0_i32_0 : i32, i32
  }
  func.func @transform_22(%arg0: i32) -> (i32, i32) {
    %c0_i32 = arith.constant 0 : i32
    %c0_i32_0 = arith.constant 0 : i32
    %c0_i32_1 = arith.constant 0 : i32
    return %c0_i32, %c0_i32_0 : i32, i32
  }
  func.func @transform_23(%arg0: i32) -> (i32, i32) {
    %c0_i32 = arith.constant 0 : i32
    %c0_i32_0 = arith.constant 0 : i32
    %c0_i32_1 = arith.constant 0 : i32
    return %c0_i32, %c0_i32_0 : i32, i32
  }
  func.func @transform_24(%arg0: i32) -> (i32, i32) {
    %c0_i32 = arith.constant 0 : i32
    %c0_i32_0 = arith.constant 0 : i32
    %c0_i32_1 = arith.constant 0 : i32
    return %c0_i32, %c0_i32_0 : i32, i32
  }
  func.func @transform_25(%arg0: i32) -> (i32, i32) {
    %c0_i32 = arith.constant 0 : i32
    %c0_i32_0 = arith.constant 0 : i32
    %c0_i32_1 = arith.constant 0 : i32
    return %c0_i32, %c0_i32_0 : i32, i32
  }
  func.func @transform_26(%arg0: i32) -> (i32, i32) {
    %c0_i32 = arith.constant 0 : i32
    %c0_i32_0 = arith.constant 0 : i32
    %c0_i32_1 = arith.constant 0 : i32
    return %c0_i32, %c0_i32_0 : i32, i32
  }
  func.func @transform_27(%arg0: i32) -> (i32, i32, i32) {
    %c0_i32 = arith.constant 0 : i32
    %c0_i32_0 = arith.constant 0 : i32
    %c0_i32_1 = arith.constant 0 : i32
    return %arg0, %c0_i32, %c0_i32_0 : i32, i32, i32
  }
}

</mosaic_0001>

<llo_original>
// kernel: _lambda_.1
$region0: #{_lambda_.1}
  #allocation0 [shape = 'u32[]', space=smem, size = 0x4, offset = 0x4, fixed_abs, tag = 'smem constant byte address 0x4 - core index']
  #allocation1 [shape = 'u32[144,128]{1,0:T(1,128)}', space=vmem, size = 0x12000, scoped, tag = 'internal scratch']
  %s0 = inlined_call_operand.hbm [shape: f32[2,64,64], index: 0, kind: input, shape index: {}]
  %s1 = inlined_call_operand.hbm [shape: f32[64,64], index: 1, kind: input, shape index: {}]
  %s2 = inlined_call_operand.hbm [shape: bf16[6,64,32], index: 2, kind: input, shape index: {}]
  %s3 = inlined_call_operand.hbm [shape: bf16[6,64,32], index: 3, kind: input, shape index: {}]
  %s4 = inlined_call_operand.hbm [shape: bf16[6,64,32], index: 4, kind: input, shape index: {}]
  %s5 = inlined_call_operand.vmem [shape: f32[6,1,32], index: 5, kind: input, shape index: {}, may-alias: {5,6,7}]
  %s6 = inlined_call_operand.vmem [shape: f32[6,1,32], index: 6, kind: input, shape index: {}, may-alias: {5,6,7}]
  %s7 = inlined_call_operand.vmem [shape: f32[6,1,32], index: 7, kind: input, shape index: {}, may-alias: {5,6,7}]
  %s8 = inlined_call_operand.vmem [shape: bf16[3,64,64], index: 8, kind: input, shape index: {}]
  %s9 = inlined_call_operand.vmem [shape: f32[3,1,64], index: 9, kind: input, shape index: {}, may-alias: {9,11,15,17}]
  %s10 = inlined_call_operand.vmem [shape: f32[3,1,64], index: 10, kind: input, shape index: {}, may-alias: {10,16}]
  %s11 = inlined_call_operand.vmem [shape: f32[3,1,64], index: 11, kind: input, shape index: {}, may-alias: {9,11,15,17}]
  %s12 = inlined_call_operand.vmem [shape: bf16[3,64,256], index: 12, kind: input, shape index: {}]
  %s13 = inlined_call_operand.vmem [shape: f32[3,1,256], index: 13, kind: input, shape index: {}]
  %s14 = inlined_call_operand.vmem [shape: bf16[3,256,64], index: 14, kind: input, shape index: {}]
  %s15 = inlined_call_operand.vmem [shape: f32[3,1,64], index: 15, kind: input, shape index: {}, may-alias: {9,11,15,17}]
  %s16 = inlined_call_operand.vmem [shape: f32[3,1,64], index: 16, kind: input, shape index: {}, may-alias: {10,16}]
  %s17 = inlined_call_operand.vmem [shape: f32[3,1,64], index: 17, kind: input, shape index: {}, may-alias: {9,11,15,17}]
  %s18 = inlined_call_operand.vmem [shape: f32[1,64], index: 18, kind: input, shape index: {}]
  %s19 = inlined_call_operand.vmem [shape: f32[1,64], index: 19, kind: input, shape index: {}, may-alias: {19,22}]
  %s20 = inlined_call_operand.hbm [shape: f32[64,64], index: 20, kind: input, shape index: {}]
  %s21 = inlined_call_operand.hbm [shape: bf16[64,64], index: 21, kind: input, shape index: {}]
  %s22 = inlined_call_operand.vmem [shape: f32[1,64], index: 22, kind: input, shape index: {}, may-alias: {19,22}]
  %s23 = inlined_call_operand.hbm [shape: bf16[64,32], index: 23, kind: input, shape index: {}]
  %s24 = inlined_call_operand.vmem [shape: f32[1,32], index: 24, kind: input, shape index: {}]
  %s25 = inlined_call_operand.hbm [shape: bf16[64,128], index: 25, kind: input, shape index: {}]
  %s26 = inlined_call_operand.vmem [shape: f32[1,128], index: 26, kind: input, shape index: {}]
  %s27 = inlined_call_operand.vmem [shape: f32[2,32,128], index: 27, kind: output, shape index: {}]
  %s28 = sld [smem:[#allocation0]]
  $region154: #{_lambda_.1} parent=0
    _
  %s30 = ssub.s32 1, %s28
  %s31 = scalar_select 0, %s30, %s28
  $region1: #{_lambda_.1} parent=0
    #allocation2 [shape = 'u8[65536]{0}', space=vmem, size = 0x10000, scoped, tag = 'input window, operand 0, single buffered']
    #allocation3 [shape = 's32[1]{0}', space=sflag, size = 0x4, scoped, tag = 'scoped memory for _lambda_.1']
    #allocation4 [shape = 'u8[32768]{0}', space=vmem, size = 0x8000, scoped, tag = 'input window, operand 1, single buffered']
    #allocation5 [shape = 's32[1]{0}', space=sflag, size = 0x4, scoped, tag = 'scoped memory for _lambda_.1']
    #allocation6 [shape = 'u8[98304]{0}', space=vmem, size = 0x18000, scoped, tag = 'input window, operand 2, single buffered']
    #allocation7 [shape = 'u8[98304]{0}', space=vmem, size = 0x18000, scoped, tag = 'input window, operand 3, single buffered']
    #allocation8 [shape = 's32[1]{0}', space=sflag, size = 0x4, scoped, tag = 'scoped memory for _lambda_.1']
    #allocation9 [shape = 'u8[98304]{0}', space=vmem, size = 0x18000, scoped, tag = 'input window, operand 4, single buffered']
    #allocation10 [shape = 'u8[32768]{0}', space=vmem, size = 0x8000, scoped, tag = 'input window, operand 20, single buffered']
    #allocation11 [shape = 's32[1]{0}', space=sflag, size = 0x4, scoped, tag = 'scoped memory for _lambda_.1']
    #allocation12 [shape = 'u8[16384]{0}', space=vmem, size = 0x4000, scoped, tag = 'input window, operand 21, single buffered']
    #allocation13 [shape = 'u8[16384]{0}', space=vmem, size = 0x4000, scoped, tag = 'input window, operand 23, single buffered']
    #allocation14 [shape = 's32[1]{0}', space=sflag, size = 0x4, scoped, tag = 'scoped memory for _lambda_.1']
    #allocation15 [shape = 'u8[16384]{0}', space=vmem, size = 0x4000, scoped, tag = 'input window, operand 25, single buffered']
    %32 = vsyncpa [#allocation3], 0
    %33 = vsyncpa [#allocation5], 0
    %34 = vsyncpa [#allocation8], 0
    %35 = vsyncpa [#allocation11], 0
    %36 = vsyncpa [#allocation14], 0
    // Predicated region
    $region2: #{_lambda_.1} parent=1 // pred_check
      _
    $region3: #{_lambda_.1} parent=1 // pred_check_branch
      %38 = sbr.rel (0) target = $region5
    $region4: #{_lambda_.1} parent=1 // pred_region
      %s40 = ssub.s32 2048, 2048
      %41 = vsyncadd [#allocation3], %s40
      %s42 = sshll.u32 [#allocation2], 4
      %s43 = int_to_ptr.vmem [resolvable:$true] %s42
      %48 = dma.hbm_to_vmem [thread:$0]  %s0, 2048, %s43, [#allocation3], 128, 128, 8
    $region5: #{_lambda_.1} parent=1 // pred_fallthru
      _
    // Predicated region
    $region6: #{_lambda_.1} parent=1 // pred_check
      _
    $region7: #{_lambda_.1} parent=1 // pred_check_branch
      %50 = sbr.rel (0) target = $region9
    $region8: #{_lambda_.1} parent=1 // pred_region
      %s52 = ssub.s32 1024, 1024
      %53 = vsyncadd [#allocation5], %s52
      %s54 = sshll.u32 [#allocation4], 4
      %s55 = int_to_ptr.vmem [resolvable:$true] %s54
      %60 = dma.hbm_to_vmem [thread:$0]  %s1, 1024, %s55, [#allocation5], 128, 128, 8
    $region9: #{_lambda_.1} parent=1 // pred_fallthru
      _
    // Predicated region
    $region10: #{_lambda_.1} parent=1 // pred_check
      _
    $region11: #{_lambda_.1} parent=1 // pred_check_branch
      %62 = sbr.rel (0) target = $region13
    $region12: #{_lambda_.1} parent=1 // pred_region
      %s64 = ssub.s32 3072, 3072
      %65 = vsyncadd [#allocation5], %s64
      %s66 = sshll.u32 [#allocation6], 4
      %s67 = int_to_ptr.vmem [resolvable:$true] %s66
      %72 = dma.hbm_to_vmem [thread:$0]  %s2, 3072, %s67, [#allocation5], 64, 64, 4
    $region13: #{_lambda_.1} parent=1 // pred_fallthru
      _
    // Predicated region
    $region14: #{_lambda_.1} parent=1 // pred_check
      _
    $region15: #{_lambda_.1} parent=1 // pred_check_branch
      %74 = sbr.rel (0) target = $region17
    $region16: #{_lambda_.1} parent=1 // pred_region
      %s76 = ssub.s32 3072, 3072
      %77 = vsyncadd [#allocation8], %s76
      %s78 = sshll.u32 [#allocation7], 4
      %s79 = int_to_ptr.vmem [resolvable:$true] %s78
      %84 = dma.hbm_to_vmem [thread:$0]  %s3, 3072, %s79, [#allocation8], 64, 64, 4
    $region17: #{_lambda_.1} parent=1 // pred_fallthru
      _
    // Predicated region
    $region18: #{_lambda_.1} parent=1 // pred_check
      _
    $region19: #{_lambda_.1} parent=1 // pred_check_branch
      %86 = sbr.rel (0) target = $region21
    $region20: #{_lambda_.1} parent=1 // pred_region
      %s88 = ssub.s32 3072, 3072
      %89 = vsyncadd [#allocation8], %s88
      %s90 = sshll.u32 [#allocation9], 4
      %s91 = int_to_ptr.vmem [resolvable:$true] %s90
      %96 = dma.hbm_to_vmem [thread:$0]  %s4, 3072, %s91, [#allocation8], 64, 64, 4
    $region21: #{_lambda_.1} parent=1 // pred_fallthru
      _
    // Predicated region
    $region22: #{_lambda_.1} parent=1 // pred_check
      _
    $region23: #{_lambda_.1} parent=1 // pred_check_branch
      %98 = sbr.rel (0) target = $region25
    $region24: #{_lambda_.1} parent=1 // pred_region
      _
    $region25: #{_lambda_.1} parent=1 // pred_fallthru
      _
    // Predicated region
    $region26: #{_lambda_.1} parent=1 // pred_check
      _
    $region27: #{_lambda_.1} parent=1 // pred_check_branch
      %100 = sbr.rel (0) target = $region29
    $region28: #{_lambda_.1} parent=1 // pred_region
      _
    $region29: #{_lambda_.1} parent=1 // pred_fallthru
      _
    // Predicated region
    $region30: #{_lambda_.1} parent=1 // pred_check
      _
    $region31: #{_lambda_.1} parent=1 // pred_check_branch
      %102 = sbr.rel (0) target = $region33
    $region32: #{_lambda_.1} parent=1 // pred_region
      _
    $region33: #{_lambda_.1} parent=1 // pred_fallthru
      _
    // Predicated region
    $region34: #{_lambda_.1} parent=1 // pred_check
      _
    $region35: #{_lambda_.1} parent=1 // pred_check_branch
      %104 = sbr.rel (0) target = $region37
    $region36: #{_lambda_.1} parent=1 // pred_region
      _
    $region37: #{_lambda_.1} parent=1 // pred_fallthru
      _
    // Predicated region
    $region38: #{_lambda_.1} parent=1 // pred_check
      _
    $region39: #{_lambda_.1} parent=1 // pred_check_branch
      %106 = sbr.rel (0) target = $region41
    $region40: #{_lambda_.1} parent=1 // pred_region
      _
    $region41: #{_lambda_.1} parent=1 // pred_fallthru
      _
    // Predicated region
    $region42: #{_lambda_.1} parent=1 // pred_check
      _
    $region43: #{_lambda_.1} parent=1 // pred_check_branch
      %108 = sbr.rel (0) target = $region45
    $region44: #{_lambda_.1} parent=1 // pred_region
      _
    $region45: #{_lambda_.1} parent=1 // pred_fallthru
      _
    // Predicated region
    $region46: #{_lambda_.1} parent=1 // pred_check
      _
    $region47: #{_lambda_.1} parent=1 // pred_check_branch
      %110 = sbr.rel (0) target = $region49
    $region48: #{_lambda_.1} parent=1 // pred_region
      _
    $region49: #{_lambda_.1} parent=1 // pred_fallthru
      _
    // Predicated region
    $region50: #{_lambda_.1} parent=1 // pred_check
      _
    $region51: #{_lambda_.1} parent=1 // pred_check_branch
      %112 = sbr.rel (0) target = $region53
    $region52: #{_lambda_.1} parent=1 // pred_region
      _
    $region53: #{_lambda_.1} parent=1 // pred_fallthru
      _
    // Predicated region
    $region54: #{_lambda_.1} parent=1 // pred_check
      _
    $region55: #{_lambda_.1} parent=1 // pred_check_branch
      %114 = sbr.rel (0) target = $region57
    $region56: #{_lambda_.1} parent=1 // pred_region
      _
    $region57: #{_lambda_.1} parent=1 // pred_fallthru
      _
    // Predicated region
    $region58: #{_lambda_.1} parent=1 // pred_check
      _
    $region59: #{_lambda_.1} parent=1 // pred_check_branch
      %116 = sbr.rel (0) target = $region61
    $region60: #{_lambda_.1} parent=1 // pred_region
      _
    $region61: #{_lambda_.1} parent=1 // pred_fallthru
      _
    // Predicated region
    $region62: #{_lambda_.1} parent=1 // pred_check
      _
    $region63: #{_lambda_.1} parent=1 // pred_check_branch
      %118 = sbr.rel (0) target = $region65
    $region64: #{_lambda_.1} parent=1 // pred_region
      _
    $region65: #{_lambda_.1} parent=1 // pred_fallthru
      _
    // Predicated region
    $region66: #{_lambda_.1} parent=1 // pred_check
      _
    $region67: #{_lambda_.1} parent=1 // pred_check_branch
      %120 = sbr.rel (0) target = $region69
    $region68: #{_lambda_.1} parent=1 // pred_region
      _
    $region69: #{_lambda_.1} parent=1 // pred_fallthru
      _
    // Predicated region
    $region70: #{_lambda_.1} parent=1 // pred_check
      _
    $region71: #{_lambda_.1} parent=1 // pred_check_branch
      %122 = sbr.rel (0) target = $region73
    $region72: #{_lambda_.1} parent=1 // pred_region
      _
    $region73: #{_lambda_.1} parent=1 // pred_fallthru
      _
    // Predicated region
    $region74: #{_lambda_.1} parent=1 // pred_check
      _
    $region75: #{_lambda_.1} parent=1 // pred_check_branch
      %124 = sbr.rel (0) target = $region77
    $region76: #{_lambda_.1} parent=1 // pred_region
      _
    $region77: #{_lambda_.1} parent=1 // pred_fallthru
      _
    // Predicated region
    $region78: #{_lambda_.1} parent=1 // pred_check
      _
    $region79: #{_lambda_.1} parent=1 // pred_check_branch
      %126 = sbr.rel (0) target = $region81
    $region80: #{_lambda_.1} parent=1 // pred_region
      _
    $region81: #{_lambda_.1} parent=1 // pred_fallthru
      _
    // Predicated region
    $region82: #{_lambda_.1} parent=1 // pred_check
      _
    $region83: #{_lambda_.1} parent=1 // pred_check_branch
      %128 = sbr.rel (0) target = $region85
    $region84: #{_lambda_.1} parent=1 // pred_region
      %s130 = ssub.s32 1024, 1024
      %131 = vsyncadd [#allocation11], %s130
      %s132 = sshll.u32 [#allocation10], 4
      %s133 = int_to_ptr.vmem [resolvable:$true] %s132
      %138 = dma.hbm_to_vmem [thread:$0]  %s20, 1024, %s133, [#allocation11], 128, 128, 8
    $region85: #{_lambda_.1} parent=1 // pred_fallthru
      _
    // Predicated region
    $region86: #{_lambda_.1} parent=1 // pred_check
      _
    $region87: #{_lambda_.1} parent=1 // pred_check_branch
      %140 = sbr.rel (0) target = $region89
    $region88: #{_lambda_.1} parent=1 // pred_region
      %s142 = ssub.s32 512, 512
      %143 = vsyncadd [#allocation11], %s142
      %s144 = sshll.u32 [#allocation12], 4
      %s145 = int_to_ptr.vmem [resolvable:$true] %s144
      %150 = dma.hbm_to_vmem [thread:$0]  %s21, 512, %s145, [#allocation11], 64, 64, 4
    $region89: #{_lambda_.1} parent=1 // pred_fallthru
      _
    // Predicated region
    $region90: #{_lambda_.1} parent=1 // pred_check
      _
    $region91: #{_lambda_.1} parent=1 // pred_check_branch
      %152 = sbr.rel (0) target = $region93
    $region92: #{_lambda_.1} parent=1 // pred_region
      _
    $region93: #{_lambda_.1} parent=1 // pred_fallthru
      _
    // Predicated region
    $region94: #{_lambda_.1} parent=1 // pred_check
      _
    $region95: #{_lambda_.1} parent=1 // pred_check_branch
      %154 = sbr.rel (0) target = $region97
    $region96: #{_lambda_.1} parent=1 // pred_region
      %s156 = ssub.s32 512, 512
      %157 = vsyncadd [#allocation14], %s156
      %s158 = sshll.u32 [#allocation13], 4
      %s159 = int_to_ptr.vmem [resolvable:$true] %s158
      %164 = dma.hbm_to_vmem [thread:$0]  %s23, 512, %s159, [#allocation14], 64, 64, 4
    $region97: #{_lambda_.1} parent=1 // pred_fallthru
      _
    // Predicated region
    $region98: #{_lambda_.1} parent=1 // pred_check
      _
    $region99: #{_lambda_.1} parent=1 // pred_check_branch
      %166 = sbr.rel (0) target = $region101
    $region100: #{_lambda_.1} parent=1 // pred_region
      _
    $region101: #{_lambda_.1} parent=1 // pred_fallthru
      _
    // Predicated region
    $region102: #{_lambda_.1} parent=1 // pred_check
      _
    $region103: #{_lambda_.1} parent=1 // pred_check_branch
      %168 = sbr.rel (0) target = $region105
    $region104: #{_lambda_.1} parent=1 // pred_region
      %s170 = ssub.s32 512, 512
      %171 = vsyncadd [#allocation14], %s170
      %s172 = sshll.u32 [#allocation15], 4
      %s173 = int_to_ptr.vmem [resolvable:$true] %s172
      %178 = dma.hbm_to_vmem [thread:$0]  %s25, 512, %s173, [#allocation14], 64, 64, 4
    $region105: #{_lambda_.1} parent=1 // pred_fallthru
      _
    // Predicated region
    $region106: #{_lambda_.1} parent=1 // pred_check
      _
    $region107: #{_lambda_.1} parent=1 // pred_check_branch
      %180 = sbr.rel (0) target = $region109
    $region108: #{_lambda_.1} parent=1 // pred_region
      _
    $region109: #{_lambda_.1} parent=1 // pred_fallthru
      _
    // Predicated region
    $region110: #{_lambda_.1} parent=1 // pred_check
      _
    $region111: #{_lambda_.1} parent=1 // pred_check_branch
      %182 = sbr.rel (0) target = $region113
    $region112: #{_lambda_.1} parent=1 // pred_region
      %183 = dma.done [#allocation3], 2048
    $region113: #{_lambda_.1} parent=1 // pred_fallthru
      _
    // Predicated region
    $region114: #{_lambda_.1} parent=1 // pred_check
      _
    $region115: #{_lambda_.1} parent=1 // pred_check_branch
      %185 = sbr.rel (0) target = $region117
    $region116: #{_lambda_.1} parent=1 // pred_region
      %186 = dma.done [#allocation5], 1024
    $region117: #{_lambda_.1} parent=1 // pred_fallthru
      _
    // Predicated region
    $region118: #{_lambda_.1} parent=1 // pred_check
      _
    $region119: #{_lambda_.1} parent=1 // pred_check_branch
      %188 = sbr.rel (0) target = $region121
    $region120: #{_lambda_.1} parent=1 // pred_region
      %189 = dma.done [#allocation5], 3072
    $region121: #{_lambda_.1} parent=1 // pred_fallthru
      _
    // Predicated region
    $region122: #{_lambda_.1} parent=1 // pred_check
      _
    $region123: #{_lambda_.1} parent=1 // pred_check_branch
      %191 = sbr.rel (0) target = $region125
    $region124: #{_lambda_.1} parent=1 // pred_region
      %192 = dma.done [#allocation8], 3072
    $region125: #{_lambda_.1} parent=1 // pred_fallthru
      _
    // Predicated region
    $region126: #{_lambda_.1} parent=1 // pred_check
      _
    $region127: #{_lambda_.1} parent=1 // pred_check_branch
      %194 = sbr.rel (0) target = $region129
    $region128: #{_lambda_.1} parent=1 // pred_region
      %195 = dma.done [#allocation8], 3072
    $region129: #{_lambda_.1} parent=1 // pred_fallthru
      _
    // Predicated region
    $region130: #{_lambda_.1} parent=1 // pred_check
      _
    $region131: #{_lambda_.1} parent=1 // pred_check_branch
      %197 = sbr.rel (0) target = $region133
    $region132: #{_lambda_.1} parent=1 // pred_region
      %198 = dma.done [#allocation11], 1024
    $region133: #{_lambda_.1} parent=1 // pred_fallthru
      _
    // Predicated region
    $region134: #{_lambda_.1} parent=1 // pred_check
      _
    $region135: #{_lambda_.1} parent=1 // pred_check_branch
      %200 = sbr.rel (0) target = $region137
    $region136: #{_lambda_.1} parent=1 // pred_region
      %201 = dma.done [#allocation11], 512
    $region137: #{_lambda_.1} parent=1 // pred_fallthru
      _
    // Predicated region
    $region138: #{_lambda_.1} parent=1 // pred_check
      _
    $region139: #{_lambda_.1} parent=1 // pred_check_branch
      %203 = sbr.rel (0) target = $region141
    $region140: #{_lambda_.1} parent=1 // pred_region
      %204 = dma.done [#allocation14], 512
    $region141: #{_lambda_.1} parent=1 // pred_fallthru
      _
    // Predicated region
    $region142: #{_lambda_.1} parent=1 // pred_check
      _
    $region143: #{_lambda_.1} parent=1 // pred_check_branch
      %206 = sbr.rel (0) target = $region145
    $region144: #{_lambda_.1} parent=1 // pred_region
      %207 = dma.done [#allocation14], 512
    $region145: #{_lambda_.1} parent=1 // pred_fallthru
      _
    %v209 = vld [vmem:[#allocation2] sm:$0xff]
    %v210 = vld [vmem:[#allocation2 + $0x8] sm:$0xff]
    %v211 = vld [vmem:[#allocation2 + $0x10] sm:$0xff]
    %v212 = vld [vmem:[#allocation2 + $0x18] sm:$0xff]
    %v213 = vld [vmem:[#allocation2 + $0x20] sm:$0xff]
    %v214 = vld [vmem:[#allocation2 + $0x28] sm:$0xff]
    %v215 = vld [vmem:[#allocation2 + $0x30] sm:$0xff]
    %v216 = vld [vmem:[#allocation2 + $0x38] sm:$0xff]
    %v217 = vld [vmem:[#allocation2 + $0x40] sm:$0xff]
    %v218 = vld [vmem:[#allocation2 + $0x48] sm:$0xff]
    %v219 = vld [vmem:[#allocation2 + $0x50] sm:$0xff]
    %v220 = vld [vmem:[#allocation2 + $0x58] sm:$0xff]
    %v221 = vld [vmem:[#allocation2 + $0x60] sm:$0xff]
    %v222 = vld [vmem:[#allocation2 + $0x68] sm:$0xff]
    %v223 = vld [vmem:[#allocation2 + $0x70] sm:$0xff]
    %v224 = vld [vmem:[#allocation2 + $0x78] sm:$0xff]
    %v225 = vld [vmem:[#allocation4] sm:$0xff]
    %v226 = vld [vmem:[#allocation4 + $0x8] sm:$0xff]
    %v227 = vld [vmem:[#allocation4 + $0x10] sm:$0xff]
    %v228 = vld [vmem:[#allocation4 + $0x18] sm:$0xff]
    %v229 = vld [vmem:[#allocation4 + $0x20] sm:$0xff]
    %v230 = vld [vmem:[#allocation4 + $0x28] sm:$0xff]
    %v231 = vld [vmem:[#allocation4 + $0x30] sm:$0xff]
    %v232 = vld [vmem:[#allocation4 + $0x38] sm:$0xff]
    %v233 = vadd.f32 %v209, %v225
    %v234 = vadd.f32 %v210, %v226
    %v235 = vadd.f32 %v211, %v227
    %v236 = vadd.f32 %v212, %v228
    %v237 = vadd.f32 %v213, %v229
    %v238 = vadd.f32 %v214, %v230
    %v239 = vadd.f32 %v215, %v231
    %v240 = vadd.f32 %v216, %v232
    %v241 = vadd.f32 %v217, %v225
    %v242 = vadd.f32 %v218, %v226
    %v243 = vadd.f32 %v219, %v227
    %v244 = vadd.f32 %v220, %v228
    %v245 = vadd.f32 %v221, %v229
    %v246 = vadd.f32 %v222, %v230
    %v247 = vadd.f32 %v223, %v231
    %v248 = vadd.f32 %v224, %v232
    %v249 = vpack.c.bf16 %v234, %v233
    %v250 = vpack.c.bf16 %v236, %v235
    %v251 = vpack.c.bf16 %v238, %v237
    %v252 = vpack.c.bf16 %v240, %v239
    %v253 = vpack.c.bf16 %v242, %v241
    %v254 = vpack.c.bf16 %v244, %v243
    %v255 = vpack.c.bf16 %v246, %v245
    %v256 = vpack.c.bf16 %v248, %v247
    %v257 = vld [vmem:[#allocation6] sm:$0xf]
    %v258 = vld [vmem:[#allocation6 + $0x4] sm:$0xf]
    %v259 = vld [vmem:[#allocation6 + $0x8] sm:$0xf]
    %v260 = vld [vmem:[#allocation6 + $0xc] sm:$0xf]
    %v261 = vld [vmem:[#allocation6 + $0x10] sm:$0xf]
    %v262 = vld [vmem:[#allocation6 + $0x14] sm:$0xf]
    %v263 = vld [vmem:[#allocation6 + $0x18] sm:$0xf]
    %v264 = vld [vmem:[#allocation6 + $0x1c] sm:$0xf]
    %v265 = vld [vmem:[%s5] sm:$0x1]
    %v267 = vlaneseq
    %v268 = vshrl.u32 %v267, 7
    %v269 = vsub.s32 0, %v268
    %v270 = vrot.slane %v265, %v269
    %v280 = vunpack.c.l.b16 %v257
    %v281 = vunpack.c.l.b16 %v258
    %v282 = vunpack.c.l.b16 %v259
    %v283 = vunpack.c.l.b16 %v260
    %v284 = vunpack.c.l.b16 %v261
    %v285 = vunpack.c.l.b16 %v262
    %v286 = vunpack.c.l.b16 %v263
    %v287 = vunpack.c.l.b16 %v264
    %v288 = vpack.c.b16 %v281, %v280
    %v289 = vpack.c.b16 %v283, %v282
    %v290 = vpack.c.b16 %v285, %v284
    %v291 = vpack.c.b16 %v287, %v286
    %vm296 = vcmask 523264
    %v298 = vsel %vm296, %v249, 0
    %v301 = vsel %vm296, %v250, 0
    %v304 = vsel %vm296, %v251, 0
    %v307 = vsel %vm296, %v252, 0
    %v310 = vsel %vm296, %v253, 0
    %v313 = vsel %vm296, %v254, 0
    %v316 = vsel %vm296, %v255, 0
    %v319 = vsel %vm296, %v256, 0
    %321 = vmatprep.subr.bf16.mxu0 0
    %322 = vmatpush1.bf16.msra.mxu0 %v288
    %323 = vmatprep.subr.bf16.mxu0 0
    %324 = vmatpush1.bf16.msra.mxu0 %v289
    %325 = vmatprep.subr.bf16.mxu0 0
    %326 = vmatpush1.bf16.msra.mxu0 %v290
    %327 = vmatprep.subr.bf16.mxu0 0
    %328 = vmatpush1.bf16.msra.mxu0 %v291
    %329 = vmatprep.subr.bf16.mxu0 0
    %330 = vmatpush1.bf16.msra.mxu0 0
    %331 = vmatprep.subr.bf16.mxu0 0
    %332 = vmatpush1.bf16.msra.mxu0 0
    %333 = vmatprep.subr.bf16.mxu0 0
    %334 = vmatpush1.bf16.msra.mxu0 0
    %335 = vmatprep.subr.bf16.mxu0 0
    %336 = vmatpush1.bf16.msra.mxu0 0
    %337 = vmatprep.subr.bf16.mxu0 0
    %338 = vmatpush1.bf16.msra.mxu0 0
    %339 = vmatprep.subr.bf16.mxu0 0
    %340 = vmatpush1.bf16.msra.mxu0 0
    %341 = vmatprep.subr.bf16.mxu0 0
    %342 = vmatpush1.bf16.msra.mxu0 0
    %343 = vmatprep.subr.bf16.mxu0 0
    %344 = vmatpush1.bf16.msra.mxu0 0
    %345 = vmatprep.subr.bf16.mxu0 0
    %346 = vmatpush1.bf16.msra.mxu0 0
    %347 = vmatprep.subr.bf16.mxu0 0
    %348 = vmatpush1.bf16.msra.mxu0 0
    %349 = vmatprep.subr.bf16.mxu0 0
    %350 = vmatpush1.bf16.msra.mxu0 0
    %351 = vmatprep.subr.bf16.mxu0 0
    %352 = vmatpush1.bf16.msra.mxu0 0
    %353 = vmatprep.mubr.bf16.mxu0 0
    %354 = vmatmul.mubr.bf16.gmra.mrb[0].mxu0 %v298
    %v355 = vpop.f32.mrb[0].mxu0
    %v356 = vadd.f32 %v270, %v355
    %v357 = vpop.f32.mrb[0].mxu0
    %v358 = vpop.f32.mrb[0].mxu0
    %v359 = vadd.f32 %v270, %v358
    %v360 = vpop.f32.mrb[0].mxu0
    %361 = vmatprep.mubr.bf16.mxu0 0
    %362 = vmatmul.mubr.bf16.gmra.mrb[0].mxu0 %v301
    %v363 = vpop.f32.mrb[0].mxu0
    %v364 = vadd.f32 %v270, %v363
    %v365 = vpop.f32.mrb[0].mxu0
    %v366 = vpop.f32.mrb[0].mxu0
    %v367 = vadd.f32 %v270, %v366
    %v368 = vpop.f32.mrb[0].mxu0
    %369 = vmatprep.mubr.bf16.mxu0 0
    %370 = vmatmul.mubr.bf16.gmra.mrb[0].mxu0 %v304
    %v371 = vpop.f32.mrb[0].mxu0
    %v372 = vadd.f32 %v270, %v371
    %v373 = vpop.f32.mrb[0].mxu0
    %v374 = vpop.f32.mrb[0].mxu0
    %v375 = vadd.f32 %v270, %v374
    %v376 = vpop.f32.mrb[0].mxu0
    %377 = vmatprep.mubr.bf16.mxu0 0
    %378 = vmatmul.mubr.bf16.gmra.mrb[0].mxu0 %v307
    %v379 = vpop.f32.mrb[0].mxu0
    %v380 = vadd.f32 %v270, %v379
    %v381 = vpop.f32.mrb[0].mxu0
    %v382 = vpop.f32.mrb[0].mxu0
    %v383 = vadd.f32 %v270, %v382
    %v384 = vpop.f32.mrb[0].mxu0
    %385 = vmatprep.mubr.bf16.mxu0 0
    %386 = vmatmul.mubr.bf16.gmra.mrb[0].mxu0 %v310
    %v387 = vpop.f32.mrb[0].mxu0
    %v388 = vadd.f32 %v270, %v387
    %v389 = vpop.f32.mrb[0].mxu0
    %v390 = vpop.f32.mrb[0].mxu0
    %v391 = vadd.f32 %v270, %v390
    %v392 = vpop.f32.mrb[0].mxu0
    %393 = vmatprep.mubr.bf16.mxu0 0
    %394 = vmatmul.mubr.bf16.gmra.mrb[0].mxu0 %v313
    %v395 = vpop.f32.mrb[0].mxu0
    %v396 = vadd.f32 %v270, %v395
    %v397 = vpop.f32.mrb[0].mxu0
    %v398 = vpop.f32.mrb[0].mxu0
    %v399 = vadd.f32 %v270, %v398
    %v400 = vpop.f32.mrb[0].mxu0
    %401 = vmatprep.mubr.bf16.mxu0 0
    %402 = vmatmul.mubr.bf16.gmra.mrb[0].mxu0 %v316
    %v403 = vpop.f32.mrb[0].mxu0
    %v404 = vadd.f32 %v270, %v403
    %v405 = vpop.f32.mrb[0].mxu0
    %v406 = vpop.f32.mrb[0].mxu0
    %v407 = vadd.f32 %v270, %v406
    %v408 = vpop.f32.mrb[0].mxu0
    %409 = vmatprep.mubr.bf16.mxu0 0
    %410 = vmatmul.mubr.bf16.gmra.mrb[0].mxu0 %v319
    %v411 = vpop.f32.mrb[0].mxu0
    %v412 = vadd.f32 %v270, %v411
    %v413 = vpop.f32.mrb[0].mxu0
    %v414 = vpop.f32.mrb[0].mxu0
    %v415 = vadd.f32 %v270, %v414
    %v416 = vpop.f32.mrb[0].mxu0
    %417 = vdwg.mxu0
    %v418 = vld [vmem:[#allocation7] sm:$0xf]
    %v419 = vld [vmem:[#allocation7 + $0x4] sm:$0xf]
    %v420 = vld [vmem:[#allocation7 + $0x8] sm:$0xf]
    %v421 = vld [vmem:[#allocation7 + $0xc] sm:$0xf]
    %v422 = vld [vmem:[#allocation7 + $0x10] sm:$0xf]
    %v423 = vld [vmem:[#allocation7 + $0x14] sm:$0xf]
    %v424 = vld [vmem:[#allocation7 + $0x18] sm:$0xf]
    %v425 = vld [vmem:[#allocation7 + $0x1c] sm:$0xf]
    %v426 = vld [vmem:[%s6] sm:$0x1]
    %v428 = vlaneseq
    %v429 = vshrl.u32 %v428, 7
    %v430 = vsub.s32 0, %v429
    %v431 = vrot.slane %v426, %v430
    %v441 = vunpack.c.l.b16 %v418
    %v442 = vunpack.c.l.b16 %v419
    %v443 = vunpack.c.l.b16 %v420
    %v444 = vunpack.c.l.b16 %v421
    %v445 = vunpack.c.l.b16 %v422
    %v446 = vunpack.c.l.b16 %v423
    %v447 = vunpack.c.l.b16 %v424
    %v448 = vunpack.c.l.b16 %v425
    %v449 = vpack.c.b16 %v442, %v441
    %v450 = vpack.c.b16 %v444, %v443
    %v451 = vpack.c.b16 %v446, %v445
    %v452 = vpack.c.b16 %v448, %v447
    %457 = vmatprep.subr.bf16.mxu0 0
    %458 = vmatpush1.bf16.msra.mxu0 %v449
    %459 = vmatprep.subr.bf16.mxu0 0
    %460 = vmatpush1.bf16.msra.mxu0 %v450
    %461 = vmatprep.subr.bf16.mxu0 0
    %462 = vmatpush1.bf16.msra.mxu0 %v451
    %463 = vmatprep.subr.bf16.mxu0 0
    %464 = vmatpush1.bf16.msra.mxu0 %v452
    %465 = vmatprep.subr.bf16.mxu0 0
    %466 = vmatpush1.bf16.msra.mxu0 0
    %467 = vmatprep.subr.bf16.mxu0 0
    %468 = vmatpush1.bf16.msra.mxu0 0
    %469 = vmatprep.subr.bf16.mxu0 0
    %470 = vmatpush1.bf16.msra.mxu0 0
    %471 = vmatprep.subr.bf16.mxu0 0
    %472 = vmatpush1.bf16.msra.mxu0 0
    %473 = vmatprep.subr.bf16.mxu0 0
    %474 = vmatpush1.bf16.msra.mxu0 0
    %475 = vmatprep.subr.bf16.mxu0 0
    %476 = vmatpush1.bf16.msra.mxu0 0
    %477 = vmatprep.subr.bf16.mxu0 0
    %478 = vmatpush1.bf16.msra.mxu0 0
    %479 = vmatprep.subr.bf16.mxu0 0
    %480 = vmatpush1.bf16.msra.mxu0 0
    %481 = vmatprep.subr.bf16.mxu0 0
    %482 = vmatpush1.bf16.msra.mxu0 0
    %483 = vmatprep.subr.bf16.mxu0 0
    %484 = vmatpush1.bf16.msra.mxu0 0
    %485 = vmatprep.subr.bf16.mxu0 0
    %486 = vmatpush1.bf16.msra.mxu0 0
    %487 = vmatprep.subr.bf16.mxu0 0
    %488 = vmatpush1.bf16.msra.mxu0 0
    %489 = vmatprep.mubr.bf16.mxu0 0
    %490 = vmatmul.mubr.bf16.gmra.mrb[0].mxu0 %v298
    %v491 = vpop.f32.mrb[0].mxu0
    %v492 = vadd.f32 %v431, %v491
    %v493 = vpop.f32.mrb[0].mxu0
    %v494 = vpop.f32.mrb[0].mxu0
    %v495 = vadd.f32 %v431, %v494
    %v496 = vpop.f32.mrb[0].mxu0
    %497 = vmatprep.mubr.bf16.mxu0 0
    %498 = vmatmul.mubr.bf16.gmra.mrb[0].mxu0 %v301
    %v499 = vpop.f32.mrb[0].mxu0
    %v500 = vadd.f32 %v431, %v499
    %v501 = vpop.f32.mrb[0].mxu0
    %v502 = vpop.f32.mrb[0].mxu0
    %v503 = vadd.f32 %v431, %v502
    %v504 = vpop.f32.mrb[0].mxu0
    %505 = vmatprep.mubr.bf16.mxu0 0
    %506 = vmatmul.mubr.bf16.gmra.mrb[0].mxu0 %v304
    %v507 = vpop.f32.mrb[0].mxu0
    %v508 = vadd.f32 %v431, %v507
    %v509 = vpop.f32.mrb[0].mxu0
    %v510 = vpop.f32.mrb[0].mxu0
    %v511 = vadd.f32 %v431, %v510
    %v512 = vpop.f32.mrb[0].mxu0
    %513 = vmatprep.mubr.bf16.mxu0 0
    %514 = vmatmul.mubr.bf16.gmra.mrb[0].mxu0 %v307
    %v515 = vpop.f32.mrb[0].mxu0
    %v516 = vadd.f32 %v431, %v515
    %v517 = vpop.f32.mrb[0].mxu0
    %v518 = vpop.f32.mrb[0].mxu0
    %v519 = vadd.f32 %v431, %v518
    %v520 = vpop.f32.mrb[0].mxu0
    %521 = vmatprep.mubr.bf16.mxu0 0
    %522 = vmatmul.mubr.bf16.gmra.mrb[0].mxu0 %v310
    %v523 = vpop.f32.mrb[0].mxu0
    %v524 = vadd.f32 %v431, %v523
    %v525 = vpop.f32.mrb[0].mxu0
    %v526 = vpop.f32.mrb[0].mxu0
    %v527 = vadd.f32 %v431, %v526
    %v528 = vpop.f32.mrb[0].mxu0
    %529 = vmatprep.mubr.bf16.mxu0 0
    %530 = vmatmul.mubr.bf16.gmra.mrb[0].mxu0 %v313
    %v531 = vpop.f32.mrb[0].mxu0
    %v532 = vadd.f32 %v431, %v531
    %v533 = vpop.f32.mrb[0].mxu0
    %v534 = vpop.f32.mrb[0].mxu0
    %v535 = vadd.f32 %v431, %v534
    %v536 = vpop.f32.mrb[0].mxu0
    %537 = vmatprep.mubr.bf16.mxu0 0
    %538 = vmatmul.mubr.bf16.gmra.mrb[0].mxu0 %v316
    %v539 = vpop.f32.mrb[0].mxu0
    %v540 = vadd.f32 %v431, %v539
    %v541 = vpop.f32.mrb[0].mxu0
    %v542 = vpop.f32.mrb[0].mxu0
    %v543 = vadd.f32 %v431, %v542
    %v544 = vpop.f32.mrb[0].mxu0
    %545 = vmatprep.mubr.bf16.mxu0 0
    %546 = vmatmul.mubr.bf16.gmra.mrb[0].mxu0 %v319
    %v547 = vpop.f32.mrb[0].mxu0
    %v548 = vadd.f32 %v431, %v547
    %v549 = vpop.f32.mrb[0].mxu0
    %v550 = vpop.f32.mrb[0].mxu0
    %v551 = vadd.f32 %v431, %v550
    %v552 = vpop.f32.mrb[0].mxu0
    %553 = vdwg.mxu0
    %v554 = vld [vmem:[#allocation9] sm:$0xf]
    %v555 = vld [vmem:[#allocation9 + $0x4] sm:$0xf]
    %v556 = vld [vmem:[#allocation9 + $0x8] sm:$0xf]
    %v557 = vld [vmem:[#allocation9 + $0xc] sm:$0xf]
    %v558 = vld [vmem:[#allocation9 + $0x10] sm:$0xf]
    %v559 = vld [vmem:[#allocation9 + $0x14] sm:$0xf]
    %v560 = vld [vmem:[#allocation9 + $0x18] sm:$0xf]
    %v561 = vld [vmem:[#allocation9 + $0x1c] sm:$0xf]
    %v562 = vld [vmem:[%s7] sm:$0x1]
    %v564 = vlaneseq
    %v565 = vshrl.u32 %v564, 7
    %v566 = vsub.s32 0, %v565
    %v567 = vrot.slane %v562, %v566
    %v577 = vunpack.c.l.b16 %v554
    %v578 = vunpack.c.l.b16 %v555
    %v579 = vunpack.c.l.b16 %v556
    %v580 = vunpack.c.l.b16 %v557
    %v581 = vunpack.c.l.b16 %v558
    %v582 = vunpack.c.l.b16 %v559
    %v583 = vunpack.c.l.b16 %v560
    %v584 = vunpack.c.l.b16 %v561
    %v585 = vpack.c.b16 %v578, %v577
    %v586 = vpack.c.b16 %v580, %v579
    %v587 = vpack.c.b16 %v582, %v581
    %v588 = vpack.c.b16 %v584, %v583
    %593 = vmatprep.subr.bf16.mxu0 0
    %594 = vmatpush1.bf16.msra.mxu0 %v585
    %595 = vmatprep.subr.bf16.mxu0 0
    %596 = vmatpush1.bf16.msra.mxu0 %v586
    %597 = vmatprep.subr.bf16.mxu0 0
    %598 = vmatpush1.bf16.msra.mxu0 %v587
    %599 = vmatprep.subr.bf16.mxu0 0
    %600 = vmatpush1.bf16.msra.mxu0 %v588
    %601 = vmatprep.subr.bf16.mxu0 0
    %602 = vmatpush1.bf16.msra.mxu0 0
    %603 = vmatprep.subr.bf16.mxu0 0
    %604 = vmatpush1.bf16.msra.mxu0 0
    %605 = vmatprep.subr.bf16.mxu0 0
    %606 = vmatpush1.bf16.msra.mxu0 0
    %607 = vmatprep.subr.bf16.mxu0 0
    %608 = vmatpush1.bf16.msra.mxu0 0
    %609 = vmatprep.subr.bf16.mxu0 0
    %610 = vmatpush1.bf16.msra.mxu0 0
    %611 = vmatprep.subr.bf16.mxu0 0
    %612 = vmatpush1.bf16.msra.mxu0 0
    %613 = vmatprep.subr.bf16.mxu0 0
    %614 = vmatpush1.bf16.msra.mxu0 0
    %615 = vmatprep.subr.bf16.mxu0 0
    %616 = vmatpush1.bf16.msra.mxu0 0
    %617 = vmatprep.subr.bf16.mxu0 0
    %618 = vmatpush1.bf16.msra.mxu0 0
    %619 = vmatprep.subr.bf16.mxu0 0
    %620 = vmatpush1.bf16.msra.mxu0 0
    %621 = vmatprep.subr.bf16.mxu0 0
    %622 = vmatpush1.bf16.msra.mxu0 0
    %623 = vmatprep.subr.bf16.mxu0 0
    %624 = vmatpush1.bf16.msra.mxu0 0
    %625 = vmatprep.mubr.bf16.mxu0 0
    %626 = vmatmul.mubr.bf16.gmra.mrb[0].mxu0 %v298
    %v627 = vpop.f32.mrb[0].mxu0
    %v628 = vadd.f32 %v567, %v627
    %v629 = vpop.f32.mrb[0].mxu0
    %v630 = vpop.f32.mrb[0].mxu0
    %v631 = vadd.f32 %v567, %v630
    %v632 = vpop.f32.mrb[0].mxu0
    %633 = vmatprep.mubr.bf16.mxu0 0
    %634 = vmatmul.mubr.bf16.gmra.mrb[0].mxu0 %v301
    %v635 = vpop.f32.mrb[0].mxu0
    %v636 = vadd.f32 %v567, %v635
    %v637 = vpop.f32.mrb[0].mxu0
    %v638 = vpop.f32.mrb[0].mxu0
    %v639 = vadd.f32 %v567, %v638
    %v640 = vpop.f32.mrb[0].mxu0
    %641 = vmatprep.mubr.bf16.mxu0 0
    %642 = vmatmul.mubr.bf16.gmra.mrb[0].mxu0 %v304
    %v643 = vpop.f32.mrb[0].mxu0
    %v644 = vadd.f32 %v567, %v643
    %v645 = vpop.f32.mrb[0].mxu0
    %v646 = vpop.f32.mrb[0].mxu0
    %v647 = vadd.f32 %v567, %v646
    %v648 = vpop.f32.mrb[0].mxu0
    %649 = vmatprep.mubr.bf16.mxu0 0
    %650 = vmatmul.mubr.bf16.gmra.mrb[0].mxu0 %v307
    %v651 = vpop.f32.mrb[0].mxu0
    %v652 = vadd.f32 %v567, %v651
    %v653 = vpop.f32.mrb[0].mxu0
    %v654 = vpop.f32.mrb[0].mxu0
    %v655 = vadd.f32 %v567, %v654
    %v656 = vpop.f32.mrb[0].mxu0
    %657 = vmatprep.mubr.bf16.mxu0 0
    %658 = vmatmul.mubr.bf16.gmra.mrb[0].mxu0 %v310
    %v659 = vpop.f32.mrb[0].mxu0
    %v660 = vadd.f32 %v567, %v659
    %v661 = vpop.f32.mrb[0].mxu0
    %v662 = vpop.f32.mrb[0].mxu0
    %v663 = vadd.f32 %v567, %v662
    %v664 = vpop.f32.mrb[0].mxu0
    %665 = vmatprep.mubr.bf16.mxu0 0
    %666 = vmatmul.mubr.bf16.gmra.mrb[0].mxu0 %v313
    %v667 = vpop.f32.mrb[0].mxu0
    %v668 = vadd.f32 %v567, %v667
    %v669 = vpop.f32.mrb[0].mxu0
    %v670 = vpop.f32.mrb[0].mxu0
    %v671 = vadd.f32 %v567, %v670
    %v672 = vpop.f32.mrb[0].mxu0
    %673 = vmatprep.mubr.bf16.mxu0 0
    %674 = vmatmul.mubr.bf16.gmra.mrb[0].mxu0 %v316
    %v675 = vpop.f32.mrb[0].mxu0
    %v676 = vadd.f32 %v567, %v675
    %v677 = vpop.f32.mrb[0].mxu0
    %v678 = vpop.f32.mrb[0].mxu0
    %v679 = vadd.f32 %v567, %v678
    %v680 = vpop.f32.mrb[0].mxu0
    %681 = vmatprep.mubr.bf16.mxu0 0
    %682 = vmatmul.mubr.bf16.gmra.mrb[0].mxu0 %v319
    %v683 = vpop.f32.mrb[0].mxu0
    %v684 = vadd.f32 %v567, %v683
    %v685 = vpop.f32.mrb[0].mxu0
    %v686 = vpop.f32.mrb[0].mxu0
    %v687 = vadd.f32 %v567, %v686
    %v688 = vpop.f32.mrb[0].mxu0
    %689 = vdwg.mxu0
    %v690 = vpack.c.bf16 %v359, %v356
    %v691 = vpack.c.bf16 %v367, %v364
    %v692 = vpack.c.bf16 %v375, %v372
    %v693 = vpack.c.bf16 %v383, %v380
    %v694 = vpack.c.bf16 %v391, %v388
    %v695 = vpack.c.bf16 %v399, %v396
    %v696 = vpack.c.bf16 %v407, %v404
    %v697 = vpack.c.bf16 %v415, %v412
    %v698 = vpack.c.bf16 %v495, %v492
    %v699 = vpack.c.bf16 %v503, %v500
    %v700 = vpack.c.bf16 %v511, %v508
    %v701 = vpack.c.bf16 %v519, %v516
    %v702 = vpack.c.bf16 %v527, %v524
    %v703 = vpack.c.bf16 %v535, %v532
    %v704 = vpack.c.bf16 %v543, %v540
    %v705 = vpack.c.bf16 %v551, %v548
    %v706 = vpack.c.bf16 %v631, %v628
    %v707 = vpack.c.bf16 %v639, %v636
    %v708 = vpack.c.bf16 %v647, %v644
    %v709 = vpack.c.bf16 %v655, %v652
    %v710 = vpack.c.bf16 %v663, %v660
    %v711 = vpack.c.bf16 %v671, %v668
    %v712 = vpack.c.bf16 %v679, %v676
    %v713 = vpack.c.bf16 %v687, %v684
    %vm714 = vcmask 261120
    %v716 = vsel %vm714, %v690, 0
    %v719 = vsel %vm714, %v691, 0
    %v722 = vsel %vm714, %v692, 0
    %v725 = vsel %vm714, %v693, 0
    %v728 = vsel %vm714, %v698, 0
    %v731 = vsel %vm714, %v699, 0
    %v734 = vsel %vm714, %v700, 0
    %v737 = vsel %vm714, %v701, 0
    %739 = vmatprep.subr.bf16.mxu0 0
    %740 = vmatpush1.bf16.xpose.msra.mxu0 %v728
    %741 = vmatprep.subr.bf16.mxu0 0
    %742 = vmatpush1.bf16.xpose.msra.mxu0 %v731
    %743 = vmatprep.subr.bf16.mxu0 0
    %744 = vmatpush1.bf16.xpose.msra.mxu0 %v734
    %745 = vmatprep.subr.bf16.mxu0 0
    %746 = vmatpush1.bf16.xpose.msra.mxu0 %v737
    %747 = vmatprep.subr.bf16.mxu0 0
    %748 = vmatpush1.bf16.xpose.msra.mxu0 0
    %749 = vmatprep.subr.bf16.mxu0 0
    %750 = vmatpush1.bf16.xpose.msra.mxu0 0
    %751 = vmatprep.subr.bf16.mxu0 0
    %752 = vmatpush1.bf16.xpose.msra.mxu0 0
    %753 = vmatprep.subr.bf16.mxu0 0
    %754 = vmatpush1.bf16.xpose.msra.mxu0 0
    %755 = vmatprep.subr.bf16.mxu0 0
    %756 = vmatpush1.bf16.xpose.msra.mxu0 0
    %757 = vmatprep.subr.bf16.mxu0 0
    %758 = vmatpush1.bf16.xpose.msra.mxu0 0
    %759 = vmatprep.subr.bf16.mxu0 0
    %760 = vmatpush1.bf16.xpose.msra.mxu0 0
    %761 = vmatprep.subr.bf16.mxu0 0
    %762 = vmatpush1.bf16.xpose.msra.mxu0 0
    %763 = vmatprep.subr.bf16.mxu0 0
    %764 = vmatpush1.bf16.xpose.msra.mxu0 0
    %765 = vmatprep.subr.bf16.mxu0 0
    %766 = vmatpush1.bf16.xpose.msra.mxu0 0
    %767 = vmatprep.subr.bf16.mxu0 0
    %768 = vmatpush1.bf16.xpose.msra.mxu0 0
    %769 = vmatprep.subr.bf16.mxu0 0
    %770 = vmatpush1.bf16.xpose.msra.mxu0 0
    %771 = vmatprep.mubr.bf16.mxu0 0
    %772 = vmatmul.mubr.bf16.gmra.mrb[0].mxu0 %v716
    %v773 = vpop.f32.mrb[0].mxu0
    %v774 = vadd.f32 0.0, %v773
    %v775 = vpop.f32.mrb[0].mxu0
    %v776 = vpop.f32.mrb[0].mxu0
    %v777 = vadd.f32 0.0, %v776
    %v778 = vpop.f32.mrb[0].mxu0
    %779 = vmatprep.mubr.bf16.mxu0 0
    %780 = vmatmul.mubr.bf16.gmra.mrb[0].mxu0 %v719
    %v781 = vpop.f32.mrb[0].mxu0
    %v782 = vadd.f32 0.0, %v781
    %v783 = vpop.f32.mrb[0].mxu0
    %v784 = vpop.f32.mrb[0].mxu0
    %v785 = vadd.f32 0.0, %v784
    %v786 = vpop.f32.mrb[0].mxu0
    %787 = vmatprep.mubr.bf16.mxu0 0
    %788 = vmatmul.mubr.bf16.gmra.mrb[0].mxu0 %v722
    %v789 = vpop.f32.mrb[0].mxu0
    %v790 = vadd.f32 0.0, %v789
    %v791 = vpop.f32.mrb[0].mxu0
    %v792 = vpop.f32.mrb[0].mxu0
    %v793 = vadd.f32 0.0, %v792
    %v794 = vpop.f32.mrb[0].mxu0
    %795 = vmatprep.mubr.bf16.mxu0 0
    %796 = vmatmul.mubr.bf16.gmra.mrb[0].mxu0 %v725
    %v797 = vpop.f32.mrb[0].mxu0
    %v798 = vadd.f32 0.0, %v797
    %v799 = vpop.f32.mrb[0].mxu0
    %v800 = vpop.f32.mrb[0].mxu0
    %v801 = vadd.f32 0.0, %v800
    %v802 = vpop.f32.mrb[0].mxu0
    %803 = vdwg.mxu0
    %v805 = vsel %vm714, %v694, 0
    %v808 = vsel %vm714, %v695, 0
    %v811 = vsel %vm714, %v696, 0
    %v814 = vsel %vm714, %v697, 0
    %v817 = vsel %vm714, %v702, 0
    %v820 = vsel %vm714, %v703, 0
    %v823 = vsel %vm714, %v704, 0
    %v826 = vsel %vm714, %v705, 0
    %828 = vmatprep.subr.bf16.mxu0 0
    %829 = vmatpush1.bf16.xpose.msra.mxu0 %v817
    %830 = vmatprep.subr.bf16.mxu0 0
    %831 = vmatpush1.bf16.xpose.msra.mxu0 %v820
    %832 = vmatprep.subr.bf16.mxu0 0
    %833 = vmatpush1.bf16.xpose.msra.mxu0 %v823
    %834 = vmatprep.subr.bf16.mxu0 0
    %835 = vmatpush1.bf16.xpose.msra.mxu0 %v826
    %836 = vmatprep.subr.bf16.mxu0 0
    %837 = vmatpush1.bf16.xpose.msra.mxu0 0
    %838 = vmatprep.subr.bf16.mxu0 0
    %839 = vmatpush1.bf16.xpose.msra.mxu0 0
    %840 = vmatprep.subr.bf16.mxu0 0
    %841 = vmatpush1.bf16.xpose.msra.mxu0 0
    %842 = vmatprep.subr.bf16.mxu0 0
    %843 = vmatpush1.bf16.xpose.msra.mxu0 0
    %844 = vmatprep.subr.bf16.mxu0 0
    %845 = vmatpush1.bf16.xpose.msra.mxu0 0
    %846 = vmatprep.subr.bf16.mxu0 0
    %847 = vmatpush1.bf16.xpose.msra.mxu0 0
    %848 = vmatprep.subr.bf16.mxu0 0
    %849 = vmatpush1.bf16.xpose.msra.mxu0 0
    %850 = vmatprep.subr.bf16.mxu0 0
    %851 = vmatpush1.bf16.xpose.msra.mxu0 0
    %852 = vmatprep.subr.bf16.mxu0 0
    %853 = vmatpush1.bf16.xpose.msra.mxu0 0
    %854 = vmatprep.subr.bf16.mxu0 0
    %855 = vmatpush1.bf16.xpose.msra.mxu0 0
    %856 = vmatprep.subr.bf16.mxu0 0
    %857 = vmatpush1.bf16.xpose.msra.mxu0 0
    %858 = vmatprep.subr.bf16.mxu0 0
    %859 = vmatpush1.bf16.xpose.msra.mxu0 0
    %860 = vmatprep.mubr.bf16.mxu0 0
    %861 = vmatmul.mubr.bf16.gmra.mrb[0].mxu0 %v805
    %v862 = vpop.f32.mrb[0].mxu0
    %v863 = vadd.f32 0.0, %v862
    %v864 = vpop.f32.mrb[0].mxu0
    %v865 = vpop.f32.mrb[0].mxu0
    %v866 = vadd.f32 0.0, %v865
    %v867 = vpop.f32.mrb[0].mxu0
    %868 = vmatprep.mubr.bf16.mxu0 0
    %869 = vmatmul.mubr.bf16.gmra.mrb[0].mxu0 %v808
    %v870 = vpop.f32.mrb[0].mxu0
    %v871 = vadd.f32 0.0, %v870
    %v872 = vpop.f32.mrb[0].mxu0
    %v873 = vpop.f32.mrb[0].mxu0
    %v874 = vadd.f32 0.0, %v873
    %v875 = vpop.f32.mrb[0].mxu0
    %876 = vmatprep.mubr.bf16.mxu0 0
    %877 = vmatmul.mubr.bf16.gmra.mrb[0].mxu0 %v811
    %v878 = vpop.f32.mrb[0].mxu0
    %v879 = vadd.f32 0.0, %v878
    %v880 = vpop.f32.mrb[0].mxu0
    %v881 = vpop.f32.mrb[0].mxu0
    %v882 = vadd.f32 0.0, %v881
    %v883 = vpop.f32.mrb[0].mxu0
    %884 = vmatprep.mubr.bf16.mxu0 0
    %885 = vmatmul.mubr.bf16.gmra.mrb[0].mxu0 %v814
    %v886 = vpop.f32.mrb[0].mxu0
    %v887 = vadd.f32 0.0, %v886
    %v888 = vpop.f32.mrb[0].mxu0
    %v889 = vpop.f32.mrb[0].mxu0
    %v890 = vadd.f32 0.0, %v889
    %v891 = vpop.f32.mrb[0].mxu0
    %892 = vdwg.mxu0
    %v893 = vmul.f32 %v774, 0.17677669
    %v894 = vmul.f32 %v777, 0.17677669
    %v895 = vmul.f32 %v782, 0.17677669
    %v896 = vmul.f32 %v785, 0.17677669
    %v897 = vmul.f32 %v790, 0.17677669
    %v898 = vmul.f32 %v793, 0.17677669
    %v899 = vmul.f32 %v798, 0.17677669
    %v900 = vmul.f32 %v801, 0.17677669
    %v901 = vmul.f32 %v863, 0.17677669
    %v902 = vmul.f32 %v866, 0.17677669
    %v903 = vmul.f32 %v871, 0.17677669
    %v904 = vmul.f32 %v874, 0.17677669
    %v905 = vmul.f32 %v879, 0.17677669
    %v906 = vmul.f32 %v882, 0.17677669
    %v907 = vmul.f32 %v887, 0.17677669
    %v908 = vmul.f32 %v890, 0.17677669
    %v909 = vsel %vm296, %v893, -inf
    %910 = vmax.xlane.f32.xlu0 %v909
    %v911 = vpop.xlane.xlu0 %910
    %v912 = vsel %vm296, %v894, -inf
    %913 = vmax.xlane.f32.xlu0 %v912
    %v914 = vpop.xlane.xlu0 %913
    %v915 = vsel %vm296, %v895, -inf
    %916 = vmax.xlane.f32.xlu0 %v915
    %v917 = vpop.xlane.xlu0 %916
    %v918 = vsel %vm296, %v896, -inf
    %919 = vmax.xlane.f32.xlu0 %v918
    %v920 = vpop.xlane.xlu0 %919
    %v921 = vsel %vm296, %v897, -inf
    %922 = vmax.xlane.f32.xlu0 %v921
    %v923 = vpop.xlane.xlu0 %922
    %v924 = vsel %vm296, %v898, -inf
    %925 = vmax.xlane.f32.xlu0 %v924
    %v926 = vpop.xlane.xlu0 %925
    %v927 = vsel %vm296, %v899, -inf
    %928 = vmax.xlane.f32.xlu0 %v927
    %v929 = vpop.xlane.xlu0 %928
    %v930 = vsel %vm296, %v900, -inf
    %931 = vmax.xlane.f32.xlu0 %v930
    %v932 = vpop.xlane.xlu0 %931
    %v933 = vsel %vm296, %v901, -inf
    %934 = vmax.xlane.f32.xlu0 %v933
    %v935 = vpop.xlane.xlu0 %934
    %v936 = vsel %vm296, %v902, -inf
    %937 = vmax.xlane.f32.xlu0 %v936
    %v938 = vpop.xlane.xlu0 %937
    %v939 = vsel %vm296, %v903, -inf
    %940 = vmax.xlane.f32.xlu0 %v939
    %v941 = vpop.xlane.xlu0 %940
    %v942 = vsel %vm296, %v904, -inf
    %943 = vmax.xlane.f32.xlu0 %v942
    %v944 = vpop.xlane.xlu0 %943
    %v945 = vsel %vm296, %v905, -inf
    %946 = vmax.xlane.f32.xlu0 %v945
    %v947 = vpop.xlane.xlu0 %946
    %v948 = vsel %vm296, %v906, -inf
    %949 = vmax.xlane.f32.xlu0 %v948
    %v950 = vpop.xlane.xlu0 %949
    %v951 = vsel %vm296, %v907, -inf
    %952 = vmax.xlane.f32.xlu0 %v951
    %v953 = vpop.xlane.xlu0 %952
    %v954 = vsel %vm296, %v908, -inf
    %955 = vmax.xlane.f32.xlu0 %v954
    %v956 = vpop.xlane.xlu0 %955
    %v957 = vsub.f32 %v893, %v911
    %v958 = vsub.f32 %v894, %v914
    %v959 = vsub.f32 %v895, %v917
    %v960 = vsub.f32 %v896, %v920
    %v961 = vsub.f32 %v897, %v923
    %v962 = vsub.f32 %v898, %v926
    %v963 = vsub.f32 %v899, %v929
    %v964 = vsub.f32 %v900, %v932
    %v965 = vsub.f32 %v901, %v935
    %v966 = vsub.f32 %v902, %v938
    %v967 = vsub.f32 %v903, %v941
    %v968 = vsub.f32 %v904, %v944
    %v969 = vsub.f32 %v905, %v947
    %v970 = vsub.f32 %v906, %v950
    %v971 = vsub.f32 %v907, %v953
    %v972 = vsub.f32 %v908, %v956
    %v973 = vmul.f32 %v957, 1.442695
    %v974 = vpow.pop %v973
    %v975 = vmul.f32 %v958, 1.442695
    %v976 = vpow.pop %v975
    %v977 = vmul.f32 %v959, 1.442695
    %v978 = vpow.pop %v977
    %v979 = vmul.f32 %v960, 1.442695
    %v980 = vpow.pop %v979
    %v981 = vmul.f32 %v961, 1.442695
    %v982 = vpow.pop %v981
    %v983 = vmul.f32 %v962, 1.442695
    %v984 = vpow.pop %v983
    %v985 = vmul.f32 %v963, 1.442695
    %v986 = vpow.pop %v985
    %v987 = vmul.f32 %v964, 1.442695
    %v988 = vpow.pop %v987
    %v989 = vmul.f32 %v965, 1.442695
    %v990 = vpow.pop %v989
    %v991 = vmul.f32 %v966, 1.442695
    %v992 = vpow.pop %v991
    %v993 = vmul.f32 %v967, 1.442695
    %v994 = vpow.pop %v993
    %v995 = vmul.f32 %v968, 1.442695
    %v996 = vpow.pop %v995
    %v997 = vmul.f32 %v969, 1.442695
    %v998 = vpow.pop %v997
    %v999 = vmul.f32 %v970, 1.442695
    %v1000 = vpow.pop %v999
    %v1001 = vmul.f32 %v971, 1.442695
    %v1002 = vpow.pop %v1001
    %v1003 = vmul.f32 %v972, 1.442695
    %v1004 = vpow.pop %v1003
    %v1005 = vsel %vm296, %v974, 0.0
    %1006 = vadd.xlane.f32.xlu0 %v1005
    %v1007 = vpop.xlane.xlu0 %1006
    %v1008 = vsel %vm296, %v976, 0.0
    %1009 = vadd.xlane.f32.xlu0 %v1008
    %v1010 = vpop.xlane.xlu0 %1009
    %v1011 = vsel %vm296, %v978, 0.0
    %1012 = vadd.xlane.f32.xlu0 %v1011
    %v1013 = vpop.xlane.xlu0 %1012
    %v1014 = vsel %vm296, %v980, 0.0
    %1015 = vadd.xlane.f32.xlu0 %v1014
    %v1016 = vpop.xlane.xlu0 %1015
    %v1017 = vsel %vm296, %v982, 0.0
    %1018 = vadd.xlane.f32.xlu0 %v1017
    %v1019 = vpop.xlane.xlu0 %1018
    %v1020 = vsel %vm296, %v984, 0.0
    %1021 = vadd.xlane.f32.xlu0 %v1020
    %v1022 = vpop.xlane.xlu0 %1021
    %v1023 = vsel %vm296, %v986, 0.0
    %1024 = vadd.xlane.f32.xlu0 %v1023
    %v1025 = vpop.xlane.xlu0 %1024
    %v1026 = vsel %vm296, %v988, 0.0
    %1027 = vadd.xlane.f32.xlu0 %v1026
    %v1028 = vpop.xlane.xlu0 %1027
    %v1029 = vsel %vm296, %v990, 0.0
    %1030 = vadd.xlane.f32.xlu0 %v1029
    %v1031 = vpop.xlane.xlu0 %1030
    %v1032 = vsel %vm296, %v992, 0.0
    %1033 = vadd.xlane.f32.xlu0 %v1032
    %v1034 = vpop.xlane.xlu0 %1033
    %v1035 = vsel %vm296, %v994, 0.0
    %1036 = vadd.xlane.f32.xlu0 %v1035
    %v1037 = vpop.xlane.xlu0 %1036
    %v1038 = vsel %vm296, %v996, 0.0
    %1039 = vadd.xlane.f32.xlu0 %v1038
    %v1040 = vpop.xlane.xlu0 %1039
    %v1041 = vsel %vm296, %v998, 0.0
    %1042 = vadd.xlane.f32.xlu0 %v1041
    %v1043 = vpop.xlane.xlu0 %1042
    %v1044 = vsel %vm296, %v1000, 0.0
    %1045 = vadd.xlane.f32.xlu0 %v1044
    %v1046 = vpop.xlane.xlu0 %1045
    %v1047 = vsel %vm296, %v1002, 0.0
    %1048 = vadd.xlane.f32.xlu0 %v1047
    %v1049 = vpop.xlane.xlu0 %1048
    %v1050 = vsel %vm296, %v1004, 0.0
    %1051 = vadd.xlane.f32.xlu0 %v1050
    %v1052 = vpop.xlane.xlu0 %1051
    %v1053 = vrcp.pop %v1007
    %v1054 = vrcp.pop %v1010
    %v1055 = vrcp.pop %v1013
    %v1056 = vrcp.pop %v1016
    %v1057 = vrcp.pop %v1019
    %v1058 = vrcp.pop %v1022
    %v1059 = vrcp.pop %v1025
    %v1060 = vrcp.pop %v1028
    %v1061 = vrcp.pop %v1031
    %v1062 = vrcp.pop %v1034
    %v1063 = vrcp.pop %v1037
    %v1064 = vrcp.pop %v1040
    %v1065 = vrcp.pop %v1043
    %v1066 = vrcp.pop %v1046
    %v1067 = vrcp.pop %v1049
    %v1068 = vrcp.pop %v1052
    %v1069 = vmul.f32 %v974, %v1053
    %v1070 = vmul.f32 %v976, %v1054
    %v1071 = vmul.f32 %v978, %v1055
    %v1072 = vmul.f32 %v980, %v1056
    %v1073 = vmul.f32 %v982, %v1057
    %v1074 = vmul.f32 %v984, %v1058
    %v1075 = vmul.f32 %v986, %v1059
    %v1076 = vmul.f32 %v988, %v1060
    %v1077 = vmul.f32 %v990, %v1061
    %v1078 = vmul.f32 %v992, %v1062
    %v1079 = vmul.f32 %v994, %v1063
    %v1080 = vmul.f32 %v996, %v1064
    %v1081 = vmul.f32 %v998, %v1065
    %v1082 = vmul.f32 %v1000, %v1066
    %v1083 = vmul.f32 %v1002, %v1067
    %v1084 = vmul.f32 %v1004, %v1068
    %v1085 = vpack.c.bf16 %v1070, %v1069
    %v1086 = vpack.c.bf16 %v1072, %v1071
    %v1087 = vpack.c.bf16 %v1074, %v1073
    %v1088 = vpack.c.bf16 %v1076, %v1075
    %v1089 = vpack.c.bf16 %v1078, %v1077
    %v1090 = vpack.c.bf16 %v1080, %v1079
    %v1091 = vpack.c.bf16 %v1082, %v1081
    %v1092 = vpack.c.bf16 %v1084, %v1083
    %v1094 = vsel %vm296, %v1085, 0
    %v1097 = vsel %vm296, %v1086, 0
    %v1100 = vsel %vm296, %v1087, 0
    %v1103 = vsel %vm296, %v1088, 0
    %1105 = vmatprep.subr.bf16.mxu0 0
    %1106 = vmatpush1.bf16.msra.mxu0 %v706
    %1107 = vmatprep.subr.bf16.mxu0 0
    %1108 = vmatpush1.bf16.msra.mxu0 %v707
    %1109 = vmatprep.subr.bf16.mxu0 0
    %1110 = vmatpush1.bf16.msra.mxu0 %v708
    %1111 = vmatprep.subr.bf16.mxu0 0
    %1112 = vmatpush1.bf16.msra.mxu0 %v709
    %1113 = vmatprep.subr.bf16.mxu0 0
    %1114 = vmatpush1.bf16.msra.mxu0 0
    %1115 = vmatprep.subr.bf16.mxu0 0
    %1116 = vmatpush1.bf16.msra.mxu0 0
    %1117 = vmatprep.subr.bf16.mxu0 0
    %1118 = vmatpush1.bf16.msra.mxu0 0
    %1119 = vmatprep.subr.bf16.mxu0 0
    %1120 = vmatpush1.bf16.msra.mxu0 0
    %1121 = vmatprep.subr.bf16.mxu0 0
    %1122 = vmatpush1.bf16.msra.mxu0 0
    %1123 = vmatprep.subr.bf16.mxu0 0
    %1124 = vmatpush1.bf16.msra.mxu0 0
    %1125 = vmatprep.subr.bf16.mxu0 0
    %1126 = vmatpush1.bf16.msra.mxu0 0
    %1127 = vmatprep.subr.bf16.mxu0 0
    %1128 = vmatpush1.bf16.msra.mxu0 0
    %1129 = vmatprep.subr.bf16.mxu0 0
    %1130 = vmatpush1.bf16.msra.mxu0 0
    %1131 = vmatprep.subr.bf16.mxu0 0
    %1132 = vmatpush1.bf16.msra.mxu0 0
    %1133 = vmatprep.subr.bf16.mxu0 0
    %1134 = vmatpush1.bf16.msra.mxu0 0
    %1135 = vmatprep.subr.bf16.mxu0 0
    %1136 = vmatpush1.bf16.msra.mxu0 0
    %1137 = vmatprep.mubr.bf16.mxu0 0
    %1138 = vmatmul.mubr.bf16.gmra.mrb[0].mxu0 %v1094
    %v1139 = vpop.f32.mrb[0].mxu0
    %v1140 = vadd.f32 0.0, %v1139
    %v1141 = vpop.f32.mrb[0].mxu0
    %v1142 = vpop.f32.mrb[0].mxu0
    %v1143 = vadd.f32 0.0, %v1142
    %v1144 = vpop.f32.mrb[0].mxu0
    %1145 = vmatprep.mubr.bf16.mxu0 0
    %1146 = vmatmul.mubr.bf16.gmra.mrb[0].mxu0 %v1097
    %v1147 = vpop.f32.mrb[0].mxu0
    %v1148 = vadd.f32 0.0, %v1147
    %v1149 = vpop.f32.mrb[0].mxu0
    %v1150 = vpop.f32.mrb[0].mxu0
    %v1151 = vadd.f32 0.0, %v1150
    %v1152 = vpop.f32.mrb[0].mxu0
    %1153 = vmatprep.mubr.bf16.mxu0 0
    %1154 = vmatmul.mubr.bf16.gmra.mrb[0].mxu0 %v1100
    %v1155 = vpop.f32.mrb[0].mxu0
    %v1156 = vadd.f32 0.0, %v1155
    %v1157 = vpop.f32.mrb[0].mxu0
    %v1158 = vpop.f32.mrb[0].mxu0
    %v1159 = vadd.f32 0.0, %v1158
    %v1160 = vpop.f32.mrb[0].mxu0
    %1161 = vmatprep.mubr.bf16.mxu0 0
    %1162 = vmatmul.mubr.bf16.gmra.mrb[0].mxu0 %v1103
    %v1163 = vpop.f32.mrb[0].mxu0
    %v1164 = vadd.f32 0.0, %v1163
    %v1165 = vpop.f32.mrb[0].mxu0
    %v1166 = vpop.f32.mrb[0].mxu0
    %v1167 = vadd.f32 0.0, %v1166
    %v1168 = vpop.f32.mrb[0].mxu0
    %1169 = vdwg.mxu0
    %v1171 = vsel %vm296, %v1089, 0
    %v1174 = vsel %vm296, %v1090, 0
    %v1177 = vsel %vm296, %v1091, 0
    %v1180 = vsel %vm296, %v1092, 0
    %1182 = vmatprep.subr.bf16.mxu0 0
    %1183 = vmatpush1.bf16.msra.mxu0 %v710
    %1184 = vmatprep.subr.bf16.mxu0 0
    %1185 = vmatpush1.bf16.msra.mxu0 %v711
    %1186 = vmatprep.subr.bf16.mxu0 0
    %1187 = vmatpush1.bf16.msra.mxu0 %v712
    %1188 = vmatprep.subr.bf16.mxu0 0
    %1189 = vmatpush1.bf16.msra.mxu0 %v713
    %1190 = vmatprep.subr.bf16.mxu0 0
    %1191 = vmatpush1.bf16.msra.mxu0 0
    %1192 = vmatprep.subr.bf16.mxu0 0
    %1193 = vmatpush1.bf16.msra.mxu0 0
    %1194 = vmatprep.subr.bf16.mxu0 0
    %1195 = vmatpush1.bf16.msra.mxu0 0
    %1196 = vmatprep.subr.bf16.mxu0 0
    %1197 = vmatpush1.bf16.msra.mxu0 0
    %1198 = vmatprep.subr.bf16.mxu0 0
    %1199 = vmatpush1.bf16.msra.mxu0 0
    %1200 = vmatprep.subr.bf16.mxu0 0
    %1201 = vmatpush1.bf16.msra.mxu0 0
    %1202 = vmatprep.subr.bf16.mxu0 0
    %1203 = vmatpush1.bf16.msra.mxu0 0
    %1204 = vmatprep.subr.bf16.mxu0 0
    %1205 = vmatpush1.bf16.msra.mxu0 0
    %1206 = vmatprep.subr.bf16.mxu0 0
    %1207 = vmatpush1.bf16.msra.mxu0 0
    %1208 = vmatprep.subr.bf16.mxu0 0
    %1209 = vmatpush1.bf16.msra.mxu0 0
    %1210 = vmatprep.subr.bf16.mxu0 0
    %1211 = vmatpush1.bf16.msra.mxu0 0
    %1212 = vmatprep.subr.bf16.mxu0 0
    %1213 = vmatpush1.bf16.msra.mxu0 0
    %1214 = vmatprep.mubr.bf16.mxu0 0
    %1215 = vmatmul.mubr.bf16.gmra.mrb[0].mxu0 %v1171
    %v1216 = vpop.f32.mrb[0].mxu0
    %v1217 = vadd.f32 0.0, %v1216
    %v1218 = vpop.f32.mrb[0].mxu0
    %v1219 = vpop.f32.mrb[0].mxu0
    %v1220 = vadd.f32 0.0, %v1219
    %v1221 = vpop.f32.mrb[0].mxu0
    %1222 = vmatprep.mubr.bf16.mxu0 0
    %1223 = vmatmul.mubr.bf16.gmra.mrb[0].mxu0 %v1174
    %v1224 = vpop.f32.mrb[0].mxu0
    %v1225 = vadd.f32 0.0, %v1224
    %v1226 = vpop.f32.mrb[0].mxu0
    %v1227 = vpop.f32.mrb[0].mxu0
    %v1228 = vadd.f32 0.0, %v1227
    %v1229 = vpop.f32.mrb[0].mxu0
    %1230 = vmatprep.mubr.bf16.mxu0 0
    %1231 = vmatmul.mubr.bf16.gmra.mrb[0].mxu0 %v1177
    %v1232 = vpop.f32.mrb[0].mxu0
    %v1233 = vadd.f32 0.0, %v1232
    %v1234 = vpop.f32.mrb[0].mxu0
    %v1235 = vpop.f32.mrb[0].mxu0
    %v1236 = vadd.f32 0.0, %v1235
    %v1237 = vpop.f32.mrb[0].mxu0
    %1238 = vmatprep.mubr.bf16.mxu0 0
    %1239 = vmatmul.mubr.bf16.gmra.mrb[0].mxu0 %v1180
    %v1240 = vpop.f32.mrb[0].mxu0
    %v1241 = vadd.f32 0.0, %v1240
    %v1242 = vpop.f32.mrb[0].mxu0
    %v1243 = vpop.f32.mrb[0].mxu0
    %v1244 = vadd.f32 0.0, %v1243
    %v1245 = vpop.f32.mrb[0].mxu0
    %1246 = vdwg.mxu0
    %s1247 = scalar_lea.vmem [#allocation6], 32
    %v1248 = vld [vmem:[%s1247] sm:$0xf]
    %v1249 = vld [vmem:[%s1247 + $0x4] sm:$0xf]
    %v1250 = vld [vmem:[%s1247 + $0x8] sm:$0xf]
    %v1251 = vld [vmem:[%s1247 + $0xc] sm:$0xf]
    %v1252 = vld [vmem:[%s1247 + $0x10] sm:$0xf]
    %v1253 = vld [vmem:[%s1247 + $0x14] sm:$0xf]
    %v1254 = vld [vmem:[%s1247 + $0x18] sm:$0xf]
    %v1255 = vld [vmem:[%s1247 + $0x1c] sm:$0xf]
    %s1256 = scalar_lea.vmem %s5, 1
    %v1257 = vld [vmem:[%s1256] sm:$0x1]
    %v1259 = vlaneseq
    %v1260 = vshrl.u32 %v1259, 7
    %v1261 = vsub.s32 0, %v1260
    %v1262 = vrot.slane %v1257, %v1261
    %v1272 = vunpack.c.l.b16 %v1248
    %v1273 = vunpack.c.l.b16 %v1249
    %v1274 = vunpack.c.l.b16 %v1250
    %v1275 = vunpack.c.l.b16 %v1251
    %v1276 = vunpack.c.l.b16 %v1252
    %v1277 = vunpack.c.l.b16 %v1253
    %v1278 = vunpack.c.l.b16 %v1254
    %v1279 = vunpack.c.l.b16 %v1255
    %v1280 = vpack.c.b16 %v1273, %v1272
    %v1281 = vpack.c.b16 %v1275, %v1274
    %v1282 = vpack.c.b16 %v1277, %v1276
    %v1283 = vpack.c.b16 %v1279, %v1278
    %1288 = vmatprep.subr.bf16.mxu0 0
    %1289 = vmatpush1.bf16.msra.mxu0 %v1280
    %1290 = vmatprep.subr.bf16.mxu0 0
    %1291 = vmatpush1.bf16.msra.mxu0 %v1281
    %1292 = vmatprep.subr.bf16.mxu0 0
    %1293 = vmatpush1.bf16.msra.mxu0 %v1282
    %1294 = vmatprep.subr.bf16.mxu0 0
    %1295 = vmatpush1.bf16.msra.mxu0 %v1283
    %1296 = vmatprep.subr.bf16.mxu0 0
    %1297 = vmatpush1.bf16.msra.mxu0 0
    %1298 = vmatprep.subr.bf16.mxu0 0
    %1299 = vmatpush1.bf16.msra.mxu0 0
    %1300 = vmatprep.subr.bf16.mxu0 0
    %1301 = vmatpush1.bf16.msra.mxu0 0
    %1302 = vmatprep.subr.bf16.mxu0 0
    %1303 = vmatpush1.bf16.msra.mxu0 0
    %1304 = vmatprep.subr.bf16.mxu0 0
    %1305 = vmatpush1.bf16.msra.mxu0 0
    %1306 = vmatprep.subr.bf16.mxu0 0
    %1307 = vmatpush1.bf16.msra.mxu0 0
    %1308 = vmatprep.subr.bf16.mxu0 0
    %1309 = vmatpush1.bf16.msra.mxu0 0
    %1310 = vmatprep.subr.bf16.mxu0 0
    %1311 = vmatpush1.bf16.msra.mxu0 0
    %1312 = vmatprep.subr.bf16.mxu0 0
    %1313 = vmatpush1.bf16.msra.mxu0 0
    %1314 = vmatprep.subr.bf16.mxu0 0
    %1315 = vmatpush1.bf16.msra.mxu0 0
    %1316 = vmatprep.subr.bf16.mxu0 0
    %1317 = vmatpush1.bf16.msra.mxu0 0
    %1318 = vmatprep.subr.bf16.mxu0 0
    %1319 = vmatpush1.bf16.msra.mxu0 0
    %1320 = vmatprep.mubr.bf16.mxu0 0
    %1321 = vmatmul.mubr.bf16.gmra.mrb[0].mxu0 %v298
    %v1322 = vpop.f32.mrb[0].mxu0
    %v1323 = vadd.f32 %v1262, %v1322
    %v1324 = vpop.f32.mrb[0].mxu0
    %v1325 = vpop.f32.mrb[0].mxu0
    %v1326 = vadd.f32 %v1262, %v1325
    %v1327 = vpop.f32.mrb[0].mxu0
    %1328 = vmatprep.mubr.bf16.mxu0 0
    %1329 = vmatmul.mubr.bf16.gmra.mrb[0].mxu0 %v301
    %v1330 = vpop.f32.mrb[0].mxu0
    %v1331 = vadd.f32 %v1262, %v1330
    %v1332 = vpop.f32.mrb[0].mxu0
    %v1333 = vpop.f32.mrb[0].mxu0
    %v1334 = vadd.f32 %v1262, %v1333
    %v1335 = vpop.f32.mrb[0].mxu0
    %1336 = vmatprep.mubr.bf16.mxu0 0
    %1337 = vmatmul.mubr.bf16.gmra.mrb[0].mxu0 %v304
    %v1338 = vpop.f32.mrb[0].mxu0
    %v1339 = vadd.f32 %v1262, %v1338
    %v1340 = vpop.f32.mrb[0].mxu0
    %v1341 = vpop.f32.mrb[0].mxu0
    %v1342 = vadd.f32 %v1262, %v1341
    %v1343 = vpop.f32.mrb[0].mxu0
    %1344 = vmatprep.mubr.bf16.mxu0 0
    %1345 = vmatmul.mubr.bf16.gmra.mrb[0].mxu0 %v307
    %v1346 = vpop.f32.mrb[0].mxu0
    %v1347 = vadd.f32 %v1262, %v1346
    %v1348 = vpop.f32.mrb[0].mxu0
    %v1349 = vpop.f32.mrb[0].mxu0
    %v1350 = vadd.f32 %v1262, %v1349
    %v1351 = vpop.f32.mrb[0].mxu0
    %1352 = vmatprep.mubr.bf16.mxu0 0
    %1353 = vmatmul.mubr.bf16.gmra.mrb[0].mxu0 %v310
    %v1354 = vpop.f32.mrb[0].mxu0
    %v1355 = vadd.f32 %v1262, %v1354
    %v1356 = vpop.f32.mrb[0].mxu0
    %v1357 = vpop.f32.mrb[0].mxu0
    %v1358 = vadd.f32 %v1262, %v1357
    %v1359 = vpop.f32.mrb[0].mxu0
    %1360 = vmatprep.mubr.bf16.mxu0 0
    %1361 = vmatmul.mubr.bf16.gmra.mrb[0].mxu0 %v313
    %v1362 = vpop.f32.mrb[0].mxu0
    %v1363 = vadd.f32 %v1262, %v1362
    %v1364 = vpop.f32.mrb[0].mxu0
    %v1365 = vpop.f32.mrb[0].mxu0
    %v1366 = vadd.f32 %v1262, %v1365
    %v1367 = vpop.f32.mrb[0].mxu0
    %1368 = vmatprep.mubr.bf16.mxu0 0
    %1369 = vmatmul.mubr.bf16.gmra.mrb[0].mxu0 %v316
    %v1370 = vpop.f32.mrb[0].mxu0
    %v1371 = vadd.f32 %v1262, %v1370
    %v1372 = vpop.f32.mrb[0].mxu0
    %v1373 = vpop.f32.mrb[0].mxu0
    %v1374 = vadd.f32 %v1262, %v1373
    %v1375 = vpop.f32.mrb[0].mxu0
    %1376 = vmatprep.mubr.bf16.mxu0 0
    %1377 = vmatmul.mubr.bf16.gmra.mrb[0].mxu0 %v319
    %v1378 = vpop.f32.mrb[0].mxu0
    %v1379 = vadd.f32 %v1262, %v1378
    %v1380 = vpop.f32.mrb[0].mxu0
    %v1381 = vpop.f32.mrb[0].mxu0
    %v1382 = vadd.f32 %v1262, %v1381
    %v1383 = vpop.f32.mrb[0].mxu0
    %1384 = vdwg.mxu0
    %s1385 = scalar_lea.vmem [#allocation7], 32
    %v1386 = vld [vmem:[%s1385] sm:$0xf]
    %v1387 = vld [vmem:[%s1385 + $0x4] sm:$0xf]
    %v1388 = vld [vmem:[%s1385 + $0x8] sm:$0xf]
    %v1389 = vld [vmem:[%s1385 + $0xc] sm:$0xf]
    %v1390 = vld [vmem:[%s1385 + $0x10] sm:$0xf]
    %v1391 = vld [vmem:[%s1385 + $0x14] sm:$0xf]
    %v1392 = vld [vmem:[%s1385 + $0x18] sm:$0xf]
    %v1393 = vld [vmem:[%s1385 + $0x1c] sm:$0xf]
    %s1394 = scalar_lea.vmem %s6, 1
    %v1395 = vld [vmem:[%s1394] sm:$0x1]
    %v1397 = vlaneseq
    %v1398 = vshrl.u32 %v1397, 7
    %v1399 = vsub.s32 0, %v1398
    %v1400 = vrot.slane %v1395, %v1399
    %v1410 = vunpack.c.l.b16 %v1386
    %v1411 = vunpack.c.l.b16 %v1387
    %v1412 = vunpack.c.l.b16 %v1388
    %v1413 = vunpack.c.l.b16 %v1389
    %v1414 = vunpack.c.l.b16 %v1390
    %v1415 = vunpack.c.l.b16 %v1391
    %v1416 = vunpack.c.l.b16 %v1392
    %v1417 = vunpack.c.l.b16 %v1393
    %v1418 = vpack.c.b16 %v1411, %v1410
    %v1419 = vpack.c.b16 %v1413, %v1412
    %v1420 = vpack.c.b16 %v1415, %v1414
    %v1421 = vpack.c.b16 %v1417, %v1416
    %1426 = vmatprep.subr.bf16.mxu0 0
    %1427 = vmatpush1.bf16.msra.mxu0 %v1418
    %1428 = vmatprep.subr.bf16.mxu0 0
    %1429 = vmatpush1.bf16.msra.mxu0 %v1419
    %1430 = vmatprep.subr.bf16.mxu0 0
    %1431 = vmatpush1.bf16.msra.mxu0 %v1420
    %1432 = vmatprep.subr.bf16.mxu0 0
    %1433 = vmatpush1.bf16.msra.mxu0 %v1421
    %1434 = vmatprep.subr.bf16.mxu0 0
    %1435 = vmatpush1.bf16.msra.mxu0 0
    %1436 = vmatprep.subr.bf16.mxu0 0
    %1437 = vmatpush1.bf16.msra.mxu0 0
    %1438 = vmatprep.subr.bf16.mxu0 0
    %1439 = vmatpush1.bf16.msra.mxu0 0
    %1440 = vmatprep.subr.bf16.mxu0 0
    %1441 = vmatpush1.bf16.msra.mxu0 0
    %1442 = vmatprep.subr.bf16.mxu0 0
    %1443 = vmatpush1.bf16.msra.mxu0 0
    %1444 = vmatprep.subr.bf16.mxu0 0
    %1445 = vmatpush1.bf16.msra.mxu0 0
    %1446 = vmatprep.subr.bf16.mxu0 0
    %1447 = vmatpush1.bf16.msra.mxu0 0
    %1448 = vmatprep.subr.bf16.mxu0 0
    %1449 = vmatpush1.bf16.msra.mxu0 0
    %1450 = vmatprep.subr.bf16.mxu0 0
    %1451 = vmatpush1.bf16.msra.mxu0 0
    %1452 = vmatprep.subr.bf16.mxu0 0
    %1453 = vmatpush1.bf16.msra.mxu0 0
    %1454 = vmatprep.subr.bf16.mxu0 0
    %1455 = vmatpush1.bf16.msra.mxu0 0
    %1456 = vmatprep.subr.bf16.mxu0 0
    %1457 = vmatpush1.bf16.msra.mxu0 0
    %1458 = vmatprep.mubr.bf16.mxu0 0
    %1459 = vmatmul.mubr.bf16.gmra.mrb[0].mxu0 %v298
    %v1460 = vpop.f32.mrb[0].mxu0
    %v1461 = vadd.f32 %v1400, %v1460
    %v1462 = vpop.f32.mrb[0].mxu0
    %v1463 = vpop.f32.mrb[0].mxu0
    %v1464 = vadd.f32 %v1400, %v1463
    %v1465 = vpop.f32.mrb[0].mxu0
    %1466 = vmatprep.mubr.bf16.mxu0 0
    %1467 = vmatmul.mubr.bf16.gmra.mrb[0].mxu0 %v301
    %v1468 = vpop.f32.mrb[0].mxu0
    %v1469 = vadd.f32 %v1400, %v1468
    %v1470 = vpop.f32.mrb[0].mxu0
    %v1471 = vpop.f32.mrb[0].mxu0
    %v1472 = vadd.f32 %v1400, %v1471
    %v1473 = vpop.f32.mrb[0].mxu0
    %1474 = vmatprep.mubr.bf16.mxu0 0
    %1475 = vmatmul.mubr.bf16.gmra.mrb[0].mxu0 %v304
    %v1476 = vpop.f32.mrb[0].mxu0
    %v1477 = vadd.f32 %v1400, %v1476
    %v1478 = vpop.f32.mrb[0].mxu0
    %v1479 = vpop.f32.mrb[0].mxu0
    %v1480 = vadd.f32 %v1400, %v1479
    %v1481 = vpop.f32.mrb[0].mxu0
    %1482 = vmatprep.mubr.bf16.mxu0 0
    %1483 = vmatmul.mubr.bf16.gmra.mrb[0].mxu0 %v307
    %v1484 = vpop.f32.mrb[0].mxu0
    %v1485 = vadd.f32 %v1400, %v1484
    %v1486 = vpop.f32.mrb[0].mxu0
    %v1487 = vpop.f32.mrb[0].mxu0
    %v1488 = vadd.f32 %v1400, %v1487
    %v1489 = vpop.f32.mrb[0].mxu0
    %1490 = vmatprep.mubr.bf16.mxu0 0
    %1491 = vmatmul.mubr.bf16.gmra.mrb[0].mxu0 %v310
    %v1492 = vpop.f32.mrb[0].mxu0
    %v1493 = vadd.f32 %v1400, %v1492
    %v1494 = vpop.f32.mrb[0].mxu0
    %v1495 = vpop.f32.mrb[0].mxu0
    %v1496 = vadd.f32 %v1400, %v1495
    %v1497 = vpop.f32.mrb[0].mxu0
    %1498 = vmatprep.mubr.bf16.mxu0 0
    %1499 = vmatmul.mubr.bf16.gmra.mrb[0].mxu0 %v313
    %v1500 = vpop.f32.mrb[0].mxu0
    %v1501 = vadd.f32 %v1400, %v1500
    %v1502 = vpop.f32.mrb[0].mxu0
    %v1503 = vpop.f32.mrb[0].mxu0
    %v1504 = vadd.f32 %v1400, %v1503
    %v1505 = vpop.f32.mrb[0].mxu0
    %1506 = vmatprep.mubr.bf16.mxu0 0
    %1507 = vmatmul.mubr.bf16.gmra.mrb[0].mxu0 %v316
    %v1508 = vpop.f32.mrb[0].mxu0
    %v1509 = vadd.f32 %v1400, %v1508
    %v1510 = vpop.f32.mrb[0].mxu0
    %v1511 = vpop.f32.mrb[0].mxu0
    %v1512 = vadd.f32 %v1400, %v1511
    %v1513 = vpop.f32.mrb[0].mxu0
    %1514 = vmatprep.mubr.bf16.mxu0 0
    %1515 = vmatmul.mubr.bf16.gmra.mrb[0].mxu0 %v319
    %v1516 = vpop.f32.mrb[0].mxu0
    %v1517 = vadd.f32 %v1400, %v1516
    %v1518 = vpop.f32.mrb[0].mxu0
    %v1519 = vpop.f32.mrb[0].mxu0
    %v1520 = vadd.f32 %v1400, %v1519
    %v1521 = vpop.f32.mrb[0].mxu0
    %1522 = vdwg.mxu0
    %s1523 = scalar_lea.vmem [#allocation9], 32
    %v1524 = vld [vmem:[%s1523] sm:$0xf]
    %v1525 = vld [vmem:[%s1523 + $0x4] sm:$0xf]
    %v1526 = vld [vmem:[%s1523 + $0x8] sm:$0xf]
    %v1527 = vld [vmem:[%s1523 + $0xc] sm:$0xf]
    %v1528 = vld [vmem:[%s1523 + $0x10] sm:$0xf]
    %v1529 = vld [vmem:[%s1523 + $0x14] sm:$0xf]
    %v1530 = vld [vmem:[%s1523 + $0x18] sm:$0xf]
    %v1531 = vld [vmem:[%s1523 + $0x1c] sm:$0xf]
    %s1532 = scalar_lea.vmem %s7, 1
    %v1533 = vld [vmem:[%s1532] sm:$0x1]
    %v1535 = vlaneseq
    %v1536 = vshrl.u32 %v1535, 7
    %v1537 = vsub.s32 0, %v1536
    %v1538 = vrot.slane %v1533, %v1537
    %v1548 = vunpack.c.l.b16 %v1524
    %v1549 = vunpack.c.l.b16 %v1525
    %v1550 = vunpack.c.l.b16 %v1526
    %v1551 = vunpack.c.l.b16 %v1527
    %v1552 = vunpack.c.l.b16 %v1528
    %v1553 = vunpack.c.l.b16 %v1529
    %v1554 = vunpack.c.l.b16 %v1530
    %v1555 = vunpack.c.l.b16 %v1531
    %v1556 = vpack.c.b16 %v1549, %v1548
    %v1557 = vpack.c.b16 %v1551, %v1550
    %v1558 = vpack.c.b16 %v1553, %v1552
    %v1559 = vpack.c.b16 %v1555, %v1554
    %1564 = vmatprep.subr.bf16.mxu0 0
    %1565 = vmatpush1.bf16.msra.mxu0 %v1556
    %1566 = vmatprep.subr.bf16.mxu0 0
    %1567 = vmatpush1.bf16.msra.mxu0 %v1557
    %1568 = vmatprep.subr.bf16.mxu0 0
    %1569 = vmatpush1.bf16.msra.mxu0 %v1558
    %1570 = vmatprep.subr.bf16.mxu0 0
    %1571 = vmatpush1.bf16.msra.mxu0 %v1559
    %1572 = vmatprep.subr.bf16.mxu0 0
    %1573 = vmatpush1.bf16.msra.mxu0 0
    %1574 = vmatprep.subr.bf16.mxu0 0
    %1575 = vmatpush1.bf16.msra.mxu0 0
    %1576 = vmatprep.subr.bf16.mxu0 0
    %1577 = vmatpush1.bf16.msra.mxu0 0
    %1578 = vmatprep.subr.bf16.mxu0 0
    %1579 = vmatpush1.bf16.msra.mxu0 0
    %1580 = vmatprep.subr.bf16.mxu0 0
    %1581 = vmatpush1.bf16.msra.mxu0 0
    %1582 = vmatprep.subr.bf16.mxu0 0
    %1583 = vmatpush1.bf16.msra.mxu0 0
    %1584 = vmatprep.subr.bf16.mxu0 0
    %1585 = vmatpush1.bf16.msra.mxu0 0
    %1586 = vmatprep.subr.bf16.mxu0 0
    %1587 = vmatpush1.bf16.msra.mxu0 0
    %1588 = vmatprep.subr.bf16.mxu0 0
    %1589 = vmatpush1.bf16.msra.mxu0 0
    %1590 = vmatprep.subr.bf16.mxu0 0
    %1591 = vmatpush1.bf16.msra.mxu0 0
    %1592 = vmatprep.subr.bf16.mxu0 0
    %1593 = vmatpush1.bf16.msra.mxu0 0
    %1594 = vmatprep.subr.bf16.mxu0 0
    %1595 = vmatpush1.bf16.msra.mxu0 0
    %1596 = vmatprep.mubr.bf16.mxu0 0
    %1597 = vmatmul.mubr.bf16.gmra.mrb[0].mxu0 %v298
    %v1598 = vpop.f32.mrb[0].mxu0
    %v1599 = vadd.f32 %v1538, %v1598
    %v1600 = vpop.f32.mrb[0].mxu0
    %v1601 = vpop.f32.mrb[0].mxu0
    %v1602 = vadd.f32 %v1538, %v1601
    %v1603 = vpop.f32.mrb[0].mxu0
    %1604 = vmatprep.mubr.bf16.mxu0 0
    %1605 = vmatmul.mubr.bf16.gmra.mrb[0].mxu0 %v301
    %v1606 = vpop.f32.mrb[0].mxu0
    %v1607 = vadd.f32 %v1538, %v1606
    %v1608 = vpop.f32.mrb[0].mxu0
    %v1609 = vpop.f32.mrb[0].mxu0
    %v1610 = vadd.f32 %v1538, %v1609
    %v1611 = vpop.f32.mrb[0].mxu0
    %1612 = vmatprep.mubr.bf16.mxu0 0
    %1613 = vmatmul.mubr.bf16.gmra.mrb[0].mxu0 %v304
    %v1614 = vpop.f32.mrb[0].mxu0
    %v1615 = vadd.f32 %v1538, %v1614
    %v1616 = vpop.f32.mrb[0].mxu0
    %v1617 = vpop.f32.mrb[0].mxu0
    %v1618 = vadd.f32 %v1538, %v1617
    %v1619 = vpop.f32.mrb[0].mxu0
    %1620 = vmatprep.mubr.bf16.mxu0 0
    %1621 = vmatmul.mubr.bf16.gmra.mrb[0].mxu0 %v307
    %v1622 = vpop.f32.mrb[0].mxu0
    %v1623 = vadd.f32 %v1538, %v1622
    %v1624 = vpop.f32.mrb[0].mxu0
    %v1625 = vpop.f32.mrb[0].mxu0
    %v1626 = vadd.f32 %v1538, %v1625
    %v1627 = vpop.f32.mrb[0].mxu0
    %1628 = vmatprep.mubr.bf16.mxu0 0
    %1629 = vmatmul.mubr.bf16.gmra.mrb[0].mxu0 %v310
    %v1630 = vpop.f32.mrb[0].mxu0
    %v1631 = vadd.f32 %v1538, %v1630
    %v1632 = vpop.f32.mrb[0].mxu0
    %v1633 = vpop.f32.mrb[0].mxu0
    %v1634 = vadd.f32 %v1538, %v1633
    %v1635 = vpop.f32.mrb[0].mxu0
    %1636 = vmatprep.mubr.bf16.mxu0 0
    %1637 = vmatmul.mubr.bf16.gmra.mrb[0].mxu0 %v313
    %v1638 = vpop.f32.mrb[0].mxu0
    %v1639 = vadd.f32 %v1538, %v1638
    %v1640 = vpop.f32.mrb[0].mxu0
    %v1641 = vpop.f32.mrb[0].mxu0
    %v1642 = vadd.f32 %v1538, %v1641
    %v1643 = vpop.f32.mrb[0].mxu0
    %1644 = vmatprep.mubr.bf16.mxu0 0
    %1645 = vmatmul.mubr.bf16.gmra.mrb[0].mxu0 %v316
    %v1646 = vpop.f32.mrb[0].mxu0
    %v1647 = vadd.f32 %v1538, %v1646
    %v1648 = vpop.f32.mrb[0].mxu0
    %v1649 = vpop.f32.mrb[0].mxu0
    %v1650 = vadd.f32 %v1538, %v1649
    %v1651 = vpop.f32.mrb[0].mxu0
    %1652 = vmatprep.mubr.bf16.mxu0 0
    %1653 = vmatmul.mubr.bf16.gmra.mrb[0].mxu0 %v319
    %v1654 = vpop.f32.mrb[0].mxu0
    %v1655 = vadd.f32 %v1538, %v1654
    %v1656 = vpop.f32.mrb[0].mxu0
    %v1657 = vpop.f32.mrb[0].mxu0
    %v1658 = vadd.f32 %v1538, %v1657
    %v1659 = vpop.f32.mrb[0].mxu0
    %1660 = vdwg.mxu0
    %v1661 = vpack.c.bf16 %v1326, %v1323
    %v1662 = vpack.c.bf16 %v1334, %v1331
    %v1663 = vpack.c.bf16 %v1342, %v1339
    %v1664 = vpack.c.bf16 %v1350, %v1347
    %v1665 = vpack.c.bf16 %v1358, %v1355
    %v1666 = vpack.c.bf16 %v1366, %v1363
    %v1667 = vpack.c.bf16 %v1374, %v1371
    %v1668 = vpack.c.bf16 %v1382, %v1379
    %v1669 = vpack.c.bf16 %v1464, %v1461
    %v1670 = vpack.c.bf16 %v1472, %v1469
    %v1671 = vpack.c.bf16 %v1480, %v1477
    %v1672 = vpack.c.bf16 %v1488, %v1485
    %v1673 = vpack.c.bf16 %v1496, %v1493
    %v1674 = vpack.c.bf16 %v1504, %v1501
    %v1675 = vpack.c.bf16 %v1512, %v1509
    %v1676 = vpack.c.bf16 %v1520, %v1517
    %v1677 = vpack.c.bf16 %v1602, %v1599
    %v1678 = vpack.c.bf16 %v1610, %v1607
    %v1679 = vpack.c.bf16 %v1618, %v1615
    %v1680 = vpack.c.bf16 %v1626, %v1623
    %v1681 = vpack.c.bf16 %v1634, %v1631
    %v1682 = vpack.c.bf16 %v1642, %v1639
    %v1683 = vpack.c.bf16 %v1650, %v1647
    %v1684 = vpack.c.bf16 %v1658, %v1655
    %v1686 = vsel %vm714, %v1661, 0
    %v1689 = vsel %vm714, %v1662, 0
    %v1692 = vsel %vm714, %v1663, 0
    %v1695 = vsel %vm714, %v1664, 0
    %v1698 = vsel %vm714, %v1669, 0
    %v1701 = vsel %vm714, %v1670, 0
    %v1704 = vsel %vm714, %v1671, 0
    %v1707 = vsel %vm714, %v1672, 0
    %1709 = vmatprep.subr.bf16.mxu0 0
    %1710 = vmatpush1.bf16.xpose.msra.mxu0 %v1698
    %1711 = vmatprep.subr.bf16.mxu0 0
    %1712 = vmatpush1.bf16.xpose.msra.mxu0 %v1701
    %1713 = vmatprep.subr.bf16.mxu0 0
    %1714 = vmatpush1.bf16.xpose.msra.mxu0 %v1704
    %1715 = vmatprep.subr.bf16.mxu0 0
    %1716 = vmatpush1.bf16.xpose.msra.mxu0 %v1707
    %1717 = vmatprep.subr.bf16.mxu0 0
    %1718 = vmatpush1.bf16.xpose.msra.mxu0 0
    %1719 = vmatprep.subr.bf16.mxu0 0
    %1720 = vmatpush1.bf16.xpose.msra.mxu0 0
    %1721 = vmatprep.subr.bf16.mxu0 0
    %1722 = vmatpush1.bf16.xpose.msra.mxu0 0
    %1723 = vmatprep.subr.bf16.mxu0 0
    %1724 = vmatpush1.bf16.xpose.msra.mxu0 0
    %1725 = vmatprep.subr.bf16.mxu0 0
    %1726 = vmatpush1.bf16.xpose.msra.mxu0 0
    %1727 = vmatprep.subr.bf16.mxu0 0
    %1728 = vmatpush1.bf16.xpose.msra.mxu0 0
    %1729 = vmatprep.subr.bf16.mxu0 0
    %1730 = vmatpush1.bf16.xpose.msra.mxu0 0
    %1731 = vmatprep.subr.bf16.mxu0 0
    %1732 = vmatpush1.bf16.xpose.msra.mxu0 0
    %1733 = vmatprep.subr.bf16.mxu0 0
    %1734 = vmatpush1.bf16.xpose.msra.mxu0 0
    %1735 = vmatprep.subr.bf16.mxu0 0
    %1736 = vmatpush1.bf16.xpose.msra.mxu0 0
    %1737 = vmatprep.subr.bf16.mxu0 0
    %1738 = vmatpush1.bf16.xpose.msra.mxu0 0
    %1739 = vmatprep.subr.bf16.mxu0 0
    %1740 = vmatpush1.bf16.xpose.msra.mxu0 0
    %1741 = vmatprep.mubr.bf16.mxu0 0
    %1742 = vmatmul.mubr.bf16.gmra.mrb[0].mxu0 %v1686
    %v1743 = vpop.f32.mrb[0].mxu0
    %v1744 = vadd.f32 0.0, %v1743
    %v1745 = vpop.f32.mrb[0].mxu0
    %v1746 = vpop.f32.mrb[0].mxu0
    %v1747 = vadd.f32 0.0, %v1746
    %v1748 = vpop.f32.mrb[0].mxu0
    %1749 = vmatprep.mubr.bf16.mxu0 0
    %1750 = vmatmul.mubr.bf16.gmra.mrb[0].mxu0 %v1689
    %v1751 = vpop.f32.mrb[0].mxu0
    %v1752 = vadd.f32 0.0, %v1751
    %v1753 = vpop.f32.mrb[0].mxu0
    %v1754 = vpop.f32.mrb[0].mxu0
    %v1755 = vadd.f32 0.0, %v1754
    %v1756 = vpop.f32.mrb[0].mxu0
    %1757 = vmatprep.mubr.bf16.mxu0 0
    %1758 = vmatmul.mubr.bf16.gmra.mrb[0].mxu0 %v1692
    %v1759 = vpop.f32.mrb[0].mxu0
    %v1760 = vadd.f32 0.0, %v1759
    %v1761 = vpop.f32.mrb[0].mxu0
    %v1762 = vpop.f32.mrb[0].mxu0
    %v1763 = vadd.f32 0.0, %v1762
    %v1764 = vpop.f32.mrb[0].mxu0
    %1765 = vmatprep.mubr.bf16.mxu0 0
    %1766 = vmatmul.mubr.bf16.gmra.mrb[0].mxu0 %v1695
    %v1767 = vpop.f32.mrb[0].mxu0
    %v1768 = vadd.f32 0.0, %v1767
    %v1769 = vpop.f32.mrb[0].mxu0
    %v1770 = vpop.f32.mrb[0].mxu0
    %v1771 = vadd.f32 0.0, %v1770
    %v1772 = vpop.f32.mrb[0].mxu0
    %1773 = vdwg.mxu0
    %v1775 = vsel %vm714, %v1665, 0
    %v1778 = vsel %vm714, %v1666, 0
    %v1781 = vsel %vm714, %v1667, 0
    %v1784 = vsel %vm714, %v1668, 0
    %v1787 = vsel %vm714, %v1673, 0
    %v1790 = vsel %vm714, %v1674, 0
    %v1793 = vsel %vm714, %v1675, 0
    %v1796 = vsel %vm714, %v1676, 0
    %1798 = vmatprep.subr.bf16.mxu0 0
    %1799 = vmatpush1.bf16.xpose.msra.mxu0 %v1787
    %1800 = vmatprep.subr.bf16.mxu0 0
    %1801 = vmatpush1.bf16.xpose.msra.mxu0 %v1790
    %1802 = vmatprep.subr.bf16.mxu0 0
    %1803 = vmatpush1.bf16.xpose.msra.mxu0 %v1793
    %1804 = vmatprep.subr.bf16.mxu0 0
    %1805 = vmatpush1.bf16.xpose.msra.mxu0 %v1796
    %1806 = vmatprep.subr.bf16.mxu0 0
    %1807 = vmatpush1.bf16.xpose.msra.mxu0 0
    %1808 = vmatprep.subr.bf16.mxu0 0
    %1809 = vmatpush1.bf16.xpose.msra.mxu0 0
    %1810 = vmatprep.subr.bf16.mxu0 0
    %1811 = vmatpush1.bf16.xpose.msra.mxu0 0
    %1812 = vmatprep.subr.bf16.mxu0 0
    %1813 = vmatpush1.bf16.xpose.msra.mxu0 0
    %1814 = vmatprep.subr.bf16.mxu0 0
    %1815 = vmatpush1.bf16.xpose.msra.mxu0 0
    %1816 = vmatprep.subr.bf16.mxu0 0
    %1817 = vmatpush1.bf16.xpose.msra.mxu0 0
    %1818 = vmatprep.subr.bf16.mxu0 0
    %1819 = vmatpush1.bf16.xpose.msra.mxu0 0
    %1820 = vmatprep.subr.bf16.mxu0 0
    %1821 = vmatpush1.bf16.xpose.msra.mxu0 0
    %1822 = vmatprep.subr.bf16.mxu0 0
    %1823 = vmatpush1.bf16.xpose.msra.mxu0 0
    %1824 = vmatprep.subr.bf16.mxu0 0
    %1825 = vmatpush1.bf16.xpose.msra.mxu0 0
    %1826 = vmatprep.subr.bf16.mxu0 0
    %1827 = vmatpush1.bf16.xpose.msra.mxu0 0
    %1828 = vmatprep.subr.bf16.mxu0 0
    %1829 = vmatpush1.bf16.xpose.msra.mxu0 0
    %1830 = vmatprep.mubr.bf16.mxu0 0
    %1831 = vmatmul.mubr.bf16.gmra.mrb[0].mxu0 %v1775
    %v1832 = vpop.f32.mrb[0].mxu0
    %v1833 = vadd.f32 0.0, %v1832
    %v1834 = vpop.f32.mrb[0].mxu0
    %v1835 = vpop.f32.mrb[0].mxu0
    %v1836 = vadd.f32 0.0, %v1835
    %v1837 = vpop.f32.mrb[0].mxu0
    %1838 = vmatprep.mubr.bf16.mxu0 0
    %1839 = vmatmul.mubr.bf16.gmra.mrb[0].mxu0 %v1778
    %v1840 = vpop.f32.mrb[0].mxu0
    %v1841 = vadd.f32 0.0, %v1840
    %v1842 = vpop.f32.mrb[0].mxu0
    %v1843 = vpop.f32.mrb[0].mxu0
    %v1844 = vadd.f32 0.0, %v1843
    %v1845 = vpop.f32.mrb[0].mxu0
    %1846 = vmatprep.mubr.bf16.mxu0 0
    %1847 = vmatmul.mubr.bf16.gmra.mrb[0].mxu0 %v1781
    %v1848 = vpop.f32.mrb[0].mxu0
    %v1849 = vadd.f32 0.0, %v1848
    %v1850 = vpop.f32.mrb[0].mxu0
    %v1851 = vpop.f32.mrb[0].mxu0
    %v1852 = vadd.f32 0.0, %v1851
    %v1853 = vpop.f32.mrb[0].mxu0
    %1854 = vmatprep.mubr.bf16.mxu0 0
    %1855 = vmatmul.mubr.bf16.gmra.mrb[0].mxu0 %v1784
    %v1856 = vpop.f32.mrb[0].mxu0
    %v1857 = vadd.f32 0.0, %v1856
    %v1858 = vpop.f32.mrb[0].mxu0
    %v1859 = vpop.f32.mrb[0].mxu0
    %v1860 = vadd.f32 0.0, %v1859
    %v1861 = vpop.f32.mrb[0].mxu0
    %1862 = vdwg.mxu0
    %v1863 = vmul.f32 %v1744, 0.17677669
    %v1864 = vmul.f32 %v1747, 0.17677669
    %v1865 = vmul.f32 %v1752, 0.17677669
    %v1866 = vmul.f32 %v1755, 0.17677669
    %v1867 = vmul.f32 %v1760, 0.17677669
    %v1868 = vmul.f32 %v1763, 0.17677669
    %v1869 = vmul.f32 %v1768, 0.17677669
    %v1870 = vmul.f32 %v1771, 0.17677669
    %v1871 = vmul.f32 %v1833, 0.17677669
    %v1872 = vmul.f32 %v1836, 0.17677669
    %v1873 = vmul.f32 %v1841, 0.17677669
    %v1874 = vmul.f32 %v1844, 0.17677669
    %v1875 = vmul.f32 %v1849, 0.17677669
    %v1876 = vmul.f32 %v1852, 0.17677669
    %v1877 = vmul.f32 %v1857, 0.17677669
    %v1878 = vmul.f32 %v1860, 0.17677669
    %v1879 = vsel %vm296, %v1863, -inf
    %1880 = vmax.xlane.f32.xlu0 %v1879
    %v1881 = vpop.xlane.xlu0 %1880
    %v1882 = vsel %vm296, %v1864, -inf
    %1883 = vmax.xlane.f32.xlu0 %v1882
    %v1884 = vpop.xlane.xlu0 %1883
    %v1885 = vsel %vm296, %v1865, -inf
    %1886 = vmax.xlane.f32.xlu0 %v1885
    %v1887 = vpop.xlane.xlu0 %1886
    %v1888 = vsel %vm296, %v1866, -inf
    %1889 = vmax.xlane.f32.xlu0 %v1888
    %v1890 = vpop.xlane.xlu0 %1889
    %v1891 = vsel %vm296, %v1867, -inf
    %1892 = vmax.xlane.f32.xlu0 %v1891
    %v1893 = vpop.xlane.xlu0 %1892
    %v1894 = vsel %vm296, %v1868, -inf
    %1895 = vmax.xlane.f32.xlu0 %v1894
    %v1896 = vpop.xlane.xlu0 %1895
    %v1897 = vsel %vm296, %v1869, -inf
    %1898 = vmax.xlane.f32.xlu0 %v1897
    %v1899 = vpop.xlane.xlu0 %1898
    %v1900 = vsel %vm296, %v1870, -inf
    %1901 = vmax.xlane.f32.xlu0 %v1900
    %v1902 = vpop.xlane.xlu0 %1901
    %v1903 = vsel %vm296, %v1871, -inf
    %1904 = vmax.xlane.f32.xlu0 %v1903
    %v1905 = vpop.xlane.xlu0 %1904
    %v1906 = vsel %vm296, %v1872, -inf
    %1907 = vmax.xlane.f32.xlu0 %v1906
    %v1908 = vpop.xlane.xlu0 %1907
    %v1909 = vsel %vm296, %v1873, -inf
    %1910 = vmax.xlane.f32.xlu0 %v1909
    %v1911 = vpop.xlane.xlu0 %1910
    %v1912 = vsel %vm296, %v1874, -inf
    %1913 = vmax.xlane.f32.xlu0 %v1912
    %v1914 = vpop.xlane.xlu0 %1913
    %v1915 = vsel %vm296, %v1875, -inf
    %1916 = vmax.xlane.f32.xlu0 %v1915
    %v1917 = vpop.xlane.xlu0 %1916
    %v1918 = vsel %vm296, %v1876, -inf
    %1919 = vmax.xlane.f32.xlu0 %v1918
    %v1920 = vpop.xlane.xlu0 %1919
    %v1921 = vsel %vm296, %v1877, -inf
    %1922 = vmax.xlane.f32.xlu0 %v1921
    %v1923 = vpop.xlane.xlu0 %1922
    %v1924 = vsel %vm296, %v1878, -inf
    %1925 = vmax.xlane.f32.xlu0 %v1924
    %v1926 = vpop.xlane.xlu0 %1925
    %v1927 = vsub.f32 %v1863, %v1881
    %v1928 = vsub.f32 %v1864, %v1884
    %v1929 = vsub.f32 %v1865, %v1887
    %v1930 = vsub.f32 %v1866, %v1890
    %v1931 = vsub.f32 %v1867, %v1893
    %v1932 = vsub.f32 %v1868, %v1896
    %v1933 = vsub.f32 %v1869, %v1899
    %v1934 = vsub.f32 %v1870, %v1902
    %v1935 = vsub.f32 %v1871, %v1905
    %v1936 = vsub.f32 %v1872, %v1908
    %v1937 = vsub.f32 %v1873, %v1911
    %v1938 = vsub.f32 %v1874, %v1914
    %v1939 = vsub.f32 %v1875, %v1917
    %v1940 = vsub.f32 %v1876, %v1920
    %v1941 = vsub.f32 %v1877, %v1923
    %v1942 = vsub.f32 %v1878, %v1926
    %v1943 = vmul.f32 %v1927, 1.442695
    %v1944 = vpow.pop %v1943
    %v1945 = vmul.f32 %v1928, 1.442695
    %v1946 = vpow.pop %v1945
    %v1947 = vmul.f32 %v1929, 1.442695
    %v1948 = vpow.pop %v1947
    %v1949 = vmul.f32 %v1930, 1.442695
    %v1950 = vpow.pop %v1949
    %v1951 = vmul.f32 %v1931, 1.442695
    %v1952 = vpow.pop %v1951
    %v1953 = vmul.f32 %v1932, 1.442695
    %v1954 = vpow.pop %v1953
    %v1955 = vmul.f32 %v1933, 1.442695
    %v1956 = vpow.pop %v1955
    %v1957 = vmul.f32 %v1934, 1.442695
    %v1958 = vpow.pop %v1957
    %v1959 = vmul.f32 %v1935, 1.442695
    %v1960 = vpow.pop %v1959
    %v1961 = vmul.f32 %v1936, 1.442695
    %v1962 = vpow.pop %v1961
    %v1963 = vmul.f32 %v1937, 1.442695
    %v1964 = vpow.pop %v1963
    %v1965 = vmul.f32 %v1938, 1.442695
    %v1966 = vpow.pop %v1965
    %v1967 = vmul.f32 %v1939, 1.442695
    %v1968 = vpow.pop %v1967
    %v1969 = vmul.f32 %v1940, 1.442695
    %v1970 = vpow.pop %v1969
    %v1971 = vmul.f32 %v1941, 1.442695
    %v1972 = vpow.pop %v1971
    %v1973 = vmul.f32 %v1942, 1.442695
    %v1974 = vpow.pop %v1973
    %v1975 = vsel %vm296, %v1944, 0.0
    %1976 = vadd.xlane.f32.xlu0 %v1975
    %v1977 = vpop.xlane.xlu0 %1976
    %v1978 = vsel %vm296, %v1946, 0.0
    %1979 = vadd.xlane.f32.xlu0 %v1978
    %v1980 = vpop.xlane.xlu0 %1979
    %v1981 = vsel %vm296, %v1948, 0.0
    %1982 = vadd.xlane.f32.xlu0 %v1981
    %v1983 = vpop.xlane.xlu0 %1982
    %v1984 = vsel %vm296, %v1950, 0.0
    %1985 = vadd.xlane.f32.xlu0 %v1984
    %v1986 = vpop.xlane.xlu0 %1985
    %v1987 = vsel %vm296, %v1952, 0.0
    %1988 = vadd.xlane.f32.xlu0 %v1987
    %v1989 = vpop.xlane.xlu0 %1988
    %v1990 = vsel %vm296, %v1954, 0.0
    %1991 = vadd.xlane.f32.xlu0 %v1990
    %v1992 = vpop.xlane.xlu0 %1991
    %v1993 = vsel %vm296, %v1956, 0.0
    %1994 = vadd.xlane.f32.xlu0 %v1993
    %v1995 = vpop.xlane.xlu0 %1994
    %v1996 = vsel %vm296, %v1958, 0.0
    %1997 = vadd.xlane.f32.xlu0 %v1996
    %v1998 = vpop.xlane.xlu0 %1997
    %v1999 = vsel %vm296, %v1960, 0.0
    %2000 = vadd.xlane.f32.xlu0 %v1999
    %v2001 = vpop.xlane.xlu0 %2000
    %v2002 = vsel %vm296, %v1962, 0.0
    %2003 = vadd.xlane.f32.xlu0 %v2002
    %v2004 = vpop.xlane.xlu0 %2003
    %v2005 = vsel %vm296, %v1964, 0.0
    %2006 = vadd.xlane.f32.xlu0 %v2005
    %v2007 = vpop.xlane.xlu0 %2006
    %v2008 = vsel %vm296, %v1966, 0.0
    %2009 = vadd.xlane.f32.xlu0 %v2008
    %v2010 = vpop.xlane.xlu0 %2009
    %v2011 = vsel %vm296, %v1968, 0.0
    %2012 = vadd.xlane.f32.xlu0 %v2011
    %v2013 = vpop.xlane.xlu0 %2012
    %v2014 = vsel %vm296, %v1970, 0.0
    %2015 = vadd.xlane.f32.xlu0 %v2014
    %v2016 = vpop.xlane.xlu0 %2015
    %v2017 = vsel %vm296, %v1972, 0.0
    %2018 = vadd.xlane.f32.xlu0 %v2017
    %v2019 = vpop.xlane.xlu0 %2018
    %v2020 = vsel %vm296, %v1974, 0.0
    %2021 = vadd.xlane.f32.xlu0 %v2020
    %v2022 = vpop.xlane.xlu0 %2021
    %v2023 = vrcp.pop %v1977
    %v2024 = vrcp.pop %v1980
    %v2025 = vrcp.pop %v1983
    %v2026 = vrcp.pop %v1986
    %v2027 = vrcp.pop %v1989
    %v2028 = vrcp.pop %v1992
    %v2029 = vrcp.pop %v1995
    %v2030 = vrcp.pop %v1998
    %v2031 = vrcp.pop %v2001
    %v2032 = vrcp.pop %v2004
    %v2033 = vrcp.pop %v2007
    %v2034 = vrcp.pop %v2010
    %v2035 = vrcp.pop %v2013
    %v2036 = vrcp.pop %v2016
    %v2037 = vrcp.pop %v2019
    %v2038 = vrcp.pop %v2022
    %v2039 = vmul.f32 %v1944, %v2023
    %v2040 = vmul.f32 %v1946, %v2024
    %v2041 = vmul.f32 %v1948, %v2025
    %v2042 = vmul.f32 %v1950, %v2026
    %v2043 = vmul.f32 %v1952, %v2027
    %v2044 = vmul.f32 %v1954, %v2028
    %v2045 = vmul.f32 %v1956, %v2029
    %v2046 = vmul.f32 %v1958, %v2030
    %v2047 = vmul.f32 %v1960, %v2031
    %v2048 = vmul.f32 %v1962, %v2032
    %v2049 = vmul.f32 %v1964, %v2033
    %v2050 = vmul.f32 %v1966, %v2034
    %v2051 = vmul.f32 %v1968, %v2035
    %v2052 = vmul.f32 %v1970, %v2036
    %v2053 = vmul.f32 %v1972, %v2037
    %v2054 = vmul.f32 %v1974, %v2038
    %v2055 = vpack.c.bf16 %v2040, %v2039
    %v2056 = vpack.c.bf16 %v2042, %v2041
    %v2057 = vpack.c.bf16 %v2044, %v2043
    %v2058 = vpack.c.bf16 %v2046, %v2045
    %v2059 = vpack.c.bf16 %v2048, %v2047
    %v2060 = vpack.c.bf16 %v2050, %v2049
    %v2061 = vpack.c.bf16 %v2052, %v2051
    %v2062 = vpack.c.bf16 %v2054, %v2053
    %v2064 = vsel %vm296, %v2055, 0
    %v2067 = vsel %vm296, %v2056, 0
    %v2070 = vsel %vm296, %v2057, 0
    %v2073 = vsel %vm296, %v2058, 0
    %2075 = vmatprep.subr.bf16.mxu0 0
    %2076 = vmatpush1.bf16.msra.mxu0 %v1677
    %2077 = vmatprep.subr.bf16.mxu0 0
    %2078 = vmatpush1.bf16.msra.mxu0 %v1678
    %2079 = vmatprep.subr.bf16.mxu0 0
    %2080 = vmatpush1.bf16.msra.mxu0 %v1679
    %2081 = vmatprep.subr.bf16.mxu0 0
    %2082 = vmatpush1.bf16.msra.mxu0 %v1680
    %2083 = vmatprep.subr.bf16.mxu0 0
    %2084 = vmatpush1.bf16.msra.mxu0 0
    %2085 = vmatprep.subr.bf16.mxu0 0
    %2086 = vmatpush1.bf16.msra.mxu0 0
    %2087 = vmatprep.subr.bf16.mxu0 0
    %2088 = vmatpush1.bf16.msra.mxu0 0
    %2089 = vmatprep.subr.bf16.mxu0 0
    %2090 = vmatpush1.bf16.msra.mxu0 0
    %2091 = vmatprep.subr.bf16.mxu0 0
    %2092 = vmatpush1.bf16.msra.mxu0 0
    %2093 = vmatprep.subr.bf16.mxu0 0
    %2094 = vmatpush1.bf16.msra.mxu0 0
    %2095 = vmatprep.subr.bf16.mxu0 0
    %2096 = vmatpush1.bf16.msra.mxu0 0
    %2097 = vmatprep.subr.bf16.mxu0 0
    %2098 = vmatpush1.bf16.msra.mxu0 0
    %2099 = vmatprep.subr.bf16.mxu0 0
    %2100 = vmatpush1.bf16.msra.mxu0 0
    %2101 = vmatprep.subr.bf16.mxu0 0
    %2102 = vmatpush1.bf16.msra.mxu0 0
    %2103 = vmatprep.subr.bf16.mxu0 0
    %2104 = vmatpush1.bf16.msra.mxu0 0
    %2105 = vmatprep.subr.bf16.mxu0 0
    %2106 = vmatpush1.bf16.msra.mxu0 0
    %2107 = vmatprep.mubr.bf16.mxu0 0
    %2108 = vmatmul.mubr.bf16.gmra.mrb[0].mxu0 %v2064
    %v2109 = vpop.f32.mrb[0].mxu0
    %v2110 = vadd.f32 0.0, %v2109
    %v2111 = vpop.f32.mrb[0].mxu0
    %v2112 = vpop.f32.mrb[0].mxu0
    %v2113 = vadd.f32 0.0, %v2112
    %v2114 = vpop.f32.mrb[0].mxu0
    %2115 = vmatprep.mubr.bf16.mxu0 0
    %2116 = vmatmul.mubr.bf16.gmra.mrb[0].mxu0 %v2067
    %v2117 = vpop.f32.mrb[0].mxu0
    %v2118 = vadd.f32 0.0, %v2117
    %v2119 = vpop.f32.mrb[0].mxu0
    %v2120 = vpop.f32.mrb[0].mxu0
    %v2121 = vadd.f32 0.0, %v2120
    %v2122 = vpop.f32.mrb[0].mxu0
    %2123 = vmatprep.mubr.bf16.mxu0 0
    %2124 = vmatmul.mubr.bf16.gmra.mrb[0].mxu0 %v2070
    %v2125 = vpop.f32.mrb[0].mxu0
    %v2126 = vadd.f32 0.0, %v2125
    %v2127 = vpop.f32.mrb[0].mxu0
    %v2128 = vpop.f32.mrb[0].mxu0
    %v2129 = vadd.f32 0.0, %v2128
    %v2130 = vpop.f32.mrb[0].mxu0
    %2131 = vmatprep.mubr.bf16.mxu0 0
    %2132 = vmatmul.mubr.bf16.gmra.mrb[0].mxu0 %v2073
    %v2133 = vpop.f32.mrb[0].mxu0
    %v2134 = vadd.f32 0.0, %v2133
    %v2135 = vpop.f32.mrb[0].mxu0
    %v2136 = vpop.f32.mrb[0].mxu0
    %v2137 = vadd.f32 0.0, %v2136
    %v2138 = vpop.f32.mrb[0].mxu0
    %2139 = vdwg.mxu0
    %v2141 = vsel %vm296, %v2059, 0
    %v2144 = vsel %vm296, %v2060, 0
    %v2147 = vsel %vm296, %v2061, 0
    %v2150 = vsel %vm296, %v2062, 0
    %2152 = vmatprep.subr.bf16.mxu0 0
    %2153 = vmatpush1.bf16.msra.mxu0 %v1681
    %2154 = vmatprep.subr.bf16.mxu0 0
    %2155 = vmatpush1.bf16.msra.mxu0 %v1682
    %2156 = vmatprep.subr.bf16.mxu0 0
    %2157 = vmatpush1.bf16.msra.mxu0 %v1683
    %2158 = vmatprep.subr.bf16.mxu0 0
    %2159 = vmatpush1.bf16.msra.mxu0 %v1684
    %2160 = vmatprep.subr.bf16.mxu0 0
    %2161 = vmatpush1.bf16.msra.mxu0 0
    %2162 = vmatprep.subr.bf16.mxu0 0
    %2163 = vmatpush1.bf16.msra.mxu0 0
    %2164 = vmatprep.subr.bf16.mxu0 0
    %2165 = vmatpush1.bf16.msra.mxu0 0
    %2166 = vmatprep.subr.bf16.mxu0 0
    %2167 = vmatpush1.bf16.msra.mxu0 0
    %2168 = vmatprep.subr.bf16.mxu0 0
    %2169 = vmatpush1.bf16.msra.mxu0 0
    %2170 = vmatprep.subr.bf16.mxu0 0
    %2171 = vmatpush1.bf16.msra.mxu0 0
    %2172 = vmatprep.subr.bf16.mxu0 0
    %2173 = vmatpush1.bf16.msra.mxu0 0
    %2174 = vmatprep.subr.bf16.mxu0 0
    %2175 = vmatpush1.bf16.msra.mxu0 0
    %2176 = vmatprep.subr.bf16.mxu0 0
    %2177 = vmatpush1.bf16.msra.mxu0 0
    %2178 = vmatprep.subr.bf16.mxu0 0
    %2179 = vmatpush1.bf16.msra.mxu0 0
    %2180 = vmatprep.subr.bf16.mxu0 0
    %2181 = vmatpush1.bf16.msra.mxu0 0
    %2182 = vmatprep.subr.bf16.mxu0 0
    %2183 = vmatpush1.bf16.msra.mxu0 0
    %2184 = vmatprep.mubr.bf16.mxu0 0
    %2185 = vmatmul.mubr.bf16.gmra.mrb[0].mxu0 %v2141
    %v2186 = vpop.f32.mrb[0].mxu0
    %v2187 = vadd.f32 0.0, %v2186
    %v2188 = vpop.f32.mrb[0].mxu0
    %v2189 = vpop.f32.mrb[0].mxu0
    %v2190 = vadd.f32 0.0, %v2189
    %v2191 = vpop.f32.mrb[0].mxu0
    %2192 = vmatprep.mubr.bf16.mxu0 0
    %2193 = vmatmul.mubr.bf16.gmra.mrb[0].mxu0 %v2144
    %v2194 = vpop.f32.mrb[0].mxu0
    %v2195 = vadd.f32 0.0, %v2194
    %v2196 = vpop.f32.mrb[0].mxu0
    %v2197 = vpop.f32.mrb[0].mxu0
    %v2198 = vadd.f32 0.0, %v2197
    %v2199 = vpop.f32.mrb[0].mxu0
    %2200 = vmatprep.mubr.bf16.mxu0 0
    %2201 = vmatmul.mubr.bf16.gmra.mrb[0].mxu0 %v2147
    %v2202 = vpop.f32.mrb[0].mxu0
    %v2203 = vadd.f32 0.0, %v2202
    %v2204 = vpop.f32.mrb[0].mxu0
    %v2205 = vpop.f32.mrb[0].mxu0
    %v2206 = vadd.f32 0.0, %v2205
    %v2207 = vpop.f32.mrb[0].mxu0
    %2208 = vmatprep.mubr.bf16.mxu0 0
    %2209 = vmatmul.mubr.bf16.gmra.mrb[0].mxu0 %v2150
    %v2210 = vpop.f32.mrb[0].mxu0
    %v2211 = vadd.f32 0.0, %v2210
    %v2212 = vpop.f32.mrb[0].mxu0
    %v2213 = vpop.f32.mrb[0].mxu0
    %v2214 = vadd.f32 0.0, %v2213
    %v2215 = vpop.f32.mrb[0].mxu0
    %2216 = vdwg.mxu0
    %2233 = vrot.lane.b32.xlu0 %v2110, 32
    %v2234 = vpop.permute.xlu0 %2233
    %2235 = vrot.lane.b32.xlu0 %v2113, 32
    %v2236 = vpop.permute.xlu0 %2235
    %2237 = vrot.lane.b32.xlu0 %v2118, 32
    %v2238 = vpop.permute.xlu0 %2237
    %2239 = vrot.lane.b32.xlu0 %v2121, 32
    %v2240 = vpop.permute.xlu0 %2239
    %2241 = vrot.lane.b32.xlu0 %v2126, 32
    %v2242 = vpop.permute.xlu0 %2241
    %2243 = vrot.lane.b32.xlu0 %v2129, 32
    %v2244 = vpop.permute.xlu0 %2243
    %2245 = vrot.lane.b32.xlu0 %v2134, 32
    %v2246 = vpop.permute.xlu0 %2245
    %2247 = vrot.lane.b32.xlu0 %v2137, 32
    %v2248 = vpop.permute.xlu0 %2247
    %2249 = vrot.lane.b32.xlu0 %v2187, 32
    %v2250 = vpop.permute.xlu0 %2249
    %2251 = vrot.lane.b32.xlu0 %v2190, 32
    %v2252 = vpop.permute.xlu0 %2251
    %2253 = vrot.lane.b32.xlu0 %v2195, 32
    %v2254 = vpop.permute.xlu0 %2253
    %2255 = vrot.lane.b32.xlu0 %v2198, 32
    %v2256 = vpop.permute.xlu0 %2255
    %2257 = vrot.lane.b32.xlu0 %v2203, 32
    %v2258 = vpop.permute.xlu0 %2257
    %2259 = vrot.lane.b32.xlu0 %v2206, 32
    %v2260 = vpop.permute.xlu0 %2259
    %2261 = vrot.lane.b32.xlu0 %v2211, 32
    %v2262 = vpop.permute.xlu0 %2261
    %2263 = vrot.lane.b32.xlu0 %v2214, 32
    %v2264 = vpop.permute.xlu0 %2263
    %v2281 = vsel %vm714, %v1140, %v2234
    %v2282 = vsel %vm714, %v1143, %v2236
    %v2283 = vsel %vm714, %v1148, %v2238
    %v2284 = vsel %vm714, %v1151, %v2240
    %v2285 = vsel %vm714, %v1156, %v2242
    %v2286 = vsel %vm714, %v1159, %v2244
    %v2287 = vsel %vm714, %v1164, %v2246
    %v2288 = vsel %vm714, %v1167, %v2248
    %v2289 = vsel %vm714, %v1217, %v2250
    %v2290 = vsel %vm714, %v1220, %v2252
    %v2291 = vsel %vm714, %v1225, %v2254
    %v2292 = vsel %vm714, %v1228, %v2256
    %v2293 = vsel %vm714, %v1233, %v2258
    %v2294 = vsel %vm714, %v1236, %v2260
    %v2295 = vsel %vm714, %v1241, %v2262
    %v2296 = vsel %vm714, %v1244, %v2264
    %v2297 = vpack.c.bf16 %v2282, %v2281
    %v2298 = vpack.c.bf16 %v2284, %v2283
    %v2299 = vpack.c.bf16 %v2286, %v2285
    %v2300 = vpack.c.bf16 %v2288, %v2287
    %v2301 = vpack.c.bf16 %v2290, %v2289
    %v2302 = vpack.c.bf16 %v2292, %v2291
    %v2303 = vpack.c.bf16 %v2294, %v2293
    %v2304 = vpack.c.bf16 %v2296, %v2295
    %v2305 = vld [vmem:[%s8] sm:$0xf]
    %v2306 = vld [vmem:[%s8 + $0x4] sm:$0xf]
    %v2307 = vld [vmem:[%s8 + $0x8] sm:$0xf]
    %v2308 = vld [vmem:[%s8 + $0xc] sm:$0xf]
    %v2309 = vld [vmem:[%s8 + $0x10] sm:$0xf]
    %v2310 = vld [vmem:[%s8 + $0x14] sm:$0xf]
    %v2311 = vld [vmem:[%s8 + $0x18] sm:$0xf]
    %v2312 = vld [vmem:[%s8 + $0x1c] sm:$0xf]
    %v2313 = vld [vmem:[%s9] sm:$0x1]
    %v2315 = vlaneseq
    %v2316 = vshrl.u32 %v2315, 7
    %v2317 = vsub.s32 0, %v2316
    %v2318 = vrot.slane %v2313, %v2317
    %v2328 = vunpack.c.l.b16 %v2305
    %v2329 = vunpack.c.l.b16 %v2306
    %v2330 = vunpack.c.l.b16 %v2307
    %v2331 = vunpack.c.l.b16 %v2308
    %v2332 = vunpack.c.l.b16 %v2309
    %v2333 = vunpack.c.l.b16 %v2310
    %v2334 = vunpack.c.l.b16 %v2311
    %v2335 = vunpack.c.l.b16 %v2312
    %v2336 = vpack.c.b16 %v2329, %v2328
    %v2337 = vpack.c.b16 %v2331, %v2330
    %v2338 = vpack.c.b16 %v2333, %v2332
    %v2339 = vpack.c.b16 %v2335, %v2334
    %v2345 = vsel %vm296, %v2297, 0
    %v2348 = vsel %vm296, %v2298, 0
    %v2351 = vsel %vm296, %v2299, 0
    %v2354 = vsel %vm296, %v2300, 0
    %v2357 = vsel %vm296, %v2301, 0
    %v2360 = vsel %vm296, %v2302, 0
    %v2363 = vsel %vm296, %v2303, 0
    %v2366 = vsel %vm296, %v2304, 0
    %2368 = vmatprep.subr.bf16.mxu0 0
    %2369 = vmatpush1.bf16.msra.mxu0 %v2336
    %2370 = vmatprep.subr.bf16.mxu0 0
    %2371 = vmatpush1.bf16.msra.mxu0 %v2337
    %2372 = vmatprep.subr.bf16.mxu0 0
    %2373 = vmatpush1.bf16.msra.mxu0 %v2338
    %2374 = vmatprep.subr.bf16.mxu0 0
    %2375 = vmatpush1.bf16.msra.mxu0 %v2339
    %2376 = vmatprep.subr.bf16.mxu0 0
    %2377 = vmatpush1.bf16.msra.mxu0 0
    %2378 = vmatprep.subr.bf16.mxu0 0
    %2379 = vmatpush1.bf16.msra.mxu0 0
    %2380 = vmatprep.subr.bf16.mxu0 0
    %2381 = vmatpush1.bf16.msra.mxu0 0
    %2382 = vmatprep.subr.bf16.mxu0 0
    %2383 = vmatpush1.bf16.msra.mxu0 0
    %2384 = vmatprep.subr.bf16.mxu0 0
    %2385 = vmatpush1.bf16.msra.mxu0 0
    %2386 = vmatprep.subr.bf16.mxu0 0
    %2387 = vmatpush1.bf16.msra.mxu0 0
    %2388 = vmatprep.subr.bf16.mxu0 0
    %2389 = vmatpush1.bf16.msra.mxu0 0
    %2390 = vmatprep.subr.bf16.mxu0 0
    %2391 = vmatpush1.bf16.msra.mxu0 0
    %2392 = vmatprep.subr.bf16.mxu0 0
    %2393 = vmatpush1.bf16.msra.mxu0 0
    %2394 = vmatprep.subr.bf16.mxu0 0
    %2395 = vmatpush1.bf16.msra.mxu0 0
    %2396 = vmatprep.subr.bf16.mxu0 0
    %2397 = vmatpush1.bf16.msra.mxu0 0
    %2398 = vmatprep.subr.bf16.mxu0 0
    %2399 = vmatpush1.bf16.msra.mxu0 0
    %2400 = vmatprep.mubr.bf16.mxu0 0
    %2401 = vmatmul.mubr.bf16.gmra.mrb[0].mxu0 %v2345
    %v2402 = vpop.f32.mrb[0].mxu0
    %v2403 = vadd.f32 %v2318, %v2402
    %v2404 = vpop.f32.mrb[0].mxu0
    %v2405 = vpop.f32.mrb[0].mxu0
    %v2406 = vadd.f32 %v2318, %v2405
    %v2407 = vpop.f32.mrb[0].mxu0
    %2408 = vmatprep.mubr.bf16.mxu0 0
    %2409 = vmatmul.mubr.bf16.gmra.mrb[0].mxu0 %v2348
    %v2410 = vpop.f32.mrb[0].mxu0
    %v2411 = vadd.f32 %v2318, %v2410
    %v2412 = vpop.f32.mrb[0].mxu0
    %v2413 = vpop.f32.mrb[0].mxu0
    %v2414 = vadd.f32 %v2318, %v2413
    %v2415 = vpop.f32.mrb[0].mxu0
    %2416 = vmatprep.mubr.bf16.mxu0 0
    %2417 = vmatmul.mubr.bf16.gmra.mrb[0].mxu0 %v2351
    %v2418 = vpop.f32.mrb[0].mxu0
    %v2419 = vadd.f32 %v2318, %v2418
    %v2420 = vpop.f32.mrb[0].mxu0
    %v2421 = vpop.f32.mrb[0].mxu0
    %v2422 = vadd.f32 %v2318, %v2421
    %v2423 = vpop.f32.mrb[0].mxu0
    %2424 = vmatprep.mubr.bf16.mxu0 0
    %2425 = vmatmul.mubr.bf16.gmra.mrb[0].mxu0 %v2354
    %v2426 = vpop.f32.mrb[0].mxu0
    %v2427 = vadd.f32 %v2318, %v2426
    %v2428 = vpop.f32.mrb[0].mxu0
    %v2429 = vpop.f32.mrb[0].mxu0
    %v2430 = vadd.f32 %v2318, %v2429
    %v2431 = vpop.f32.mrb[0].mxu0
    %2432 = vmatprep.mubr.bf16.mxu0 0
    %2433 = vmatmul.mubr.bf16.gmra.mrb[0].mxu0 %v2357
    %v2434 = vpop.f32.mrb[0].mxu0
    %v2435 = vadd.f32 %v2318, %v2434
    %v2436 = vpop.f32.mrb[0].mxu0
    %v2437 = vpop.f32.mrb[0].mxu0
    %v2438 = vadd.f32 %v2318, %v2437
    %v2439 = vpop.f32.mrb[0].mxu0
    %2440 = vmatprep.mubr.bf16.mxu0 0
    %2441 = vmatmul.mubr.bf16.gmra.mrb[0].mxu0 %v2360
    %v2442 = vpop.f32.mrb[0].mxu0
    %v2443 = vadd.f32 %v2318, %v2442
    %v2444 = vpop.f32.mrb[0].mxu0
    %v2445 = vpop.f32.mrb[0].mxu0
    %v2446 = vadd.f32 %v2318, %v2445
    %v2447 = vpop.f32.mrb[0].mxu0
    %2448 = vmatprep.mubr.bf16.mxu0 0
    %2449 = vmatmul.mubr.bf16.gmra.mrb[0].mxu0 %v2363
    %v2450 = vpop.f32.mrb[0].mxu0
    %v2451 = vadd.f32 %v2318, %v2450
    %v2452 = vpop.f32.mrb[0].mxu0
    %v2453 = vpop.f32.mrb[0].mxu0
    %v2454 = vadd.f32 %v2318, %v2453
    %v2455 = vpop.f32.mrb[0].mxu0
    %2456 = vmatprep.mubr.bf16.mxu0 0
    %2457 = vmatmul.mubr.bf16.gmra.mrb[0].mxu0 %v2366
    %v2458 = vpop.f32.mrb[0].mxu0
    %v2459 = vadd.f32 %v2318, %v2458
    %v2460 = vpop.f32.mrb[0].mxu0
    %v2461 = vpop.f32.mrb[0].mxu0
    %v2462 = vadd.f32 %v2318, %v2461
    %v2463 = vpop.f32.mrb[0].mxu0
    %2464 = vdwg.mxu0
    %v2465 = vadd.f32 %v2403, %v233
    %v2466 = vadd.f32 %v2406, %v234
    %v2467 = vadd.f32 %v2411, %v235
    %v2468 = vadd.f32 %v2414, %v236
    %v2469 = vadd.f32 %v2419, %v237
    %v2470 = vadd.f32 %v2422, %v238
    %v2471 = vadd.f32 %v2427, %v239
    %v2472 = vadd.f32 %v2430, %v240
    %v2473 = vadd.f32 %v2435, %v241
    %v2474 = vadd.f32 %v2438, %v242
    %v2475 = vadd.f32 %v2443, %v243
    %v2476 = vadd.f32 %v2446, %v244
    %v2477 = vadd.f32 %v2451, %v245
    %v2478 = vadd.f32 %v2454, %v246
    %v2479 = vadd.f32 %v2459, %v247
    %v2480 = vadd.f32 %v2462, %v248
    %v2481 = vld [vmem:[%s10] sm:$0x1]
    %v2482 = vld [vmem:[%s11] sm:$0x1]
    %v2483 = vsel %vm296, %v2465, 0.0
    %2484 = vadd.xlane.f32.xlu0 %v2483
    %v2485 = vpop.xlane.xlu0 %2484
    %v2486 = vsel %vm296, %v2466, 0.0
    %2487 = vadd.xlane.f32.xlu0 %v2486
    %v2488 = vpop.xlane.xlu0 %2487
    %v2489 = vsel %vm296, %v2467, 0.0
    %2490 = vadd.xlane.f32.xlu0 %v2489
    %v2491 = vpop.xlane.xlu0 %2490
    %v2492 = vsel %vm296, %v2468, 0.0
    %2493 = vadd.xlane.f32.xlu0 %v2492
    %v2494 = vpop.xlane.xlu0 %2493
    %v2495 = vsel %vm296, %v2469, 0.0
    %2496 = vadd.xlane.f32.xlu0 %v2495
    %v2497 = vpop.xlane.xlu0 %2496
    %v2498 = vsel %vm296, %v2470, 0.0
    %2499 = vadd.xlane.f32.xlu0 %v2498
    %v2500 = vpop.xlane.xlu0 %2499
    %v2501 = vsel %vm296, %v2471, 0.0
    %2502 = vadd.xlane.f32.xlu0 %v2501
    %v2503 = vpop.xlane.xlu0 %2502
    %v2504 = vsel %vm296, %v2472, 0.0
    %2505 = vadd.xlane.f32.xlu0 %v2504
    %v2506 = vpop.xlane.xlu0 %2505
    %v2507 = vsel %vm296, %v2473, 0.0
    %2508 = vadd.xlane.f32.xlu0 %v2507
    %v2509 = vpop.xlane.xlu0 %2508
    %v2510 = vsel %vm296, %v2474, 0.0
    %2511 = vadd.xlane.f32.xlu0 %v2510
    %v2512 = vpop.xlane.xlu0 %2511
    %v2513 = vsel %vm296, %v2475, 0.0
    %2514 = vadd.xlane.f32.xlu0 %v2513
    %v2515 = vpop.xlane.xlu0 %2514
    %v2516 = vsel %vm296, %v2476, 0.0
    %2517 = vadd.xlane.f32.xlu0 %v2516
    %v2518 = vpop.xlane.xlu0 %2517
    %v2519 = vsel %vm296, %v2477, 0.0
    %2520 = vadd.xlane.f32.xlu0 %v2519
    %v2521 = vpop.xlane.xlu0 %2520
    %v2522 = vsel %vm296, %v2478, 0.0
    %2523 = vadd.xlane.f32.xlu0 %v2522
    %v2524 = vpop.xlane.xlu0 %2523
    %v2525 = vsel %vm296, %v2479, 0.0
    %2526 = vadd.xlane.f32.xlu0 %v2525
    %v2527 = vpop.xlane.xlu0 %2526
    %v2528 = vsel %vm296, %v2480, 0.0
    %2529 = vadd.xlane.f32.xlu0 %v2528
    %v2530 = vpop.xlane.xlu0 %2529
    %v2531 = vrcp.pop 64.0
    %v2532 = vmul.f32 %v2485, %v2531
    %v2533 = vmul.f32 %v2488, %v2531
    %v2534 = vmul.f32 %v2491, %v2531
    %v2535 = vmul.f32 %v2494, %v2531
    %v2536 = vmul.f32 %v2497, %v2531
    %v2537 = vmul.f32 %v2500, %v2531
    %v2538 = vmul.f32 %v2503, %v2531
    %v2539 = vmul.f32 %v2506, %v2531
    %v2540 = vmul.f32 %v2509, %v2531
    %v2541 = vmul.f32 %v2512, %v2531
    %v2542 = vmul.f32 %v2515, %v2531
    %v2543 = vmul.f32 %v2518, %v2531
    %v2544 = vmul.f32 %v2521, %v2531
    %v2545 = vmul.f32 %v2524, %v2531
    %v2546 = vmul.f32 %v2527, %v2531
    %v2547 = vmul.f32 %v2530, %v2531
    %v2548 = vsub.f32 %v2465, %v2532
    %v2549 = vsub.f32 %v2466, %v2533
    %v2550 = vsub.f32 %v2467, %v2534
    %v2551 = vsub.f32 %v2468, %v2535
    %v2552 = vsub.f32 %v2469, %v2536
    %v2553 = vsub.f32 %v2470, %v2537
    %v2554 = vsub.f32 %v2471, %v2538
    %v2555 = vsub.f32 %v2472, %v2539
    %v2556 = vsub.f32 %v2473, %v2540
    %v2557 = vsub.f32 %v2474, %v2541
    %v2558 = vsub.f32 %v2475, %v2542
    %v2559 = vsub.f32 %v2476, %v2543
    %v2560 = vsub.f32 %v2477, %v2544
    %v2561 = vsub.f32 %v2478, %v2545
    %v2562 = vsub.f32 %v2479, %v2546
    %v2563 = vsub.f32 %v2480, %v2547
    %v2564 = vmul.f32 %v2548, %v2548
    %v2565 = vmul.f32 %v2549, %v2549
    %v2566 = vmul.f32 %v2550, %v2550
    %v2567 = vmul.f32 %v2551, %v2551
    %v2568 = vmul.f32 %v2552, %v2552
    %v2569 = vmul.f32 %v2553, %v2553
    %v2570 = vmul.f32 %v2554, %v2554
    %v2571 = vmul.f32 %v2555, %v2555
    %v2572 = vmul.f32 %v2556, %v2556
    %v2573 = vmul.f32 %v2557, %v2557
    %v2574 = vmul.f32 %v2558, %v2558
    %v2575 = vmul.f32 %v2559, %v2559
    %v2576 = vmul.f32 %v2560, %v2560
    %v2577 = vmul.f32 %v2561, %v2561
    %v2578 = vmul.f32 %v2562, %v2562
    %v2579 = vmul.f32 %v2563, %v2563
    %v2580 = vsel %vm296, %v2564, 0.0
    %2581 = vadd.xlane.f32.xlu0 %v2580
    %v2582 = vpop.xlane.xlu0 %2581
    %v2583 = vsel %vm296, %v2565, 0.0
    %2584 = vadd.xlane.f32.xlu0 %v2583
    %v2585 = vpop.xlane.xlu0 %2584
    %v2586 = vsel %vm296, %v2566, 0.0
    %2587 = vadd.xlane.f32.xlu0 %v2586
    %v2588 = vpop.xlane.xlu0 %2587
    %v2589 = vsel %vm296, %v2567, 0.0
    %2590 = vadd.xlane.f32.xlu0 %v2589
    %v2591 = vpop.xlane.xlu0 %2590
    %v2592 = vsel %vm296, %v2568, 0.0
    %2593 = vadd.xlane.f32.xlu0 %v2592
    %v2594 = vpop.xlane.xlu0 %2593
    %v2595 = vsel %vm296, %v2569, 0.0
    %2596 = vadd.xlane.f32.xlu0 %v2595
    %v2597 = vpop.xlane.xlu0 %2596
    %v2598 = vsel %vm296, %v2570, 0.0
    %2599 = vadd.xlane.f32.xlu0 %v2598
    %v2600 = vpop.xlane.xlu0 %2599
    %v2601 = vsel %vm296, %v2571, 0.0
    %2602 = vadd.xlane.f32.xlu0 %v2601
    %v2603 = vpop.xlane.xlu0 %2602
    %v2604 = vsel %vm296, %v2572, 0.0
    %2605 = vadd.xlane.f32.xlu0 %v2604
    %v2606 = vpop.xlane.xlu0 %2605
    %v2607 = vsel %vm296, %v2573, 0.0
    %2608 = vadd.xlane.f32.xlu0 %v2607
    %v2609 = vpop.xlane.xlu0 %2608
    %v2610 = vsel %vm296, %v2574, 0.0
    %2611 = vadd.xlane.f32.xlu0 %v2610
    %v2612 = vpop.xlane.xlu0 %2611
    %v2613 = vsel %vm296, %v2575, 0.0
    %2614 = vadd.xlane.f32.xlu0 %v2613
    %v2615 = vpop.xlane.xlu0 %2614
    %v2616 = vsel %vm296, %v2576, 0.0
    %2617 = vadd.xlane.f32.xlu0 %v2616
    %v2618 = vpop.xlane.xlu0 %2617
    %v2619 = vsel %vm296, %v2577, 0.0
    %2620 = vadd.xlane.f32.xlu0 %v2619
    %v2621 = vpop.xlane.xlu0 %2620
    %v2622 = vsel %vm296, %v2578, 0.0
    %2623 = vadd.xlane.f32.xlu0 %v2622
    %v2624 = vpop.xlane.xlu0 %2623
    %v2625 = vsel %vm296, %v2579, 0.0
    %2626 = vadd.xlane.f32.xlu0 %v2625
    %v2627 = vpop.xlane.xlu0 %2626
    %v2628 = vmul.f32 %v2582, %v2531
    %v2629 = vmul.f32 %v2585, %v2531
    %v2630 = vmul.f32 %v2588, %v2531
    %v2631 = vmul.f32 %v2591, %v2531
    %v2632 = vmul.f32 %v2594, %v2531
    %v2633 = vmul.f32 %v2597, %v2531
    %v2634 = vmul.f32 %v2600, %v2531
    %v2635 = vmul.f32 %v2603, %v2531
    %v2636 = vmul.f32 %v2606, %v2531
    %v2637 = vmul.f32 %v2609, %v2531
    %v2638 = vmul.f32 %v2612, %v2531
    %v2639 = vmul.f32 %v2615, %v2531
    %v2640 = vmul.f32 %v2618, %v2531
    %v2641 = vmul.f32 %v2621, %v2531
    %v2642 = vmul.f32 %v2624, %v2531
    %v2643 = vmul.f32 %v2627, %v2531
    %v2644 = vadd.f32 %v2628, 1e-05
    %v2645 = vadd.f32 %v2629, 1e-05
    %v2646 = vadd.f32 %v2630, 1e-05
    %v2647 = vadd.f32 %v2631, 1e-05
    %v2648 = vadd.f32 %v2632, 1e-05
    %v2649 = vadd.f32 %v2633, 1e-05
    %v2650 = vadd.f32 %v2634, 1e-05
    %v2651 = vadd.f32 %v2635, 1e-05
    %v2652 = vadd.f32 %v2636, 1e-05
    %v2653 = vadd.f32 %v2637, 1e-05
    %v2654 = vadd.f32 %v2638, 1e-05
    %v2655 = vadd.f32 %v2639, 1e-05
    %v2656 = vadd.f32 %v2640, 1e-05
    %v2657 = vadd.f32 %v2641, 1e-05
    %v2658 = vadd.f32 %v2642, 1e-05
    %v2659 = vadd.f32 %v2643, 1e-05
    %v2660 = vrsqrt.pop %v2644
    %v2661 = vrsqrt.pop %v2645
    %v2662 = vrsqrt.pop %v2646
    %v2663 = vrsqrt.pop %v2647
    %v2664 = vrsqrt.pop %v2648
    %v2665 = vrsqrt.pop %v2649
    %v2666 = vrsqrt.pop %v2650
    %v2667 = vrsqrt.pop %v2651
    %v2668 = vrsqrt.pop %v2652
    %v2669 = vrsqrt.pop %v2653
    %v2670 = vrsqrt.pop %v2654
    %v2671 = vrsqrt.pop %v2655
    %v2672 = vrsqrt.pop %v2656
    %v2673 = vrsqrt.pop %v2657
    %v2674 = vrsqrt.pop %v2658
    %v2675 = vrsqrt.pop %v2659
    %v2676 = vmul.f32 %v2548, %v2660
    %v2677 = vmul.f32 %v2549, %v2661
    %v2678 = vmul.f32 %v2550, %v2662
    %v2679 = vmul.f32 %v2551, %v2663
    %v2680 = vmul.f32 %v2552, %v2664
    %v2681 = vmul.f32 %v2553, %v2665
    %v2682 = vmul.f32 %v2554, %v2666
    %v2683 = vmul.f32 %v2555, %v2667
    %v2684 = vmul.f32 %v2556, %v2668
    %v2685 = vmul.f32 %v2557, %v2669
    %v2686 = vmul.f32 %v2558, %v2670
    %v2687 = vmul.f32 %v2559, %v2671
    %v2688 = vmul.f32 %v2560, %v2672
    %v2689 = vmul.f32 %v2561, %v2673
    %v2690 = vmul.f32 %v2562, %v2674
    %v2691 = vmul.f32 %v2563, %v2675
    %v2693 = vlaneseq
    %v2694 = vshrl.u32 %v2693, 7
    %v2695 = vsub.s32 0, %v2694
    %v2696 = vrot.slane %v2481, %v2695
    %v2698 = vmul.f32 %v2676, %v2696
    %v2699 = vmul.f32 %v2677, %v2696
    %v2700 = vmul.f32 %v2678, %v2696
    %v2701 = vmul.f32 %v2679, %v2696
    %v2702 = vmul.f32 %v2680, %v2696
    %v2703 = vmul.f32 %v2681, %v2696
    %v2704 = vmul.f32 %v2682, %v2696
    %v2705 = vmul.f32 %v2683, %v2696
    %v2706 = vmul.f32 %v2684, %v2696
    %v2707 = vmul.f32 %v2685, %v2696
    %v2708 = vmul.f32 %v2686, %v2696
    %v2709 = vmul.f32 %v2687, %v2696
    %v2710 = vmul.f32 %v2688, %v2696
    %v2711 = vmul.f32 %v2689, %v2696
    %v2712 = vmul.f32 %v2690, %v2696
    %v2713 = vmul.f32 %v2691, %v2696
    %v2715 = vlaneseq
    %v2716 = vshrl.u32 %v2715, 7
    %v2717 = vsub.s32 0, %v2716
    %v2718 = vrot.slane %v2482, %v2717
    %v2720 = vadd.f32 %v2698, %v2718
    %v2721 = vadd.f32 %v2699, %v2718
    %v2722 = vadd.f32 %v2700, %v2718
    %v2723 = vadd.f32 %v2701, %v2718
    %v2724 = vadd.f32 %v2702, %v2718
    %v2725 = vadd.f32 %v2703, %v2718
    %v2726 = vadd.f32 %v2704, %v2718
    %v2727 = vadd.f32 %v2705, %v2718
    %v2728 = vadd.f32 %v2706, %v2718
    %v2729 = vadd.f32 %v2707, %v2718
    %v2730 = vadd.f32 %v2708, %v2718
    %v2731 = vadd.f32 %v2709, %v2718
    %v2732 = vadd.f32 %v2710, %v2718
    %v2733 = vadd.f32 %v2711, %v2718
    %v2734 = vadd.f32 %v2712, %v2718
    %v2735 = vadd.f32 %v2713, %v2718
    %v2736 = vpack.c.bf16 %v2721, %v2720
    %v2737 = vpack.c.bf16 %v2723, %v2722
    %v2738 = vpack.c.bf16 %v2725, %v2724
    %v2739 = vpack.c.bf16 %v2727, %v2726
    %v2740 = vpack.c.bf16 %v2729, %v2728
    %v2741 = vpack.c.bf16 %v2731, %v2730
    %v2742 = vpack.c.bf16 %v2733, %v2732
    %v2743 = vpack.c.bf16 %v2735, %v2734
    %v2744 = vld [vmem:[%s12] sm:$0xff]
    %v2745 = vld [vmem:[%s12 + $0x8] sm:$0xff]
    %v2746 = vld [vmem:[%s12 + $0x10] sm:$0xff]
    %v2747 = vld [vmem:[%s12 + $0x18] sm:$0xff]
    %v2748 = vld [vmem:[%s12 + $0x20] sm:$0xff]
    %v2749 = vld [vmem:[%s12 + $0x28] sm:$0xff]
    %v2750 = vld [vmem:[%s12 + $0x30] sm:$0xff]
    %v2751 = vld [vmem:[%s12 + $0x38] sm:$0xff]
    %v2752 = vld [vmem:[%s13] sm:$0x3]
    %v2754 = vlaneseq
    %v2755 = vshrl.u32 %v2754, 7
    %v2756 = vsub.s32 0, %v2755
    %v2757 = vrot.slane %v2752, %v2756
    %v2758 = vlaneseq
    %v2759 = vshrl.u32 %v2758, 7
    %v2760 = vsub.s32 1, %v2759
    %v2761 = vrot.slane %v2752, %v2760
    %v2772 = vunpack.c.l.b16 %v2744
    %v2773 = vunpack.c.h.b16 %v2744
    %v2774 = vunpack.c.l.b16 %v2745
    %v2775 = vunpack.c.h.b16 %v2745
    %v2776 = vunpack.c.l.b16 %v2746
    %v2777 = vunpack.c.h.b16 %v2746
    %v2778 = vunpack.c.l.b16 %v2747
    %v2779 = vunpack.c.h.b16 %v2747
    %v2780 = vunpack.c.l.b16 %v2748
    %v2781 = vunpack.c.h.b16 %v2748
    %v2782 = vunpack.c.l.b16 %v2749
    %v2783 = vunpack.c.h.b16 %v2749
    %v2784 = vunpack.c.l.b16 %v2750
    %v2785 = vunpack.c.h.b16 %v2750
    %v2786 = vunpack.c.l.b16 %v2751
    %v2787 = vunpack.c.h.b16 %v2751
    %v2788 = vpack.c.b16 %v2774, %v2772
    %v2789 = vpack.c.b16 %v2775, %v2773
    %v2790 = vpack.c.b16 %v2778, %v2776
    %v2791 = vpack.c.b16 %v2779, %v2777
    %v2792 = vpack.c.b16 %v2782, %v2780
    %v2793 = vpack.c.b16 %v2783, %v2781
    %v2794 = vpack.c.b16 %v2786, %v2784
    %v2795 = vpack.c.b16 %v2787, %v2785
    %v2805 = vsel %vm296, %v2736, 0
    %v2808 = vsel %vm296, %v2737, 0
    %v2811 = vsel %vm296, %v2738, 0
    %v2814 = vsel %vm296, %v2739, 0
    %v2817 = vsel %vm296, %v2740, 0
    %v2820 = vsel %vm296, %v2741, 0
    %v2823 = vsel %vm296, %v2742, 0
    %v2826 = vsel %vm296, %v2743, 0
    %2828 = vmatprep.subr.bf16.mxu0 %v2789
    %2829 = vmatpush1.bf16.msra.mxu0 %v2788
    %2830 = vmatprep.subr.bf16.mxu0 %v2791
    %2831 = vmatpush1.bf16.msra.mxu0 %v2790
    %2832 = vmatprep.subr.bf16.mxu0 %v2793
    %2833 = vmatpush1.bf16.msra.mxu0 %v2792
    %2834 = vmatprep.subr.bf16.mxu0 %v2795
    %2835 = vmatpush1.bf16.msra.mxu0 %v2794
    %2836 = vmatprep.subr.bf16.mxu0 0
    %2837 = vmatpush1.bf16.msra.mxu0 0
    %2838 = vmatprep.subr.bf16.mxu0 0
    %2839 = vmatpush1.bf16.msra.mxu0 0
    %2840 = vmatprep.subr.bf16.mxu0 0
    %2841 = vmatpush1.bf16.msra.mxu0 0
    %2842 = vmatprep.subr.bf16.mxu0 0
    %2843 = vmatpush1.bf16.msra.mxu0 0
    %2844 = vmatprep.subr.bf16.mxu0 0
    %2845 = vmatpush1.bf16.msra.mxu0 0
    %2846 = vmatprep.subr.bf16.mxu0 0
    %2847 = vmatpush1.bf16.msra.mxu0 0
    %2848 = vmatprep.subr.bf16.mxu0 0
    %2849 = vmatpush1.bf16.msra.mxu0 0
    %2850 = vmatprep.subr.bf16.mxu0 0
    %2851 = vmatpush1.bf16.msra.mxu0 0
    %2852 = vmatprep.subr.bf16.mxu0 0
    %2853 = vmatpush1.bf16.msra.mxu0 0
    %2854 = vmatprep.subr.bf16.mxu0 0
    %2855 = vmatpush1.bf16.msra.mxu0 0
    %2856 = vmatprep.subr.bf16.mxu0 0
    %2857 = vmatpush1.bf16.msra.mxu0 0
    %2858 = vmatprep.subr.bf16.mxu0 0
    %2859 = vmatpush1.bf16.msra.mxu0 0
    %2860 = vmatprep.mubr.bf16.mxu0 0
    %2861 = vmatmul.mubr.bf16.gmra.mrb[0].mxu0 %v2805
    %v2862 = vpop.f32.mrb[0].mxu0
    %v2863 = vadd.f32 %v2757, %v2862
    %v2864 = vpop.f32.mrb[0].mxu0
    %v2865 = vadd.f32 %v2761, %v2864
    %v2866 = vpop.f32.mrb[0].mxu0
    %v2867 = vadd.f32 %v2757, %v2866
    %v2868 = vpop.f32.mrb[0].mxu0
    %v2869 = vadd.f32 %v2761, %v2868
    %2870 = vmatprep.mubr.bf16.mxu0 0
    %2871 = vmatmul.mubr.bf16.gmra.mrb[0].mxu0 %v2808
    %v2872 = vpop.f32.mrb[0].mxu0
    %v2873 = vadd.f32 %v2757, %v2872
    %v2874 = vpop.f32.mrb[0].mxu0
    %v2875 = vadd.f32 %v2761, %v2874
    %v2876 = vpop.f32.mrb[0].mxu0
    %v2877 = vadd.f32 %v2757, %v2876
    %v2878 = vpop.f32.mrb[0].mxu0
    %v2879 = vadd.f32 %v2761, %v2878
    %2880 = vmatprep.mubr.bf16.mxu0 0
    %2881 = vmatmul.mubr.bf16.gmra.mrb[0].mxu0 %v2811
    %v2882 = vpop.f32.mrb[0].mxu0
    %v2883 = vadd.f32 %v2757, %v2882
    %v2884 = vpop.f32.mrb[0].mxu0
    %v2885 = vadd.f32 %v2761, %v2884
    %v2886 = vpop.f32.mrb[0].mxu0
    %v2887 = vadd.f32 %v2757, %v2886
    %v2888 = vpop.f32.mrb[0].mxu0
    %v2889 = vadd.f32 %v2761, %v2888
    %2890 = vmatprep.mubr.bf16.mxu0 0
    %2891 = vmatmul.mubr.bf16.gmra.mrb[0].mxu0 %v2814
    %v2892 = vpop.f32.mrb[0].mxu0
    %v2893 = vadd.f32 %v2757, %v2892
    %v2894 = vpop.f32.mrb[0].mxu0
    %v2895 = vadd.f32 %v2761, %v2894
    %v2896 = vpop.f32.mrb[0].mxu0
    %v2897 = vadd.f32 %v2757, %v2896
    %v2898 = vpop.f32.mrb[0].mxu0
    %v2899 = vadd.f32 %v2761, %v2898
    %2900 = vmatprep.mubr.bf16.mxu0 0
    %2901 = vmatmul.mubr.bf16.gmra.mrb[0].mxu0 %v2817
    %v2902 = vpop.f32.mrb[0].mxu0
    %v2903 = vadd.f32 %v2757, %v2902
    %v2904 = vpop.f32.mrb[0].mxu0
    %v2905 = vadd.f32 %v2761, %v2904
    %v2906 = vpop.f32.mrb[0].mxu0
    %v2907 = vadd.f32 %v2757, %v2906
    %v2908 = vpop.f32.mrb[0].mxu0
    %v2909 = vadd.f32 %v2761, %v2908
    %2910 = vmatprep.mubr.bf16.mxu0 0
    %2911 = vmatmul.mubr.bf16.gmra.mrb[0].mxu0 %v2820
    %v2912 = vpop.f32.mrb[0].mxu0
    %v2913 = vadd.f32 %v2757, %v2912
    %v2914 = vpop.f32.mrb[0].mxu0
    %v2915 = vadd.f32 %v2761, %v2914
    %v2916 = vpop.f32.mrb[0].mxu0
    %v2917 = vadd.f32 %v2757, %v2916
    %v2918 = vpop.f32.mrb[0].mxu0
    %v2919 = vadd.f32 %v2761, %v2918
    %2920 = vmatprep.mubr.bf16.mxu0 0
    %2921 = vmatmul.mubr.bf16.gmra.mrb[0].mxu0 %v2823
    %v2922 = vpop.f32.mrb[0].mxu0
    %v2923 = vadd.f32 %v2757, %v2922
    %v2924 = vpop.f32.mrb[0].mxu0
    %v2925 = vadd.f32 %v2761, %v2924
    %v2926 = vpop.f32.mrb[0].mxu0
    %v2927 = vadd.f32 %v2757, %v2926
    %v2928 = vpop.f32.mrb[0].mxu0
    %v2929 = vadd.f32 %v2761, %v2928
    %2930 = vmatprep.mubr.bf16.mxu0 0
    %2931 = vmatmul.mubr.bf16.gmra.mrb[0].mxu0 %v2826
    %v2932 = vpop.f32.mrb[0].mxu0
    %v2933 = vadd.f32 %v2757, %v2932
    %v2934 = vpop.f32.mrb[0].mxu0
    %v2935 = vadd.f32 %v2761, %v2934
    %v2936 = vpop.f32.mrb[0].mxu0
    %v2937 = vadd.f32 %v2757, %v2936
    %v2938 = vpop.f32.mrb[0].mxu0
    %v2939 = vadd.f32 %v2761, %v2938
    %2940 = vdwg.mxu0
    %v2941 = vmax.f32 %v2863, 0.0
    %v2942 = vmax.f32 %v2865, 0.0
    %v2943 = vmax.f32 %v2867, 0.0
    %v2944 = vmax.f32 %v2869, 0.0
    %v2945 = vmax.f32 %v2873, 0.0
    %v2946 = vmax.f32 %v2875, 0.0
    %v2947 = vmax.f32 %v2877, 0.0
    %v2948 = vmax.f32 %v2879, 0.0
    %v2949 = vmax.f32 %v2883, 0.0
    %v2950 = vmax.f32 %v2885, 0.0
    %v2951 = vmax.f32 %v2887, 0.0
    %v2952 = vmax.f32 %v2889, 0.0
    %v2953 = vmax.f32 %v2893, 0.0
    %v2954 = vmax.f32 %v2895, 0.0
    %v2955 = vmax.f32 %v2897, 0.0
    %v2956 = vmax.f32 %v2899, 0.0
    %v2957 = vmax.f32 %v2903, 0.0
    %v2958 = vmax.f32 %v2905, 0.0
    %v2959 = vmax.f32 %v2907, 0.0
    %v2960 = vmax.f32 %v2909, 0.0
    %v2961 = vmax.f32 %v2913, 0.0
    %v2962 = vmax.f32 %v2915, 0.0
    %v2963 = vmax.f32 %v2917, 0.0
    %v2964 = vmax.f32 %v2919, 0.0
    %v2965 = vmax.f32 %v2923, 0.0
    %v2966 = vmax.f32 %v2925, 0.0
    %v2967 = vmax.f32 %v2927, 0.0
    %v2968 = vmax.f32 %v2929, 0.0
    %v2969 = vmax.f32 %v2933, 0.0
    %v2970 = vmax.f32 %v2935, 0.0
    %v2971 = vmax.f32 %v2937, 0.0
    %v2972 = vmax.f32 %v2939, 0.0
    %v2973 = vpack.c.bf16 %v2943, %v2941
    %v2974 = vpack.c.bf16 %v2944, %v2942
    %v2975 = vpack.c.bf16 %v2947, %v2945
    %v2976 = vpack.c.bf16 %v2948, %v2946
    %v2977 = vpack.c.bf16 %v2951, %v2949
    %v2978 = vpack.c.bf16 %v2952, %v2950
    %v2979 = vpack.c.bf16 %v2955, %v2953
    %v2980 = vpack.c.bf16 %v2956, %v2954
    %v2981 = vpack.c.bf16 %v2959, %v2957
    %v2982 = vpack.c.bf16 %v2960, %v2958
    %v2983 = vpack.c.bf16 %v2963, %v2961
    %v2984 = vpack.c.bf16 %v2964, %v2962
    %v2985 = vpack.c.bf16 %v2967, %v2965
    %v2986 = vpack.c.bf16 %v2968, %v2966
    %v2987 = vpack.c.bf16 %v2971, %v2969
    %v2988 = vpack.c.bf16 %v2972, %v2970
    %v2989 = vld [vmem:[%s14] sm:$0xf]
    %v2990 = vld [vmem:[%s14 + $0x4] sm:$0xf]
    %v2991 = vld [vmem:[%s14 + $0x8] sm:$0xf]
    %v2992 = vld [vmem:[%s14 + $0xc] sm:$0xf]
    %v2993 = vld [vmem:[%s14 + $0x10] sm:$0xf]
    %v2994 = vld [vmem:[%s14 + $0x14] sm:$0xf]
    %v2995 = vld [vmem:[%s14 + $0x18] sm:$0xf]
    %v2996 = vld [vmem:[%s14 + $0x1c] sm:$0xf]
    %v2997 = vld [vmem:[%s14 + $0x20] sm:$0xf]
    %v2998 = vld [vmem:[%s14 + $0x24] sm:$0xf]
    %v2999 = vld [vmem:[%s14 + $0x28] sm:$0xf]
    %v3000 = vld [vmem:[%s14 + $0x2c] sm:$0xf]
    %v3001 = vld [vmem:[%s14 + $0x30] sm:$0xf]
    %v3002 = vld [vmem:[%s14 + $0x34] sm:$0xf]
    %v3003 = vld [vmem:[%s14 + $0x38] sm:$0xf]
    %v3004 = vld [vmem:[%s14 + $0x3c] sm:$0xf]
    %v3005 = vld [vmem:[%s14 + $0x40] sm:$0xf]
    %v3006 = vld [vmem:[%s14 + $0x44] sm:$0xf]
    %v3007 = vld [vmem:[%s14 + $0x48] sm:$0xf]
    %v3008 = vld [vmem:[%s14 + $0x4c] sm:$0xf]
    %v3009 = vld [vmem:[%s14 + $0x50] sm:$0xf]
    %v3010 = vld [vmem:[%s14 + $0x54] sm:$0xf]
    %v3011 = vld [vmem:[%s14 + $0x58] sm:$0xf]
    %v3012 = vld [vmem:[%s14 + $0x5c] sm:$0xf]
    %v3013 = vld [vmem:[%s14 + $0x60] sm:$0xf]
    %v3014 = vld [vmem:[%s14 + $0x64] sm:$0xf]
    %v3015 = vld [vmem:[%s14 + $0x68] sm:$0xf]
    %v3016 = vld [vmem:[%s14 + $0x6c] sm:$0xf]
    %v3017 = vld [vmem:[%s14 + $0x70] sm:$0xf]
    %v3018 = vld [vmem:[%s14 + $0x74] sm:$0xf]
    %v3019 = vld [vmem:[%s14 + $0x78] sm:$0xf]
    %v3020 = vld [vmem:[%s14 + $0x7c] sm:$0xf]
    %v3021 = vld [vmem:[%s15] sm:$0x1]
    %v3023 = vlaneseq
    %v3024 = vshrl.u32 %v3023, 7
    %v3025 = vsub.s32 0, %v3024
    %v3026 = vrot.slane %v3021, %v3025
    %v3060 = vunpack.c.l.b16 %v2989
    %v3061 = vunpack.c.l.b16 %v2990
    %v3062 = vunpack.c.l.b16 %v2991
    %v3063 = vunpack.c.l.b16 %v2992
    %v3064 = vunpack.c.l.b16 %v2993
    %v3065 = vunpack.c.l.b16 %v2994
    %v3066 = vunpack.c.l.b16 %v2995
    %v3067 = vunpack.c.l.b16 %v2996
    %v3068 = vunpack.c.l.b16 %v2997
    %v3069 = vunpack.c.l.b16 %v2998
    %v3070 = vunpack.c.l.b16 %v2999
    %v3071 = vunpack.c.l.b16 %v3000
    %v3072 = vunpack.c.l.b16 %v3001
    %v3073 = vunpack.c.l.b16 %v3002
    %v3074 = vunpack.c.l.b16 %v3003
    %v3075 = vunpack.c.l.b16 %v3004
    %v3076 = vunpack.c.l.b16 %v3005
    %v3077 = vunpack.c.l.b16 %v3006
    %v3078 = vunpack.c.l.b16 %v3007
    %v3079 = vunpack.c.l.b16 %v3008
    %v3080 = vunpack.c.l.b16 %v3009
    %v3081 = vunpack.c.l.b16 %v3010
    %v3082 = vunpack.c.l.b16 %v3011
    %v3083 = vunpack.c.l.b16 %v3012
    %v3084 = vunpack.c.l.b16 %v3013
    %v3085 = vunpack.c.l.b16 %v3014
    %v3086 = vunpack.c.l.b16 %v3015
    %v3087 = vunpack.c.l.b16 %v3016
    %v3088 = vunpack.c.l.b16 %v3017
    %v3089 = vunpack.c.l.b16 %v3018
    %v3090 = vunpack.c.l.b16 %v3019
    %v3091 = vunpack.c.l.b16 %v3020
    %v3092 = vpack.c.b16 %v3061, %v3060
    %v3093 = vpack.c.b16 %v3063, %v3062
    %v3094 = vpack.c.b16 %v3065, %v3064
    %v3095 = vpack.c.b16 %v3067, %v3066
    %v3096 = vpack.c.b16 %v3069, %v3068
    %v3097 = vpack.c.b16 %v3071, %v3070
    %v3098 = vpack.c.b16 %v3073, %v3072
    %v3099 = vpack.c.b16 %v3075, %v3074
    %v3100 = vpack.c.b16 %v3077, %v3076
    %v3101 = vpack.c.b16 %v3079, %v3078
    %v3102 = vpack.c.b16 %v3081, %v3080
    %v3103 = vpack.c.b16 %v3083, %v3082
    %v3104 = vpack.c.b16 %v3085, %v3084
    %v3105 = vpack.c.b16 %v3087, %v3086
    %v3106 = vpack.c.b16 %v3089, %v3088
    %v3107 = vpack.c.b16 %v3091, %v3090
    %3124 = vmatprep.subr.bf16.mxu0 0
    %3125 = vmatpush1.bf16.msra.mxu0 %v3092
    %3126 = vmatprep.subr.bf16.mxu0 0
    %3127 = vmatpush1.bf16.msra.mxu0 %v3093
    %3128 = vmatprep.subr.bf16.mxu0 0
    %3129 = vmatpush1.bf16.msra.mxu0 %v3094
    %3130 = vmatprep.subr.bf16.mxu0 0
    %3131 = vmatpush1.bf16.msra.mxu0 %v3095
    %3132 = vmatprep.subr.bf16.mxu0 0
    %3133 = vmatpush1.bf16.msra.mxu0 %v3096
    %3134 = vmatprep.subr.bf16.mxu0 0
    %3135 = vmatpush1.bf16.msra.mxu0 %v3097
    %3136 = vmatprep.subr.bf16.mxu0 0
    %3137 = vmatpush1.bf16.msra.mxu0 %v3098
    %3138 = vmatprep.subr.bf16.mxu0 0
    %3139 = vmatpush1.bf16.msra.mxu0 %v3099
    %3140 = vmatprep.subr.bf16.mxu0 0
    %3141 = vmatpush1.bf16.msra.mxu0 %v3100
    %3142 = vmatprep.subr.bf16.mxu0 0
    %3143 = vmatpush1.bf16.msra.mxu0 %v3101
    %3144 = vmatprep.subr.bf16.mxu0 0
    %3145 = vmatpush1.bf16.msra.mxu0 %v3102
    %3146 = vmatprep.subr.bf16.mxu0 0
    %3147 = vmatpush1.bf16.msra.mxu0 %v3103
    %3148 = vmatprep.subr.bf16.mxu0 0
    %3149 = vmatpush1.bf16.msra.mxu0 %v3104
    %3150 = vmatprep.subr.bf16.mxu0 0
    %3151 = vmatpush1.bf16.msra.mxu0 %v3105
    %3152 = vmatprep.subr.bf16.mxu0 0
    %3153 = vmatpush1.bf16.msra.mxu0 %v3106
    %3154 = vmatprep.subr.bf16.mxu0 0
    %3155 = vmatpush1.bf16.msra.mxu0 %v3107
    %3156 = vmatprep.mubr.bf16.mxu0 %v2974
    %3157 = vmatmul.mubr.bf16.gmra.mrb[0].mxu0 %v2973
    %v3158 = vpop.f32.mrb[0].mxu0
    %v3159 = vadd.f32 %v3026, %v3158
    %v3160 = vpop.f32.mrb[0].mxu0
    %v3161 = vpop.f32.mrb[0].mxu0
    %v3162 = vadd.f32 %v3026, %v3161
    %v3163 = vpop.f32.mrb[0].mxu0
    %3164 = vmatprep.mubr.bf16.mxu0 %v2976
    %3165 = vmatmul.mubr.bf16.gmra.mrb[0].mxu0 %v2975
    %v3166 = vpop.f32.mrb[0].mxu0
    %v3167 = vadd.f32 %v3026, %v3166
    %v3168 = vpop.f32.mrb[0].mxu0
    %v3169 = vpop.f32.mrb[0].mxu0
    %v3170 = vadd.f32 %v3026, %v3169
    %v3171 = vpop.f32.mrb[0].mxu0
    %3172 = vmatprep.mubr.bf16.mxu0 %v2978
    %3173 = vmatmul.mubr.bf16.gmra.mrb[0].mxu0 %v2977
    %v3174 = vpop.f32.mrb[0].mxu0
    %v3175 = vadd.f32 %v3026, %v3174
    %v3176 = vpop.f32.mrb[0].mxu0
    %v3177 = vpop.f32.mrb[0].mxu0
    %v3178 = vadd.f32 %v3026, %v3177
    %v3179 = vpop.f32.mrb[0].mxu0
    %3180 = vmatprep.mubr.bf16.mxu0 %v2980
    %3181 = vmatmul.mubr.bf16.gmra.mrb[0].mxu0 %v2979
    %v3182 = vpop.f32.mrb[0].mxu0
    %v3183 = vadd.f32 %v3026, %v3182
    %v3184 = vpop.f32.mrb[0].mxu0
    %v3185 = vpop.f32.mrb[0].mxu0
    %v3186 = vadd.f32 %v3026, %v3185
    %v3187 = vpop.f32.mrb[0].mxu0
    %3188 = vmatprep.mubr.bf16.mxu0 %v2982
    %3189 = vmatmul.mubr.bf16.gmra.mrb[0].mxu0 %v2981
    %v3190 = vpop.f32.mrb[0].mxu0
    %v3191 = vadd.f32 %v3026, %v3190
    %v3192 = vpop.f32.mrb[0].mxu0
    %v3193 = vpop.f32.mrb[0].mxu0
    %v3194 = vadd.f32 %v3026, %v3193
    %v3195 = vpop.f32.mrb[0].mxu0
    %3196 = vmatprep.mubr.bf16.mxu0 %v2984
    %3197 = vmatmul.mubr.bf16.gmra.mrb[0].mxu0 %v2983
    %v3198 = vpop.f32.mrb[0].mxu0
    %v3199 = vadd.f32 %v3026, %v3198
    %v3200 = vpop.f32.mrb[0].mxu0
    %v3201 = vpop.f32.mrb[0].mxu0
    %v3202 = vadd.f32 %v3026, %v3201
    %v3203 = vpop.f32.mrb[0].mxu0
    %3204 = vmatprep.mubr.bf16.mxu0 %v2986
    %3205 = vmatmul.mubr.bf16.gmra.mrb[0].mxu0 %v2985
    %v3206 = vpop.f32.mrb[0].mxu0
    %v3207 = vadd.f32 %v3026, %v3206
    %v3208 = vpop.f32.mrb[0].mxu0
    %v3209 = vpop.f32.mrb[0].mxu0
    %v3210 = vadd.f32 %v3026, %v3209
    %v3211 = vpop.f32.mrb[0].mxu0
    %3212 = vmatprep.mubr.bf16.mxu0 %v2988
    %3213 = vmatmul.mubr.bf16.gmra.mrb[0].mxu0 %v2987
    %v3214 = vpop.f32.mrb[0].mxu0
    %v3215 = vadd.f32 %v3026, %v3214
    %v3216 = vpop.f32.mrb[0].mxu0
    %v3217 = vpop.f32.mrb[0].mxu0
    %v3218 = vadd.f32 %v3026, %v3217
    %v3219 = vpop.f32.mrb[0].mxu0
    %3220 = vdwg.mxu0
    %v3221 = vadd.f32 %v3159, %v2720
    %v3222 = vadd.f32 %v3162, %v2721
    %v3223 = vadd.f32 %v3167, %v2722
    %v3224 = vadd.f32 %v3170, %v2723
    %v3225 = vadd.f32 %v3175, %v2724
    %v3226 = vadd.f32 %v3178, %v2725
    %v3227 = vadd.f32 %v3183, %v2726
    %v3228 = vadd.f32 %v3186, %v2727
    %v3229 = vadd.f32 %v3191, %v2728
    %v3230 = vadd.f32 %v3194, %v2729
    %v3231 = vadd.f32 %v3199, %v2730
    %v3232 = vadd.f32 %v3202, %v2731
    %v3233 = vadd.f32 %v3207, %v2732
    %v3234 = vadd.f32 %v3210, %v2733
    %v3235 = vadd.f32 %v3215, %v2734
    %v3236 = vadd.f32 %v3218, %v2735
    %v3237 = vld [vmem:[%s16] sm:$0x1]
    %v3238 = vld [vmem:[%s17] sm:$0x1]
    %v3239 = vsel %vm296, %v3221, 0.0
    %3240 = vadd.xlane.f32.xlu0 %v3239
    %v3241 = vpop.xlane.xlu0 %3240
    %v3242 = vsel %vm296, %v3222, 0.0
    %3243 = vadd.xlane.f32.xlu0 %v3242
    %v3244 = vpop.xlane.xlu0 %3243
    %v3245 = vsel %vm296, %v3223, 0.0
    %3246 = vadd.xlane.f32.xlu0 %v3245
    %v3247 = vpop.xlane.xlu0 %3246
    %v3248 = vsel %vm296, %v3224, 0.0
    %3249 = vadd.xlane.f32.xlu0 %v3248
    %v3250 = vpop.xlane.xlu0 %3249
    %v3251 = vsel %vm296, %v3225, 0.0
    %3252 = vadd.xlane.f32.xlu0 %v3251
    %v3253 = vpop.xlane.xlu0 %3252
    %v3254 = vsel %vm296, %v3226, 0.0
    %3255 = vadd.xlane.f32.xlu0 %v3254
    %v3256 = vpop.xlane.xlu0 %3255
    %v3257 = vsel %vm296, %v3227, 0.0
    %3258 = vadd.xlane.f32.xlu0 %v3257
    %v3259 = vpop.xlane.xlu0 %3258
    %v3260 = vsel %vm296, %v3228, 0.0
    %3261 = vadd.xlane.f32.xlu0 %v3260
    %v3262 = vpop.xlane.xlu0 %3261
    %v3263 = vsel %vm296, %v3229, 0.0
    %3264 = vadd.xlane.f32.xlu0 %v3263
    %v3265 = vpop.xlane.xlu0 %3264
    %v3266 = vsel %vm296, %v3230, 0.0
    %3267 = vadd.xlane.f32.xlu0 %v3266
    %v3268 = vpop.xlane.xlu0 %3267
    %v3269 = vsel %vm296, %v3231, 0.0
    %3270 = vadd.xlane.f32.xlu0 %v3269
    %v3271 = vpop.xlane.xlu0 %3270
    %v3272 = vsel %vm296, %v3232, 0.0
    %3273 = vadd.xlane.f32.xlu0 %v3272
    %v3274 = vpop.xlane.xlu0 %3273
    %v3275 = vsel %vm296, %v3233, 0.0
    %3276 = vadd.xlane.f32.xlu0 %v3275
    %v3277 = vpop.xlane.xlu0 %3276
    %v3278 = vsel %vm296, %v3234, 0.0
    %3279 = vadd.xlane.f32.xlu0 %v3278
    %v3280 = vpop.xlane.xlu0 %3279
    %v3281 = vsel %vm296, %v3235, 0.0
    %3282 = vadd.xlane.f32.xlu0 %v3281
    %v3283 = vpop.xlane.xlu0 %3282
    %v3284 = vsel %vm296, %v3236, 0.0
    %3285 = vadd.xlane.f32.xlu0 %v3284
    %v3286 = vpop.xlane.xlu0 %3285
    %v3287 = vmul.f32 %v3241, %v2531
    %v3288 = vmul.f32 %v3244, %v2531
    %v3289 = vmul.f32 %v3247, %v2531
    %v3290 = vmul.f32 %v3250, %v2531
    %v3291 = vmul.f32 %v3253, %v2531
    %v3292 = vmul.f32 %v3256, %v2531
    %v3293 = vmul.f32 %v3259, %v2531
    %v3294 = vmul.f32 %v3262, %v2531
    %v3295 = vmul.f32 %v3265, %v2531
    %v3296 = vmul.f32 %v3268, %v2531
    %v3297 = vmul.f32 %v3271, %v2531
    %v3298 = vmul.f32 %v3274, %v2531
    %v3299 = vmul.f32 %v3277, %v2531
    %v3300 = vmul.f32 %v3280, %v2531
    %v3301 = vmul.f32 %v3283, %v2531
    %v3302 = vmul.f32 %v3286, %v2531
    %v3303 = vsub.f32 %v3221, %v3287
    %v3304 = vsub.f32 %v3222, %v3288
    %v3305 = vsub.f32 %v3223, %v3289
    %v3306 = vsub.f32 %v3224, %v3290
    %v3307 = vsub.f32 %v3225, %v3291
    %v3308 = vsub.f32 %v3226, %v3292
    %v3309 = vsub.f32 %v3227, %v3293
    %v3310 = vsub.f32 %v3228, %v3294
    %v3311 = vsub.f32 %v3229, %v3295
    %v3312 = vsub.f32 %v3230, %v3296
    %v3313 = vsub.f32 %v3231, %v3297
    %v3314 = vsub.f32 %v3232, %v3298
    %v3315 = vsub.f32 %v3233, %v3299
    %v3316 = vsub.f32 %v3234, %v3300
    %v3317 = vsub.f32 %v3235, %v3301
    %v3318 = vsub.f32 %v3236, %v3302
    %v3319 = vmul.f32 %v3303, %v3303
    %v3320 = vmul.f32 %v3304, %v3304
    %v3321 = vmul.f32 %v3305, %v3305
    %v3322 = vmul.f32 %v3306, %v3306
    %v3323 = vmul.f32 %v3307, %v3307
    %v3324 = vmul.f32 %v3308, %v3308
    %v3325 = vmul.f32 %v3309, %v3309
    %v3326 = vmul.f32 %v3310, %v3310
    %v3327 = vmul.f32 %v3311, %v3311
    %v3328 = vmul.f32 %v3312, %v3312
    %v3329 = vmul.f32 %v3313, %v3313
    %v3330 = vmul.f32 %v3314, %v3314
    %v3331 = vmul.f32 %v3315, %v3315
    %v3332 = vmul.f32 %v3316, %v3316
    %v3333 = vmul.f32 %v3317, %v3317
    %v3334 = vmul.f32 %v3318, %v3318
    %v3335 = vsel %vm296, %v3319, 0.0
    %3336 = vadd.xlane.f32.xlu0 %v3335
    %v3337 = vpop.xlane.xlu0 %3336
    %v3338 = vsel %vm296, %v3320, 0.0
    %3339 = vadd.xlane.f32.xlu0 %v3338
    %v3340 = vpop.xlane.xlu0 %3339
    %v3341 = vsel %vm296, %v3321, 0.0
    %3342 = vadd.xlane.f32.xlu0 %v3341
    %v3343 = vpop.xlane.xlu0 %3342
    %v3344 = vsel %vm296, %v3322, 0.0
    %3345 = vadd.xlane.f32.xlu0 %v3344
    %v3346 = vpop.xlane.xlu0 %3345
    %v3347 = vsel %vm296, %v3323, 0.0
    %3348 = vadd.xlane.f32.xlu0 %v3347
    %v3349 = vpop.xlane.xlu0 %3348
    %v3350 = vsel %vm296, %v3324, 0.0
    %3351 = vadd.xlane.f32.xlu0 %v3350
    %v3352 = vpop.xlane.xlu0 %3351
    %v3353 = vsel %vm296, %v3325, 0.0
    %3354 = vadd.xlane.f32.xlu0 %v3353
    %v3355 = vpop.xlane.xlu0 %3354
    %v3356 = vsel %vm296, %v3326, 0.0
    %3357 = vadd.xlane.f32.xlu0 %v3356
    %v3358 = vpop.xlane.xlu0 %3357
    %v3359 = vsel %vm296, %v3327, 0.0
    %3360 = vadd.xlane.f32.xlu0 %v3359
    %v3361 = vpop.xlane.xlu0 %3360
    %v3362 = vsel %vm296, %v3328, 0.0
    %3363 = vadd.xlane.f32.xlu0 %v3362
    %v3364 = vpop.xlane.xlu0 %3363
    %v3365 = vsel %vm296, %v3329, 0.0
    %3366 = vadd.xlane.f32.xlu0 %v3365
    %v3367 = vpop.xlane.xlu0 %3366
    %v3368 = vsel %vm296, %v3330, 0.0
    %3369 = vadd.xlane.f32.xlu0 %v3368
    %v3370 = vpop.xlane.xlu0 %3369
    %v3371 = vsel %vm296, %v3331, 0.0
    %3372 = vadd.xlane.f32.xlu0 %v3371
    %v3373 = vpop.xlane.xlu0 %3372
    %v3374 = vsel %vm296, %v3332, 0.0
    %3375 = vadd.xlane.f32.xlu0 %v3374
    %v3376 = vpop.xlane.xlu0 %3375
    %v3377 = vsel %vm296, %v3333, 0.0
    %3378 = vadd.xlane.f32.xlu0 %v3377
    %v3379 = vpop.xlane.xlu0 %3378
    %v3380 = vsel %vm296, %v3334, 0.0
    %3381 = vadd.xlane.f32.xlu0 %v3380
    %v3382 = vpop.xlane.xlu0 %3381
    %v3383 = vmul.f32 %v3337, %v2531
    %v3384 = vmul.f32 %v3340, %v2531
    %v3385 = vmul.f32 %v3343, %v2531
    %v3386 = vmul.f32 %v3346, %v2531
    %v3387 = vmul.f32 %v3349, %v2531
    %v3388 = vmul.f32 %v3352, %v2531
    %v3389 = vmul.f32 %v3355, %v2531
    %v3390 = vmul.f32 %v3358, %v2531
    %v3391 = vmul.f32 %v3361, %v2531
    %v3392 = vmul.f32 %v3364, %v2531
    %v3393 = vmul.f32 %v3367, %v2531
    %v3394 = vmul.f32 %v3370, %v2531
    %v3395 = vmul.f32 %v3373, %v2531
    %v3396 = vmul.f32 %v3376, %v2531
    %v3397 = vmul.f32 %v3379, %v2531
    %v3398 = vmul.f32 %v3382, %v2531
    %v3399 = vadd.f32 %v3383, 1e-05
    %v3400 = vadd.f32 %v3384, 1e-05
    %v3401 = vadd.f32 %v3385, 1e-05
    %v3402 = vadd.f32 %v3386, 1e-05
    %v3403 = vadd.f32 %v3387, 1e-05
    %v3404 = vadd.f32 %v3388, 1e-05
    %v3405 = vadd.f32 %v3389, 1e-05
    %v3406 = vadd.f32 %v3390, 1e-05
    %v3407 = vadd.f32 %v3391, 1e-05
    %v3408 = vadd.f32 %v3392, 1e-05
    %v3409 = vadd.f32 %v3393, 1e-05
    %v3410 = vadd.f32 %v3394, 1e-05
    %v3411 = vadd.f32 %v3395, 1e-05
    %v3412 = vadd.f32 %v3396, 1e-05
    %v3413 = vadd.f32 %v3397, 1e-05
    %v3414 = vadd.f32 %v3398, 1e-05
    %v3415 = vrsqrt.pop %v3399
    %v3416 = vrsqrt.pop %v3400
    %v3417 = vrsqrt.pop %v3401
    %v3418 = vrsqrt.pop %v3402
    %v3419 = vrsqrt.pop %v3403
    %v3420 = vrsqrt.pop %v3404
    %v3421 = vrsqrt.pop %v3405
    %v3422 = vrsqrt.pop %v3406
    %v3423 = vrsqrt.pop %v3407
    %v3424 = vrsqrt.pop %v3408
    %v3425 = vrsqrt.pop %v3409
    %v3426 = vrsqrt.pop %v3410
    %v3427 = vrsqrt.pop %v3411
    %v3428 = vrsqrt.pop %v3412
    %v3429 = vrsqrt.pop %v3413
    %v3430 = vrsqrt.pop %v3414
    %v3431 = vmul.f32 %v3303, %v3415
    %v3432 = vmul.f32 %v3304, %v3416
    %v3433 = vmul.f32 %v3305, %v3417
    %v3434 = vmul.f32 %v3306, %v3418
    %v3435 = vmul.f32 %v3307, %v3419
    %v3436 = vmul.f32 %v3308, %v3420
    %v3437 = vmul.f32 %v3309, %v3421
    %v3438 = vmul.f32 %v3310, %v3422
    %v3439 = vmul.f32 %v3311, %v3423
    %v3440 = vmul.f32 %v3312, %v3424
    %v3441 = vmul.f32 %v3313, %v3425
    %v3442 = vmul.f32 %v3314, %v3426
    %v3443 = vmul.f32 %v3315, %v3427
    %v3444 = vmul.f32 %v3316, %v3428
    %v3445 = vmul.f32 %v3317, %v3429
    %v3446 = vmul.f32 %v3318, %v3430
    %v3448 = vlaneseq
    %v3449 = vshrl.u32 %v3448, 7
    %v3450 = vsub.s32 0, %v3449
    %v3451 = vrot.slane %v3237, %v3450
    %v3453 = vmul.f32 %v3431, %v3451
    %v3454 = vmul.f32 %v3432, %v3451
    %v3455 = vmul.f32 %v3433, %v3451
    %v3456 = vmul.f32 %v3434, %v3451
    %v3457 = vmul.f32 %v3435, %v3451
    %v3458 = vmul.f32 %v3436, %v3451
    %v3459 = vmul.f32 %v3437, %v3451
    %v3460 = vmul.f32 %v3438, %v3451
    %v3461 = vmul.f32 %v3439, %v3451
    %v3462 = vmul.f32 %v3440, %v3451
    %v3463 = vmul.f32 %v3441, %v3451
    %v3464 = vmul.f32 %v3442, %v3451
    %v3465 = vmul.f32 %v3443, %v3451
    %v3466 = vmul.f32 %v3444, %v3451
    %v3467 = vmul.f32 %v3445, %v3451
    %v3468 = vmul.f32 %v3446, %v3451
    %v3470 = vlaneseq
    %v3471 = vshrl.u32 %v3470, 7
    %v3472 = vsub.s32 0, %v3471
    %v3473 = vrot.slane %v3238, %v3472
    %v3475 = vadd.f32 %v3453, %v3473
    %v3476 = vadd.f32 %v3454, %v3473
    %v3477 = vadd.f32 %v3455, %v3473
    %v3478 = vadd.f32 %v3456, %v3473
    %v3479 = vadd.f32 %v3457, %v3473
    %v3480 = vadd.f32 %v3458, %v3473
    %v3481 = vadd.f32 %v3459, %v3473
    %v3482 = vadd.f32 %v3460, %v3473
    %v3483 = vadd.f32 %v3461, %v3473
    %v3484 = vadd.f32 %v3462, %v3473
    %v3485 = vadd.f32 %v3463, %v3473
    %v3486 = vadd.f32 %v3464, %v3473
    %v3487 = vadd.f32 %v3465, %v3473
    %v3488 = vadd.f32 %v3466, %v3473
    %v3489 = vadd.f32 %v3467, %v3473
    %v3490 = vadd.f32 %v3468, %v3473
    %v3491 = vpack.c.bf16 %v3476, %v3475
    %v3492 = vpack.c.bf16 %v3478, %v3477
    %v3493 = vpack.c.bf16 %v3480, %v3479
    %v3494 = vpack.c.bf16 %v3482, %v3481
    %v3495 = vpack.c.bf16 %v3484, %v3483
    %v3496 = vpack.c.bf16 %v3486, %v3485
    %v3497 = vpack.c.bf16 %v3488, %v3487
    %v3498 = vpack.c.bf16 %v3490, %v3489
    %s3499 = scalar_lea.vmem [#allocation6], 64
    %v3500 = vld [vmem:[%s3499] sm:$0xf]
    %v3501 = vld [vmem:[%s3499 + $0x4] sm:$0xf]
    %v3502 = vld [vmem:[%s3499 + $0x8] sm:$0xf]
    %v3503 = vld [vmem:[%s3499 + $0xc] sm:$0xf]
    %v3504 = vld [vmem:[%s3499 + $0x10] sm:$0xf]
    %v3505 = vld [vmem:[%s3499 + $0x14] sm:$0xf]
    %v3506 = vld [vmem:[%s3499 + $0x18] sm:$0xf]
    %v3507 = vld [vmem:[%s3499 + $0x1c] sm:$0xf]
    %s3508 = scalar_lea.vmem %s5, 2
    %v3509 = vld [vmem:[%s3508] sm:$0x1]
    %v3511 = vlaneseq
    %v3512 = vshrl.u32 %v3511, 7
    %v3513 = vsub.s32 0, %v3512
    %v3514 = vrot.slane %v3509, %v3513
    %v3524 = vunpack.c.l.b16 %v3500
    %v3525 = vunpack.c.l.b16 %v3501
    %v3526 = vunpack.c.l.b16 %v3502
    %v3527 = vunpack.c.l.b16 %v3503
    %v3528 = vunpack.c.l.b16 %v3504
    %v3529 = vunpack.c.l.b16 %v3505
    %v3530 = vunpack.c.l.b16 %v3506
    %v3531 = vunpack.c.l.b16 %v3507
    %v3532 = vpack.c.b16 %v3525, %v3524
    %v3533 = vpack.c.b16 %v3527, %v3526
    %v3534 = vpack.c.b16 %v3529, %v3528
    %v3535 = vpack.c.b16 %v3531, %v3530
    %v3541 = vsel %vm296, %v3491, 0
    %v3544 = vsel %vm296, %v3492, 0
    %v3547 = vsel %vm296, %v3493, 0
    %v3550 = vsel %vm296, %v3494, 0
    %v3553 = vsel %vm296, %v3495, 0
    %v3556 = vsel %vm296, %v3496, 0
    %v3559 = vsel %vm296, %v3497, 0
    %v3562 = vsel %vm296, %v3498, 0
    %3564 = vmatprep.subr.bf16.mxu0 0
    %3565 = vmatpush1.bf16.msra.mxu0 %v3532
    %3566 = vmatprep.subr.bf16.mxu0 0
    %3567 = vmatpush1.bf16.msra.mxu0 %v3533
    %3568 = vmatprep.subr.bf16.mxu0 0
    %3569 = vmatpush1.bf16.msra.mxu0 %v3534
    %3570 = vmatprep.subr.bf16.mxu0 0
    %3571 = vmatpush1.bf16.msra.mxu0 %v3535
    %3572 = vmatprep.subr.bf16.mxu0 0
    %3573 = vmatpush1.bf16.msra.mxu0 0
    %3574 = vmatprep.subr.bf16.mxu0 0
    %3575 = vmatpush1.bf16.msra.mxu0 0
    %3576 = vmatprep.subr.bf16.mxu0 0
    %3577 = vmatpush1.bf16.msra.mxu0 0
    %3578 = vmatprep.subr.bf16.mxu0 0
    %3579 = vmatpush1.bf16.msra.mxu0 0
    %3580 = vmatprep.subr.bf16.mxu0 0
    %3581 = vmatpush1.bf16.msra.mxu0 0
    %3582 = vmatprep.subr.bf16.mxu0 0
    %3583 = vmatpush1.bf16.msra.mxu0 0
    %3584 = vmatprep.subr.bf16.mxu0 0
    %3585 = vmatpush1.bf16.msra.mxu0 0
    %3586 = vmatprep.subr.bf16.mxu0 0
    %3587 = vmatpush1.bf16.msra.mxu0 0
    %3588 = vmatprep.subr.bf16.mxu0 0
    %3589 = vmatpush1.bf16.msra.mxu0 0
    %3590 = vmatprep.subr.bf16.mxu0 0
    %3591 = vmatpush1.bf16.msra.mxu0 0
    %3592 = vmatprep.subr.bf16.mxu0 0
    %3593 = vmatpush1.bf16.msra.mxu0 0
    %3594 = vmatprep.subr.bf16.mxu0 0
    %3595 = vmatpush1.bf16.msra.mxu0 0
    %3596 = vmatprep.mubr.bf16.mxu0 0
    %3597 = vmatmul.mubr.bf16.gmra.mrb[0].mxu0 %v3541
    %v3598 = vpop.f32.mrb[0].mxu0
    %v3599 = vadd.f32 %v3514, %v3598
    %v3600 = vpop.f32.mrb[0].mxu0
    %v3601 = vpop.f32.mrb[0].mxu0
    %v3602 = vadd.f32 %v3514, %v3601
    %v3603 = vpop.f32.mrb[0].mxu0
    %3604 = vmatprep.mubr.bf16.mxu0 0
    %3605 = vmatmul.mubr.bf16.gmra.mrb[0].mxu0 %v3544
    %v3606 = vpop.f32.mrb[0].mxu0
    %v3607 = vadd.f32 %v3514, %v3606
    %v3608 = vpop.f32.mrb[0].mxu0
    %v3609 = vpop.f32.mrb[0].mxu0
    %v3610 = vadd.f32 %v3514, %v3609
    %v3611 = vpop.f32.mrb[0].mxu0
    %3612 = vmatprep.mubr.bf16.mxu0 0
    %3613 = vmatmul.mubr.bf16.gmra.mrb[0].mxu0 %v3547
    %v3614 = vpop.f32.mrb[0].mxu0
    %v3615 = vadd.f32 %v3514, %v3614
    %v3616 = vpop.f32.mrb[0].mxu0
    %v3617 = vpop.f32.mrb[0].mxu0
    %v3618 = vadd.f32 %v3514, %v3617
    %v3619 = vpop.f32.mrb[0].mxu0
    %3620 = vmatprep.mubr.bf16.mxu0 0
    %3621 = vmatmul.mubr.bf16.gmra.mrb[0].mxu0 %v3550
    %v3622 = vpop.f32.mrb[0].mxu0
    %v3623 = vadd.f32 %v3514, %v3622
    %v3624 = vpop.f32.mrb[0].mxu0
    %v3625 = vpop.f32.mrb[0].mxu0
    %v3626 = vadd.f32 %v3514, %v3625
    %v3627 = vpop.f32.mrb[0].mxu0
    %3628 = vmatprep.mubr.bf16.mxu0 0
    %3629 = vmatmul.mubr.bf16.gmra.mrb[0].mxu0 %v3553
    %v3630 = vpop.f32.mrb[0].mxu0
    %v3631 = vadd.f32 %v3514, %v3630
    %v3632 = vpop.f32.mrb[0].mxu0
    %v3633 = vpop.f32.mrb[0].mxu0
    %v3634 = vadd.f32 %v3514, %v3633
    %v3635 = vpop.f32.mrb[0].mxu0
    %3636 = vmatprep.mubr.bf16.mxu0 0
    %3637 = vmatmul.mubr.bf16.gmra.mrb[0].mxu0 %v3556
    %v3638 = vpop.f32.mrb[0].mxu0
    %v3639 = vadd.f32 %v3514, %v3638
    %v3640 = vpop.f32.mrb[0].mxu0
    %v3641 = vpop.f32.mrb[0].mxu0
    %v3642 = vadd.f32 %v3514, %v3641
    %v3643 = vpop.f32.mrb[0].mxu0
    %3644 = vmatprep.mubr.bf16.mxu0 0
    %3645 = vmatmul.mubr.bf16.gmra.mrb[0].mxu0 %v3559
    %v3646 = vpop.f32.mrb[0].mxu0
    %v3647 = vadd.f32 %v3514, %v3646
    %v3648 = vpop.f32.mrb[0].mxu0
    %v3649 = vpop.f32.mrb[0].mxu0
    %v3650 = vadd.f32 %v3514, %v3649
    %v3651 = vpop.f32.mrb[0].mxu0
    %3652 = vmatprep.mubr.bf16.mxu0 0
    %3653 = vmatmul.mubr.bf16.gmra.mrb[0].mxu0 %v3562
    %v3654 = vpop.f32.mrb[0].mxu0
    %v3655 = vadd.f32 %v3514, %v3654
    %v3656 = vpop.f32.mrb[0].mxu0
    %v3657 = vpop.f32.mrb[0].mxu0
    %v3658 = vadd.f32 %v3514, %v3657
    %v3659 = vpop.f32.mrb[0].mxu0
    %3660 = vdwg.mxu0
    %s3661 = scalar_lea.vmem [#allocation7], 64
    %v3662 = vld [vmem:[%s3661] sm:$0xf]
    %v3663 = vld [vmem:[%s3661 + $0x4] sm:$0xf]
    %v3664 = vld [vmem:[%s3661 + $0x8] sm:$0xf]
    %v3665 = vld [vmem:[%s3661 + $0xc] sm:$0xf]
    %v3666 = vld [vmem:[%s3661 + $0x10] sm:$0xf]
    %v3667 = vld [vmem:[%s3661 + $0x14] sm:$0xf]
    %v3668 = vld [vmem:[%s3661 + $0x18] sm:$0xf]
    %v3669 = vld [vmem:[%s3661 + $0x1c] sm:$0xf]
    %s3670 = scalar_lea.vmem %s6, 2
    %v3671 = vld [vmem:[%s3670] sm:$0x1]
    %v3673 = vlaneseq
    %v3674 = vshrl.u32 %v3673, 7
    %v3675 = vsub.s32 0, %v3674
    %v3676 = vrot.slane %v3671, %v3675
    %v3686 = vunpack.c.l.b16 %v3662
    %v3687 = vunpack.c.l.b16 %v3663
    %v3688 = vunpack.c.l.b16 %v3664
    %v3689 = vunpack.c.l.b16 %v3665
    %v3690 = vunpack.c.l.b16 %v3666
    %v3691 = vunpack.c.l.b16 %v3667
    %v3692 = vunpack.c.l.b16 %v3668
    %v3693 = vunpack.c.l.b16 %v3669
    %v3694 = vpack.c.b16 %v3687, %v3686
    %v3695 = vpack.c.b16 %v3689, %v3688
    %v3696 = vpack.c.b16 %v3691, %v3690
    %v3697 = vpack.c.b16 %v3693, %v3692
    %3702 = vmatprep.subr.bf16.mxu0 0
    %3703 = vmatpush1.bf16.msra.mxu0 %v3694
    %3704 = vmatprep.subr.bf16.mxu0 0
    %3705 = vmatpush1.bf16.msra.mxu0 %v3695
    %3706 = vmatprep.subr.bf16.mxu0 0
    %3707 = vmatpush1.bf16.msra.mxu0 %v3696
    %3708 = vmatprep.subr.bf16.mxu0 0
    %3709 = vmatpush1.bf16.msra.mxu0 %v3697
    %3710 = vmatprep.subr.bf16.mxu0 0
    %3711 = vmatpush1.bf16.msra.mxu0 0
    %3712 = vmatprep.subr.bf16.mxu0 0
    %3713 = vmatpush1.bf16.msra.mxu0 0
    %3714 = vmatprep.subr.bf16.mxu0 0
    %3715 = vmatpush1.bf16.msra.mxu0 0
    %3716 = vmatprep.subr.bf16.mxu0 0
    %3717 = vmatpush1.bf16.msra.mxu0 0
    %3718 = vmatprep.subr.bf16.mxu0 0
    %3719 = vmatpush1.bf16.msra.mxu0 0
    %3720 = vmatprep.subr.bf16.mxu0 0
    %3721 = vmatpush1.bf16.msra.mxu0 0
    %3722 = vmatprep.subr.bf16.mxu0 0
    %3723 = vmatpush1.bf16.msra.mxu0 0
    %3724 = vmatprep.subr.bf16.mxu0 0
    %3725 = vmatpush1.bf16.msra.mxu0 0
    %3726 = vmatprep.subr.bf16.mxu0 0
    %3727 = vmatpush1.bf16.msra.mxu0 0
    %3728 = vmatprep.subr.bf16.mxu0 0
    %3729 = vmatpush1.bf16.msra.mxu0 0
    %3730 = vmatprep.subr.bf16.mxu0 0
    %3731 = vmatpush1.bf16.msra.mxu0 0
    %3732 = vmatprep.subr.bf16.mxu0 0
    %3733 = vmatpush1.bf16.msra.mxu0 0
    %3734 = vmatprep.mubr.bf16.mxu0 0
    %3735 = vmatmul.mubr.bf16.gmra.mrb[0].mxu0 %v3541
    %v3736 = vpop.f32.mrb[0].mxu0
    %v3737 = vadd.f32 %v3676, %v3736
    %v3738 = vpop.f32.mrb[0].mxu0
    %v3739 = vpop.f32.mrb[0].mxu0
    %v3740 = vadd.f32 %v3676, %v3739
    %v3741 = vpop.f32.mrb[0].mxu0
    %3742 = vmatprep.mubr.bf16.mxu0 0
    %3743 = vmatmul.mubr.bf16.gmra.mrb[0].mxu0 %v3544
    %v3744 = vpop.f32.mrb[0].mxu0
    %v3745 = vadd.f32 %v3676, %v3744
    %v3746 = vpop.f32.mrb[0].mxu0
    %v3747 = vpop.f32.mrb[0].mxu0
    %v3748 = vadd.f32 %v3676, %v3747
    %v3749 = vpop.f32.mrb[0].mxu0
    %3750 = vmatprep.mubr.bf16.mxu0 0
    %3751 = vmatmul.mubr.bf16.gmra.mrb[0].mxu0 %v3547
    %v3752 = vpop.f32.mrb[0].mxu0
    %v3753 = vadd.f32 %v3676, %v3752
    %v3754 = vpop.f32.mrb[0].mxu0
    %v3755 = vpop.f32.mrb[0].mxu0
    %v3756 = vadd.f32 %v3676, %v3755
    %v3757 = vpop.f32.mrb[0].mxu0
    %3758 = vmatprep.mubr.bf16.mxu0 0
    %3759 = vmatmul.mubr.bf16.gmra.mrb[0].mxu0 %v3550
    %v3760 = vpop.f32.mrb[0].mxu0
    %v3761 = vadd.f32 %v3676, %v3760
    %v3762 = vpop.f32.mrb[0].mxu0
    %v3763 = vpop.f32.mrb[0].mxu0
    %v3764 = vadd.f32 %v3676, %v3763
    %v3765 = vpop.f32.mrb[0].mxu0
    %3766 = vmatprep.mubr.bf16.mxu0 0
    %3767 = vmatmul.mubr.bf16.gmra.mrb[0].mxu0 %v3553
    %v3768 = vpop.f32.mrb[0].mxu0
    %v3769 = vadd.f32 %v3676, %v3768
    %v3770 = vpop.f32.mrb[0].mxu0
    %v3771 = vpop.f32.mrb[0].mxu0
    %v3772 = vadd.f32 %v3676, %v3771
    %v3773 = vpop.f32.mrb[0].mxu0
    %3774 = vmatprep.mubr.bf16.mxu0 0
    %3775 = vmatmul.mubr.bf16.gmra.mrb[0].mxu0 %v3556
    %v3776 = vpop.f32.mrb[0].mxu0
    %v3777 = vadd.f32 %v3676, %v3776
    %v3778 = vpop.f32.mrb[0].mxu0
    %v3779 = vpop.f32.mrb[0].mxu0
    %v3780 = vadd.f32 %v3676, %v3779
    %v3781 = vpop.f32.mrb[0].mxu0
    %3782 = vmatprep.mubr.bf16.mxu0 0
    %3783 = vmatmul.mubr.bf16.gmra.mrb[0].mxu0 %v3559
    %v3784 = vpop.f32.mrb[0].mxu0
    %v3785 = vadd.f32 %v3676, %v3784
    %v3786 = vpop.f32.mrb[0].mxu0
    %v3787 = vpop.f32.mrb[0].mxu0
    %v3788 = vadd.f32 %v3676, %v3787
    %v3789 = vpop.f32.mrb[0].mxu0
    %3790 = vmatprep.mubr.bf16.mxu0 0
    %3791 = vmatmul.mubr.bf16.gmra.mrb[0].mxu0 %v3562
    %v3792 = vpop.f32.mrb[0].mxu0
    %v3793 = vadd.f32 %v3676, %v3792
    %v3794 = vpop.f32.mrb[0].mxu0
    %v3795 = vpop.f32.mrb[0].mxu0
    %v3796 = vadd.f32 %v3676, %v3795
    %v3797 = vpop.f32.mrb[0].mxu0
    %3798 = vdwg.mxu0
    %s3799 = scalar_lea.vmem [#allocation9], 64
    %v3800 = vld [vmem:[%s3799] sm:$0xf]
    %v3801 = vld [vmem:[%s3799 + $0x4] sm:$0xf]
    %v3802 = vld [vmem:[%s3799 + $0x8] sm:$0xf]
    %v3803 = vld [vmem:[%s3799 + $0xc] sm:$0xf]
    %v3804 = vld [vmem:[%s3799 + $0x10] sm:$0xf]
    %v3805 = vld [vmem:[%s3799 + $0x14] sm:$0xf]
    %v3806 = vld [vmem:[%s3799 + $0x18] sm:$0xf]
    %v3807 = vld [vmem:[%s3799 + $0x1c] sm:$0xf]
    %s3808 = scalar_lea.vmem %s7, 2
    %v3809 = vld [vmem:[%s3808] sm:$0x1]
    %v3811 = vlaneseq
    %v3812 = vshrl.u32 %v3811, 7
    %v3813 = vsub.s32 0, %v3812
    %v3814 = vrot.slane %v3809, %v3813
    %v3824 = vunpack.c.l.b16 %v3800
    %v3825 = vunpack.c.l.b16 %v3801
    %v3826 = vunpack.c.l.b16 %v3802
    %v3827 = vunpack.c.l.b16 %v3803
    %v3828 = vunpack.c.l.b16 %v3804
    %v3829 = vunpack.c.l.b16 %v3805
    %v3830 = vunpack.c.l.b16 %v3806
    %v3831 = vunpack.c.l.b16 %v3807
    %v3832 = vpack.c.b16 %v3825, %v3824
    %v3833 = vpack.c.b16 %v3827, %v3826
    %v3834 = vpack.c.b16 %v3829, %v3828
    %v3835 = vpack.c.b16 %v3831, %v3830
    %3840 = vmatprep.subr.bf16.mxu0 0
    %3841 = vmatpush1.bf16.msra.mxu0 %v3832
    %3842 = vmatprep.subr.bf16.mxu0 0
    %3843 = vmatpush1.bf16.msra.mxu0 %v3833
    %3844 = vmatprep.subr.bf16.mxu0 0
    %3845 = vmatpush1.bf16.msra.mxu0 %v3834
    %3846 = vmatprep.subr.bf16.mxu0 0
    %3847 = vmatpush1.bf16.msra.mxu0 %v3835
    %3848 = vmatprep.subr.bf16.mxu0 0
    %3849 = vmatpush1.bf16.msra.mxu0 0
    %3850 = vmatprep.subr.bf16.mxu0 0
    %3851 = vmatpush1.bf16.msra.mxu0 0
    %3852 = vmatprep.subr.bf16.mxu0 0
    %3853 = vmatpush1.bf16.msra.mxu0 0
    %3854 = vmatprep.subr.bf16.mxu0 0
    %3855 = vmatpush1.bf16.msra.mxu0 0
    %3856 = vmatprep.subr.bf16.mxu0 0
    %3857 = vmatpush1.bf16.msra.mxu0 0
    %3858 = vmatprep.subr.bf16.mxu0 0
    %3859 = vmatpush1.bf16.msra.mxu0 0
    %3860 = vmatprep.subr.bf16.mxu0 0
    %3861 = vmatpush1.bf16.msra.mxu0 0
    %3862 = vmatprep.subr.bf16.mxu0 0
    %3863 = vmatpush1.bf16.msra.mxu0 0
    %3864 = vmatprep.subr.bf16.mxu0 0
    %3865 = vmatpush1.bf16.msra.mxu0 0
    %3866 = vmatprep.subr.bf16.mxu0 0
    %3867 = vmatpush1.bf16.msra.mxu0 0
    %3868 = vmatprep.subr.bf16.mxu0 0
    %3869 = vmatpush1.bf16.msra.mxu0 0
    %3870 = vmatprep.subr.bf16.mxu0 0
    %3871 = vmatpush1.bf16.msra.mxu0 0
    %3872 = vmatprep.mubr.bf16.mxu0 0
    %3873 = vmatmul.mubr.bf16.gmra.mrb[0].mxu0 %v3541
    %v3874 = vpop.f32.mrb[0].mxu0
    %v3875 = vadd.f32 %v3814, %v3874
    %v3876 = vpop.f32.mrb[0].mxu0
    %v3877 = vpop.f32.mrb[0].mxu0
    %v3878 = vadd.f32 %v3814, %v3877
    %v3879 = vpop.f32.mrb[0].mxu0
    %3880 = vmatprep.mubr.bf16.mxu0 0
    %3881 = vmatmul.mubr.bf16.gmra.mrb[0].mxu0 %v3544
    %v3882 = vpop.f32.mrb[0].mxu0
    %v3883 = vadd.f32 %v3814, %v3882
    %v3884 = vpop.f32.mrb[0].mxu0
    %v3885 = vpop.f32.mrb[0].mxu0
    %v3886 = vadd.f32 %v3814, %v3885
    %v3887 = vpop.f32.mrb[0].mxu0
    %3888 = vmatprep.mubr.bf16.mxu0 0
    %3889 = vmatmul.mubr.bf16.gmra.mrb[0].mxu0 %v3547
    %v3890 = vpop.f32.mrb[0].mxu0
    %v3891 = vadd.f32 %v3814, %v3890
    %v3892 = vpop.f32.mrb[0].mxu0
    %v3893 = vpop.f32.mrb[0].mxu0
    %v3894 = vadd.f32 %v3814, %v3893
    %v3895 = vpop.f32.mrb[0].mxu0
    %3896 = vmatprep.mubr.bf16.mxu0 0
    %3897 = vmatmul.mubr.bf16.gmra.mrb[0].mxu0 %v3550
    %v3898 = vpop.f32.mrb[0].mxu0
    %v3899 = vadd.f32 %v3814, %v3898
    %v3900 = vpop.f32.mrb[0].mxu0
    %v3901 = vpop.f32.mrb[0].mxu0
    %v3902 = vadd.f32 %v3814, %v3901
    %v3903 = vpop.f32.mrb[0].mxu0
    %3904 = vmatprep.mubr.bf16.mxu0 0
    %3905 = vmatmul.mubr.bf16.gmra.mrb[0].mxu0 %v3553
    %v3906 = vpop.f32.mrb[0].mxu0
    %v3907 = vadd.f32 %v3814, %v3906
    %v3908 = vpop.f32.mrb[0].mxu0
    %v3909 = vpop.f32.mrb[0].mxu0
    %v3910 = vadd.f32 %v3814, %v3909
    %v3911 = vpop.f32.mrb[0].mxu0
    %3912 = vmatprep.mubr.bf16.mxu0 0
    %3913 = vmatmul.mubr.bf16.gmra.mrb[0].mxu0 %v3556
    %v3914 = vpop.f32.mrb[0].mxu0
    %v3915 = vadd.f32 %v3814, %v3914
    %v3916 = vpop.f32.mrb[0].mxu0
    %v3917 = vpop.f32.mrb[0].mxu0
    %v3918 = vadd.f32 %v3814, %v3917
    %v3919 = vpop.f32.mrb[0].mxu0
    %3920 = vmatprep.mubr.bf16.mxu0 0
    %3921 = vmatmul.mubr.bf16.gmra.mrb[0].mxu0 %v3559
    %v3922 = vpop.f32.mrb[0].mxu0
    %v3923 = vadd.f32 %v3814, %v3922
    %v3924 = vpop.f32.mrb[0].mxu0
    %v3925 = vpop.f32.mrb[0].mxu0
    %v3926 = vadd.f32 %v3814, %v3925
    %v3927 = vpop.f32.mrb[0].mxu0
    %3928 = vmatprep.mubr.bf16.mxu0 0
    %3929 = vmatmul.mubr.bf16.gmra.mrb[0].mxu0 %v3562
    %v3930 = vpop.f32.mrb[0].mxu0
    %v3931 = vadd.f32 %v3814, %v3930
    %v3932 = vpop.f32.mrb[0].mxu0
    %v3933 = vpop.f32.mrb[0].mxu0
    %v3934 = vadd.f32 %v3814, %v3933
    %v3935 = vpop.f32.mrb[0].mxu0
    %3936 = vdwg.mxu0
    %v3937 = vpack.c.bf16 %v3602, %v3599
    %v3938 = vpack.c.bf16 %v3610, %v3607
    %v3939 = vpack.c.bf16 %v3618, %v3615
    %v3940 = vpack.c.bf16 %v3626, %v3623
    %v3941 = vpack.c.bf16 %v3634, %v3631
    %v3942 = vpack.c.bf16 %v3642, %v3639
    %v3943 = vpack.c.bf16 %v3650, %v3647
    %v3944 = vpack.c.bf16 %v3658, %v3655
    %v3945 = vpack.c.bf16 %v3740, %v3737
    %v3946 = vpack.c.bf16 %v3748, %v3745
    %v3947 = vpack.c.bf16 %v3756, %v3753
    %v3948 = vpack.c.bf16 %v3764, %v3761
    %v3949 = vpack.c.bf16 %v3772, %v3769
    %v3950 = vpack.c.bf16 %v3780, %v3777
    %v3951 = vpack.c.bf16 %v3788, %v3785
    %v3952 = vpack.c.bf16 %v3796, %v3793
    %v3953 = vpack.c.bf16 %v3878, %v3875
    %v3954 = vpack.c.bf16 %v3886, %v3883
    %v3955 = vpack.c.bf16 %v3894, %v3891
    %v3956 = vpack.c.bf16 %v3902, %v3899
    %v3957 = vpack.c.bf16 %v3910, %v3907
    %v3958 = vpack.c.bf16 %v3918, %v3915
    %v3959 = vpack.c.bf16 %v3926, %v3923
    %v3960 = vpack.c.bf16 %v3934, %v3931
    %v3962 = vsel %vm714, %v3937, 0
    %v3965 = vsel %vm714, %v3938, 0
    %v3968 = vsel %vm714, %v3939, 0
    %v3971 = vsel %vm714, %v3940, 0
    %v3974 = vsel %vm714, %v3945, 0
    %v3977 = vsel %vm714, %v3946, 0
    %v3980 = vsel %vm714, %v3947, 0
    %v3983 = vsel %vm714, %v3948, 0
    %3985 = vmatprep.subr.bf16.mxu0 0
    %3986 = vmatpush1.bf16.xpose.msra.mxu0 %v3974
    %3987 = vmatprep.subr.bf16.mxu0 0
    %3988 = vmatpush1.bf16.xpose.msra.mxu0 %v3977
    %3989 = vmatprep.subr.bf16.mxu0 0
    %3990 = vmatpush1.bf16.xpose.msra.mxu0 %v3980
    %3991 = vmatprep.subr.bf16.mxu0 0
    %3992 = vmatpush1.bf16.xpose.msra.mxu0 %v3983
    %3993 = vmatprep.subr.bf16.mxu0 0
    %3994 = vmatpush1.bf16.xpose.msra.mxu0 0
    %3995 = vmatprep.subr.bf16.mxu0 0
    %3996 = vmatpush1.bf16.xpose.msra.mxu0 0
    %3997 = vmatprep.subr.bf16.mxu0 0
    %3998 = vmatpush1.bf16.xpose.msra.mxu0 0
    %3999 = vmatprep.subr.bf16.mxu0 0
    %4000 = vmatpush1.bf16.xpose.msra.mxu0 0
    %4001 = vmatprep.subr.bf16.mxu0 0
    %4002 = vmatpush1.bf16.xpose.msra.mxu0 0
    %4003 = vmatprep.subr.bf16.mxu0 0
    %4004 = vmatpush1.bf16.xpose.msra.mxu0 0
    %4005 = vmatprep.subr.bf16.mxu0 0
    %4006 = vmatpush1.bf16.xpose.msra.mxu0 0
    %4007 = vmatprep.subr.bf16.mxu0 0
    %4008 = vmatpush1.bf16.xpose.msra.mxu0 0
    %4009 = vmatprep.subr.bf16.mxu0 0
    %4010 = vmatpush1.bf16.xpose.msra.mxu0 0
    %4011 = vmatprep.subr.bf16.mxu0 0
    %4012 = vmatpush1.bf16.xpose.msra.mxu0 0
    %4013 = vmatprep.subr.bf16.mxu0 0
    %4014 = vmatpush1.bf16.xpose.msra.mxu0 0
    %4015 = vmatprep.subr.bf16.mxu0 0
    %4016 = vmatpush1.bf16.xpose.msra.mxu0 0
    %4017 = vmatprep.mubr.bf16.mxu0 0
    %4018 = vmatmul.mubr.bf16.gmra.mrb[0].mxu0 %v3962
    %v4019 = vpop.f32.mrb[0].mxu0
    %v4020 = vadd.f32 0.0, %v4019
    %v4021 = vpop.f32.mrb[0].mxu0
    %v4022 = vpop.f32.mrb[0].mxu0
    %v4023 = vadd.f32 0.0, %v4022
    %v4024 = vpop.f32.mrb[0].mxu0
    %4025 = vmatprep.mubr.bf16.mxu0 0
    %4026 = vmatmul.mubr.bf16.gmra.mrb[0].mxu0 %v3965
    %v4027 = vpop.f32.mrb[0].mxu0
    %v4028 = vadd.f32 0.0, %v4027
    %v4029 = vpop.f32.mrb[0].mxu0
    %v4030 = vpop.f32.mrb[0].mxu0
    %v4031 = vadd.f32 0.0, %v4030
    %v4032 = vpop.f32.mrb[0].mxu0
    %4033 = vmatprep.mubr.bf16.mxu0 0
    %4034 = vmatmul.mubr.bf16.gmra.mrb[0].mxu0 %v3968
    %v4035 = vpop.f32.mrb[0].mxu0
    %v4036 = vadd.f32 0.0, %v4035
    %v4037 = vpop.f32.mrb[0].mxu0
    %v4038 = vpop.f32.mrb[0].mxu0
    %v4039 = vadd.f32 0.0, %v4038
    %v4040 = vpop.f32.mrb[0].mxu0
    %4041 = vmatprep.mubr.bf16.mxu0 0
    %4042 = vmatmul.mubr.bf16.gmra.mrb[0].mxu0 %v3971
    %v4043 = vpop.f32.mrb[0].mxu0
    %v4044 = vadd.f32 0.0, %v4043
    %v4045 = vpop.f32.mrb[0].mxu0
    %v4046 = vpop.f32.mrb[0].mxu0
    %v4047 = vadd.f32 0.0, %v4046
    %v4048 = vpop.f32.mrb[0].mxu0
    %4049 = vdwg.mxu0
    %v4051 = vsel %vm714, %v3941, 0
    %v4054 = vsel %vm714, %v3942, 0
    %v4057 = vsel %vm714, %v3943, 0
    %v4060 = vsel %vm714, %v3944, 0
    %v4063 = vsel %vm714, %v3949, 0
    %v4066 = vsel %vm714, %v3950, 0
    %v4069 = vsel %vm714, %v3951, 0
    %v4072 = vsel %vm714, %v3952, 0
    %4074 = vmatprep.subr.bf16.mxu0 0
    %4075 = vmatpush1.bf16.xpose.msra.mxu0 %v4063
    %4076 = vmatprep.subr.bf16.mxu0 0
    %4077 = vmatpush1.bf16.xpose.msra.mxu0 %v4066
    %4078 = vmatprep.subr.bf16.mxu0 0
    %4079 = vmatpush1.bf16.xpose.msra.mxu0 %v4069
    %4080 = vmatprep.subr.bf16.mxu0 0
    %4081 = vmatpush1.bf16.xpose.msra.mxu0 %v4072
    %4082 = vmatprep.subr.bf16.mxu0 0
    %4083 = vmatpush1.bf16.xpose.msra.mxu0 0
    %4084 = vmatprep.subr.bf16.mxu0 0
    %4085 = vmatpush1.bf16.xpose.msra.mxu0 0
    %4086 = vmatprep.subr.bf16.mxu0 0
    %4087 = vmatpush1.bf16.xpose.msra.mxu0 0
    %4088 = vmatprep.subr.bf16.mxu0 0
    %4089 = vmatpush1.bf16.xpose.msra.mxu0 0
    %4090 = vmatprep.subr.bf16.mxu0 0
    %4091 = vmatpush1.bf16.xpose.msra.mxu0 0
    %4092 = vmatprep.subr.bf16.mxu0 0
    %4093 = vmatpush1.bf16.xpose.msra.mxu0 0
    %4094 = vmatprep.subr.bf16.mxu0 0
    %4095 = vmatpush1.bf16.xpose.msra.mxu0 0
    %4096 = vmatprep.subr.bf16.mxu0 0
    %4097 = vmatpush1.bf16.xpose.msra.mxu0 0
    %4098 = vmatprep.subr.bf16.mxu0 0
    %4099 = vmatpush1.bf16.xpose.msra.mxu0 0
    %4100 = vmatprep.subr.bf16.mxu0 0
    %4101 = vmatpush1.bf16.xpose.msra.mxu0 0
    %4102 = vmatprep.subr.bf16.mxu0 0
    %4103 = vmatpush1.bf16.xpose.msra.mxu0 0
    %4104 = vmatprep.subr.bf16.mxu0 0
    %4105 = vmatpush1.bf16.xpose.msra.mxu0 0
    %4106 = vmatprep.mubr.bf16.mxu0 0
    %4107 = vmatmul.mubr.bf16.gmra.mrb[0].mxu0 %v4051
    %v4108 = vpop.f32.mrb[0].mxu0
    %v4109 = vadd.f32 0.0, %v4108
    %v4110 = vpop.f32.mrb[0].mxu0
    %v4111 = vpop.f32.mrb[0].mxu0
    %v4112 = vadd.f32 0.0, %v4111
    %v4113 = vpop.f32.mrb[0].mxu0
    %4114 = vmatprep.mubr.bf16.mxu0 0
    %4115 = vmatmul.mubr.bf16.gmra.mrb[0].mxu0 %v4054
    %v4116 = vpop.f32.mrb[0].mxu0
    %v4117 = vadd.f32 0.0, %v4116
    %v4118 = vpop.f32.mrb[0].mxu0
    %v4119 = vpop.f32.mrb[0].mxu0
    %v4120 = vadd.f32 0.0, %v4119
    %v4121 = vpop.f32.mrb[0].mxu0
    %4122 = vmatprep.mubr.bf16.mxu0 0
    %4123 = vmatmul.mubr.bf16.gmra.mrb[0].mxu0 %v4057
    %v4124 = vpop.f32.mrb[0].mxu0
    %v4125 = vadd.f32 0.0, %v4124
    %v4126 = vpop.f32.mrb[0].mxu0
    %v4127 = vpop.f32.mrb[0].mxu0
    %v4128 = vadd.f32 0.0, %v4127
    %v4129 = vpop.f32.mrb[0].mxu0
    %4130 = vmatprep.mubr.bf16.mxu0 0
    %4131 = vmatmul.mubr.bf16.gmra.mrb[0].mxu0 %v4060
    %v4132 = vpop.f32.mrb[0].mxu0
    %v4133 = vadd.f32 0.0, %v4132
    %v4134 = vpop.f32.mrb[0].mxu0
    %v4135 = vpop.f32.mrb[0].mxu0
    %v4136 = vadd.f32 0.0, %v4135
    %v4137 = vpop.f32.mrb[0].mxu0
    %4138 = vdwg.mxu0
    %v4139 = vmul.f32 %v4020, 0.17677669
    %v4140 = vmul.f32 %v4023, 0.17677669
    %v4141 = vmul.f32 %v4028, 0.17677669
    %v4142 = vmul.f32 %v4031, 0.17677669
    %v4143 = vmul.f32 %v4036, 0.17677669
    %v4144 = vmul.f32 %v4039, 0.17677669
    %v4145 = vmul.f32 %v4044, 0.17677669
    %v4146 = vmul.f32 %v4047, 0.17677669
    %v4147 = vmul.f32 %v4109, 0.17677669
    %v4148 = vmul.f32 %v4112, 0.17677669
    %v4149 = vmul.f32 %v4117, 0.17677669
    %v4150 = vmul.f32 %v4120, 0.17677669
    %v4151 = vmul.f32 %v4125, 0.17677669
    %v4152 = vmul.f32 %v4128, 0.17677669
    %v4153 = vmul.f32 %v4133, 0.17677669
    %v4154 = vmul.f32 %v4136, 0.17677669
    %v4155 = vsel %vm296, %v4139, -inf
    %4156 = vmax.xlane.f32.xlu0 %v4155
    %v4157 = vpop.xlane.xlu0 %4156
    %v4158 = vsel %vm296, %v4140, -inf
    %4159 = vmax.xlane.f32.xlu0 %v4158
    %v4160 = vpop.xlane.xlu0 %4159
    %v4161 = vsel %vm296, %v4141, -inf
    %4162 = vmax.xlane.f32.xlu0 %v4161
    %v4163 = vpop.xlane.xlu0 %4162
    %v4164 = vsel %vm296, %v4142, -inf
    %4165 = vmax.xlane.f32.xlu0 %v4164
    %v4166 = vpop.xlane.xlu0 %4165
    %v4167 = vsel %vm296, %v4143, -inf
    %4168 = vmax.xlane.f32.xlu0 %v4167
    %v4169 = vpop.xlane.xlu0 %4168
    %v4170 = vsel %vm296, %v4144, -inf
    %4171 = vmax.xlane.f32.xlu0 %v4170
    %v4172 = vpop.xlane.xlu0 %4171
    %v4173 = vsel %vm296, %v4145, -inf
    %4174 = vmax.xlane.f32.xlu0 %v4173
    %v4175 = vpop.xlane.xlu0 %4174
    %v4176 = vsel %vm296, %v4146, -inf
    %4177 = vmax.xlane.f32.xlu0 %v4176
    %v4178 = vpop.xlane.xlu0 %4177
    %v4179 = vsel %vm296, %v4147, -inf
    %4180 = vmax.xlane.f32.xlu0 %v4179
    %v4181 = vpop.xlane.xlu0 %4180
    %v4182 = vsel %vm296, %v4148, -inf
    %4183 = vmax.xlane.f32.xlu0 %v4182
    %v4184 = vpop.xlane.xlu0 %4183
    %v4185 = vsel %vm296, %v4149, -inf
    %4186 = vmax.xlane.f32.xlu0 %v4185
    %v4187 = vpop.xlane.xlu0 %4186
    %v4188 = vsel %vm296, %v4150, -inf
    %4189 = vmax.xlane.f32.xlu0 %v4188
    %v4190 = vpop.xlane.xlu0 %4189
    %v4191 = vsel %vm296, %v4151, -inf
    %4192 = vmax.xlane.f32.xlu0 %v4191
    %v4193 = vpop.xlane.xlu0 %4192
    %v4194 = vsel %vm296, %v4152, -inf
    %4195 = vmax.xlane.f32.xlu0 %v4194
    %v4196 = vpop.xlane.xlu0 %4195
    %v4197 = vsel %vm296, %v4153, -inf
    %4198 = vmax.xlane.f32.xlu0 %v4197
    %v4199 = vpop.xlane.xlu0 %4198
    %v4200 = vsel %vm296, %v4154, -inf
    %4201 = vmax.xlane.f32.xlu0 %v4200
    %v4202 = vpop.xlane.xlu0 %4201
    %v4203 = vsub.f32 %v4139, %v4157
    %v4204 = vsub.f32 %v4140, %v4160
    %v4205 = vsub.f32 %v4141, %v4163
    %v4206 = vsub.f32 %v4142, %v4166
    %v4207 = vsub.f32 %v4143, %v4169
    %v4208 = vsub.f32 %v4144, %v4172
    %v4209 = vsub.f32 %v4145, %v4175
    %v4210 = vsub.f32 %v4146, %v4178
    %v4211 = vsub.f32 %v4147, %v4181
    %v4212 = vsub.f32 %v4148, %v4184
    %v4213 = vsub.f32 %v4149, %v4187
    %v4214 = vsub.f32 %v4150, %v4190
    %v4215 = vsub.f32 %v4151, %v4193
    %v4216 = vsub.f32 %v4152, %v4196
    %v4217 = vsub.f32 %v4153, %v4199
    %v4218 = vsub.f32 %v4154, %v4202
    %v4219 = vmul.f32 %v4203, 1.442695
    %v4220 = vpow.pop %v4219
    %v4221 = vmul.f32 %v4204, 1.442695
    %v4222 = vpow.pop %v4221
    %v4223 = vmul.f32 %v4205, 1.442695
    %v4224 = vpow.pop %v4223
    %v4225 = vmul.f32 %v4206, 1.442695
    %v4226 = vpow.pop %v4225
    %v4227 = vmul.f32 %v4207, 1.442695
    %v4228 = vpow.pop %v4227
    %v4229 = vmul.f32 %v4208, 1.442695
    %v4230 = vpow.pop %v4229
    %v4231 = vmul.f32 %v4209, 1.442695
    %v4232 = vpow.pop %v4231
    %v4233 = vmul.f32 %v4210, 1.442695
    %v4234 = vpow.pop %v4233
    %v4235 = vmul.f32 %v4211, 1.442695
    %v4236 = vpow.pop %v4235
    %v4237 = vmul.f32 %v4212, 1.442695
    %v4238 = vpow.pop %v4237
    %v4239 = vmul.f32 %v4213, 1.442695
    %v4240 = vpow.pop %v4239
    %v4241 = vmul.f32 %v4214, 1.442695
    %v4242 = vpow.pop %v4241
    %v4243 = vmul.f32 %v4215, 1.442695
    %v4244 = vpow.pop %v4243
    %v4245 = vmul.f32 %v4216, 1.442695
    %v4246 = vpow.pop %v4245
    %v4247 = vmul.f32 %v4217, 1.442695
    %v4248 = vpow.pop %v4247
    %v4249 = vmul.f32 %v4218, 1.442695
    %v4250 = vpow.pop %v4249
    %v4251 = vsel %vm296, %v4220, 0.0
    %4252 = vadd.xlane.f32.xlu0 %v4251
    %v4253 = vpop.xlane.xlu0 %4252
    %v4254 = vsel %vm296, %v4222, 0.0
    %4255 = vadd.xlane.f32.xlu0 %v4254
    %v4256 = vpop.xlane.xlu0 %4255
    %v4257 = vsel %vm296, %v4224, 0.0
    %4258 = vadd.xlane.f32.xlu0 %v4257
    %v4259 = vpop.xlane.xlu0 %4258
    %v4260 = vsel %vm296, %v4226, 0.0
    %4261 = vadd.xlane.f32.xlu0 %v4260
    %v4262 = vpop.xlane.xlu0 %4261
    %v4263 = vsel %vm296, %v4228, 0.0
    %4264 = vadd.xlane.f32.xlu0 %v4263
    %v4265 = vpop.xlane.xlu0 %4264
    %v4266 = vsel %vm296, %v4230, 0.0
    %4267 = vadd.xlane.f32.xlu0 %v4266
    %v4268 = vpop.xlane.xlu0 %4267
    %v4269 = vsel %vm296, %v4232, 0.0
    %4270 = vadd.xlane.f32.xlu0 %v4269
    %v4271 = vpop.xlane.xlu0 %4270
    %v4272 = vsel %vm296, %v4234, 0.0
    %4273 = vadd.xlane.f32.xlu0 %v4272
    %v4274 = vpop.xlane.xlu0 %4273
    %v4275 = vsel %vm296, %v4236, 0.0
    %4276 = vadd.xlane.f32.xlu0 %v4275
    %v4277 = vpop.xlane.xlu0 %4276
    %v4278 = vsel %vm296, %v4238, 0.0
    %4279 = vadd.xlane.f32.xlu0 %v4278
    %v4280 = vpop.xlane.xlu0 %4279
    %v4281 = vsel %vm296, %v4240, 0.0
    %4282 = vadd.xlane.f32.xlu0 %v4281
    %v4283 = vpop.xlane.xlu0 %4282
    %v4284 = vsel %vm296, %v4242, 0.0
    %4285 = vadd.xlane.f32.xlu0 %v4284
    %v4286 = vpop.xlane.xlu0 %4285
    %v4287 = vsel %vm296, %v4244, 0.0
    %4288 = vadd.xlane.f32.xlu0 %v4287
    %v4289 = vpop.xlane.xlu0 %4288
    %v4290 = vsel %vm296, %v4246, 0.0
    %4291 = vadd.xlane.f32.xlu0 %v4290
    %v4292 = vpop.xlane.xlu0 %4291
    %v4293 = vsel %vm296, %v4248, 0.0
    %4294 = vadd.xlane.f32.xlu0 %v4293
    %v4295 = vpop.xlane.xlu0 %4294
    %v4296 = vsel %vm296, %v4250, 0.0
    %4297 = vadd.xlane.f32.xlu0 %v4296
    %v4298 = vpop.xlane.xlu0 %4297
    %v4299 = vrcp.pop %v4253
    %v4300 = vrcp.pop %v4256
    %v4301 = vrcp.pop %v4259
    %v4302 = vrcp.pop %v4262
    %v4303 = vrcp.pop %v4265
    %v4304 = vrcp.pop %v4268
    %v4305 = vrcp.pop %v4271
    %v4306 = vrcp.pop %v4274
    %v4307 = vrcp.pop %v4277
    %v4308 = vrcp.pop %v4280
    %v4309 = vrcp.pop %v4283
    %v4310 = vrcp.pop %v4286
    %v4311 = vrcp.pop %v4289
    %v4312 = vrcp.pop %v4292
    %v4313 = vrcp.pop %v4295
    %v4314 = vrcp.pop %v4298
    %v4315 = vmul.f32 %v4220, %v4299
    %v4316 = vmul.f32 %v4222, %v4300
    %v4317 = vmul.f32 %v4224, %v4301
    %v4318 = vmul.f32 %v4226, %v4302
    %v4319 = vmul.f32 %v4228, %v4303
    %v4320 = vmul.f32 %v4230, %v4304
    %v4321 = vmul.f32 %v4232, %v4305
    %v4322 = vmul.f32 %v4234, %v4306
    %v4323 = vmul.f32 %v4236, %v4307
    %v4324 = vmul.f32 %v4238, %v4308
    %v4325 = vmul.f32 %v4240, %v4309
    %v4326 = vmul.f32 %v4242, %v4310
    %v4327 = vmul.f32 %v4244, %v4311
    %v4328 = vmul.f32 %v4246, %v4312
    %v4329 = vmul.f32 %v4248, %v4313
    %v4330 = vmul.f32 %v4250, %v4314
    %v4331 = vpack.c.bf16 %v4316, %v4315
    %v4332 = vpack.c.bf16 %v4318, %v4317
    %v4333 = vpack.c.bf16 %v4320, %v4319
    %v4334 = vpack.c.bf16 %v4322, %v4321
    %v4335 = vpack.c.bf16 %v4324, %v4323
    %v4336 = vpack.c.bf16 %v4326, %v4325
    %v4337 = vpack.c.bf16 %v4328, %v4327
    %v4338 = vpack.c.bf16 %v4330, %v4329
    %v4340 = vsel %vm296, %v4331, 0
    %v4343 = vsel %vm296, %v4332, 0
    %v4346 = vsel %vm296, %v4333, 0
    %v4349 = vsel %vm296, %v4334, 0
    %4351 = vmatprep.subr.bf16.mxu0 0
    %4352 = vmatpush1.bf16.msra.mxu0 %v3953
    %4353 = vmatprep.subr.bf16.mxu0 0
    %4354 = vmatpush1.bf16.msra.mxu0 %v3954
    %4355 = vmatprep.subr.bf16.mxu0 0
    %4356 = vmatpush1.bf16.msra.mxu0 %v3955
    %4357 = vmatprep.subr.bf16.mxu0 0
    %4358 = vmatpush1.bf16.msra.mxu0 %v3956
    %4359 = vmatprep.subr.bf16.mxu0 0
    %4360 = vmatpush1.bf16.msra.mxu0 0
    %4361 = vmatprep.subr.bf16.mxu0 0
    %4362 = vmatpush1.bf16.msra.mxu0 0
    %4363 = vmatprep.subr.bf16.mxu0 0
    %4364 = vmatpush1.bf16.msra.mxu0 0
    %4365 = vmatprep.subr.bf16.mxu0 0
    %4366 = vmatpush1.bf16.msra.mxu0 0
    %4367 = vmatprep.subr.bf16.mxu0 0
    %4368 = vmatpush1.bf16.msra.mxu0 0
    %4369 = vmatprep.subr.bf16.mxu0 0
    %4370 = vmatpush1.bf16.msra.mxu0 0
    %4371 = vmatprep.subr.bf16.mxu0 0
    %4372 = vmatpush1.bf16.msra.mxu0 0
    %4373 = vmatprep.subr.bf16.mxu0 0
    %4374 = vmatpush1.bf16.msra.mxu0 0
    %4375 = vmatprep.subr.bf16.mxu0 0
    %4376 = vmatpush1.bf16.msra.mxu0 0
    %4377 = vmatprep.subr.bf16.mxu0 0
    %4378 = vmatpush1.bf16.msra.mxu0 0
    %4379 = vmatprep.subr.bf16.mxu0 0
    %4380 = vmatpush1.bf16.msra.mxu0 0
    %4381 = vmatprep.subr.bf16.mxu0 0
    %4382 = vmatpush1.bf16.msra.mxu0 0
    %4383 = vmatprep.mubr.bf16.mxu0 0
    %4384 = vmatmul.mubr.bf16.gmra.mrb[0].mxu0 %v4340
    %v4385 = vpop.f32.mrb[0].mxu0
    %v4386 = vadd.f32 0.0, %v4385
    %v4387 = vpop.f32.mrb[0].mxu0
    %v4388 = vpop.f32.mrb[0].mxu0
    %v4389 = vadd.f32 0.0, %v4388
    %v4390 = vpop.f32.mrb[0].mxu0
    %4391 = vmatprep.mubr.bf16.mxu0 0
    %4392 = vmatmul.mubr.bf16.gmra.mrb[0].mxu0 %v4343
    %v4393 = vpop.f32.mrb[0].mxu0
    %v4394 = vadd.f32 0.0, %v4393
    %v4395 = vpop.f32.mrb[0].mxu0
    %v4396 = vpop.f32.mrb[0].mxu0
    %v4397 = vadd.f32 0.0, %v4396
    %v4398 = vpop.f32.mrb[0].mxu0
    %4399 = vmatprep.mubr.bf16.mxu0 0
    %4400 = vmatmul.mubr.bf16.gmra.mrb[0].mxu0 %v4346
    %v4401 = vpop.f32.mrb[0].mxu0
    %v4402 = vadd.f32 0.0, %v4401
    %v4403 = vpop.f32.mrb[0].mxu0
    %v4404 = vpop.f32.mrb[0].mxu0
    %v4405 = vadd.f32 0.0, %v4404
    %v4406 = vpop.f32.mrb[0].mxu0
    %4407 = vmatprep.mubr.bf16.mxu0 0
    %4408 = vmatmul.mubr.bf16.gmra.mrb[0].mxu0 %v4349
    %v4409 = vpop.f32.mrb[0].mxu0
    %v4410 = vadd.f32 0.0, %v4409
    %v4411 = vpop.f32.mrb[0].mxu0
    %v4412 = vpop.f32.mrb[0].mxu0
    %v4413 = vadd.f32 0.0, %v4412
    %v4414 = vpop.f32.mrb[0].mxu0
    %4415 = vdwg.mxu0
    %v4417 = vsel %vm296, %v4335, 0
    %v4420 = vsel %vm296, %v4336, 0
    %v4423 = vsel %vm296, %v4337, 0
    %v4426 = vsel %vm296, %v4338, 0
    %4428 = vmatprep.subr.bf16.mxu0 0
    %4429 = vmatpush1.bf16.msra.mxu0 %v3957
    %4430 = vmatprep.subr.bf16.mxu0 0
    %4431 = vmatpush1.bf16.msra.mxu0 %v3958
    %4432 = vmatprep.subr.bf16.mxu0 0
    %4433 = vmatpush1.bf16.msra.mxu0 %v3959
    %4434 = vmatprep.subr.bf16.mxu0 0
    %4435 = vmatpush1.bf16.msra.mxu0 %v3960
    %4436 = vmatprep.subr.bf16.mxu0 0
    %4437 = vmatpush1.bf16.msra.mxu0 0
    %4438 = vmatprep.subr.bf16.mxu0 0
    %4439 = vmatpush1.bf16.msra.mxu0 0
    %4440 = vmatprep.subr.bf16.mxu0 0
    %4441 = vmatpush1.bf16.msra.mxu0 0
    %4442 = vmatprep.subr.bf16.mxu0 0
    %4443 = vmatpush1.bf16.msra.mxu0 0
    %4444 = vmatprep.subr.bf16.mxu0 0
    %4445 = vmatpush1.bf16.msra.mxu0 0
    %4446 = vmatprep.subr.bf16.mxu0 0
    %4447 = vmatpush1.bf16.msra.mxu0 0
    %4448 = vmatprep.subr.bf16.mxu0 0
    %4449 = vmatpush1.bf16.msra.mxu0 0
    %4450 = vmatprep.subr.bf16.mxu0 0
    %4451 = vmatpush1.bf16.msra.mxu0 0
    %4452 = vmatprep.subr.bf16.mxu0 0
    %4453 = vmatpush1.bf16.msra.mxu0 0
    %4454 = vmatprep.subr.bf16.mxu0 0
    %4455 = vmatpush1.bf16.msra.mxu0 0
    %4456 = vmatprep.subr.bf16.mxu0 0
    %4457 = vmatpush1.bf16.msra.mxu0 0
    %4458 = vmatprep.subr.bf16.mxu0 0
    %4459 = vmatpush1.bf16.msra.mxu0 0
    %4460 = vmatprep.mubr.bf16.mxu0 0
    %4461 = vmatmul.mubr.bf16.gmra.mrb[0].mxu0 %v4417
    %v4462 = vpop.f32.mrb[0].mxu0
    %v4463 = vadd.f32 0.0, %v4462
    %v4464 = vpop.f32.mrb[0].mxu0
    %v4465 = vpop.f32.mrb[0].mxu0
    %v4466 = vadd.f32 0.0, %v4465
    %v4467 = vpop.f32.mrb[0].mxu0
    %4468 = vmatprep.mubr.bf16.mxu0 0
    %4469 = vmatmul.mubr.bf16.gmra.mrb[0].mxu0 %v4420
    %v4470 = vpop.f32.mrb[0].mxu0
    %v4471 = vadd.f32 0.0, %v4470
    %v4472 = vpop.f32.mrb[0].mxu0
    %v4473 = vpop.f32.mrb[0].mxu0
    %v4474 = vadd.f32 0.0, %v4473
    %v4475 = vpop.f32.mrb[0].mxu0
    %4476 = vmatprep.mubr.bf16.mxu0 0
    %4477 = vmatmul.mubr.bf16.gmra.mrb[0].mxu0 %v4423
    %v4478 = vpop.f32.mrb[0].mxu0
    %v4479 = vadd.f32 0.0, %v4478
    %v4480 = vpop.f32.mrb[0].mxu0
    %v4481 = vpop.f32.mrb[0].mxu0
    %v4482 = vadd.f32 0.0, %v4481
    %v4483 = vpop.f32.mrb[0].mxu0
    %4484 = vmatprep.mubr.bf16.mxu0 0
    %4485 = vmatmul.mubr.bf16.gmra.mrb[0].mxu0 %v4426
    %v4486 = vpop.f32.mrb[0].mxu0
    %v4487 = vadd.f32 0.0, %v4486
    %v4488 = vpop.f32.mrb[0].mxu0
    %v4489 = vpop.f32.mrb[0].mxu0
    %v4490 = vadd.f32 0.0, %v4489
    %v4491 = vpop.f32.mrb[0].mxu0
    %4492 = vdwg.mxu0
    %s4493 = scalar_lea.vmem [#allocation6], 96
    %v4494 = vld [vmem:[%s4493] sm:$0xf]
    %v4495 = vld [vmem:[%s4493 + $0x4] sm:$0xf]
    %v4496 = vld [vmem:[%s4493 + $0x8] sm:$0xf]
    %v4497 = vld [vmem:[%s4493 + $0xc] sm:$0xf]
    %v4498 = vld [vmem:[%s4493 + $0x10] sm:$0xf]
    %v4499 = vld [vmem:[%s4493 + $0x14] sm:$0xf]
    %v4500 = vld [vmem:[%s4493 + $0x18] sm:$0xf]
    %v4501 = vld [vmem:[%s4493 + $0x1c] sm:$0xf]
    %s4502 = scalar_lea.vmem %s5, 3
    %v4503 = vld [vmem:[%s4502] sm:$0x1]
    %v4505 = vlaneseq
    %v4506 = vshrl.u32 %v4505, 7
    %v4507 = vsub.s32 0, %v4506
    %v4508 = vrot.slane %v4503, %v4507
    %v4518 = vunpack.c.l.b16 %v4494
    %v4519 = vunpack.c.l.b16 %v4495
    %v4520 = vunpack.c.l.b16 %v4496
    %v4521 = vunpack.c.l.b16 %v4497
    %v4522 = vunpack.c.l.b16 %v4498
    %v4523 = vunpack.c.l.b16 %v4499
    %v4524 = vunpack.c.l.b16 %v4500
    %v4525 = vunpack.c.l.b16 %v4501
    %v4526 = vpack.c.b16 %v4519, %v4518
    %v4527 = vpack.c.b16 %v4521, %v4520
    %v4528 = vpack.c.b16 %v4523, %v4522
    %v4529 = vpack.c.b16 %v4525, %v4524
    %4534 = vmatprep.subr.bf16.mxu0 0
    %4535 = vmatpush1.bf16.msra.mxu0 %v4526
    %4536 = vmatprep.subr.bf16.mxu0 0
    %4537 = vmatpush1.bf16.msra.mxu0 %v4527
    %4538 = vmatprep.subr.bf16.mxu0 0
    %4539 = vmatpush1.bf16.msra.mxu0 %v4528
    %4540 = vmatprep.subr.bf16.mxu0 0
    %4541 = vmatpush1.bf16.msra.mxu0 %v4529
    %4542 = vmatprep.subr.bf16.mxu0 0
    %4543 = vmatpush1.bf16.msra.mxu0 0
    %4544 = vmatprep.subr.bf16.mxu0 0
    %4545 = vmatpush1.bf16.msra.mxu0 0
    %4546 = vmatprep.subr.bf16.mxu0 0
    %4547 = vmatpush1.bf16.msra.mxu0 0
    %4548 = vmatprep.subr.bf16.mxu0 0
    %4549 = vmatpush1.bf16.msra.mxu0 0
    %4550 = vmatprep.subr.bf16.mxu0 0
    %4551 = vmatpush1.bf16.msra.mxu0 0
    %4552 = vmatprep.subr.bf16.mxu0 0
    %4553 = vmatpush1.bf16.msra.mxu0 0
    %4554 = vmatprep.subr.bf16.mxu0 0
    %4555 = vmatpush1.bf16.msra.mxu0 0
    %4556 = vmatprep.subr.bf16.mxu0 0
    %4557 = vmatpush1.bf16.msra.mxu0 0
    %4558 = vmatprep.subr.bf16.mxu0 0
    %4559 = vmatpush1.bf16.msra.mxu0 0
    %4560 = vmatprep.subr.bf16.mxu0 0
    %4561 = vmatpush1.bf16.msra.mxu0 0
    %4562 = vmatprep.subr.bf16.mxu0 0
    %4563 = vmatpush1.bf16.msra.mxu0 0
    %4564 = vmatprep.subr.bf16.mxu0 0
    %4565 = vmatpush1.bf16.msra.mxu0 0
    %4566 = vmatprep.mubr.bf16.mxu0 0
    %4567 = vmatmul.mubr.bf16.gmra.mrb[0].mxu0 %v3541
    %v4568 = vpop.f32.mrb[0].mxu0
    %v4569 = vadd.f32 %v4508, %v4568
    %v4570 = vpop.f32.mrb[0].mxu0
    %v4571 = vpop.f32.mrb[0].mxu0
    %v4572 = vadd.f32 %v4508, %v4571
    %v4573 = vpop.f32.mrb[0].mxu0
    %4574 = vmatprep.mubr.bf16.mxu0 0
    %4575 = vmatmul.mubr.bf16.gmra.mrb[0].mxu0 %v3544
    %v4576 = vpop.f32.mrb[0].mxu0
    %v4577 = vadd.f32 %v4508, %v4576
    %v4578 = vpop.f32.mrb[0].mxu0
    %v4579 = vpop.f32.mrb[0].mxu0
    %v4580 = vadd.f32 %v4508, %v4579
    %v4581 = vpop.f32.mrb[0].mxu0
    %4582 = vmatprep.mubr.bf16.mxu0 0
    %4583 = vmatmul.mubr.bf16.gmra.mrb[0].mxu0 %v3547
    %v4584 = vpop.f32.mrb[0].mxu0
    %v4585 = vadd.f32 %v4508, %v4584
    %v4586 = vpop.f32.mrb[0].mxu0
    %v4587 = vpop.f32.mrb[0].mxu0
    %v4588 = vadd.f32 %v4508, %v4587
    %v4589 = vpop.f32.mrb[0].mxu0
    %4590 = vmatprep.mubr.bf16.mxu0 0
    %4591 = vmatmul.mubr.bf16.gmra.mrb[0].mxu0 %v3550
    %v4592 = vpop.f32.mrb[0].mxu0
    %v4593 = vadd.f32 %v4508, %v4592
    %v4594 = vpop.f32.mrb[0].mxu0
    %v4595 = vpop.f32.mrb[0].mxu0
    %v4596 = vadd.f32 %v4508, %v4595
    %v4597 = vpop.f32.mrb[0].mxu0
    %4598 = vmatprep.mubr.bf16.mxu0 0
    %4599 = vmatmul.mubr.bf16.gmra.mrb[0].mxu0 %v3553
    %v4600 = vpop.f32.mrb[0].mxu0
    %v4601 = vadd.f32 %v4508, %v4600
    %v4602 = vpop.f32.mrb[0].mxu0
    %v4603 = vpop.f32.mrb[0].mxu0
    %v4604 = vadd.f32 %v4508, %v4603
    %v4605 = vpop.f32.mrb[0].mxu0
    %4606 = vmatprep.mubr.bf16.mxu0 0
    %4607 = vmatmul.mubr.bf16.gmra.mrb[0].mxu0 %v3556
    %v4608 = vpop.f32.mrb[0].mxu0
    %v4609 = vadd.f32 %v4508, %v4608
    %v4610 = vpop.f32.mrb[0].mxu0
    %v4611 = vpop.f32.mrb[0].mxu0
    %v4612 = vadd.f32 %v4508, %v4611
    %v4613 = vpop.f32.mrb[0].mxu0
    %4614 = vmatprep.mubr.bf16.mxu0 0
    %4615 = vmatmul.mubr.bf16.gmra.mrb[0].mxu0 %v3559
    %v4616 = vpop.f32.mrb[0].mxu0
    %v4617 = vadd.f32 %v4508, %v4616
    %v4618 = vpop.f32.mrb[0].mxu0
    %v4619 = vpop.f32.mrb[0].mxu0
    %v4620 = vadd.f32 %v4508, %v4619
    %v4621 = vpop.f32.mrb[0].mxu0
    %4622 = vmatprep.mubr.bf16.mxu0 0
    %4623 = vmatmul.mubr.bf16.gmra.mrb[0].mxu0 %v3562
    %v4624 = vpop.f32.mrb[0].mxu0
    %v4625 = vadd.f32 %v4508, %v4624
    %v4626 = vpop.f32.mrb[0].mxu0
    %v4627 = vpop.f32.mrb[0].mxu0
    %v4628 = vadd.f32 %v4508, %v4627
    %v4629 = vpop.f32.mrb[0].mxu0
    %4630 = vdwg.mxu0
    %s4631 = scalar_lea.vmem [#allocation7], 96
    %v4632 = vld [vmem:[%s4631] sm:$0xf]
    %v4633 = vld [vmem:[%s4631 + $0x4] sm:$0xf]
    %v4634 = vld [vmem:[%s4631 + $0x8] sm:$0xf]
    %v4635 = vld [vmem:[%s4631 + $0xc] sm:$0xf]
    %v4636 = vld [vmem:[%s4631 + $0x10] sm:$0xf]
    %v4637 = vld [vmem:[%s4631 + $0x14] sm:$0xf]
    %v4638 = vld [vmem:[%s4631 + $0x18] sm:$0xf]
    %v4639 = vld [vmem:[%s4631 + $0x1c] sm:$0xf]
    %s4640 = scalar_lea.vmem %s6, 3
    %v4641 = vld [vmem:[%s4640] sm:$0x1]
    %v4643 = vlaneseq
    %v4644 = vshrl.u32 %v4643, 7
    %v4645 = vsub.s32 0, %v4644
    %v4646 = vrot.slane %v4641, %v4645
    %v4656 = vunpack.c.l.b16 %v4632
    %v4657 = vunpack.c.l.b16 %v4633
    %v4658 = vunpack.c.l.b16 %v4634
    %v4659 = vunpack.c.l.b16 %v4635
    %v4660 = vunpack.c.l.b16 %v4636
    %v4661 = vunpack.c.l.b16 %v4637
    %v4662 = vunpack.c.l.b16 %v4638
    %v4663 = vunpack.c.l.b16 %v4639
    %v4664 = vpack.c.b16 %v4657, %v4656
    %v4665 = vpack.c.b16 %v4659, %v4658
    %v4666 = vpack.c.b16 %v4661, %v4660
    %v4667 = vpack.c.b16 %v4663, %v4662
    %4672 = vmatprep.subr.bf16.mxu0 0
    %4673 = vmatpush1.bf16.msra.mxu0 %v4664
    %4674 = vmatprep.subr.bf16.mxu0 0
    %4675 = vmatpush1.bf16.msra.mxu0 %v4665
    %4676 = vmatprep.subr.bf16.mxu0 0
    %4677 = vmatpush1.bf16.msra.mxu0 %v4666
    %4678 = vmatprep.subr.bf16.mxu0 0
    %4679 = vmatpush1.bf16.msra.mxu0 %v4667
    %4680 = vmatprep.subr.bf16.mxu0 0
    %4681 = vmatpush1.bf16.msra.mxu0 0
    %4682 = vmatprep.subr.bf16.mxu0 0
    %4683 = vmatpush1.bf16.msra.mxu0 0
    %4684 = vmatprep.subr.bf16.mxu0 0
    %4685 = vmatpush1.bf16.msra.mxu0 0
    %4686 = vmatprep.subr.bf16.mxu0 0
    %4687 = vmatpush1.bf16.msra.mxu0 0
    %4688 = vmatprep.subr.bf16.mxu0 0
    %4689 = vmatpush1.bf16.msra.mxu0 0
    %4690 = vmatprep.subr.bf16.mxu0 0
    %4691 = vmatpush1.bf16.msra.mxu0 0
    %4692 = vmatprep.subr.bf16.mxu0 0
    %4693 = vmatpush1.bf16.msra.mxu0 0
    %4694 = vmatprep.subr.bf16.mxu0 0
    %4695 = vmatpush1.bf16.msra.mxu0 0
    %4696 = vmatprep.subr.bf16.mxu0 0
    %4697 = vmatpush1.bf16.msra.mxu0 0
    %4698 = vmatprep.subr.bf16.mxu0 0
    %4699 = vmatpush1.bf16.msra.mxu0 0
    %4700 = vmatprep.subr.bf16.mxu0 0
    %4701 = vmatpush1.bf16.msra.mxu0 0
    %4702 = vmatprep.subr.bf16.mxu0 0
    %4703 = vmatpush1.bf16.msra.mxu0 0
    %4704 = vmatprep.mubr.bf16.mxu0 0
    %4705 = vmatmul.mubr.bf16.gmra.mrb[0].mxu0 %v3541
    %v4706 = vpop.f32.mrb[0].mxu0
    %v4707 = vadd.f32 %v4646, %v4706
    %v4708 = vpop.f32.mrb[0].mxu0
    %v4709 = vpop.f32.mrb[0].mxu0
    %v4710 = vadd.f32 %v4646, %v4709
    %v4711 = vpop.f32.mrb[0].mxu0
    %4712 = vmatprep.mubr.bf16.mxu0 0
    %4713 = vmatmul.mubr.bf16.gmra.mrb[0].mxu0 %v3544
    %v4714 = vpop.f32.mrb[0].mxu0
    %v4715 = vadd.f32 %v4646, %v4714
    %v4716 = vpop.f32.mrb[0].mxu0
    %v4717 = vpop.f32.mrb[0].mxu0
    %v4718 = vadd.f32 %v4646, %v4717
    %v4719 = vpop.f32.mrb[0].mxu0
    %4720 = vmatprep.mubr.bf16.mxu0 0
    %4721 = vmatmul.mubr.bf16.gmra.mrb[0].mxu0 %v3547
    %v4722 = vpop.f32.mrb[0].mxu0
    %v4723 = vadd.f32 %v4646, %v4722
    %v4724 = vpop.f32.mrb[0].mxu0
    %v4725 = vpop.f32.mrb[0].mxu0
    %v4726 = vadd.f32 %v4646, %v4725
    %v4727 = vpop.f32.mrb[0].mxu0
    %4728 = vmatprep.mubr.bf16.mxu0 0
    %4729 = vmatmul.mubr.bf16.gmra.mrb[0].mxu0 %v3550
    %v4730 = vpop.f32.mrb[0].mxu0
    %v4731 = vadd.f32 %v4646, %v4730
    %v4732 = vpop.f32.mrb[0].mxu0
    %v4733 = vpop.f32.mrb[0].mxu0
    %v4734 = vadd.f32 %v4646, %v4733
    %v4735 = vpop.f32.mrb[0].mxu0
    %4736 = vmatprep.mubr.bf16.mxu0 0
    %4737 = vmatmul.mubr.bf16.gmra.mrb[0].mxu0 %v3553
    %v4738 = vpop.f32.mrb[0].mxu0
    %v4739 = vadd.f32 %v4646, %v4738
    %v4740 = vpop.f32.mrb[0].mxu0
    %v4741 = vpop.f32.mrb[0].mxu0
    %v4742 = vadd.f32 %v4646, %v4741
    %v4743 = vpop.f32.mrb[0].mxu0
    %4744 = vmatprep.mubr.bf16.mxu0 0
    %4745 = vmatmul.mubr.bf16.gmra.mrb[0].mxu0 %v3556
    %v4746 = vpop.f32.mrb[0].mxu0
    %v4747 = vadd.f32 %v4646, %v4746
    %v4748 = vpop.f32.mrb[0].mxu0
    %v4749 = vpop.f32.mrb[0].mxu0
    %v4750 = vadd.f32 %v4646, %v4749
    %v4751 = vpop.f32.mrb[0].mxu0
    %4752 = vmatprep.mubr.bf16.mxu0 0
    %4753 = vmatmul.mubr.bf16.gmra.mrb[0].mxu0 %v3559
    %v4754 = vpop.f32.mrb[0].mxu0
    %v4755 = vadd.f32 %v4646, %v4754
    %v4756 = vpop.f32.mrb[0].mxu0
    %v4757 = vpop.f32.mrb[0].mxu0
    %v4758 = vadd.f32 %v4646, %v4757
    %v4759 = vpop.f32.mrb[0].mxu0
    %4760 = vmatprep.mubr.bf16.mxu0 0
    %4761 = vmatmul.mubr.bf16.gmra.mrb[0].mxu0 %v3562
    %v4762 = vpop.f32.mrb[0].mxu0
    %v4763 = vadd.f32 %v4646, %v4762
    %v4764 = vpop.f32.mrb[0].mxu0
    %v4765 = vpop.f32.mrb[0].mxu0
    %v4766 = vadd.f32 %v4646, %v4765
    %v4767 = vpop.f32.mrb[0].mxu0
    %4768 = vdwg.mxu0
    %s4769 = scalar_lea.vmem [#allocation9], 96
    %v4770 = vld [vmem:[%s4769] sm:$0xf]
    %v4771 = vld [vmem:[%s4769 + $0x4] sm:$0xf]
    %v4772 = vld [vmem:[%s4769 + $0x8] sm:$0xf]
    %v4773 = vld [vmem:[%s4769 + $0xc] sm:$0xf]
    %v4774 = vld [vmem:[%s4769 + $0x10] sm:$0xf]
    %v4775 = vld [vmem:[%s4769 + $0x14] sm:$0xf]
    %v4776 = vld [vmem:[%s4769 + $0x18] sm:$0xf]
    %v4777 = vld [vmem:[%s4769 + $0x1c] sm:$0xf]
    %s4778 = scalar_lea.vmem %s7, 3
    %v4779 = vld [vmem:[%s4778] sm:$0x1]
    %v4781 = vlaneseq
    %v4782 = vshrl.u32 %v4781, 7
    %v4783 = vsub.s32 0, %v4782
    %v4784 = vrot.slane %v4779, %v4783
    %v4794 = vunpack.c.l.b16 %v4770
    %v4795 = vunpack.c.l.b16 %v4771
    %v4796 = vunpack.c.l.b16 %v4772
    %v4797 = vunpack.c.l.b16 %v4773
    %v4798 = vunpack.c.l.b16 %v4774
    %v4799 = vunpack.c.l.b16 %v4775
    %v4800 = vunpack.c.l.b16 %v4776
    %v4801 = vunpack.c.l.b16 %v4777
    %v4802 = vpack.c.b16 %v4795, %v4794
    %v4803 = vpack.c.b16 %v4797, %v4796
    %v4804 = vpack.c.b16 %v4799, %v4798
    %v4805 = vpack.c.b16 %v4801, %v4800
    %4810 = vmatprep.subr.bf16.mxu0 0
    %4811 = vmatpush1.bf16.msra.mxu0 %v4802
    %4812 = vmatprep.subr.bf16.mxu0 0
    %4813 = vmatpush1.bf16.msra.mxu0 %v4803
    %4814 = vmatprep.subr.bf16.mxu0 0
    %4815 = vmatpush1.bf16.msra.mxu0 %v4804
    %4816 = vmatprep.subr.bf16.mxu0 0
    %4817 = vmatpush1.bf16.msra.mxu0 %v4805
    %4818 = vmatprep.subr.bf16.mxu0 0
    %4819 = vmatpush1.bf16.msra.mxu0 0
    %4820 = vmatprep.subr.bf16.mxu0 0
    %4821 = vmatpush1.bf16.msra.mxu0 0
    %4822 = vmatprep.subr.bf16.mxu0 0
    %4823 = vmatpush1.bf16.msra.mxu0 0
    %4824 = vmatprep.subr.bf16.mxu0 0
    %4825 = vmatpush1.bf16.msra.mxu0 0
    %4826 = vmatprep.subr.bf16.mxu0 0
    %4827 = vmatpush1.bf16.msra.mxu0 0
    %4828 = vmatprep.subr.bf16.mxu0 0
    %4829 = vmatpush1.bf16.msra.mxu0 0
    %4830 = vmatprep.subr.bf16.mxu0 0
    %4831 = vmatpush1.bf16.msra.mxu0 0
    %4832 = vmatprep.subr.bf16.mxu0 0
    %4833 = vmatpush1.bf16.msra.mxu0 0
    %4834 = vmatprep.subr.bf16.mxu0 0
    %4835 = vmatpush1.bf16.msra.mxu0 0
    %4836 = vmatprep.subr.bf16.mxu0 0
    %4837 = vmatpush1.bf16.msra.mxu0 0
    %4838 = vmatprep.subr.bf16.mxu0 0
    %4839 = vmatpush1.bf16.msra.mxu0 0
    %4840 = vmatprep.subr.bf16.mxu0 0
    %4841 = vmatpush1.bf16.msra.mxu0 0
    %4842 = vmatprep.mubr.bf16.mxu0 0
    %4843 = vmatmul.mubr.bf16.gmra.mrb[0].mxu0 %v3541
    %v4844 = vpop.f32.mrb[0].mxu0
    %v4845 = vadd.f32 %v4784, %v4844
    %v4846 = vpop.f32.mrb[0].mxu0
    %v4847 = vpop.f32.mrb[0].mxu0
    %v4848 = vadd.f32 %v4784, %v4847
    %v4849 = vpop.f32.mrb[0].mxu0
    %4850 = vmatprep.mubr.bf16.mxu0 0
    %4851 = vmatmul.mubr.bf16.gmra.mrb[0].mxu0 %v3544
    %v4852 = vpop.f32.mrb[0].mxu0
    %v4853 = vadd.f32 %v4784, %v4852
    %v4854 = vpop.f32.mrb[0].mxu0
    %v4855 = vpop.f32.mrb[0].mxu0
    %v4856 = vadd.f32 %v4784, %v4855
    %v4857 = vpop.f32.mrb[0].mxu0
    %4858 = vmatprep.mubr.bf16.mxu0 0
    %4859 = vmatmul.mubr.bf16.gmra.mrb[0].mxu0 %v3547
    %v4860 = vpop.f32.mrb[0].mxu0
    %v4861 = vadd.f32 %v4784, %v4860
    %v4862 = vpop.f32.mrb[0].mxu0
    %v4863 = vpop.f32.mrb[0].mxu0
    %v4864 = vadd.f32 %v4784, %v4863
    %v4865 = vpop.f32.mrb[0].mxu0
    %4866 = vmatprep.mubr.bf16.mxu0 0
    %4867 = vmatmul.mubr.bf16.gmra.mrb[0].mxu0 %v3550
    %v4868 = vpop.f32.mrb[0].mxu0
    %v4869 = vadd.f32 %v4784, %v4868
    %v4870 = vpop.f32.mrb[0].mxu0
    %v4871 = vpop.f32.mrb[0].mxu0
    %v4872 = vadd.f32 %v4784, %v4871
    %v4873 = vpop.f32.mrb[0].mxu0
    %4874 = vmatprep.mubr.bf16.mxu0 0
    %4875 = vmatmul.mubr.bf16.gmra.mrb[0].mxu0 %v3553
    %v4876 = vpop.f32.mrb[0].mxu0
    %v4877 = vadd.f32 %v4784, %v4876
    %v4878 = vpop.f32.mrb[0].mxu0
    %v4879 = vpop.f32.mrb[0].mxu0
    %v4880 = vadd.f32 %v4784, %v4879
    %v4881 = vpop.f32.mrb[0].mxu0
    %4882 = vmatprep.mubr.bf16.mxu0 0
    %4883 = vmatmul.mubr.bf16.gmra.mrb[0].mxu0 %v3556
    %v4884 = vpop.f32.mrb[0].mxu0
    %v4885 = vadd.f32 %v4784, %v4884
    %v4886 = vpop.f32.mrb[0].mxu0
    %v4887 = vpop.f32.mrb[0].mxu0
    %v4888 = vadd.f32 %v4784, %v4887
    %v4889 = vpop.f32.mrb[0].mxu0
    %4890 = vmatprep.mubr.bf16.mxu0 0
    %4891 = vmatmul.mubr.bf16.gmra.mrb[0].mxu0 %v3559
    %v4892 = vpop.f32.mrb[0].mxu0
    %v4893 = vadd.f32 %v4784, %v4892
    %v4894 = vpop.f32.mrb[0].mxu0
    %v4895 = vpop.f32.mrb[0].mxu0
    %v4896 = vadd.f32 %v4784, %v4895
    %v4897 = vpop.f32.mrb[0].mxu0
    %4898 = vmatprep.mubr.bf16.mxu0 0
    %4899 = vmatmul.mubr.bf16.gmra.mrb[0].mxu0 %v3562
    %v4900 = vpop.f32.mrb[0].mxu0
    %v4901 = vadd.f32 %v4784, %v4900
    %v4902 = vpop.f32.mrb[0].mxu0
    %v4903 = vpop.f32.mrb[0].mxu0
    %v4904 = vadd.f32 %v4784, %v4903
    %v4905 = vpop.f32.mrb[0].mxu0
    %4906 = vdwg.mxu0
    %v4907 = vpack.c.bf16 %v4572, %v4569
    %v4908 = vpack.c.bf16 %v4580, %v4577
    %v4909 = vpack.c.bf16 %v4588, %v4585
    %v4910 = vpack.c.bf16 %v4596, %v4593
    %v4911 = vpack.c.bf16 %v4604, %v4601
    %v4912 = vpack.c.bf16 %v4612, %v4609
    %v4913 = vpack.c.bf16 %v4620, %v4617
    %v4914 = vpack.c.bf16 %v4628, %v4625
    %v4915 = vpack.c.bf16 %v4710, %v4707
    %v4916 = vpack.c.bf16 %v4718, %v4715
    %v4917 = vpack.c.bf16 %v4726, %v4723
    %v4918 = vpack.c.bf16 %v4734, %v4731
    %v4919 = vpack.c.bf16 %v4742, %v4739
    %v4920 = vpack.c.bf16 %v4750, %v4747
    %v4921 = vpack.c.bf16 %v4758, %v4755
    %v4922 = vpack.c.bf16 %v4766, %v4763
    %v4923 = vpack.c.bf16 %v4848, %v4845
    %v4924 = vpack.c.bf16 %v4856, %v4853
    %v4925 = vpack.c.bf16 %v4864, %v4861
    %v4926 = vpack.c.bf16 %v4872, %v4869
    %v4927 = vpack.c.bf16 %v4880, %v4877
    %v4928 = vpack.c.bf16 %v4888, %v4885
    %v4929 = vpack.c.bf16 %v4896, %v4893
    %v4930 = vpack.c.bf16 %v4904, %v4901
    %v4932 = vsel %vm714, %v4907, 0
    %v4935 = vsel %vm714, %v4908, 0
    %v4938 = vsel %vm714, %v4909, 0
    %v4941 = vsel %vm714, %v4910, 0
    %v4944 = vsel %vm714, %v4915, 0
    %v4947 = vsel %vm714, %v4916, 0
    %v4950 = vsel %vm714, %v4917, 0
    %v4953 = vsel %vm714, %v4918, 0
    %4955 = vmatprep.subr.bf16.mxu0 0
    %4956 = vmatpush1.bf16.xpose.msra.mxu0 %v4944
    %4957 = vmatprep.subr.bf16.mxu0 0
    %4958 = vmatpush1.bf16.xpose.msra.mxu0 %v4947
    %4959 = vmatprep.subr.bf16.mxu0 0
    %4960 = vmatpush1.bf16.xpose.msra.mxu0 %v4950
    %4961 = vmatprep.subr.bf16.mxu0 0
    %4962 = vmatpush1.bf16.xpose.msra.mxu0 %v4953
    %4963 = vmatprep.subr.bf16.mxu0 0
    %4964 = vmatpush1.bf16.xpose.msra.mxu0 0
    %4965 = vmatprep.subr.bf16.mxu0 0
    %4966 = vmatpush1.bf16.xpose.msra.mxu0 0
    %4967 = vmatprep.subr.bf16.mxu0 0
    %4968 = vmatpush1.bf16.xpose.msra.mxu0 0
    %4969 = vmatprep.subr.bf16.mxu0 0
    %4970 = vmatpush1.bf16.xpose.msra.mxu0 0
    %4971 = vmatprep.subr.bf16.mxu0 0
    %4972 = vmatpush1.bf16.xpose.msra.mxu0 0
    %4973 = vmatprep.subr.bf16.mxu0 0
    %4974 = vmatpush1.bf16.xpose.msra.mxu0 0
    %4975 = vmatprep.subr.bf16.mxu0 0
    %4976 = vmatpush1.bf16.xpose.msra.mxu0 0
    %4977 = vmatprep.subr.bf16.mxu0 0
    %4978 = vmatpush1.bf16.xpose.msra.mxu0 0
    %4979 = vmatprep.subr.bf16.mxu0 0
    %4980 = vmatpush1.bf16.xpose.msra.mxu0 0
    %4981 = vmatprep.subr.bf16.mxu0 0
    %4982 = vmatpush1.bf16.xpose.msra.mxu0 0
    %4983 = vmatprep.subr.bf16.mxu0 0
    %4984 = vmatpush1.bf16.xpose.msra.mxu0 0
    %4985 = vmatprep.subr.bf16.mxu0 0
    %4986 = vmatpush1.bf16.xpose.msra.mxu0 0
    %4987 = vmatprep.mubr.bf16.mxu0 0
    %4988 = vmatmul.mubr.bf16.gmra.mrb[0].mxu0 %v4932
    %v4989 = vpop.f32.mrb[0].mxu0
    %v4990 = vadd.f32 0.0, %v4989
    %v4991 = vpop.f32.mrb[0].mxu0
    %v4992 = vpop.f32.mrb[0].mxu0
    %v4993 = vadd.f32 0.0, %v4992
    %v4994 = vpop.f32.mrb[0].mxu0
    %4995 = vmatprep.mubr.bf16.mxu0 0
    %4996 = vmatmul.mubr.bf16.gmra.mrb[0].mxu0 %v4935
    %v4997 = vpop.f32.mrb[0].mxu0
    %v4998 = vadd.f32 0.0, %v4997
    %v4999 = vpop.f32.mrb[0].mxu0
    %v5000 = vpop.f32.mrb[0].mxu0
    %v5001 = vadd.f32 0.0, %v5000
    %v5002 = vpop.f32.mrb[0].mxu0
    %5003 = vmatprep.mubr.bf16.mxu0 0
    %5004 = vmatmul.mubr.bf16.gmra.mrb[0].mxu0 %v4938
    %v5005 = vpop.f32.mrb[0].mxu0
    %v5006 = vadd.f32 0.0, %v5005
    %v5007 = vpop.f32.mrb[0].mxu0
    %v5008 = vpop.f32.mrb[0].mxu0
    %v5009 = vadd.f32 0.0, %v5008
    %v5010 = vpop.f32.mrb[0].mxu0
    %5011 = vmatprep.mubr.bf16.mxu0 0
    %5012 = vmatmul.mubr.bf16.gmra.mrb[0].mxu0 %v4941
    %v5013 = vpop.f32.mrb[0].mxu0
    %v5014 = vadd.f32 0.0, %v5013
    %v5015 = vpop.f32.mrb[0].mxu0
    %v5016 = vpop.f32.mrb[0].mxu0
    %v5017 = vadd.f32 0.0, %v5016
    %v5018 = vpop.f32.mrb[0].mxu0
    %5019 = vdwg.mxu0
    %v5021 = vsel %vm714, %v4911, 0
    %v5024 = vsel %vm714, %v4912, 0
    %v5027 = vsel %vm714, %v4913, 0
    %v5030 = vsel %vm714, %v4914, 0
    %v5033 = vsel %vm714, %v4919, 0
    %v5036 = vsel %vm714, %v4920, 0
    %v5039 = vsel %vm714, %v4921, 0
    %v5042 = vsel %vm714, %v4922, 0
    %5044 = vmatprep.subr.bf16.mxu0 0
    %5045 = vmatpush1.bf16.xpose.msra.mxu0 %v5033
    %5046 = vmatprep.subr.bf16.mxu0 0
    %5047 = vmatpush1.bf16.xpose.msra.mxu0 %v5036
    %5048 = vmatprep.subr.bf16.mxu0 0
    %5049 = vmatpush1.bf16.xpose.msra.mxu0 %v5039
    %5050 = vmatprep.subr.bf16.mxu0 0
    %5051 = vmatpush1.bf16.xpose.msra.mxu0 %v5042
    %5052 = vmatprep.subr.bf16.mxu0 0
    %5053 = vmatpush1.bf16.xpose.msra.mxu0 0
    %5054 = vmatprep.subr.bf16.mxu0 0
    %5055 = vmatpush1.bf16.xpose.msra.mxu0 0
    %5056 = vmatprep.subr.bf16.mxu0 0
    %5057 = vmatpush1.bf16.xpose.msra.mxu0 0
    %5058 = vmatprep.subr.bf16.mxu0 0
    %5059 = vmatpush1.bf16.xpose.msra.mxu0 0
    %5060 = vmatprep.subr.bf16.mxu0 0
    %5061 = vmatpush1.bf16.xpose.msra.mxu0 0
    %5062 = vmatprep.subr.bf16.mxu0 0
    %5063 = vmatpush1.bf16.xpose.msra.mxu0 0
    %5064 = vmatprep.subr.bf16.mxu0 0
    %5065 = vmatpush1.bf16.xpose.msra.mxu0 0
    %5066 = vmatprep.subr.bf16.mxu0 0
    %5067 = vmatpush1.bf16.xpose.msra.mxu0 0
    %5068 = vmatprep.subr.bf16.mxu0 0
    %5069 = vmatpush1.bf16.xpose.msra.mxu0 0
    %5070 = vmatprep.subr.bf16.mxu0 0
    %5071 = vmatpush1.bf16.xpose.msra.mxu0 0
    %5072 = vmatprep.subr.bf16.mxu0 0
    %5073 = vmatpush1.bf16.xpose.msra.mxu0 0
    %5074 = vmatprep.subr.bf16.mxu0 0
    %5075 = vmatpush1.bf16.xpose.msra.mxu0 0
    %5076 = vmatprep.mubr.bf16.mxu0 0
    %5077 = vmatmul.mubr.bf16.gmra.mrb[0].mxu0 %v5021
    %v5078 = vpop.f32.mrb[0].mxu0
    %v5079 = vadd.f32 0.0, %v5078
    %v5080 = vpop.f32.mrb[0].mxu0
    %v5081 = vpop.f32.mrb[0].mxu0
    %v5082 = vadd.f32 0.0, %v5081
    %v5083 = vpop.f32.mrb[0].mxu0
    %5084 = vmatprep.mubr.bf16.mxu0 0
    %5085 = vmatmul.mubr.bf16.gmra.mrb[0].mxu0 %v5024
    %v5086 = vpop.f32.mrb[0].mxu0
    %v5087 = vadd.f32 0.0, %v5086
    %v5088 = vpop.f32.mrb[0].mxu0
    %v5089 = vpop.f32.mrb[0].mxu0
    %v5090 = vadd.f32 0.0, %v5089
    %v5091 = vpop.f32.mrb[0].mxu0
    %5092 = vmatprep.mubr.bf16.mxu0 0
    %5093 = vmatmul.mubr.bf16.gmra.mrb[0].mxu0 %v5027
    %v5094 = vpop.f32.mrb[0].mxu0
    %v5095 = vadd.f32 0.0, %v5094
    %v5096 = vpop.f32.mrb[0].mxu0
    %v5097 = vpop.f32.mrb[0].mxu0
    %v5098 = vadd.f32 0.0, %v5097
    %v5099 = vpop.f32.mrb[0].mxu0
    %5100 = vmatprep.mubr.bf16.mxu0 0
    %5101 = vmatmul.mubr.bf16.gmra.mrb[0].mxu0 %v5030
    %v5102 = vpop.f32.mrb[0].mxu0
    %v5103 = vadd.f32 0.0, %v5102
    %v5104 = vpop.f32.mrb[0].mxu0
    %v5105 = vpop.f32.mrb[0].mxu0
    %v5106 = vadd.f32 0.0, %v5105
    %v5107 = vpop.f32.mrb[0].mxu0
    %5108 = vdwg.mxu0
    %v5109 = vmul.f32 %v4990, 0.17677669
    %v5110 = vmul.f32 %v4993, 0.17677669
    %v5111 = vmul.f32 %v4998, 0.17677669
    %v5112 = vmul.f32 %v5001, 0.17677669
    %v5113 = vmul.f32 %v5006, 0.17677669
    %v5114 = vmul.f32 %v5009, 0.17677669
    %v5115 = vmul.f32 %v5014, 0.17677669
    %v5116 = vmul.f32 %v5017, 0.17677669
    %v5117 = vmul.f32 %v5079, 0.17677669
    %v5118 = vmul.f32 %v5082, 0.17677669
    %v5119 = vmul.f32 %v5087, 0.17677669
    %v5120 = vmul.f32 %v5090, 0.17677669
    %v5121 = vmul.f32 %v5095, 0.17677669
    %v5122 = vmul.f32 %v5098, 0.17677669
    %v5123 = vmul.f32 %v5103, 0.17677669
    %v5124 = vmul.f32 %v5106, 0.17677669
    %v5125 = vsel %vm296, %v5109, -inf
    %5126 = vmax.xlane.f32.xlu0 %v5125
    %v5127 = vpop.xlane.xlu0 %5126
    %v5128 = vsel %vm296, %v5110, -inf
    %5129 = vmax.xlane.f32.xlu0 %v5128
    %v5130 = vpop.xlane.xlu0 %5129
    %v5131 = vsel %vm296, %v5111, -inf
    %5132 = vmax.xlane.f32.xlu0 %v5131
    %v5133 = vpop.xlane.xlu0 %5132
    %v5134 = vsel %vm296, %v5112, -inf
    %5135 = vmax.xlane.f32.xlu0 %v5134
    %v5136 = vpop.xlane.xlu0 %5135
    %v5137 = vsel %vm296, %v5113, -inf
    %5138 = vmax.xlane.f32.xlu0 %v5137
    %v5139 = vpop.xlane.xlu0 %5138
    %v5140 = vsel %vm296, %v5114, -inf
    %5141 = vmax.xlane.f32.xlu0 %v5140
    %v5142 = vpop.xlane.xlu0 %5141
    %v5143 = vsel %vm296, %v5115, -inf
    %5144 = vmax.xlane.f32.xlu0 %v5143
    %v5145 = vpop.xlane.xlu0 %5144
    %v5146 = vsel %vm296, %v5116, -inf
    %5147 = vmax.xlane.f32.xlu0 %v5146
    %v5148 = vpop.xlane.xlu0 %5147
    %v5149 = vsel %vm296, %v5117, -inf
    %5150 = vmax.xlane.f32.xlu0 %v5149
    %v5151 = vpop.xlane.xlu0 %5150
    %v5152 = vsel %vm296, %v5118, -inf
    %5153 = vmax.xlane.f32.xlu0 %v5152
    %v5154 = vpop.xlane.xlu0 %5153
    %v5155 = vsel %vm296, %v5119, -inf
    %5156 = vmax.xlane.f32.xlu0 %v5155
    %v5157 = vpop.xlane.xlu0 %5156
    %v5158 = vsel %vm296, %v5120, -inf
    %5159 = vmax.xlane.f32.xlu0 %v5158
    %v5160 = vpop.xlane.xlu0 %5159
    %v5161 = vsel %vm296, %v5121, -inf
    %5162 = vmax.xlane.f32.xlu0 %v5161
    %v5163 = vpop.xlane.xlu0 %5162
    %v5164 = vsel %vm296, %v5122, -inf
    %5165 = vmax.xlane.f32.xlu0 %v5164
    %v5166 = vpop.xlane.xlu0 %5165
    %v5167 = vsel %vm296, %v5123, -inf
    %5168 = vmax.xlane.f32.xlu0 %v5167
    %v5169 = vpop.xlane.xlu0 %5168
    %v5170 = vsel %vm296, %v5124, -inf
    %5171 = vmax.xlane.f32.xlu0 %v5170
    %v5172 = vpop.xlane.xlu0 %5171
    %v5173 = vsub.f32 %v5109, %v5127
    %v5174 = vsub.f32 %v5110, %v5130
    %v5175 = vsub.f32 %v5111, %v5133
    %v5176 = vsub.f32 %v5112, %v5136
    %v5177 = vsub.f32 %v5113, %v5139
    %v5178 = vsub.f32 %v5114, %v5142
    %v5179 = vsub.f32 %v5115, %v5145
    %v5180 = vsub.f32 %v5116, %v5148
    %v5181 = vsub.f32 %v5117, %v5151
    %v5182 = vsub.f32 %v5118, %v5154
    %v5183 = vsub.f32 %v5119, %v5157
    %v5184 = vsub.f32 %v5120, %v5160
    %v5185 = vsub.f32 %v5121, %v5163
    %v5186 = vsub.f32 %v5122, %v5166
    %v5187 = vsub.f32 %v5123, %v5169
    %v5188 = vsub.f32 %v5124, %v5172
    %v5189 = vmul.f32 %v5173, 1.442695
    %v5190 = vpow.pop %v5189
    %v5191 = vmul.f32 %v5174, 1.442695
    %v5192 = vpow.pop %v5191
    %v5193 = vmul.f32 %v5175, 1.442695
    %v5194 = vpow.pop %v5193
    %v5195 = vmul.f32 %v5176, 1.442695
    %v5196 = vpow.pop %v5195
    %v5197 = vmul.f32 %v5177, 1.442695
    %v5198 = vpow.pop %v5197
    %v5199 = vmul.f32 %v5178, 1.442695
    %v5200 = vpow.pop %v5199
    %v5201 = vmul.f32 %v5179, 1.442695
    %v5202 = vpow.pop %v5201
    %v5203 = vmul.f32 %v5180, 1.442695
    %v5204 = vpow.pop %v5203
    %v5205 = vmul.f32 %v5181, 1.442695
    %v5206 = vpow.pop %v5205
    %v5207 = vmul.f32 %v5182, 1.442695
    %v5208 = vpow.pop %v5207
    %v5209 = vmul.f32 %v5183, 1.442695
    %v5210 = vpow.pop %v5209
    %v5211 = vmul.f32 %v5184, 1.442695
    %v5212 = vpow.pop %v5211
    %v5213 = vmul.f32 %v5185, 1.442695
    %v5214 = vpow.pop %v5213
    %v5215 = vmul.f32 %v5186, 1.442695
    %v5216 = vpow.pop %v5215
    %v5217 = vmul.f32 %v5187, 1.442695
    %v5218 = vpow.pop %v5217
    %v5219 = vmul.f32 %v5188, 1.442695
    %v5220 = vpow.pop %v5219
    %v5221 = vsel %vm296, %v5190, 0.0
    %5222 = vadd.xlane.f32.xlu0 %v5221
    %v5223 = vpop.xlane.xlu0 %5222
    %v5224 = vsel %vm296, %v5192, 0.0
    %5225 = vadd.xlane.f32.xlu0 %v5224
    %v5226 = vpop.xlane.xlu0 %5225
    %v5227 = vsel %vm296, %v5194, 0.0
    %5228 = vadd.xlane.f32.xlu0 %v5227
    %v5229 = vpop.xlane.xlu0 %5228
    %v5230 = vsel %vm296, %v5196, 0.0
    %5231 = vadd.xlane.f32.xlu0 %v5230
    %v5232 = vpop.xlane.xlu0 %5231
    %v5233 = vsel %vm296, %v5198, 0.0
    %5234 = vadd.xlane.f32.xlu0 %v5233
    %v5235 = vpop.xlane.xlu0 %5234
    %v5236 = vsel %vm296, %v5200, 0.0
    %5237 = vadd.xlane.f32.xlu0 %v5236
    %v5238 = vpop.xlane.xlu0 %5237
    %v5239 = vsel %vm296, %v5202, 0.0
    %5240 = vadd.xlane.f32.xlu0 %v5239
    %v5241 = vpop.xlane.xlu0 %5240
    %v5242 = vsel %vm296, %v5204, 0.0
    %5243 = vadd.xlane.f32.xlu0 %v5242
    %v5244 = vpop.xlane.xlu0 %5243
    %v5245 = vsel %vm296, %v5206, 0.0
    %5246 = vadd.xlane.f32.xlu0 %v5245
    %v5247 = vpop.xlane.xlu0 %5246
    %v5248 = vsel %vm296, %v5208, 0.0
    %5249 = vadd.xlane.f32.xlu0 %v5248
    %v5250 = vpop.xlane.xlu0 %5249
    %v5251 = vsel %vm296, %v5210, 0.0
    %5252 = vadd.xlane.f32.xlu0 %v5251
    %v5253 = vpop.xlane.xlu0 %5252
    %v5254 = vsel %vm296, %v5212, 0.0
    %5255 = vadd.xlane.f32.xlu0 %v5254
    %v5256 = vpop.xlane.xlu0 %5255
    %v5257 = vsel %vm296, %v5214, 0.0
    %5258 = vadd.xlane.f32.xlu0 %v5257
    %v5259 = vpop.xlane.xlu0 %5258
    %v5260 = vsel %vm296, %v5216, 0.0
    %5261 = vadd.xlane.f32.xlu0 %v5260
    %v5262 = vpop.xlane.xlu0 %5261
    %v5263 = vsel %vm296, %v5218, 0.0
    %5264 = vadd.xlane.f32.xlu0 %v5263
    %v5265 = vpop.xlane.xlu0 %5264
    %v5266 = vsel %vm296, %v5220, 0.0
    %5267 = vadd.xlane.f32.xlu0 %v5266
    %v5268 = vpop.xlane.xlu0 %5267
    %v5269 = vrcp.pop %v5223
    %v5270 = vrcp.pop %v5226
    %v5271 = vrcp.pop %v5229
    %v5272 = vrcp.pop %v5232
    %v5273 = vrcp.pop %v5235
    %v5274 = vrcp.pop %v5238
    %v5275 = vrcp.pop %v5241
    %v5276 = vrcp.pop %v5244
    %v5277 = vrcp.pop %v5247
    %v5278 = vrcp.pop %v5250
    %v5279 = vrcp.pop %v5253
    %v5280 = vrcp.pop %v5256
    %v5281 = vrcp.pop %v5259
    %v5282 = vrcp.pop %v5262
    %v5283 = vrcp.pop %v5265
    %v5284 = vrcp.pop %v5268
    %v5285 = vmul.f32 %v5190, %v5269
    %v5286 = vmul.f32 %v5192, %v5270
    %v5287 = vmul.f32 %v5194, %v5271
    %v5288 = vmul.f32 %v5196, %v5272
    %v5289 = vmul.f32 %v5198, %v5273
    %v5290 = vmul.f32 %v5200, %v5274
    %v5291 = vmul.f32 %v5202, %v5275
    %v5292 = vmul.f32 %v5204, %v5276
    %v5293 = vmul.f32 %v5206, %v5277
    %v5294 = vmul.f32 %v5208, %v5278
    %v5295 = vmul.f32 %v5210, %v5279
    %v5296 = vmul.f32 %v5212, %v5280
    %v5297 = vmul.f32 %v5214, %v5281
    %v5298 = vmul.f32 %v5216, %v5282
    %v5299 = vmul.f32 %v5218, %v5283
    %v5300 = vmul.f32 %v5220, %v5284
    %v5301 = vpack.c.bf16 %v5286, %v5285
    %v5302 = vpack.c.bf16 %v5288, %v5287
    %v5303 = vpack.c.bf16 %v5290, %v5289
    %v5304 = vpack.c.bf16 %v5292, %v5291
    %v5305 = vpack.c.bf16 %v5294, %v5293
    %v5306 = vpack.c.bf16 %v5296, %v5295
    %v5307 = vpack.c.bf16 %v5298, %v5297
    %v5308 = vpack.c.bf16 %v5300, %v5299
    %v5310 = vsel %vm296, %v5301, 0
    %v5313 = vsel %vm296, %v5302, 0
    %v5316 = vsel %vm296, %v5303, 0
    %v5319 = vsel %vm296, %v5304, 0
    %5321 = vmatprep.subr.bf16.mxu0 0
    %5322 = vmatpush1.bf16.msra.mxu0 %v4923
    %5323 = vmatprep.subr.bf16.mxu0 0
    %5324 = vmatpush1.bf16.msra.mxu0 %v4924
    %5325 = vmatprep.subr.bf16.mxu0 0
    %5326 = vmatpush1.bf16.msra.mxu0 %v4925
    %5327 = vmatprep.subr.bf16.mxu0 0
    %5328 = vmatpush1.bf16.msra.mxu0 %v4926
    %5329 = vmatprep.subr.bf16.mxu0 0
    %5330 = vmatpush1.bf16.msra.mxu0 0
    %5331 = vmatprep.subr.bf16.mxu0 0
    %5332 = vmatpush1.bf16.msra.mxu0 0
    %5333 = vmatprep.subr.bf16.mxu0 0
    %5334 = vmatpush1.bf16.msra.mxu0 0
    %5335 = vmatprep.subr.bf16.mxu0 0
    %5336 = vmatpush1.bf16.msra.mxu0 0
    %5337 = vmatprep.subr.bf16.mxu0 0
    %5338 = vmatpush1.bf16.msra.mxu0 0
    %5339 = vmatprep.subr.bf16.mxu0 0
    %5340 = vmatpush1.bf16.msra.mxu0 0
    %5341 = vmatprep.subr.bf16.mxu0 0
    %5342 = vmatpush1.bf16.msra.mxu0 0
    %5343 = vmatprep.subr.bf16.mxu0 0
    %5344 = vmatpush1.bf16.msra.mxu0 0
    %5345 = vmatprep.subr.bf16.mxu0 0
    %5346 = vmatpush1.bf16.msra.mxu0 0
    %5347 = vmatprep.subr.bf16.mxu0 0
    %5348 = vmatpush1.bf16.msra.mxu0 0
    %5349 = vmatprep.subr.bf16.mxu0 0
    %5350 = vmatpush1.bf16.msra.mxu0 0
    %5351 = vmatprep.subr.bf16.mxu0 0
    %5352 = vmatpush1.bf16.msra.mxu0 0
    %5353 = vmatprep.mubr.bf16.mxu0 0
    %5354 = vmatmul.mubr.bf16.gmra.mrb[0].mxu0 %v5310
    %v5355 = vpop.f32.mrb[0].mxu0
    %v5356 = vadd.f32 0.0, %v5355
    %v5357 = vpop.f32.mrb[0].mxu0
    %v5358 = vpop.f32.mrb[0].mxu0
    %v5359 = vadd.f32 0.0, %v5358
    %v5360 = vpop.f32.mrb[0].mxu0
    %5361 = vmatprep.mubr.bf16.mxu0 0
    %5362 = vmatmul.mubr.bf16.gmra.mrb[0].mxu0 %v5313
    %v5363 = vpop.f32.mrb[0].mxu0
    %v5364 = vadd.f32 0.0, %v5363
    %v5365 = vpop.f32.mrb[0].mxu0
    %v5366 = vpop.f32.mrb[0].mxu0
    %v5367 = vadd.f32 0.0, %v5366
    %v5368 = vpop.f32.mrb[0].mxu0
    %5369 = vmatprep.mubr.bf16.mxu0 0
    %5370 = vmatmul.mubr.bf16.gmra.mrb[0].mxu0 %v5316
    %v5371 = vpop.f32.mrb[0].mxu0
    %v5372 = vadd.f32 0.0, %v5371
    %v5373 = vpop.f32.mrb[0].mxu0
    %v5374 = vpop.f32.mrb[0].mxu0
    %v5375 = vadd.f32 0.0, %v5374
    %v5376 = vpop.f32.mrb[0].mxu0
    %5377 = vmatprep.mubr.bf16.mxu0 0
    %5378 = vmatmul.mubr.bf16.gmra.mrb[0].mxu0 %v5319
    %v5379 = vpop.f32.mrb[0].mxu0
    %v5380 = vadd.f32 0.0, %v5379
    %v5381 = vpop.f32.mrb[0].mxu0
    %v5382 = vpop.f32.mrb[0].mxu0
    %v5383 = vadd.f32 0.0, %v5382
    %v5384 = vpop.f32.mrb[0].mxu0
    %5385 = vdwg.mxu0
    %v5387 = vsel %vm296, %v5305, 0
    %v5390 = vsel %vm296, %v5306, 0
    %v5393 = vsel %vm296, %v5307, 0
    %v5396 = vsel %vm296, %v5308, 0
    %5398 = vmatprep.subr.bf16.mxu0 0
    %5399 = vmatpush1.bf16.msra.mxu0 %v4927
    %5400 = vmatprep.subr.bf16.mxu0 0
    %5401 = vmatpush1.bf16.msra.mxu0 %v4928
    %5402 = vmatprep.subr.bf16.mxu0 0
    %5403 = vmatpush1.bf16.msra.mxu0 %v4929
    %5404 = vmatprep.subr.bf16.mxu0 0
    %5405 = vmatpush1.bf16.msra.mxu0 %v4930
    %5406 = vmatprep.subr.bf16.mxu0 0
    %5407 = vmatpush1.bf16.msra.mxu0 0
    %5408 = vmatprep.subr.bf16.mxu0 0
    %5409 = vmatpush1.bf16.msra.mxu0 0
    %5410 = vmatprep.subr.bf16.mxu0 0
    %5411 = vmatpush1.bf16.msra.mxu0 0
    %5412 = vmatprep.subr.bf16.mxu0 0
    %5413 = vmatpush1.bf16.msra.mxu0 0
    %5414 = vmatprep.subr.bf16.mxu0 0
    %5415 = vmatpush1.bf16.msra.mxu0 0
    %5416 = vmatprep.subr.bf16.mxu0 0
    %5417 = vmatpush1.bf16.msra.mxu0 0
    %5418 = vmatprep.subr.bf16.mxu0 0
    %5419 = vmatpush1.bf16.msra.mxu0 0
    %5420 = vmatprep.subr.bf16.mxu0 0
    %5421 = vmatpush1.bf16.msra.mxu0 0
    %5422 = vmatprep.subr.bf16.mxu0 0
    %5423 = vmatpush1.bf16.msra.mxu0 0
    %5424 = vmatprep.subr.bf16.mxu0 0
    %5425 = vmatpush1.bf16.msra.mxu0 0
    %5426 = vmatprep.subr.bf16.mxu0 0
    %5427 = vmatpush1.bf16.msra.mxu0 0
    %5428 = vmatprep.subr.bf16.mxu0 0
    %5429 = vmatpush1.bf16.msra.mxu0 0
    %5430 = vmatprep.mubr.bf16.mxu0 0
    %5431 = vmatmul.mubr.bf16.gmra.mrb[0].mxu0 %v5387
    %v5432 = vpop.f32.mrb[0].mxu0
    %v5433 = vadd.f32 0.0, %v5432
    %v5434 = vpop.f32.mrb[0].mxu0
    %v5435 = vpop.f32.mrb[0].mxu0
    %v5436 = vadd.f32 0.0, %v5435
    %v5437 = vpop.f32.mrb[0].mxu0
    %5438 = vmatprep.mubr.bf16.mxu0 0
    %5439 = vmatmul.mubr.bf16.gmra.mrb[0].mxu0 %v5390
    %v5440 = vpop.f32.mrb[0].mxu0
    %v5441 = vadd.f32 0.0, %v5440
    %v5442 = vpop.f32.mrb[0].mxu0
    %v5443 = vpop.f32.mrb[0].mxu0
    %v5444 = vadd.f32 0.0, %v5443
    %v5445 = vpop.f32.mrb[0].mxu0
    %5446 = vmatprep.mubr.bf16.mxu0 0
    %5447 = vmatmul.mubr.bf16.gmra.mrb[0].mxu0 %v5393
    %v5448 = vpop.f32.mrb[0].mxu0
    %v5449 = vadd.f32 0.0, %v5448
    %v5450 = vpop.f32.mrb[0].mxu0
    %v5451 = vpop.f32.mrb[0].mxu0
    %v5452 = vadd.f32 0.0, %v5451
    %v5453 = vpop.f32.mrb[0].mxu0
    %5454 = vmatprep.mubr.bf16.mxu0 0
    %5455 = vmatmul.mubr.bf16.gmra.mrb[0].mxu0 %v5396
    %v5456 = vpop.f32.mrb[0].mxu0
    %v5457 = vadd.f32 0.0, %v5456
    %v5458 = vpop.f32.mrb[0].mxu0
    %v5459 = vpop.f32.mrb[0].mxu0
    %v5460 = vadd.f32 0.0, %v5459
    %v5461 = vpop.f32.mrb[0].mxu0
    %5462 = vdwg.mxu0
    %5479 = vrot.lane.b32.xlu0 %v5356, 32
    %v5480 = vpop.permute.xlu0 %5479
    %5481 = vrot.lane.b32.xlu0 %v5359, 32
    %v5482 = vpop.permute.xlu0 %5481
    %5483 = vrot.lane.b32.xlu0 %v5364, 32
    %v5484 = vpop.permute.xlu0 %5483
    %5485 = vrot.lane.b32.xlu0 %v5367, 32
    %v5486 = vpop.permute.xlu0 %5485
    %5487 = vrot.lane.b32.xlu0 %v5372, 32
    %v5488 = vpop.permute.xlu0 %5487
    %5489 = vrot.lane.b32.xlu0 %v5375, 32
    %v5490 = vpop.permute.xlu0 %5489
    %5491 = vrot.lane.b32.xlu0 %v5380, 32
    %v5492 = vpop.permute.xlu0 %5491
    %5493 = vrot.lane.b32.xlu0 %v5383, 32
    %v5494 = vpop.permute.xlu0 %5493
    %5495 = vrot.lane.b32.xlu0 %v5433, 32
    %v5496 = vpop.permute.xlu0 %5495
    %5497 = vrot.lane.b32.xlu0 %v5436, 32
    %v5498 = vpop.permute.xlu0 %5497
    %5499 = vrot.lane.b32.xlu0 %v5441, 32
    %v5500 = vpop.permute.xlu0 %5499
    %5501 = vrot.lane.b32.xlu0 %v5444, 32
    %v5502 = vpop.permute.xlu0 %5501
    %5503 = vrot.lane.b32.xlu0 %v5449, 32
    %v5504 = vpop.permute.xlu0 %5503
    %5505 = vrot.lane.b32.xlu0 %v5452, 32
    %v5506 = vpop.permute.xlu0 %5505
    %5507 = vrot.lane.b32.xlu0 %v5457, 32
    %v5508 = vpop.permute.xlu0 %5507
    %5509 = vrot.lane.b32.xlu0 %v5460, 32
    %v5510 = vpop.permute.xlu0 %5509
    %v5527 = vsel %vm714, %v4386, %v5480
    %v5528 = vsel %vm714, %v4389, %v5482
    %v5529 = vsel %vm714, %v4394, %v5484
    %v5530 = vsel %vm714, %v4397, %v5486
    %v5531 = vsel %vm714, %v4402, %v5488
    %v5532 = vsel %vm714, %v4405, %v5490
    %v5533 = vsel %vm714, %v4410, %v5492
    %v5534 = vsel %vm714, %v4413, %v5494
    %v5535 = vsel %vm714, %v4463, %v5496
    %v5536 = vsel %vm714, %v4466, %v5498
    %v5537 = vsel %vm714, %v4471, %v5500
    %v5538 = vsel %vm714, %v4474, %v5502
    %v5539 = vsel %vm714, %v4479, %v5504
    %v5540 = vsel %vm714, %v4482, %v5506
    %v5541 = vsel %vm714, %v4487, %v5508
    %v5542 = vsel %vm714, %v4490, %v5510
    %v5543 = vpack.c.bf16 %v5528, %v5527
    %v5544 = vpack.c.bf16 %v5530, %v5529
    %v5545 = vpack.c.bf16 %v5532, %v5531
    %v5546 = vpack.c.bf16 %v5534, %v5533
    %v5547 = vpack.c.bf16 %v5536, %v5535
    %v5548 = vpack.c.bf16 %v5538, %v5537
    %v5549 = vpack.c.bf16 %v5540, %v5539
    %v5550 = vpack.c.bf16 %v5542, %v5541
    %s5551 = scalar_lea.vmem %s8, 32
    %v5552 = vld [vmem:[%s5551] sm:$0xf]
    %v5553 = vld [vmem:[%s5551 + $0x4] sm:$0xf]
    %v5554 = vld [vmem:[%s5551 + $0x8] sm:$0xf]
    %v5555 = vld [vmem:[%s5551 + $0xc] sm:$0xf]
    %v5556 = vld [vmem:[%s5551 + $0x10] sm:$0xf]
    %v5557 = vld [vmem:[%s5551 + $0x14] sm:$0xf]
    %v5558 = vld [vmem:[%s5551 + $0x18] sm:$0xf]
    %v5559 = vld [vmem:[%s5551 + $0x1c] sm:$0xf]
    %s5560 = scalar_lea.vmem %s9, 1
    %v5561 = vld [vmem:[%s5560] sm:$0x1]
    %v5563 = vlaneseq
    %v5564 = vshrl.u32 %v5563, 7
    %v5565 = vsub.s32 0, %v5564
    %v5566 = vrot.slane %v5561, %v5565
    %v5576 = vunpack.c.l.b16 %v5552
    %v5577 = vunpack.c.l.b16 %v5553
    %v5578 = vunpack.c.l.b16 %v5554
    %v5579 = vunpack.c.l.b16 %v5555
    %v5580 = vunpack.c.l.b16 %v5556
    %v5581 = vunpack.c.l.b16 %v5557
    %v5582 = vunpack.c.l.b16 %v5558
    %v5583 = vunpack.c.l.b16 %v5559
    %v5584 = vpack.c.b16 %v5577, %v5576
    %v5585 = vpack.c.b16 %v5579, %v5578
    %v5586 = vpack.c.b16 %v5581, %v5580
    %v5587 = vpack.c.b16 %v5583, %v5582
    %v5593 = vsel %vm296, %v5543, 0
    %v5596 = vsel %vm296, %v5544, 0
    %v5599 = vsel %vm296, %v5545, 0
    %v5602 = vsel %vm296, %v5546, 0
    %v5605 = vsel %vm296, %v5547, 0
    %v5608 = vsel %vm296, %v5548, 0
    %v5611 = vsel %vm296, %v5549, 0
    %v5614 = vsel %vm296, %v5550, 0
    %5616 = vmatprep.subr.bf16.mxu0 0
    %5617 = vmatpush1.bf16.msra.mxu0 %v5584
    %5618 = vmatprep.subr.bf16.mxu0 0
    %5619 = vmatpush1.bf16.msra.mxu0 %v5585
    %5620 = vmatprep.subr.bf16.mxu0 0
    %5621 = vmatpush1.bf16.msra.mxu0 %v5586
    %5622 = vmatprep.subr.bf16.mxu0 0
    %5623 = vmatpush1.bf16.msra.mxu0 %v5587
    %5624 = vmatprep.subr.bf16.mxu0 0
    %5625 = vmatpush1.bf16.msra.mxu0 0
    %5626 = vmatprep.subr.bf16.mxu0 0
    %5627 = vmatpush1.bf16.msra.mxu0 0
    %5628 = vmatprep.subr.bf16.mxu0 0
    %5629 = vmatpush1.bf16.msra.mxu0 0
    %5630 = vmatprep.subr.bf16.mxu0 0
    %5631 = vmatpush1.bf16.msra.mxu0 0
    %5632 = vmatprep.subr.bf16.mxu0 0
    %5633 = vmatpush1.bf16.msra.mxu0 0
    %5634 = vmatprep.subr.bf16.mxu0 0
    %5635 = vmatpush1.bf16.msra.mxu0 0
    %5636 = vmatprep.subr.bf16.mxu0 0
    %5637 = vmatpush1.bf16.msra.mxu0 0
    %5638 = vmatprep.subr.bf16.mxu0 0
    %5639 = vmatpush1.bf16.msra.mxu0 0
    %5640 = vmatprep.subr.bf16.mxu0 0
    %5641 = vmatpush1.bf16.msra.mxu0 0
    %5642 = vmatprep.subr.bf16.mxu0 0
    %5643 = vmatpush1.bf16.msra.mxu0 0
    %5644 = vmatprep.subr.bf16.mxu0 0
    %5645 = vmatpush1.bf16.msra.mxu0 0
    %5646 = vmatprep.subr.bf16.mxu0 0
    %5647 = vmatpush1.bf16.msra.mxu0 0
    %5648 = vmatprep.mubr.bf16.mxu0 0
    %5649 = vmatmul.mubr.bf16.gmra.mrb[0].mxu0 %v5593
    %v5650 = vpop.f32.mrb[0].mxu0
    %v5651 = vadd.f32 %v5566, %v5650
    %v5652 = vpop.f32.mrb[0].mxu0
    %v5653 = vpop.f32.mrb[0].mxu0
    %v5654 = vadd.f32 %v5566, %v5653
    %v5655 = vpop.f32.mrb[0].mxu0
    %5656 = vmatprep.mubr.bf16.mxu0 0
    %5657 = vmatmul.mubr.bf16.gmra.mrb[0].mxu0 %v5596
    %v5658 = vpop.f32.mrb[0].mxu0
    %v5659 = vadd.f32 %v5566, %v5658
    %v5660 = vpop.f32.mrb[0].mxu0
    %v5661 = vpop.f32.mrb[0].mxu0
    %v5662 = vadd.f32 %v5566, %v5661
    %v5663 = vpop.f32.mrb[0].mxu0
    %5664 = vmatprep.mubr.bf16.mxu0 0
    %5665 = vmatmul.mubr.bf16.gmra.mrb[0].mxu0 %v5599
    %v5666 = vpop.f32.mrb[0].mxu0
    %v5667 = vadd.f32 %v5566, %v5666
    %v5668 = vpop.f32.mrb[0].mxu0
    %v5669 = vpop.f32.mrb[0].mxu0
    %v5670 = vadd.f32 %v5566, %v5669
    %v5671 = vpop.f32.mrb[0].mxu0
    %5672 = vmatprep.mubr.bf16.mxu0 0
    %5673 = vmatmul.mubr.bf16.gmra.mrb[0].mxu0 %v5602
    %v5674 = vpop.f32.mrb[0].mxu0
    %v5675 = vadd.f32 %v5566, %v5674
    %v5676 = vpop.f32.mrb[0].mxu0
    %v5677 = vpop.f32.mrb[0].mxu0
    %v5678 = vadd.f32 %v5566, %v5677
    %v5679 = vpop.f32.mrb[0].mxu0
    %5680 = vmatprep.mubr.bf16.mxu0 0
    %5681 = vmatmul.mubr.bf16.gmra.mrb[0].mxu0 %v5605
    %v5682 = vpop.f32.mrb[0].mxu0
    %v5683 = vadd.f32 %v5566, %v5682
    %v5684 = vpop.f32.mrb[0].mxu0
    %v5685 = vpop.f32.mrb[0].mxu0
    %v5686 = vadd.f32 %v5566, %v5685
    %v5687 = vpop.f32.mrb[0].mxu0
    %5688 = vmatprep.mubr.bf16.mxu0 0
    %5689 = vmatmul.mubr.bf16.gmra.mrb[0].mxu0 %v5608
    %v5690 = vpop.f32.mrb[0].mxu0
    %v5691 = vadd.f32 %v5566, %v5690
    %v5692 = vpop.f32.mrb[0].mxu0
    %v5693 = vpop.f32.mrb[0].mxu0
    %v5694 = vadd.f32 %v5566, %v5693
    %v5695 = vpop.f32.mrb[0].mxu0
    %5696 = vmatprep.mubr.bf16.mxu0 0
    %5697 = vmatmul.mubr.bf16.gmra.mrb[0].mxu0 %v5611
    %v5698 = vpop.f32.mrb[0].mxu0
    %v5699 = vadd.f32 %v5566, %v5698
    %v5700 = vpop.f32.mrb[0].mxu0
    %v5701 = vpop.f32.mrb[0].mxu0
    %v5702 = vadd.f32 %v5566, %v5701
    %v5703 = vpop.f32.mrb[0].mxu0
    %5704 = vmatprep.mubr.bf16.mxu0 0
    %5705 = vmatmul.mubr.bf16.gmra.mrb[0].mxu0 %v5614
    %v5706 = vpop.f32.mrb[0].mxu0
    %v5707 = vadd.f32 %v5566, %v5706
    %v5708 = vpop.f32.mrb[0].mxu0
    %v5709 = vpop.f32.mrb[0].mxu0
    %v5710 = vadd.f32 %v5566, %v5709
    %v5711 = vpop.f32.mrb[0].mxu0
    %5712 = vdwg.mxu0
    %v5713 = vadd.f32 %v5651, %v3475
    %v5714 = vadd.f32 %v5654, %v3476
    %v5715 = vadd.f32 %v5659, %v3477
    %v5716 = vadd.f32 %v5662, %v3478
    %v5717 = vadd.f32 %v5667, %v3479
    %v5718 = vadd.f32 %v5670, %v3480
    %v5719 = vadd.f32 %v5675, %v3481
    %v5720 = vadd.f32 %v5678, %v3482
    %v5721 = vadd.f32 %v5683, %v3483
    %v5722 = vadd.f32 %v5686, %v3484
    %v5723 = vadd.f32 %v5691, %v3485
    %v5724 = vadd.f32 %v5694, %v3486
    %v5725 = vadd.f32 %v5699, %v3487
    %v5726 = vadd.f32 %v5702, %v3488
    %v5727 = vadd.f32 %v5707, %v3489
    %v5728 = vadd.f32 %v5710, %v3490
    %s5729 = scalar_lea.vmem %s10, 1
    %v5730 = vld [vmem:[%s5729] sm:$0x1]
    %s5731 = scalar_lea.vmem %s11, 1
    %v5732 = vld [vmem:[%s5731] sm:$0x1]
    %v5733 = vsel %vm296, %v5713, 0.0
    %5734 = vadd.xlane.f32.xlu0 %v5733
    %v5735 = vpop.xlane.xlu0 %5734
    %v5736 = vsel %vm296, %v5714, 0.0
    %5737 = vadd.xlane.f32.xlu0 %v5736
    %v5738 = vpop.xlane.xlu0 %5737
    %v5739 = vsel %vm296, %v5715, 0.0
    %5740 = vadd.xlane.f32.xlu0 %v5739
    %v5741 = vpop.xlane.xlu0 %5740
    %v5742 = vsel %vm296, %v5716, 0.0
    %5743 = vadd.xlane.f32.xlu0 %v5742
    %v5744 = vpop.xlane.xlu0 %5743
    %v5745 = vsel %vm296, %v5717, 0.0
    %5746 = vadd.xlane.f32.xlu0 %v5745
    %v5747 = vpop.xlane.xlu0 %5746
    %v5748 = vsel %vm296, %v5718, 0.0
    %5749 = vadd.xlane.f32.xlu0 %v5748
    %v5750 = vpop.xlane.xlu0 %5749
    %v5751 = vsel %vm296, %v5719, 0.0
    %5752 = vadd.xlane.f32.xlu0 %v5751
    %v5753 = vpop.xlane.xlu0 %5752
    %v5754 = vsel %vm296, %v5720, 0.0
    %5755 = vadd.xlane.f32.xlu0 %v5754
    %v5756 = vpop.xlane.xlu0 %5755
    %v5757 = vsel %vm296, %v5721, 0.0
    %5758 = vadd.xlane.f32.xlu0 %v5757
    %v5759 = vpop.xlane.xlu0 %5758
    %v5760 = vsel %vm296, %v5722, 0.0
    %5761 = vadd.xlane.f32.xlu0 %v5760
    %v5762 = vpop.xlane.xlu0 %5761
    %v5763 = vsel %vm296, %v5723, 0.0
    %5764 = vadd.xlane.f32.xlu0 %v5763
    %v5765 = vpop.xlane.xlu0 %5764
    %v5766 = vsel %vm296, %v5724, 0.0
    %5767 = vadd.xlane.f32.xlu0 %v5766
    %v5768 = vpop.xlane.xlu0 %5767
    %v5769 = vsel %vm296, %v5725, 0.0
    %5770 = vadd.xlane.f32.xlu0 %v5769
    %v5771 = vpop.xlane.xlu0 %5770
    %v5772 = vsel %vm296, %v5726, 0.0
    %5773 = vadd.xlane.f32.xlu0 %v5772
    %v5774 = vpop.xlane.xlu0 %5773
    %v5775 = vsel %vm296, %v5727, 0.0
    %5776 = vadd.xlane.f32.xlu0 %v5775
    %v5777 = vpop.xlane.xlu0 %5776
    %v5778 = vsel %vm296, %v5728, 0.0
    %5779 = vadd.xlane.f32.xlu0 %v5778
    %v5780 = vpop.xlane.xlu0 %5779
    %v5781 = vmul.f32 %v5735, %v2531
    %v5782 = vmul.f32 %v5738, %v2531
    %v5783 = vmul.f32 %v5741, %v2531
    %v5784 = vmul.f32 %v5744, %v2531
    %v5785 = vmul.f32 %v5747, %v2531
    %v5786 = vmul.f32 %v5750, %v2531
    %v5787 = vmul.f32 %v5753, %v2531
    %v5788 = vmul.f32 %v5756, %v2531
    %v5789 = vmul.f32 %v5759, %v2531
    %v5790 = vmul.f32 %v5762, %v2531
    %v5791 = vmul.f32 %v5765, %v2531
    %v5792 = vmul.f32 %v5768, %v2531
    %v5793 = vmul.f32 %v5771, %v2531
    %v5794 = vmul.f32 %v5774, %v2531
    %v5795 = vmul.f32 %v5777, %v2531
    %v5796 = vmul.f32 %v5780, %v2531
    %v5797 = vsub.f32 %v5713, %v5781
    %v5798 = vsub.f32 %v5714, %v5782
    %v5799 = vsub.f32 %v5715, %v5783
    %v5800 = vsub.f32 %v5716, %v5784
    %v5801 = vsub.f32 %v5717, %v5785
    %v5802 = vsub.f32 %v5718, %v5786
    %v5803 = vsub.f32 %v5719, %v5787
    %v5804 = vsub.f32 %v5720, %v5788
    %v5805 = vsub.f32 %v5721, %v5789
    %v5806 = vsub.f32 %v5722, %v5790
    %v5807 = vsub.f32 %v5723, %v5791
    %v5808 = vsub.f32 %v5724, %v5792
    %v5809 = vsub.f32 %v5725, %v5793
    %v5810 = vsub.f32 %v5726, %v5794
    %v5811 = vsub.f32 %v5727, %v5795
    %v5812 = vsub.f32 %v5728, %v5796
    %v5813 = vmul.f32 %v5797, %v5797
    %v5814 = vmul.f32 %v5798, %v5798
    %v5815 = vmul.f32 %v5799, %v5799
    %v5816 = vmul.f32 %v5800, %v5800
    %v5817 = vmul.f32 %v5801, %v5801
    %v5818 = vmul.f32 %v5802, %v5802
    %v5819 = vmul.f32 %v5803, %v5803
    %v5820 = vmul.f32 %v5804, %v5804
    %v5821 = vmul.f32 %v5805, %v5805
    %v5822 = vmul.f32 %v5806, %v5806
    %v5823 = vmul.f32 %v5807, %v5807
    %v5824 = vmul.f32 %v5808, %v5808
    %v5825 = vmul.f32 %v5809, %v5809
    %v5826 = vmul.f32 %v5810, %v5810
    %v5827 = vmul.f32 %v5811, %v5811
    %v5828 = vmul.f32 %v5812, %v5812
    %v5829 = vsel %vm296, %v5813, 0.0
    %5830 = vadd.xlane.f32.xlu0 %v5829
    %v5831 = vpop.xlane.xlu0 %5830
    %v5832 = vsel %vm296, %v5814, 0.0
    %5833 = vadd.xlane.f32.xlu0 %v5832
    %v5834 = vpop.xlane.xlu0 %5833
    %v5835 = vsel %vm296, %v5815, 0.0
    %5836 = vadd.xlane.f32.xlu0 %v5835
    %v5837 = vpop.xlane.xlu0 %5836
    %v5838 = vsel %vm296, %v5816, 0.0
    %5839 = vadd.xlane.f32.xlu0 %v5838
    %v5840 = vpop.xlane.xlu0 %5839
    %v5841 = vsel %vm296, %v5817, 0.0
    %5842 = vadd.xlane.f32.xlu0 %v5841
    %v5843 = vpop.xlane.xlu0 %5842
    %v5844 = vsel %vm296, %v5818, 0.0
    %5845 = vadd.xlane.f32.xlu0 %v5844
    %v5846 = vpop.xlane.xlu0 %5845
    %v5847 = vsel %vm296, %v5819, 0.0
    %5848 = vadd.xlane.f32.xlu0 %v5847
    %v5849 = vpop.xlane.xlu0 %5848
    %v5850 = vsel %vm296, %v5820, 0.0
    %5851 = vadd.xlane.f32.xlu0 %v5850
    %v5852 = vpop.xlane.xlu0 %5851
    %v5853 = vsel %vm296, %v5821, 0.0
    %5854 = vadd.xlane.f32.xlu0 %v5853
    %v5855 = vpop.xlane.xlu0 %5854
    %v5856 = vsel %vm296, %v5822, 0.0
    %5857 = vadd.xlane.f32.xlu0 %v5856
    %v5858 = vpop.xlane.xlu0 %5857
    %v5859 = vsel %vm296, %v5823, 0.0
    %5860 = vadd.xlane.f32.xlu0 %v5859
    %v5861 = vpop.xlane.xlu0 %5860
    %v5862 = vsel %vm296, %v5824, 0.0
    %5863 = vadd.xlane.f32.xlu0 %v5862
    %v5864 = vpop.xlane.xlu0 %5863
    %v5865 = vsel %vm296, %v5825, 0.0
    %5866 = vadd.xlane.f32.xlu0 %v5865
    %v5867 = vpop.xlane.xlu0 %5866
    %v5868 = vsel %vm296, %v5826, 0.0
    %5869 = vadd.xlane.f32.xlu0 %v5868
    %v5870 = vpop.xlane.xlu0 %5869
    %v5871 = vsel %vm296, %v5827, 0.0
    %5872 = vadd.xlane.f32.xlu0 %v5871
    %v5873 = vpop.xlane.xlu0 %5872
    %v5874 = vsel %vm296, %v5828, 0.0
    %5875 = vadd.xlane.f32.xlu0 %v5874
    %v5876 = vpop.xlane.xlu0 %5875
    %v5877 = vmul.f32 %v5831, %v2531
    %v5878 = vmul.f32 %v5834, %v2531
    %v5879 = vmul.f32 %v5837, %v2531
    %v5880 = vmul.f32 %v5840, %v2531
    %v5881 = vmul.f32 %v5843, %v2531
    %v5882 = vmul.f32 %v5846, %v2531
    %v5883 = vmul.f32 %v5849, %v2531
    %v5884 = vmul.f32 %v5852, %v2531
    %v5885 = vmul.f32 %v5855, %v2531
    %v5886 = vmul.f32 %v5858, %v2531
    %v5887 = vmul.f32 %v5861, %v2531
    %v5888 = vmul.f32 %v5864, %v2531
    %v5889 = vmul.f32 %v5867, %v2531
    %v5890 = vmul.f32 %v5870, %v2531
    %v5891 = vmul.f32 %v5873, %v2531
    %v5892 = vmul.f32 %v5876, %v2531
    %v5893 = vadd.f32 %v5877, 1e-05
    %v5894 = vadd.f32 %v5878, 1e-05
    %v5895 = vadd.f32 %v5879, 1e-05
    %v5896 = vadd.f32 %v5880, 1e-05
    %v5897 = vadd.f32 %v5881, 1e-05
    %v5898 = vadd.f32 %v5882, 1e-05
    %v5899 = vadd.f32 %v5883, 1e-05
    %v5900 = vadd.f32 %v5884, 1e-05
    %v5901 = vadd.f32 %v5885, 1e-05
    %v5902 = vadd.f32 %v5886, 1e-05
    %v5903 = vadd.f32 %v5887, 1e-05
    %v5904 = vadd.f32 %v5888, 1e-05
    %v5905 = vadd.f32 %v5889, 1e-05
    %v5906 = vadd.f32 %v5890, 1e-05
    %v5907 = vadd.f32 %v5891, 1e-05
    %v5908 = vadd.f32 %v5892, 1e-05
    %v5909 = vrsqrt.pop %v5893
    %v5910 = vrsqrt.pop %v5894
    %v5911 = vrsqrt.pop %v5895
    %v5912 = vrsqrt.pop %v5896
    %v5913 = vrsqrt.pop %v5897
    %v5914 = vrsqrt.pop %v5898
    %v5915 = vrsqrt.pop %v5899
    %v5916 = vrsqrt.pop %v5900
    %v5917 = vrsqrt.pop %v5901
    %v5918 = vrsqrt.pop %v5902
    %v5919 = vrsqrt.pop %v5903
    %v5920 = vrsqrt.pop %v5904
    %v5921 = vrsqrt.pop %v5905
    %v5922 = vrsqrt.pop %v5906
    %v5923 = vrsqrt.pop %v5907
    %v5924 = vrsqrt.pop %v5908
    %v5925 = vmul.f32 %v5797, %v5909
    %v5926 = vmul.f32 %v5798, %v5910
    %v5927 = vmul.f32 %v5799, %v5911
    %v5928 = vmul.f32 %v5800, %v5912
    %v5929 = vmul.f32 %v5801, %v5913
    %v5930 = vmul.f32 %v5802, %v5914
    %v5931 = vmul.f32 %v5803, %v5915
    %v5932 = vmul.f32 %v5804, %v5916
    %v5933 = vmul.f32 %v5805, %v5917
    %v5934 = vmul.f32 %v5806, %v5918
    %v5935 = vmul.f32 %v5807, %v5919
    %v5936 = vmul.f32 %v5808, %v5920
    %v5937 = vmul.f32 %v5809, %v5921
    %v5938 = vmul.f32 %v5810, %v5922
    %v5939 = vmul.f32 %v5811, %v5923
    %v5940 = vmul.f32 %v5812, %v5924
    %v5942 = vlaneseq
    %v5943 = vshrl.u32 %v5942, 7
    %v5944 = vsub.s32 0, %v5943
    %v5945 = vrot.slane %v5730, %v5944
    %v5947 = vmul.f32 %v5925, %v5945
    %v5948 = vmul.f32 %v5926, %v5945
    %v5949 = vmul.f32 %v5927, %v5945
    %v5950 = vmul.f32 %v5928, %v5945
    %v5951 = vmul.f32 %v5929, %v5945
    %v5952 = vmul.f32 %v5930, %v5945
    %v5953 = vmul.f32 %v5931, %v5945
    %v5954 = vmul.f32 %v5932, %v5945
    %v5955 = vmul.f32 %v5933, %v5945
    %v5956 = vmul.f32 %v5934, %v5945
    %v5957 = vmul.f32 %v5935, %v5945
    %v5958 = vmul.f32 %v5936, %v5945
    %v5959 = vmul.f32 %v5937, %v5945
    %v5960 = vmul.f32 %v5938, %v5945
    %v5961 = vmul.f32 %v5939, %v5945
    %v5962 = vmul.f32 %v5940, %v5945
    %v5964 = vlaneseq
    %v5965 = vshrl.u32 %v5964, 7
    %v5966 = vsub.s32 0, %v5965
    %v5967 = vrot.slane %v5732, %v5966
    %v5969 = vadd.f32 %v5947, %v5967
    %v5970 = vadd.f32 %v5948, %v5967
    %v5971 = vadd.f32 %v5949, %v5967
    %v5972 = vadd.f32 %v5950, %v5967
    %v5973 = vadd.f32 %v5951, %v5967
    %v5974 = vadd.f32 %v5952, %v5967
    %v5975 = vadd.f32 %v5953, %v5967
    %v5976 = vadd.f32 %v5954, %v5967
    %v5977 = vadd.f32 %v5955, %v5967
    %v5978 = vadd.f32 %v5956, %v5967
    %v5979 = vadd.f32 %v5957, %v5967
    %v5980 = vadd.f32 %v5958, %v5967
    %v5981 = vadd.f32 %v5959, %v5967
    %v5982 = vadd.f32 %v5960, %v5967
    %v5983 = vadd.f32 %v5961, %v5967
    %v5984 = vadd.f32 %v5962, %v5967
    %v5985 = vpack.c.bf16 %v5970, %v5969
    %v5986 = vpack.c.bf16 %v5972, %v5971
    %v5987 = vpack.c.bf16 %v5974, %v5973
    %v5988 = vpack.c.bf16 %v5976, %v5975
    %v5989 = vpack.c.bf16 %v5978, %v5977
    %v5990 = vpack.c.bf16 %v5980, %v5979
    %v5991 = vpack.c.bf16 %v5982, %v5981
    %v5992 = vpack.c.bf16 %v5984, %v5983
    %s5993 = scalar_lea.vmem %s12, 64
    %v5994 = vld [vmem:[%s5993] sm:$0xff]
    %v5995 = vld [vmem:[%s5993 + $0x8] sm:$0xff]
    %v5996 = vld [vmem:[%s5993 + $0x10] sm:$0xff]
    %v5997 = vld [vmem:[%s5993 + $0x18] sm:$0xff]
    %v5998 = vld [vmem:[%s5993 + $0x20] sm:$0xff]
    %v5999 = vld [vmem:[%s5993 + $0x28] sm:$0xff]
    %v6000 = vld [vmem:[%s5993 + $0x30] sm:$0xff]
    %v6001 = vld [vmem:[%s5993 + $0x38] sm:$0xff]
    %s6002 = scalar_lea.vmem %s13, 2
    %v6003 = vld [vmem:[%s6002] sm:$0x3]
    %v6005 = vlaneseq
    %v6006 = vshrl.u32 %v6005, 7
    %v6007 = vsub.s32 0, %v6006
    %v6008 = vrot.slane %v6003, %v6007
    %v6009 = vlaneseq
    %v6010 = vshrl.u32 %v6009, 7
    %v6011 = vsub.s32 1, %v6010
    %v6012 = vrot.slane %v6003, %v6011
    %v6023 = vunpack.c.l.b16 %v5994
    %v6024 = vunpack.c.h.b16 %v5994
    %v6025 = vunpack.c.l.b16 %v5995
    %v6026 = vunpack.c.h.b16 %v5995
    %v6027 = vunpack.c.l.b16 %v5996
    %v6028 = vunpack.c.h.b16 %v5996
    %v6029 = vunpack.c.l.b16 %v5997
    %v6030 = vunpack.c.h.b16 %v5997
    %v6031 = vunpack.c.l.b16 %v5998
    %v6032 = vunpack.c.h.b16 %v5998
    %v6033 = vunpack.c.l.b16 %v5999
    %v6034 = vunpack.c.h.b16 %v5999
    %v6035 = vunpack.c.l.b16 %v6000
    %v6036 = vunpack.c.h.b16 %v6000
    %v6037 = vunpack.c.l.b16 %v6001
    %v6038 = vunpack.c.h.b16 %v6001
    %v6039 = vpack.c.b16 %v6025, %v6023
    %v6040 = vpack.c.b16 %v6026, %v6024
    %v6041 = vpack.c.b16 %v6029, %v6027
    %v6042 = vpack.c.b16 %v6030, %v6028
    %v6043 = vpack.c.b16 %v6033, %v6031
    %v6044 = vpack.c.b16 %v6034, %v6032
    %v6045 = vpack.c.b16 %v6037, %v6035
    %v6046 = vpack.c.b16 %v6038, %v6036
    %v6056 = vsel %vm296, %v5985, 0
    %v6059 = vsel %vm296, %v5986, 0
    %v6062 = vsel %vm296, %v5987, 0
    %v6065 = vsel %vm296, %v5988, 0
    %v6068 = vsel %vm296, %v5989, 0
    %v6071 = vsel %vm296, %v5990, 0
    %v6074 = vsel %vm296, %v5991, 0
    %v6077 = vsel %vm296, %v5992, 0
    %6079 = vmatprep.subr.bf16.mxu0 %v6040
    %6080 = vmatpush1.bf16.msra.mxu0 %v6039
    %6081 = vmatprep.subr.bf16.mxu0 %v6042
    %6082 = vmatpush1.bf16.msra.mxu0 %v6041
    %6083 = vmatprep.subr.bf16.mxu0 %v6044
    %6084 = vmatpush1.bf16.msra.mxu0 %v6043
    %6085 = vmatprep.subr.bf16.mxu0 %v6046
    %6086 = vmatpush1.bf16.msra.mxu0 %v6045
    %6087 = vmatprep.subr.bf16.mxu0 0
    %6088 = vmatpush1.bf16.msra.mxu0 0
    %6089 = vmatprep.subr.bf16.mxu0 0
    %6090 = vmatpush1.bf16.msra.mxu0 0
    %6091 = vmatprep.subr.bf16.mxu0 0
    %6092 = vmatpush1.bf16.msra.mxu0 0
    %6093 = vmatprep.subr.bf16.mxu0 0
    %6094 = vmatpush1.bf16.msra.mxu0 0
    %6095 = vmatprep.subr.bf16.mxu0 0
    %6096 = vmatpush1.bf16.msra.mxu0 0
    %6097 = vmatprep.subr.bf16.mxu0 0
    %6098 = vmatpush1.bf16.msra.mxu0 0
    %6099 = vmatprep.subr.bf16.mxu0 0
    %6100 = vmatpush1.bf16.msra.mxu0 0
    %6101 = vmatprep.subr.bf16.mxu0 0
    %6102 = vmatpush1.bf16.msra.mxu0 0
    %6103 = vmatprep.subr.bf16.mxu0 0
    %6104 = vmatpush1.bf16.msra.mxu0 0
    %6105 = vmatprep.subr.bf16.mxu0 0
    %6106 = vmatpush1.bf16.msra.mxu0 0
    %6107 = vmatprep.subr.bf16.mxu0 0
    %6108 = vmatpush1.bf16.msra.mxu0 0
    %6109 = vmatprep.subr.bf16.mxu0 0
    %6110 = vmatpush1.bf16.msra.mxu0 0
    %6111 = vmatprep.mubr.bf16.mxu0 0
    %6112 = vmatmul.mubr.bf16.gmra.mrb[0].mxu0 %v6056
    %v6113 = vpop.f32.mrb[0].mxu0
    %v6114 = vadd.f32 %v6008, %v6113
    %v6115 = vpop.f32.mrb[0].mxu0
    %v6116 = vadd.f32 %v6012, %v6115
    %v6117 = vpop.f32.mrb[0].mxu0
    %v6118 = vadd.f32 %v6008, %v6117
    %v6119 = vpop.f32.mrb[0].mxu0
    %v6120 = vadd.f32 %v6012, %v6119
    %6121 = vmatprep.mubr.bf16.mxu0 0
    %6122 = vmatmul.mubr.bf16.gmra.mrb[0].mxu0 %v6059
    %v6123 = vpop.f32.mrb[0].mxu0
    %v6124 = vadd.f32 %v6008, %v6123
    %v6125 = vpop.f32.mrb[0].mxu0
    %v6126 = vadd.f32 %v6012, %v6125
    %v6127 = vpop.f32.mrb[0].mxu0
    %v6128 = vadd.f32 %v6008, %v6127
    %v6129 = vpop.f32.mrb[0].mxu0
    %v6130 = vadd.f32 %v6012, %v6129
    %6131 = vmatprep.mubr.bf16.mxu0 0
    %6132 = vmatmul.mubr.bf16.gmra.mrb[0].mxu0 %v6062
    %v6133 = vpop.f32.mrb[0].mxu0
    %v6134 = vadd.f32 %v6008, %v6133
    %v6135 = vpop.f32.mrb[0].mxu0
    %v6136 = vadd.f32 %v6012, %v6135
    %v6137 = vpop.f32.mrb[0].mxu0
    %v6138 = vadd.f32 %v6008, %v6137
    %v6139 = vpop.f32.mrb[0].mxu0
    %v6140 = vadd.f32 %v6012, %v6139
    %6141 = vmatprep.mubr.bf16.mxu0 0
    %6142 = vmatmul.mubr.bf16.gmra.mrb[0].mxu0 %v6065
    %v6143 = vpop.f32.mrb[0].mxu0
    %v6144 = vadd.f32 %v6008, %v6143
    %v6145 = vpop.f32.mrb[0].mxu0
    %v6146 = vadd.f32 %v6012, %v6145
    %v6147 = vpop.f32.mrb[0].mxu0
    %v6148 = vadd.f32 %v6008, %v6147
    %v6149 = vpop.f32.mrb[0].mxu0
    %v6150 = vadd.f32 %v6012, %v6149
    %6151 = vmatprep.mubr.bf16.mxu0 0
    %6152 = vmatmul.mubr.bf16.gmra.mrb[0].mxu0 %v6068
    %v6153 = vpop.f32.mrb[0].mxu0
    %v6154 = vadd.f32 %v6008, %v6153
    %v6155 = vpop.f32.mrb[0].mxu0
    %v6156 = vadd.f32 %v6012, %v6155
    %v6157 = vpop.f32.mrb[0].mxu0
    %v6158 = vadd.f32 %v6008, %v6157
    %v6159 = vpop.f32.mrb[0].mxu0
    %v6160 = vadd.f32 %v6012, %v6159
    %6161 = vmatprep.mubr.bf16.mxu0 0
    %6162 = vmatmul.mubr.bf16.gmra.mrb[0].mxu0 %v6071
    %v6163 = vpop.f32.mrb[0].mxu0
    %v6164 = vadd.f32 %v6008, %v6163
    %v6165 = vpop.f32.mrb[0].mxu0
    %v6166 = vadd.f32 %v6012, %v6165
    %v6167 = vpop.f32.mrb[0].mxu0
    %v6168 = vadd.f32 %v6008, %v6167
    %v6169 = vpop.f32.mrb[0].mxu0
    %v6170 = vadd.f32 %v6012, %v6169
    %6171 = vmatprep.mubr.bf16.mxu0 0
    %6172 = vmatmul.mubr.bf16.gmra.mrb[0].mxu0 %v6074
    %v6173 = vpop.f32.mrb[0].mxu0
    %v6174 = vadd.f32 %v6008, %v6173
    %v6175 = vpop.f32.mrb[0].mxu0
    %v6176 = vadd.f32 %v6012, %v6175
    %v6177 = vpop.f32.mrb[0].mxu0
    %v6178 = vadd.f32 %v6008, %v6177
    %v6179 = vpop.f32.mrb[0].mxu0
    %v6180 = vadd.f32 %v6012, %v6179
    %6181 = vmatprep.mubr.bf16.mxu0 0
    %6182 = vmatmul.mubr.bf16.gmra.mrb[0].mxu0 %v6077
    %v6183 = vpop.f32.mrb[0].mxu0
    %v6184 = vadd.f32 %v6008, %v6183
    %v6185 = vpop.f32.mrb[0].mxu0
    %v6186 = vadd.f32 %v6012, %v6185
    %v6187 = vpop.f32.mrb[0].mxu0
    %v6188 = vadd.f32 %v6008, %v6187
    %v6189 = vpop.f32.mrb[0].mxu0
    %v6190 = vadd.f32 %v6012, %v6189
    %6191 = vdwg.mxu0
    %v6192 = vmax.f32 %v6114, 0.0
    %v6193 = vmax.f32 %v6116, 0.0
    %v6194 = vmax.f32 %v6118, 0.0
    %v6195 = vmax.f32 %v6120, 0.0
    %v6196 = vmax.f32 %v6124, 0.0
    %v6197 = vmax.f32 %v6126, 0.0
    %v6198 = vmax.f32 %v6128, 0.0
    %v6199 = vmax.f32 %v6130, 0.0
    %v6200 = vmax.f32 %v6134, 0.0
    %v6201 = vmax.f32 %v6136, 0.0
    %v6202 = vmax.f32 %v6138, 0.0
    %v6203 = vmax.f32 %v6140, 0.0
    %v6204 = vmax.f32 %v6144, 0.0
    %v6205 = vmax.f32 %v6146, 0.0
    %v6206 = vmax.f32 %v6148, 0.0
    %v6207 = vmax.f32 %v6150, 0.0
    %v6208 = vmax.f32 %v6154, 0.0
    %v6209 = vmax.f32 %v6156, 0.0
    %v6210 = vmax.f32 %v6158, 0.0
    %v6211 = vmax.f32 %v6160, 0.0
    %v6212 = vmax.f32 %v6164, 0.0
    %v6213 = vmax.f32 %v6166, 0.0
    %v6214 = vmax.f32 %v6168, 0.0
    %v6215 = vmax.f32 %v6170, 0.0
    %v6216 = vmax.f32 %v6174, 0.0
    %v6217 = vmax.f32 %v6176, 0.0
    %v6218 = vmax.f32 %v6178, 0.0
    %v6219 = vmax.f32 %v6180, 0.0
    %v6220 = vmax.f32 %v6184, 0.0
    %v6221 = vmax.f32 %v6186, 0.0
    %v6222 = vmax.f32 %v6188, 0.0
    %v6223 = vmax.f32 %v6190, 0.0
    %v6224 = vpack.c.bf16 %v6194, %v6192
    %v6225 = vpack.c.bf16 %v6195, %v6193
    %v6226 = vpack.c.bf16 %v6198, %v6196
    %v6227 = vpack.c.bf16 %v6199, %v6197
    %v6228 = vpack.c.bf16 %v6202, %v6200
    %v6229 = vpack.c.bf16 %v6203, %v6201
    %v6230 = vpack.c.bf16 %v6206, %v6204
    %v6231 = vpack.c.bf16 %v6207, %v6205
    %v6232 = vpack.c.bf16 %v6210, %v6208
    %v6233 = vpack.c.bf16 %v6211, %v6209
    %v6234 = vpack.c.bf16 %v6214, %v6212
    %v6235 = vpack.c.bf16 %v6215, %v6213
    %v6236 = vpack.c.bf16 %v6218, %v6216
    %v6237 = vpack.c.bf16 %v6219, %v6217
    %v6238 = vpack.c.bf16 %v6222, %v6220
    %v6239 = vpack.c.bf16 %v6223, %v6221
    %s6240 = scalar_lea.vmem %s14, 128
    %v6241 = vld [vmem:[%s6240] sm:$0xf]
    %v6242 = vld [vmem:[%s6240 + $0x4] sm:$0xf]
    %v6243 = vld [vmem:[%s6240 + $0x8] sm:$0xf]
    %v6244 = vld [vmem:[%s6240 + $0xc] sm:$0xf]
    %v6245 = vld [vmem:[%s6240 + $0x10] sm:$0xf]
    %v6246 = vld [vmem:[%s6240 + $0x14] sm:$0xf]
    %v6247 = vld [vmem:[%s6240 + $0x18] sm:$0xf]
    %v6248 = vld [vmem:[%s6240 + $0x1c] sm:$0xf]
    %v6249 = vld [vmem:[%s6240 + $0x20] sm:$0xf]
    %v6250 = vld [vmem:[%s6240 + $0x24] sm:$0xf]
    %v6251 = vld [vmem:[%s6240 + $0x28] sm:$0xf]
    %v6252 = vld [vmem:[%s6240 + $0x2c] sm:$0xf]
    %v6253 = vld [vmem:[%s6240 + $0x30] sm:$0xf]
    %v6254 = vld [vmem:[%s6240 + $0x34] sm:$0xf]
    %v6255 = vld [vmem:[%s6240 + $0x38] sm:$0xf]
    %v6256 = vld [vmem:[%s6240 + $0x3c] sm:$0xf]
    %v6257 = vld [vmem:[%s6240 + $0x40] sm:$0xf]
    %v6258 = vld [vmem:[%s6240 + $0x44] sm:$0xf]
    %v6259 = vld [vmem:[%s6240 + $0x48] sm:$0xf]
    %v6260 = vld [vmem:[%s6240 + $0x4c] sm:$0xf]
    %v6261 = vld [vmem:[%s6240 + $0x50] sm:$0xf]
    %v6262 = vld [vmem:[%s6240 + $0x54] sm:$0xf]
    %v6263 = vld [vmem:[%s6240 + $0x58] sm:$0xf]
    %v6264 = vld [vmem:[%s6240 + $0x5c] sm:$0xf]
    %v6265 = vld [vmem:[%s6240 + $0x60] sm:$0xf]
    %v6266 = vld [vmem:[%s6240 + $0x64] sm:$0xf]
    %v6267 = vld [vmem:[%s6240 + $0x68] sm:$0xf]
    %v6268 = vld [vmem:[%s6240 + $0x6c] sm:$0xf]
    %v6269 = vld [vmem:[%s6240 + $0x70] sm:$0xf]
    %v6270 = vld [vmem:[%s6240 + $0x74] sm:$0xf]
    %v6271 = vld [vmem:[%s6240 + $0x78] sm:$0xf]
    %v6272 = vld [vmem:[%s6240 + $0x7c] sm:$0xf]
    %s6273 = scalar_lea.vmem %s15, 1
    %v6274 = vld [vmem:[%s6273] sm:$0x1]
    %v6276 = vlaneseq
    %v6277 = vshrl.u32 %v6276, 7
    %v6278 = vsub.s32 0, %v6277
    %v6279 = vrot.slane %v6274, %v6278
    %v6313 = vunpack.c.l.b16 %v6241
    %v6314 = vunpack.c.l.b16 %v6242
    %v6315 = vunpack.c.l.b16 %v6243
    %v6316 = vunpack.c.l.b16 %v6244
    %v6317 = vunpack.c.l.b16 %v6245
    %v6318 = vunpack.c.l.b16 %v6246
    %v6319 = vunpack.c.l.b16 %v6247
    %v6320 = vunpack.c.l.b16 %v6248
    %v6321 = vunpack.c.l.b16 %v6249
    %v6322 = vunpack.c.l.b16 %v6250
    %v6323 = vunpack.c.l.b16 %v6251
    %v6324 = vunpack.c.l.b16 %v6252
    %v6325 = vunpack.c.l.b16 %v6253
    %v6326 = vunpack.c.l.b16 %v6254
    %v6327 = vunpack.c.l.b16 %v6255
    %v6328 = vunpack.c.l.b16 %v6256
    %v6329 = vunpack.c.l.b16 %v6257
    %v6330 = vunpack.c.l.b16 %v6258
    %v6331 = vunpack.c.l.b16 %v6259
    %v6332 = vunpack.c.l.b16 %v6260
    %v6333 = vunpack.c.l.b16 %v6261
    %v6334 = vunpack.c.l.b16 %v6262
    %v6335 = vunpack.c.l.b16 %v6263
    %v6336 = vunpack.c.l.b16 %v6264
    %v6337 = vunpack.c.l.b16 %v6265
    %v6338 = vunpack.c.l.b16 %v6266
    %v6339 = vunpack.c.l.b16 %v6267
    %v6340 = vunpack.c.l.b16 %v6268
    %v6341 = vunpack.c.l.b16 %v6269
    %v6342 = vunpack.c.l.b16 %v6270
    %v6343 = vunpack.c.l.b16 %v6271
    %v6344 = vunpack.c.l.b16 %v6272
    %v6345 = vpack.c.b16 %v6314, %v6313
    %v6346 = vpack.c.b16 %v6316, %v6315
    %v6347 = vpack.c.b16 %v6318, %v6317
    %v6348 = vpack.c.b16 %v6320, %v6319
    %v6349 = vpack.c.b16 %v6322, %v6321
    %v6350 = vpack.c.b16 %v6324, %v6323
    %v6351 = vpack.c.b16 %v6326, %v6325
    %v6352 = vpack.c.b16 %v6328, %v6327
    %v6353 = vpack.c.b16 %v6330, %v6329
    %v6354 = vpack.c.b16 %v6332, %v6331
    %v6355 = vpack.c.b16 %v6334, %v6333
    %v6356 = vpack.c.b16 %v6336, %v6335
    %v6357 = vpack.c.b16 %v6338, %v6337
    %v6358 = vpack.c.b16 %v6340, %v6339
    %v6359 = vpack.c.b16 %v6342, %v6341
    %v6360 = vpack.c.b16 %v6344, %v6343
    %6377 = vmatprep.subr.bf16.mxu0 0
    %6378 = vmatpush1.bf16.msra.mxu0 %v6345
    %6379 = vmatprep.subr.bf16.mxu0 0
    %6380 = vmatpush1.bf16.msra.mxu0 %v6346
    %6381 = vmatprep.subr.bf16.mxu0 0
    %6382 = vmatpush1.bf16.msra.mxu0 %v6347
    %6383 = vmatprep.subr.bf16.mxu0 0
    %6384 = vmatpush1.bf16.msra.mxu0 %v6348
    %6385 = vmatprep.subr.bf16.mxu0 0
    %6386 = vmatpush1.bf16.msra.mxu0 %v6349
    %6387 = vmatprep.subr.bf16.mxu0 0
    %6388 = vmatpush1.bf16.msra.mxu0 %v6350
    %6389 = vmatprep.subr.bf16.mxu0 0
    %6390 = vmatpush1.bf16.msra.mxu0 %v6351
    %6391 = vmatprep.subr.bf16.mxu0 0
    %6392 = vmatpush1.bf16.msra.mxu0 %v6352
    %6393 = vmatprep.subr.bf16.mxu0 0
    %6394 = vmatpush1.bf16.msra.mxu0 %v6353
    %6395 = vmatprep.subr.bf16.mxu0 0
    %6396 = vmatpush1.bf16.msra.mxu0 %v6354
    %6397 = vmatprep.subr.bf16.mxu0 0
    %6398 = vmatpush1.bf16.msra.mxu0 %v6355
    %6399 = vmatprep.subr.bf16.mxu0 0
    %6400 = vmatpush1.bf16.msra.mxu0 %v6356
    %6401 = vmatprep.subr.bf16.mxu0 0
    %6402 = vmatpush1.bf16.msra.mxu0 %v6357
    %6403 = vmatprep.subr.bf16.mxu0 0
    %6404 = vmatpush1.bf16.msra.mxu0 %v6358
    %6405 = vmatprep.subr.bf16.mxu0 0
    %6406 = vmatpush1.bf16.msra.mxu0 %v6359
    %6407 = vmatprep.subr.bf16.mxu0 0
    %6408 = vmatpush1.bf16.msra.mxu0 %v6360
    %6409 = vmatprep.mubr.bf16.mxu0 %v6225
    %6410 = vmatmul.mubr.bf16.gmra.mrb[0].mxu0 %v6224
    %v6411 = vpop.f32.mrb[0].mxu0
    %v6412 = vadd.f32 %v6279, %v6411
    %v6413 = vpop.f32.mrb[0].mxu0
    %v6414 = vpop.f32.mrb[0].mxu0
    %v6415 = vadd.f32 %v6279, %v6414
    %v6416 = vpop.f32.mrb[0].mxu0
    %6417 = vmatprep.mubr.bf16.mxu0 %v6227
    %6418 = vmatmul.mubr.bf16.gmra.mrb[0].mxu0 %v6226
    %v6419 = vpop.f32.mrb[0].mxu0
    %v6420 = vadd.f32 %v6279, %v6419
    %v6421 = vpop.f32.mrb[0].mxu0
    %v6422 = vpop.f32.mrb[0].mxu0
    %v6423 = vadd.f32 %v6279, %v6422
    %v6424 = vpop.f32.mrb[0].mxu0
    %6425 = vmatprep.mubr.bf16.mxu0 %v6229
    %6426 = vmatmul.mubr.bf16.gmra.mrb[0].mxu0 %v6228
    %v6427 = vpop.f32.mrb[0].mxu0
    %v6428 = vadd.f32 %v6279, %v6427
    %v6429 = vpop.f32.mrb[0].mxu0
    %v6430 = vpop.f32.mrb[0].mxu0
    %v6431 = vadd.f32 %v6279, %v6430
    %v6432 = vpop.f32.mrb[0].mxu0
    %6433 = vmatprep.mubr.bf16.mxu0 %v6231
    %6434 = vmatmul.mubr.bf16.gmra.mrb[0].mxu0 %v6230
    %v6435 = vpop.f32.mrb[0].mxu0
    %v6436 = vadd.f32 %v6279, %v6435
    %v6437 = vpop.f32.mrb[0].mxu0
    %v6438 = vpop.f32.mrb[0].mxu0
    %v6439 = vadd.f32 %v6279, %v6438
    %v6440 = vpop.f32.mrb[0].mxu0
    %6441 = vmatprep.mubr.bf16.mxu0 %v6233
    %6442 = vmatmul.mubr.bf16.gmra.mrb[0].mxu0 %v6232
    %v6443 = vpop.f32.mrb[0].mxu0
    %v6444 = vadd.f32 %v6279, %v6443
    %v6445 = vpop.f32.mrb[0].mxu0
    %v6446 = vpop.f32.mrb[0].mxu0
    %v6447 = vadd.f32 %v6279, %v6446
    %v6448 = vpop.f32.mrb[0].mxu0
    %6449 = vmatprep.mubr.bf16.mxu0 %v6235
    %6450 = vmatmul.mubr.bf16.gmra.mrb[0].mxu0 %v6234
    %v6451 = vpop.f32.mrb[0].mxu0
    %v6452 = vadd.f32 %v6279, %v6451
    %v6453 = vpop.f32.mrb[0].mxu0
    %v6454 = vpop.f32.mrb[0].mxu0
    %v6455 = vadd.f32 %v6279, %v6454
    %v6456 = vpop.f32.mrb[0].mxu0
    %6457 = vmatprep.mubr.bf16.mxu0 %v6237
    %6458 = vmatmul.mubr.bf16.gmra.mrb[0].mxu0 %v6236
    %v6459 = vpop.f32.mrb[0].mxu0
    %v6460 = vadd.f32 %v6279, %v6459
    %v6461 = vpop.f32.mrb[0].mxu0
    %v6462 = vpop.f32.mrb[0].mxu0
    %v6463 = vadd.f32 %v6279, %v6462
    %v6464 = vpop.f32.mrb[0].mxu0
    %6465 = vmatprep.mubr.bf16.mxu0 %v6239
    %6466 = vmatmul.mubr.bf16.gmra.mrb[0].mxu0 %v6238
    %v6467 = vpop.f32.mrb[0].mxu0
    %v6468 = vadd.f32 %v6279, %v6467
    %v6469 = vpop.f32.mrb[0].mxu0
    %v6470 = vpop.f32.mrb[0].mxu0
    %v6471 = vadd.f32 %v6279, %v6470
    %v6472 = vpop.f32.mrb[0].mxu0
    %6473 = vdwg.mxu0
    %v6474 = vadd.f32 %v6412, %v5969
    %v6475 = vadd.f32 %v6415, %v5970
    %v6476 = vadd.f32 %v6420, %v5971
    %v6477 = vadd.f32 %v6423, %v5972
    %v6478 = vadd.f32 %v6428, %v5973
    %v6479 = vadd.f32 %v6431, %v5974
    %v6480 = vadd.f32 %v6436, %v5975
    %v6481 = vadd.f32 %v6439, %v5976
    %v6482 = vadd.f32 %v6444, %v5977
    %v6483 = vadd.f32 %v6447, %v5978
    %v6484 = vadd.f32 %v6452, %v5979
    %v6485 = vadd.f32 %v6455, %v5980
    %v6486 = vadd.f32 %v6460, %v5981
    %v6487 = vadd.f32 %v6463, %v5982
    %v6488 = vadd.f32 %v6468, %v5983
    %v6489 = vadd.f32 %v6471, %v5984
    %s6490 = scalar_lea.vmem %s16, 1
    %v6491 = vld [vmem:[%s6490] sm:$0x1]
    %s6492 = scalar_lea.vmem %s17, 1
    %v6493 = vld [vmem:[%s6492] sm:$0x1]
    %v6494 = vsel %vm296, %v6474, 0.0
    %6495 = vadd.xlane.f32.xlu0 %v6494
    %v6496 = vpop.xlane.xlu0 %6495
    %v6497 = vsel %vm296, %v6475, 0.0
    %6498 = vadd.xlane.f32.xlu0 %v6497
    %v6499 = vpop.xlane.xlu0 %6498
    %v6500 = vsel %vm296, %v6476, 0.0
    %6501 = vadd.xlane.f32.xlu0 %v6500
    %v6502 = vpop.xlane.xlu0 %6501
    %v6503 = vsel %vm296, %v6477, 0.0
    %6504 = vadd.xlane.f32.xlu0 %v6503
    %v6505 = vpop.xlane.xlu0 %6504
    %v6506 = vsel %vm296, %v6478, 0.0
    %6507 = vadd.xlane.f32.xlu0 %v6506
    %v6508 = vpop.xlane.xlu0 %6507
    %v6509 = vsel %vm296, %v6479, 0.0
    %6510 = vadd.xlane.f32.xlu0 %v6509
    %v6511 = vpop.xlane.xlu0 %6510
    %v6512 = vsel %vm296, %v6480, 0.0
    %6513 = vadd.xlane.f32.xlu0 %v6512
    %v6514 = vpop.xlane.xlu0 %6513
    %v6515 = vsel %vm296, %v6481, 0.0
    %6516 = vadd.xlane.f32.xlu0 %v6515
    %v6517 = vpop.xlane.xlu0 %6516
    %v6518 = vsel %vm296, %v6482, 0.0
    %6519 = vadd.xlane.f32.xlu0 %v6518
    %v6520 = vpop.xlane.xlu0 %6519
    %v6521 = vsel %vm296, %v6483, 0.0
    %6522 = vadd.xlane.f32.xlu0 %v6521
    %v6523 = vpop.xlane.xlu0 %6522
    %v6524 = vsel %vm296, %v6484, 0.0
    %6525 = vadd.xlane.f32.xlu0 %v6524
    %v6526 = vpop.xlane.xlu0 %6525
    %v6527 = vsel %vm296, %v6485, 0.0
    %6528 = vadd.xlane.f32.xlu0 %v6527
    %v6529 = vpop.xlane.xlu0 %6528
    %v6530 = vsel %vm296, %v6486, 0.0
    %6531 = vadd.xlane.f32.xlu0 %v6530
    %v6532 = vpop.xlane.xlu0 %6531
    %v6533 = vsel %vm296, %v6487, 0.0
    %6534 = vadd.xlane.f32.xlu0 %v6533
    %v6535 = vpop.xlane.xlu0 %6534
    %v6536 = vsel %vm296, %v6488, 0.0
    %6537 = vadd.xlane.f32.xlu0 %v6536
    %v6538 = vpop.xlane.xlu0 %6537
    %v6539 = vsel %vm296, %v6489, 0.0
    %6540 = vadd.xlane.f32.xlu0 %v6539
    %v6541 = vpop.xlane.xlu0 %6540
    %v6542 = vmul.f32 %v6496, %v2531
    %v6543 = vmul.f32 %v6499, %v2531
    %v6544 = vmul.f32 %v6502, %v2531
    %v6545 = vmul.f32 %v6505, %v2531
    %v6546 = vmul.f32 %v6508, %v2531
    %v6547 = vmul.f32 %v6511, %v2531
    %v6548 = vmul.f32 %v6514, %v2531
    %v6549 = vmul.f32 %v6517, %v2531
    %v6550 = vmul.f32 %v6520, %v2531
    %v6551 = vmul.f32 %v6523, %v2531
    %v6552 = vmul.f32 %v6526, %v2531
    %v6553 = vmul.f32 %v6529, %v2531
    %v6554 = vmul.f32 %v6532, %v2531
    %v6555 = vmul.f32 %v6535, %v2531
    %v6556 = vmul.f32 %v6538, %v2531
    %v6557 = vmul.f32 %v6541, %v2531
    %v6558 = vsub.f32 %v6474, %v6542
    %v6559 = vsub.f32 %v6475, %v6543
    %v6560 = vsub.f32 %v6476, %v6544
    %v6561 = vsub.f32 %v6477, %v6545
    %v6562 = vsub.f32 %v6478, %v6546
    %v6563 = vsub.f32 %v6479, %v6547
    %v6564 = vsub.f32 %v6480, %v6548
    %v6565 = vsub.f32 %v6481, %v6549
    %v6566 = vsub.f32 %v6482, %v6550
    %v6567 = vsub.f32 %v6483, %v6551
    %v6568 = vsub.f32 %v6484, %v6552
    %v6569 = vsub.f32 %v6485, %v6553
    %v6570 = vsub.f32 %v6486, %v6554
    %v6571 = vsub.f32 %v6487, %v6555
    %v6572 = vsub.f32 %v6488, %v6556
    %v6573 = vsub.f32 %v6489, %v6557
    %v6574 = vmul.f32 %v6558, %v6558
    %v6575 = vmul.f32 %v6559, %v6559
    %v6576 = vmul.f32 %v6560, %v6560
    %v6577 = vmul.f32 %v6561, %v6561
    %v6578 = vmul.f32 %v6562, %v6562
    %v6579 = vmul.f32 %v6563, %v6563
    %v6580 = vmul.f32 %v6564, %v6564
    %v6581 = vmul.f32 %v6565, %v6565
    %v6582 = vmul.f32 %v6566, %v6566
    %v6583 = vmul.f32 %v6567, %v6567
    %v6584 = vmul.f32 %v6568, %v6568
    %v6585 = vmul.f32 %v6569, %v6569
    %v6586 = vmul.f32 %v6570, %v6570
    %v6587 = vmul.f32 %v6571, %v6571
    %v6588 = vmul.f32 %v6572, %v6572
    %v6589 = vmul.f32 %v6573, %v6573
    %v6590 = vsel %vm296, %v6574, 0.0
    %6591 = vadd.xlane.f32.xlu0 %v6590
    %v6592 = vpop.xlane.xlu0 %6591
    %v6593 = vsel %vm296, %v6575, 0.0
    %6594 = vadd.xlane.f32.xlu0 %v6593
    %v6595 = vpop.xlane.xlu0 %6594
    %v6596 = vsel %vm296, %v6576, 0.0
    %6597 = vadd.xlane.f32.xlu0 %v6596
    %v6598 = vpop.xlane.xlu0 %6597
    %v6599 = vsel %vm296, %v6577, 0.0
    %6600 = vadd.xlane.f32.xlu0 %v6599
    %v6601 = vpop.xlane.xlu0 %6600
    %v6602 = vsel %vm296, %v6578, 0.0
    %6603 = vadd.xlane.f32.xlu0 %v6602
    %v6604 = vpop.xlane.xlu0 %6603
    %v6605 = vsel %vm296, %v6579, 0.0
    %6606 = vadd.xlane.f32.xlu0 %v6605
    %v6607 = vpop.xlane.xlu0 %6606
    %v6608 = vsel %vm296, %v6580, 0.0
    %6609 = vadd.xlane.f32.xlu0 %v6608
    %v6610 = vpop.xlane.xlu0 %6609
    %v6611 = vsel %vm296, %v6581, 0.0
    %6612 = vadd.xlane.f32.xlu0 %v6611
    %v6613 = vpop.xlane.xlu0 %6612
    %v6614 = vsel %vm296, %v6582, 0.0
    %6615 = vadd.xlane.f32.xlu0 %v6614
    %v6616 = vpop.xlane.xlu0 %6615
    %v6617 = vsel %vm296, %v6583, 0.0
    %6618 = vadd.xlane.f32.xlu0 %v6617
    %v6619 = vpop.xlane.xlu0 %6618
    %v6620 = vsel %vm296, %v6584, 0.0
    %6621 = vadd.xlane.f32.xlu0 %v6620
    %v6622 = vpop.xlane.xlu0 %6621
    %v6623 = vsel %vm296, %v6585, 0.0
    %6624 = vadd.xlane.f32.xlu0 %v6623
    %v6625 = vpop.xlane.xlu0 %6624
    %v6626 = vsel %vm296, %v6586, 0.0
    %6627 = vadd.xlane.f32.xlu0 %v6626
    %v6628 = vpop.xlane.xlu0 %6627
    %v6629 = vsel %vm296, %v6587, 0.0
    %6630 = vadd.xlane.f32.xlu0 %v6629
    %v6631 = vpop.xlane.xlu0 %6630
    %v6632 = vsel %vm296, %v6588, 0.0
    %6633 = vadd.xlane.f32.xlu0 %v6632
    %v6634 = vpop.xlane.xlu0 %6633
    %v6635 = vsel %vm296, %v6589, 0.0
    %6636 = vadd.xlane.f32.xlu0 %v6635
    %v6637 = vpop.xlane.xlu0 %6636
    %v6638 = vmul.f32 %v6592, %v2531
    %v6639 = vmul.f32 %v6595, %v2531
    %v6640 = vmul.f32 %v6598, %v2531
    %v6641 = vmul.f32 %v6601, %v2531
    %v6642 = vmul.f32 %v6604, %v2531
    %v6643 = vmul.f32 %v6607, %v2531
    %v6644 = vmul.f32 %v6610, %v2531
    %v6645 = vmul.f32 %v6613, %v2531
    %v6646 = vmul.f32 %v6616, %v2531
    %v6647 = vmul.f32 %v6619, %v2531
    %v6648 = vmul.f32 %v6622, %v2531
    %v6649 = vmul.f32 %v6625, %v2531
    %v6650 = vmul.f32 %v6628, %v2531
    %v6651 = vmul.f32 %v6631, %v2531
    %v6652 = vmul.f32 %v6634, %v2531
    %v6653 = vmul.f32 %v6637, %v2531
    %v6654 = vadd.f32 %v6638, 1e-05
    %v6655 = vadd.f32 %v6639, 1e-05
    %v6656 = vadd.f32 %v6640, 1e-05
    %v6657 = vadd.f32 %v6641, 1e-05
    %v6658 = vadd.f32 %v6642, 1e-05
    %v6659 = vadd.f32 %v6643, 1e-05
    %v6660 = vadd.f32 %v6644, 1e-05
    %v6661 = vadd.f32 %v6645, 1e-05
    %v6662 = vadd.f32 %v6646, 1e-05
    %v6663 = vadd.f32 %v6647, 1e-05
    %v6664 = vadd.f32 %v6648, 1e-05
    %v6665 = vadd.f32 %v6649, 1e-05
    %v6666 = vadd.f32 %v6650, 1e-05
    %v6667 = vadd.f32 %v6651, 1e-05
    %v6668 = vadd.f32 %v6652, 1e-05
    %v6669 = vadd.f32 %v6653, 1e-05
    %v6670 = vrsqrt.pop %v6654
    %v6671 = vrsqrt.pop %v6655
    %v6672 = vrsqrt.pop %v6656
    %v6673 = vrsqrt.pop %v6657
    %v6674 = vrsqrt.pop %v6658
    %v6675 = vrsqrt.pop %v6659
    %v6676 = vrsqrt.pop %v6660
    %v6677 = vrsqrt.pop %v6661
    %v6678 = vrsqrt.pop %v6662
    %v6679 = vrsqrt.pop %v6663
    %v6680 = vrsqrt.pop %v6664
    %v6681 = vrsqrt.pop %v6665
    %v6682 = vrsqrt.pop %v6666
    %v6683 = vrsqrt.pop %v6667
    %v6684 = vrsqrt.pop %v6668
    %v6685 = vrsqrt.pop %v6669
    %v6686 = vmul.f32 %v6558, %v6670
    %v6687 = vmul.f32 %v6559, %v6671
    %v6688 = vmul.f32 %v6560, %v6672
    %v6689 = vmul.f32 %v6561, %v6673
    %v6690 = vmul.f32 %v6562, %v6674
    %v6691 = vmul.f32 %v6563, %v6675
    %v6692 = vmul.f32 %v6564, %v6676
    %v6693 = vmul.f32 %v6565, %v6677
    %v6694 = vmul.f32 %v6566, %v6678
    %v6695 = vmul.f32 %v6567, %v6679
    %v6696 = vmul.f32 %v6568, %v6680
    %v6697 = vmul.f32 %v6569, %v6681
    %v6698 = vmul.f32 %v6570, %v6682
    %v6699 = vmul.f32 %v6571, %v6683
    %v6700 = vmul.f32 %v6572, %v6684
    %v6701 = vmul.f32 %v6573, %v6685
    %v6703 = vlaneseq
    %v6704 = vshrl.u32 %v6703, 7
    %v6705 = vsub.s32 0, %v6704
    %v6706 = vrot.slane %v6491, %v6705
    %v6708 = vmul.f32 %v6686, %v6706
    %v6709 = vmul.f32 %v6687, %v6706
    %v6710 = vmul.f32 %v6688, %v6706
    %v6711 = vmul.f32 %v6689, %v6706
    %v6712 = vmul.f32 %v6690, %v6706
    %v6713 = vmul.f32 %v6691, %v6706
    %v6714 = vmul.f32 %v6692, %v6706
    %v6715 = vmul.f32 %v6693, %v6706
    %v6716 = vmul.f32 %v6694, %v6706
    %v6717 = vmul.f32 %v6695, %v6706
    %v6718 = vmul.f32 %v6696, %v6706
    %v6719 = vmul.f32 %v6697, %v6706
    %v6720 = vmul.f32 %v6698, %v6706
    %v6721 = vmul.f32 %v6699, %v6706
    %v6722 = vmul.f32 %v6700, %v6706
    %v6723 = vmul.f32 %v6701, %v6706
    %v6725 = vlaneseq
    %v6726 = vshrl.u32 %v6725, 7
    %v6727 = vsub.s32 0, %v6726
    %v6728 = vrot.slane %v6493, %v6727
    %v6730 = vadd.f32 %v6708, %v6728
    %v6731 = vadd.f32 %v6709, %v6728
    %v6732 = vadd.f32 %v6710, %v6728
    %v6733 = vadd.f32 %v6711, %v6728
    %v6734 = vadd.f32 %v6712, %v6728
    %v6735 = vadd.f32 %v6713, %v6728
    %v6736 = vadd.f32 %v6714, %v6728
    %v6737 = vadd.f32 %v6715, %v6728
    %v6738 = vadd.f32 %v6716, %v6728
    %v6739 = vadd.f32 %v6717, %v6728
    %v6740 = vadd.f32 %v6718, %v6728
    %v6741 = vadd.f32 %v6719, %v6728
    %v6742 = vadd.f32 %v6720, %v6728
    %v6743 = vadd.f32 %v6721, %v6728
    %v6744 = vadd.f32 %v6722, %v6728
    %v6745 = vadd.f32 %v6723, %v6728
    %v6746 = vpack.c.bf16 %v6731, %v6730
    %v6747 = vpack.c.bf16 %v6733, %v6732
    %v6748 = vpack.c.bf16 %v6735, %v6734
    %v6749 = vpack.c.bf16 %v6737, %v6736
    %v6750 = vpack.c.bf16 %v6739, %v6738
    %v6751 = vpack.c.bf16 %v6741, %v6740
    %v6752 = vpack.c.bf16 %v6743, %v6742
    %v6753 = vpack.c.bf16 %v6745, %v6744
    %s6754 = scalar_lea.vmem [#allocation6], 128
    %v6755 = vld [vmem:[%s6754] sm:$0xf]
    %v6756 = vld [vmem:[%s6754 + $0x4] sm:$0xf]
    %v6757 = vld [vmem:[%s6754 + $0x8] sm:$0xf]
    %v6758 = vld [vmem:[%s6754 + $0xc] sm:$0xf]
    %v6759 = vld [vmem:[%s6754 + $0x10] sm:$0xf]
    %v6760 = vld [vmem:[%s6754 + $0x14] sm:$0xf]
    %v6761 = vld [vmem:[%s6754 + $0x18] sm:$0xf]
    %v6762 = vld [vmem:[%s6754 + $0x1c] sm:$0xf]
    %s6763 = scalar_lea.vmem %s5, 4
    %v6764 = vld [vmem:[%s6763] sm:$0x1]
    %v6766 = vlaneseq
    %v6767 = vshrl.u32 %v6766, 7
    %v6768 = vsub.s32 0, %v6767
    %v6769 = vrot.slane %v6764, %v6768
    %v6779 = vunpack.c.l.b16 %v6755
    %v6780 = vunpack.c.l.b16 %v6756
    %v6781 = vunpack.c.l.b16 %v6757
    %v6782 = vunpack.c.l.b16 %v6758
    %v6783 = vunpack.c.l.b16 %v6759
    %v6784 = vunpack.c.l.b16 %v6760
    %v6785 = vunpack.c.l.b16 %v6761
    %v6786 = vunpack.c.l.b16 %v6762
    %v6787 = vpack.c.b16 %v6780, %v6779
    %v6788 = vpack.c.b16 %v6782, %v6781
    %v6789 = vpack.c.b16 %v6784, %v6783
    %v6790 = vpack.c.b16 %v6786, %v6785
    %v6796 = vsel %vm296, %v6746, 0
    %v6799 = vsel %vm296, %v6747, 0
    %v6802 = vsel %vm296, %v6748, 0
    %v6805 = vsel %vm296, %v6749, 0
    %v6808 = vsel %vm296, %v6750, 0
    %v6811 = vsel %vm296, %v6751, 0
    %v6814 = vsel %vm296, %v6752, 0
    %v6817 = vsel %vm296, %v6753, 0
    %6819 = vmatprep.subr.bf16.mxu0 0
    %6820 = vmatpush1.bf16.msra.mxu0 %v6787
    %6821 = vmatprep.subr.bf16.mxu0 0
    %6822 = vmatpush1.bf16.msra.mxu0 %v6788
    %6823 = vmatprep.subr.bf16.mxu0 0
    %6824 = vmatpush1.bf16.msra.mxu0 %v6789
    %6825 = vmatprep.subr.bf16.mxu0 0
    %6826 = vmatpush1.bf16.msra.mxu0 %v6790
    %6827 = vmatprep.subr.bf16.mxu0 0
    %6828 = vmatpush1.bf16.msra.mxu0 0
    %6829 = vmatprep.subr.bf16.mxu0 0
    %6830 = vmatpush1.bf16.msra.mxu0 0
    %6831 = vmatprep.subr.bf16.mxu0 0
    %6832 = vmatpush1.bf16.msra.mxu0 0
    %6833 = vmatprep.subr.bf16.mxu0 0
    %6834 = vmatpush1.bf16.msra.mxu0 0
    %6835 = vmatprep.subr.bf16.mxu0 0
    %6836 = vmatpush1.bf16.msra.mxu0 0
    %6837 = vmatprep.subr.bf16.mxu0 0
    %6838 = vmatpush1.bf16.msra.mxu0 0
    %6839 = vmatprep.subr.bf16.mxu0 0
    %6840 = vmatpush1.bf16.msra.mxu0 0
    %6841 = vmatprep.subr.bf16.mxu0 0
    %6842 = vmatpush1.bf16.msra.mxu0 0
    %6843 = vmatprep.subr.bf16.mxu0 0
    %6844 = vmatpush1.bf16.msra.mxu0 0
    %6845 = vmatprep.subr.bf16.mxu0 0
    %6846 = vmatpush1.bf16.msra.mxu0 0
    %6847 = vmatprep.subr.bf16.mxu0 0
    %6848 = vmatpush1.bf16.msra.mxu0 0
    %6849 = vmatprep.subr.bf16.mxu0 0
    %6850 = vmatpush1.bf16.msra.mxu0 0
    %6851 = vmatprep.mubr.bf16.mxu0 0
    %6852 = vmatmul.mubr.bf16.gmra.mrb[0].mxu0 %v6796
    %v6853 = vpop.f32.mrb[0].mxu0
    %v6854 = vadd.f32 %v6769, %v6853
    %v6855 = vpop.f32.mrb[0].mxu0
    %v6856 = vpop.f32.mrb[0].mxu0
    %v6857 = vadd.f32 %v6769, %v6856
    %v6858 = vpop.f32.mrb[0].mxu0
    %6859 = vmatprep.mubr.bf16.mxu0 0
    %6860 = vmatmul.mubr.bf16.gmra.mrb[0].mxu0 %v6799
    %v6861 = vpop.f32.mrb[0].mxu0
    %v6862 = vadd.f32 %v6769, %v6861
    %v6863 = vpop.f32.mrb[0].mxu0
    %v6864 = vpop.f32.mrb[0].mxu0
    %v6865 = vadd.f32 %v6769, %v6864
    %v6866 = vpop.f32.mrb[0].mxu0
    %6867 = vmatprep.mubr.bf16.mxu0 0
    %6868 = vmatmul.mubr.bf16.gmra.mrb[0].mxu0 %v6802
    %v6869 = vpop.f32.mrb[0].mxu0
    %v6870 = vadd.f32 %v6769, %v6869
    %v6871 = vpop.f32.mrb[0].mxu0
    %v6872 = vpop.f32.mrb[0].mxu0
    %v6873 = vadd.f32 %v6769, %v6872
    %v6874 = vpop.f32.mrb[0].mxu0
    %6875 = vmatprep.mubr.bf16.mxu0 0
    %6876 = vmatmul.mubr.bf16.gmra.mrb[0].mxu0 %v6805
    %v6877 = vpop.f32.mrb[0].mxu0
    %v6878 = vadd.f32 %v6769, %v6877
    %v6879 = vpop.f32.mrb[0].mxu0
    %v6880 = vpop.f32.mrb[0].mxu0
    %v6881 = vadd.f32 %v6769, %v6880
    %v6882 = vpop.f32.mrb[0].mxu0
    %6883 = vmatprep.mubr.bf16.mxu0 0
    %6884 = vmatmul.mubr.bf16.gmra.mrb[0].mxu0 %v6808
    %v6885 = vpop.f32.mrb[0].mxu0
    %v6886 = vadd.f32 %v6769, %v6885
    %v6887 = vpop.f32.mrb[0].mxu0
    %v6888 = vpop.f32.mrb[0].mxu0
    %v6889 = vadd.f32 %v6769, %v6888
    %v6890 = vpop.f32.mrb[0].mxu0
    %6891 = vmatprep.mubr.bf16.mxu0 0
    %6892 = vmatmul.mubr.bf16.gmra.mrb[0].mxu0 %v6811
    %v6893 = vpop.f32.mrb[0].mxu0
    %v6894 = vadd.f32 %v6769, %v6893
    %v6895 = vpop.f32.mrb[0].mxu0
    %v6896 = vpop.f32.mrb[0].mxu0
    %v6897 = vadd.f32 %v6769, %v6896
    %v6898 = vpop.f32.mrb[0].mxu0
    %6899 = vmatprep.mubr.bf16.mxu0 0
    %6900 = vmatmul.mubr.bf16.gmra.mrb[0].mxu0 %v6814
    %v6901 = vpop.f32.mrb[0].mxu0
    %v6902 = vadd.f32 %v6769, %v6901
    %v6903 = vpop.f32.mrb[0].mxu0
    %v6904 = vpop.f32.mrb[0].mxu0
    %v6905 = vadd.f32 %v6769, %v6904
    %v6906 = vpop.f32.mrb[0].mxu0
    %6907 = vmatprep.mubr.bf16.mxu0 0
    %6908 = vmatmul.mubr.bf16.gmra.mrb[0].mxu0 %v6817
    %v6909 = vpop.f32.mrb[0].mxu0
    %v6910 = vadd.f32 %v6769, %v6909
    %v6911 = vpop.f32.mrb[0].mxu0
    %v6912 = vpop.f32.mrb[0].mxu0
    %v6913 = vadd.f32 %v6769, %v6912
    %v6914 = vpop.f32.mrb[0].mxu0
    %6915 = vdwg.mxu0
    %s6916 = scalar_lea.vmem [#allocation7], 128
    %v6917 = vld [vmem:[%s6916] sm:$0xf]
    %v6918 = vld [vmem:[%s6916 + $0x4] sm:$0xf]
    %v6919 = vld [vmem:[%s6916 + $0x8] sm:$0xf]
    %v6920 = vld [vmem:[%s6916 + $0xc] sm:$0xf]
    %v6921 = vld [vmem:[%s6916 + $0x10] sm:$0xf]
    %v6922 = vld [vmem:[%s6916 + $0x14] sm:$0xf]
    %v6923 = vld [vmem:[%s6916 + $0x18] sm:$0xf]
    %v6924 = vld [vmem:[%s6916 + $0x1c] sm:$0xf]
    %s6925 = scalar_lea.vmem %s6, 4
    %v6926 = vld [vmem:[%s6925] sm:$0x1]
    %v6928 = vlaneseq
    %v6929 = vshrl.u32 %v6928, 7
    %v6930 = vsub.s32 0, %v6929
    %v6931 = vrot.slane %v6926, %v6930
    %v6941 = vunpack.c.l.b16 %v6917
    %v6942 = vunpack.c.l.b16 %v6918
    %v6943 = vunpack.c.l.b16 %v6919
    %v6944 = vunpack.c.l.b16 %v6920
    %v6945 = vunpack.c.l.b16 %v6921
    %v6946 = vunpack.c.l.b16 %v6922
    %v6947 = vunpack.c.l.b16 %v6923
    %v6948 = vunpack.c.l.b16 %v6924
    %v6949 = vpack.c.b16 %v6942, %v6941
    %v6950 = vpack.c.b16 %v6944, %v6943
    %v6951 = vpack.c.b16 %v6946, %v6945
    %v6952 = vpack.c.b16 %v6948, %v6947
    %6957 = vmatprep.subr.bf16.mxu0 0
    %6958 = vmatpush1.bf16.msra.mxu0 %v6949
    %6959 = vmatprep.subr.bf16.mxu0 0
    %6960 = vmatpush1.bf16.msra.mxu0 %v6950
    %6961 = vmatprep.subr.bf16.mxu0 0
    %6962 = vmatpush1.bf16.msra.mxu0 %v6951
    %6963 = vmatprep.subr.bf16.mxu0 0
    %6964 = vmatpush1.bf16.msra.mxu0 %v6952
    %6965 = vmatprep.subr.bf16.mxu0 0
    %6966 = vmatpush1.bf16.msra.mxu0 0
    %6967 = vmatprep.subr.bf16.mxu0 0
    %6968 = vmatpush1.bf16.msra.mxu0 0
    %6969 = vmatprep.subr.bf16.mxu0 0
    %6970 = vmatpush1.bf16.msra.mxu0 0
    %6971 = vmatprep.subr.bf16.mxu0 0
    %6972 = vmatpush1.bf16.msra.mxu0 0
    %6973 = vmatprep.subr.bf16.mxu0 0
    %6974 = vmatpush1.bf16.msra.mxu0 0
    %6975 = vmatprep.subr.bf16.mxu0 0
    %6976 = vmatpush1.bf16.msra.mxu0 0
    %6977 = vmatprep.subr.bf16.mxu0 0
    %6978 = vmatpush1.bf16.msra.mxu0 0
    %6979 = vmatprep.subr.bf16.mxu0 0
    %6980 = vmatpush1.bf16.msra.mxu0 0
    %6981 = vmatprep.subr.bf16.mxu0 0
    %6982 = vmatpush1.bf16.msra.mxu0 0
    %6983 = vmatprep.subr.bf16.mxu0 0
    %6984 = vmatpush1.bf16.msra.mxu0 0
    %6985 = vmatprep.subr.bf16.mxu0 0
    %6986 = vmatpush1.bf16.msra.mxu0 0
    %6987 = vmatprep.subr.bf16.mxu0 0
    %6988 = vmatpush1.bf16.msra.mxu0 0
    %6989 = vmatprep.mubr.bf16.mxu0 0
    %6990 = vmatmul.mubr.bf16.gmra.mrb[0].mxu0 %v6796
    %v6991 = vpop.f32.mrb[0].mxu0
    %v6992 = vadd.f32 %v6931, %v6991
    %v6993 = vpop.f32.mrb[0].mxu0
    %v6994 = vpop.f32.mrb[0].mxu0
    %v6995 = vadd.f32 %v6931, %v6994
    %v6996 = vpop.f32.mrb[0].mxu0
    %6997 = vmatprep.mubr.bf16.mxu0 0
    %6998 = vmatmul.mubr.bf16.gmra.mrb[0].mxu0 %v6799
    %v6999 = vpop.f32.mrb[0].mxu0
    %v7000 = vadd.f32 %v6931, %v6999
    %v7001 = vpop.f32.mrb[0].mxu0
    %v7002 = vpop.f32.mrb[0].mxu0
    %v7003 = vadd.f32 %v6931, %v7002
    %v7004 = vpop.f32.mrb[0].mxu0
    %7005 = vmatprep.mubr.bf16.mxu0 0
    %7006 = vmatmul.mubr.bf16.gmra.mrb[0].mxu0 %v6802
    %v7007 = vpop.f32.mrb[0].mxu0
    %v7008 = vadd.f32 %v6931, %v7007
    %v7009 = vpop.f32.mrb[0].mxu0
    %v7010 = vpop.f32.mrb[0].mxu0
    %v7011 = vadd.f32 %v6931, %v7010
    %v7012 = vpop.f32.mrb[0].mxu0
    %7013 = vmatprep.mubr.bf16.mxu0 0
    %7014 = vmatmul.mubr.bf16.gmra.mrb[0].mxu0 %v6805
    %v7015 = vpop.f32.mrb[0].mxu0
    %v7016 = vadd.f32 %v6931, %v7015
    %v7017 = vpop.f32.mrb[0].mxu0
    %v7018 = vpop.f32.mrb[0].mxu0
    %v7019 = vadd.f32 %v6931, %v7018
    %v7020 = vpop.f32.mrb[0].mxu0
    %7021 = vmatprep.mubr.bf16.mxu0 0
    %7022 = vmatmul.mubr.bf16.gmra.mrb[0].mxu0 %v6808
    %v7023 = vpop.f32.mrb[0].mxu0
    %v7024 = vadd.f32 %v6931, %v7023
    %v7025 = vpop.f32.mrb[0].mxu0
    %v7026 = vpop.f32.mrb[0].mxu0
    %v7027 = vadd.f32 %v6931, %v7026
    %v7028 = vpop.f32.mrb[0].mxu0
    %7029 = vmatprep.mubr.bf16.mxu0 0
    %7030 = vmatmul.mubr.bf16.gmra.mrb[0].mxu0 %v6811
    %v7031 = vpop.f32.mrb[0].mxu0
    %v7032 = vadd.f32 %v6931, %v7031
    %v7033 = vpop.f32.mrb[0].mxu0
    %v7034 = vpop.f32.mrb[0].mxu0
    %v7035 = vadd.f32 %v6931, %v7034
    %v7036 = vpop.f32.mrb[0].mxu0
    %7037 = vmatprep.mubr.bf16.mxu0 0
    %7038 = vmatmul.mubr.bf16.gmra.mrb[0].mxu0 %v6814
    %v7039 = vpop.f32.mrb[0].mxu0
    %v7040 = vadd.f32 %v6931, %v7039
    %v7041 = vpop.f32.mrb[0].mxu0
    %v7042 = vpop.f32.mrb[0].mxu0
    %v7043 = vadd.f32 %v6931, %v7042
    %v7044 = vpop.f32.mrb[0].mxu0
    %7045 = vmatprep.mubr.bf16.mxu0 0
    %7046 = vmatmul.mubr.bf16.gmra.mrb[0].mxu0 %v6817
    %v7047 = vpop.f32.mrb[0].mxu0
    %v7048 = vadd.f32 %v6931, %v7047
    %v7049 = vpop.f32.mrb[0].mxu0
    %v7050 = vpop.f32.mrb[0].mxu0
    %v7051 = vadd.f32 %v6931, %v7050
    %v7052 = vpop.f32.mrb[0].mxu0
    %7053 = vdwg.mxu0
    %s7054 = scalar_lea.vmem [#allocation9], 128
    %v7055 = vld [vmem:[%s7054] sm:$0xf]
    %v7056 = vld [vmem:[%s7054 + $0x4] sm:$0xf]
    %v7057 = vld [vmem:[%s7054 + $0x8] sm:$0xf]
    %v7058 = vld [vmem:[%s7054 + $0xc] sm:$0xf]
    %v7059 = vld [vmem:[%s7054 + $0x10] sm:$0xf]
    %v7060 = vld [vmem:[%s7054 + $0x14] sm:$0xf]
    %v7061 = vld [vmem:[%s7054 + $0x18] sm:$0xf]
    %v7062 = vld [vmem:[%s7054 + $0x1c] sm:$0xf]
    %s7063 = scalar_lea.vmem %s7, 4
    %v7064 = vld [vmem:[%s7063] sm:$0x1]
    %v7066 = vlaneseq
    %v7067 = vshrl.u32 %v7066, 7
    %v7068 = vsub.s32 0, %v7067
    %v7069 = vrot.slane %v7064, %v7068
    %v7079 = vunpack.c.l.b16 %v7055
    %v7080 = vunpack.c.l.b16 %v7056
    %v7081 = vunpack.c.l.b16 %v7057
    %v7082 = vunpack.c.l.b16 %v7058
    %v7083 = vunpack.c.l.b16 %v7059
    %v7084 = vunpack.c.l.b16 %v7060
    %v7085 = vunpack.c.l.b16 %v7061
    %v7086 = vunpack.c.l.b16 %v7062
    %v7087 = vpack.c.b16 %v7080, %v7079
    %v7088 = vpack.c.b16 %v7082, %v7081
    %v7089 = vpack.c.b16 %v7084, %v7083
    %v7090 = vpack.c.b16 %v7086, %v7085
    %7095 = vmatprep.subr.bf16.mxu0 0
    %7096 = vmatpush1.bf16.msra.mxu0 %v7087
    %7097 = vmatprep.subr.bf16.mxu0 0
    %7098 = vmatpush1.bf16.msra.mxu0 %v7088
    %7099 = vmatprep.subr.bf16.mxu0 0
    %7100 = vmatpush1.bf16.msra.mxu0 %v7089
    %7101 = vmatprep.subr.bf16.mxu0 0
    %7102 = vmatpush1.bf16.msra.mxu0 %v7090
    %7103 = vmatprep.subr.bf16.mxu0 0
    %7104 = vmatpush1.bf16.msra.mxu0 0
    %7105 = vmatprep.subr.bf16.mxu0 0
    %7106 = vmatpush1.bf16.msra.mxu0 0
    %7107 = vmatprep.subr.bf16.mxu0 0
    %7108 = vmatpush1.bf16.msra.mxu0 0
    %7109 = vmatprep.subr.bf16.mxu0 0
    %7110 = vmatpush1.bf16.msra.mxu0 0
    %7111 = vmatprep.subr.bf16.mxu0 0
    %7112 = vmatpush1.bf16.msra.mxu0 0
    %7113 = vmatprep.subr.bf16.mxu0 0
    %7114 = vmatpush1.bf16.msra.mxu0 0
    %7115 = vmatprep.subr.bf16.mxu0 0
    %7116 = vmatpush1.bf16.msra.mxu0 0
    %7117 = vmatprep.subr.bf16.mxu0 0
    %7118 = vmatpush1.bf16.msra.mxu0 0
    %7119 = vmatprep.subr.bf16.mxu0 0
    %7120 = vmatpush1.bf16.msra.mxu0 0
    %7121 = vmatprep.subr.bf16.mxu0 0
    %7122 = vmatpush1.bf16.msra.mxu0 0
    %7123 = vmatprep.subr.bf16.mxu0 0
    %7124 = vmatpush1.bf16.msra.mxu0 0
    %7125 = vmatprep.subr.bf16.mxu0 0
    %7126 = vmatpush1.bf16.msra.mxu0 0
    %7127 = vmatprep.mubr.bf16.mxu0 0
    %7128 = vmatmul.mubr.bf16.gmra.mrb[0].mxu0 %v6796
    %v7129 = vpop.f32.mrb[0].mxu0
    %v7130 = vadd.f32 %v7069, %v7129
    %v7131 = vpop.f32.mrb[0].mxu0
    %v7132 = vpop.f32.mrb[0].mxu0
    %v7133 = vadd.f32 %v7069, %v7132
    %v7134 = vpop.f32.mrb[0].mxu0
    %7135 = vmatprep.mubr.bf16.mxu0 0
    %7136 = vmatmul.mubr.bf16.gmra.mrb[0].mxu0 %v6799
    %v7137 = vpop.f32.mrb[0].mxu0
    %v7138 = vadd.f32 %v7069, %v7137
    %v7139 = vpop.f32.mrb[0].mxu0
    %v7140 = vpop.f32.mrb[0].mxu0
    %v7141 = vadd.f32 %v7069, %v7140
    %v7142 = vpop.f32.mrb[0].mxu0
    %7143 = vmatprep.mubr.bf16.mxu0 0
    %7144 = vmatmul.mubr.bf16.gmra.mrb[0].mxu0 %v6802
    %v7145 = vpop.f32.mrb[0].mxu0
    %v7146 = vadd.f32 %v7069, %v7145
    %v7147 = vpop.f32.mrb[0].mxu0
    %v7148 = vpop.f32.mrb[0].mxu0
    %v7149 = vadd.f32 %v7069, %v7148
    %v7150 = vpop.f32.mrb[0].mxu0
    %7151 = vmatprep.mubr.bf16.mxu0 0
    %7152 = vmatmul.mubr.bf16.gmra.mrb[0].mxu0 %v6805
    %v7153 = vpop.f32.mrb[0].mxu0
    %v7154 = vadd.f32 %v7069, %v7153
    %v7155 = vpop.f32.mrb[0].mxu0
    %v7156 = vpop.f32.mrb[0].mxu0
    %v7157 = vadd.f32 %v7069, %v7156
    %v7158 = vpop.f32.mrb[0].mxu0
    %7159 = vmatprep.mubr.bf16.mxu0 0
    %7160 = vmatmul.mubr.bf16.gmra.mrb[0].mxu0 %v6808
    %v7161 = vpop.f32.mrb[0].mxu0
    %v7162 = vadd.f32 %v7069, %v7161
    %v7163 = vpop.f32.mrb[0].mxu0
    %v7164 = vpop.f32.mrb[0].mxu0
    %v7165 = vadd.f32 %v7069, %v7164
    %v7166 = vpop.f32.mrb[0].mxu0
    %7167 = vmatprep.mubr.bf16.mxu0 0
    %7168 = vmatmul.mubr.bf16.gmra.mrb[0].mxu0 %v6811
    %v7169 = vpop.f32.mrb[0].mxu0
    %v7170 = vadd.f32 %v7069, %v7169
    %v7171 = vpop.f32.mrb[0].mxu0
    %v7172 = vpop.f32.mrb[0].mxu0
    %v7173 = vadd.f32 %v7069, %v7172
    %v7174 = vpop.f32.mrb[0].mxu0
    %7175 = vmatprep.mubr.bf16.mxu0 0
    %7176 = vmatmul.mubr.bf16.gmra.mrb[0].mxu0 %v6814
    %v7177 = vpop.f32.mrb[0].mxu0
    %v7178 = vadd.f32 %v7069, %v7177
    %v7179 = vpop.f32.mrb[0].mxu0
    %v7180 = vpop.f32.mrb[0].mxu0
    %v7181 = vadd.f32 %v7069, %v7180
    %v7182 = vpop.f32.mrb[0].mxu0
    %7183 = vmatprep.mubr.bf16.mxu0 0
    %7184 = vmatmul.mubr.bf16.gmra.mrb[0].mxu0 %v6817
    %v7185 = vpop.f32.mrb[0].mxu0
    %v7186 = vadd.f32 %v7069, %v7185
    %v7187 = vpop.f32.mrb[0].mxu0
    %v7188 = vpop.f32.mrb[0].mxu0
    %v7189 = vadd.f32 %v7069, %v7188
    %v7190 = vpop.f32.mrb[0].mxu0
    %7191 = vdwg.mxu0
    %v7192 = vpack.c.bf16 %v6857, %v6854
    %v7193 = vpack.c.bf16 %v6865, %v6862
    %v7194 = vpack.c.bf16 %v6873, %v6870
    %v7195 = vpack.c.bf16 %v6881, %v6878
    %v7196 = vpack.c.bf16 %v6889, %v6886
    %v7197 = vpack.c.bf16 %v6897, %v6894
    %v7198 = vpack.c.bf16 %v6905, %v6902
    %v7199 = vpack.c.bf16 %v6913, %v6910
    %v7200 = vpack.c.bf16 %v6995, %v6992
    %v7201 = vpack.c.bf16 %v7003, %v7000
    %v7202 = vpack.c.bf16 %v7011, %v7008
    %v7203 = vpack.c.bf16 %v7019, %v7016
    %v7204 = vpack.c.bf16 %v7027, %v7024
    %v7205 = vpack.c.bf16 %v7035, %v7032
    %v7206 = vpack.c.bf16 %v7043, %v7040
    %v7207 = vpack.c.bf16 %v7051, %v7048
    %v7208 = vpack.c.bf16 %v7133, %v7130
    %v7209 = vpack.c.bf16 %v7141, %v7138
    %v7210 = vpack.c.bf16 %v7149, %v7146
    %v7211 = vpack.c.bf16 %v7157, %v7154
    %v7212 = vpack.c.bf16 %v7165, %v7162
    %v7213 = vpack.c.bf16 %v7173, %v7170
    %v7214 = vpack.c.bf16 %v7181, %v7178
    %v7215 = vpack.c.bf16 %v7189, %v7186
    %v7217 = vsel %vm714, %v7192, 0
    %v7220 = vsel %vm714, %v7193, 0
    %v7223 = vsel %vm714, %v7194, 0
    %v7226 = vsel %vm714, %v7195, 0
    %v7229 = vsel %vm714, %v7200, 0
    %v7232 = vsel %vm714, %v7201, 0
    %v7235 = vsel %vm714, %v7202, 0
    %v7238 = vsel %vm714, %v7203, 0
    %7240 = vmatprep.subr.bf16.mxu0 0
    %7241 = vmatpush1.bf16.xpose.msra.mxu0 %v7229
    %7242 = vmatprep.subr.bf16.mxu0 0
    %7243 = vmatpush1.bf16.xpose.msra.mxu0 %v7232
    %7244 = vmatprep.subr.bf16.mxu0 0
    %7245 = vmatpush1.bf16.xpose.msra.mxu0 %v7235
    %7246 = vmatprep.subr.bf16.mxu0 0
    %7247 = vmatpush1.bf16.xpose.msra.mxu0 %v7238
    %7248 = vmatprep.subr.bf16.mxu0 0
    %7249 = vmatpush1.bf16.xpose.msra.mxu0 0
    %7250 = vmatprep.subr.bf16.mxu0 0
    %7251 = vmatpush1.bf16.xpose.msra.mxu0 0
    %7252 = vmatprep.subr.bf16.mxu0 0
    %7253 = vmatpush1.bf16.xpose.msra.mxu0 0
    %7254 = vmatprep.subr.bf16.mxu0 0
    %7255 = vmatpush1.bf16.xpose.msra.mxu0 0
    %7256 = vmatprep.subr.bf16.mxu0 0
    %7257 = vmatpush1.bf16.xpose.msra.mxu0 0
    %7258 = vmatprep.subr.bf16.mxu0 0
    %7259 = vmatpush1.bf16.xpose.msra.mxu0 0
    %7260 = vmatprep.subr.bf16.mxu0 0
    %7261 = vmatpush1.bf16.xpose.msra.mxu0 0
    %7262 = vmatprep.subr.bf16.mxu0 0
    %7263 = vmatpush1.bf16.xpose.msra.mxu0 0
    %7264 = vmatprep.subr.bf16.mxu0 0
    %7265 = vmatpush1.bf16.xpose.msra.mxu0 0
    %7266 = vmatprep.subr.bf16.mxu0 0
    %7267 = vmatpush1.bf16.xpose.msra.mxu0 0
    %7268 = vmatprep.subr.bf16.mxu0 0
    %7269 = vmatpush1.bf16.xpose.msra.mxu0 0
    %7270 = vmatprep.subr.bf16.mxu0 0
    %7271 = vmatpush1.bf16.xpose.msra.mxu0 0
    %7272 = vmatprep.mubr.bf16.mxu0 0
    %7273 = vmatmul.mubr.bf16.gmra.mrb[0].mxu0 %v7217
    %v7274 = vpop.f32.mrb[0].mxu0
    %v7275 = vadd.f32 0.0, %v7274
    %v7276 = vpop.f32.mrb[0].mxu0
    %v7277 = vpop.f32.mrb[0].mxu0
    %v7278 = vadd.f32 0.0, %v7277
    %v7279 = vpop.f32.mrb[0].mxu0
    %7280 = vmatprep.mubr.bf16.mxu0 0
    %7281 = vmatmul.mubr.bf16.gmra.mrb[0].mxu0 %v7220
    %v7282 = vpop.f32.mrb[0].mxu0
    %v7283 = vadd.f32 0.0, %v7282
    %v7284 = vpop.f32.mrb[0].mxu0
    %v7285 = vpop.f32.mrb[0].mxu0
    %v7286 = vadd.f32 0.0, %v7285
    %v7287 = vpop.f32.mrb[0].mxu0
    %7288 = vmatprep.mubr.bf16.mxu0 0
    %7289 = vmatmul.mubr.bf16.gmra.mrb[0].mxu0 %v7223
    %v7290 = vpop.f32.mrb[0].mxu0
    %v7291 = vadd.f32 0.0, %v7290
    %v7292 = vpop.f32.mrb[0].mxu0
    %v7293 = vpop.f32.mrb[0].mxu0
    %v7294 = vadd.f32 0.0, %v7293
    %v7295 = vpop.f32.mrb[0].mxu0
    %7296 = vmatprep.mubr.bf16.mxu0 0
    %7297 = vmatmul.mubr.bf16.gmra.mrb[0].mxu0 %v7226
    %v7298 = vpop.f32.mrb[0].mxu0
    %v7299 = vadd.f32 0.0, %v7298
    %v7300 = vpop.f32.mrb[0].mxu0
    %v7301 = vpop.f32.mrb[0].mxu0
    %v7302 = vadd.f32 0.0, %v7301
    %v7303 = vpop.f32.mrb[0].mxu0
    %7304 = vdwg.mxu0
    %v7306 = vsel %vm714, %v7196, 0
    %v7309 = vsel %vm714, %v7197, 0
    %v7312 = vsel %vm714, %v7198, 0
    %v7315 = vsel %vm714, %v7199, 0
    %v7318 = vsel %vm714, %v7204, 0
    %v7321 = vsel %vm714, %v7205, 0
    %v7324 = vsel %vm714, %v7206, 0
    %v7327 = vsel %vm714, %v7207, 0
    %7329 = vmatprep.subr.bf16.mxu0 0
    %7330 = vmatpush1.bf16.xpose.msra.mxu0 %v7318
    %7331 = vmatprep.subr.bf16.mxu0 0
    %7332 = vmatpush1.bf16.xpose.msra.mxu0 %v7321
    %7333 = vmatprep.subr.bf16.mxu0 0
    %7334 = vmatpush1.bf16.xpose.msra.mxu0 %v7324
    %7335 = vmatprep.subr.bf16.mxu0 0
    %7336 = vmatpush1.bf16.xpose.msra.mxu0 %v7327
    %7337 = vmatprep.subr.bf16.mxu0 0
    %7338 = vmatpush1.bf16.xpose.msra.mxu0 0
    %7339 = vmatprep.subr.bf16.mxu0 0
    %7340 = vmatpush1.bf16.xpose.msra.mxu0 0
    %7341 = vmatprep.subr.bf16.mxu0 0
    %7342 = vmatpush1.bf16.xpose.msra.mxu0 0
    %7343 = vmatprep.subr.bf16.mxu0 0
    %7344 = vmatpush1.bf16.xpose.msra.mxu0 0
    %7345 = vmatprep.subr.bf16.mxu0 0
    %7346 = vmatpush1.bf16.xpose.msra.mxu0 0
    %7347 = vmatprep.subr.bf16.mxu0 0
    %7348 = vmatpush1.bf16.xpose.msra.mxu0 0
    %7349 = vmatprep.subr.bf16.mxu0 0
    %7350 = vmatpush1.bf16.xpose.msra.mxu0 0
    %7351 = vmatprep.subr.bf16.mxu0 0
    %7352 = vmatpush1.bf16.xpose.msra.mxu0 0
    %7353 = vmatprep.subr.bf16.mxu0 0
    %7354 = vmatpush1.bf16.xpose.msra.mxu0 0
    %7355 = vmatprep.subr.bf16.mxu0 0
    %7356 = vmatpush1.bf16.xpose.msra.mxu0 0
    %7357 = vmatprep.subr.bf16.mxu0 0
    %7358 = vmatpush1.bf16.xpose.msra.mxu0 0
    %7359 = vmatprep.subr.bf16.mxu0 0
    %7360 = vmatpush1.bf16.xpose.msra.mxu0 0
    %7361 = vmatprep.mubr.bf16.mxu0 0
    %7362 = vmatmul.mubr.bf16.gmra.mrb[0].mxu0 %v7306
    %v7363 = vpop.f32.mrb[0].mxu0
    %v7364 = vadd.f32 0.0, %v7363
    %v7365 = vpop.f32.mrb[0].mxu0
    %v7366 = vpop.f32.mrb[0].mxu0
    %v7367 = vadd.f32 0.0, %v7366
    %v7368 = vpop.f32.mrb[0].mxu0
    %7369 = vmatprep.mubr.bf16.mxu0 0
    %7370 = vmatmul.mubr.bf16.gmra.mrb[0].mxu0 %v7309
    %v7371 = vpop.f32.mrb[0].mxu0
    %v7372 = vadd.f32 0.0, %v7371
    %v7373 = vpop.f32.mrb[0].mxu0
    %v7374 = vpop.f32.mrb[0].mxu0
    %v7375 = vadd.f32 0.0, %v7374
    %v7376 = vpop.f32.mrb[0].mxu0
    %7377 = vmatprep.mubr.bf16.mxu0 0
    %7378 = vmatmul.mubr.bf16.gmra.mrb[0].mxu0 %v7312
    %v7379 = vpop.f32.mrb[0].mxu0
    %v7380 = vadd.f32 0.0, %v7379
    %v7381 = vpop.f32.mrb[0].mxu0
    %v7382 = vpop.f32.mrb[0].mxu0
    %v7383 = vadd.f32 0.0, %v7382
    %v7384 = vpop.f32.mrb[0].mxu0
    %7385 = vmatprep.mubr.bf16.mxu0 0
    %7386 = vmatmul.mubr.bf16.gmra.mrb[0].mxu0 %v7315
    %v7387 = vpop.f32.mrb[0].mxu0
    %v7388 = vadd.f32 0.0, %v7387
    %v7389 = vpop.f32.mrb[0].mxu0
    %v7390 = vpop.f32.mrb[0].mxu0
    %v7391 = vadd.f32 0.0, %v7390
    %v7392 = vpop.f32.mrb[0].mxu0
    %7393 = vdwg.mxu0
    %v7394 = vmul.f32 %v7275, 0.17677669
    %v7395 = vmul.f32 %v7278, 0.17677669
    %v7396 = vmul.f32 %v7283, 0.17677669
    %v7397 = vmul.f32 %v7286, 0.17677669
    %v7398 = vmul.f32 %v7291, 0.17677669
    %v7399 = vmul.f32 %v7294, 0.17677669
    %v7400 = vmul.f32 %v7299, 0.17677669
    %v7401 = vmul.f32 %v7302, 0.17677669
    %v7402 = vmul.f32 %v7364, 0.17677669
    %v7403 = vmul.f32 %v7367, 0.17677669
    %v7404 = vmul.f32 %v7372, 0.17677669
    %v7405 = vmul.f32 %v7375, 0.17677669
    %v7406 = vmul.f32 %v7380, 0.17677669
    %v7407 = vmul.f32 %v7383, 0.17677669
    %v7408 = vmul.f32 %v7388, 0.17677669
    %v7409 = vmul.f32 %v7391, 0.17677669
    %v7410 = vsel %vm296, %v7394, -inf
    %7411 = vmax.xlane.f32.xlu0 %v7410
    %v7412 = vpop.xlane.xlu0 %7411
    %v7413 = vsel %vm296, %v7395, -inf
    %7414 = vmax.xlane.f32.xlu0 %v7413
    %v7415 = vpop.xlane.xlu0 %7414
    %v7416 = vsel %vm296, %v7396, -inf
    %7417 = vmax.xlane.f32.xlu0 %v7416
    %v7418 = vpop.xlane.xlu0 %7417
    %v7419 = vsel %vm296, %v7397, -inf
    %7420 = vmax.xlane.f32.xlu0 %v7419
    %v7421 = vpop.xlane.xlu0 %7420
    %v7422 = vsel %vm296, %v7398, -inf
    %7423 = vmax.xlane.f32.xlu0 %v7422
    %v7424 = vpop.xlane.xlu0 %7423
    %v7425 = vsel %vm296, %v7399, -inf
    %7426 = vmax.xlane.f32.xlu0 %v7425
    %v7427 = vpop.xlane.xlu0 %7426
    %v7428 = vsel %vm296, %v7400, -inf
    %7429 = vmax.xlane.f32.xlu0 %v7428
    %v7430 = vpop.xlane.xlu0 %7429
    %v7431 = vsel %vm296, %v7401, -inf
    %7432 = vmax.xlane.f32.xlu0 %v7431
    %v7433 = vpop.xlane.xlu0 %7432
    %v7434 = vsel %vm296, %v7402, -inf
    %7435 = vmax.xlane.f32.xlu0 %v7434
    %v7436 = vpop.xlane.xlu0 %7435
    %v7437 = vsel %vm296, %v7403, -inf
    %7438 = vmax.xlane.f32.xlu0 %v7437
    %v7439 = vpop.xlane.xlu0 %7438
    %v7440 = vsel %vm296, %v7404, -inf
    %7441 = vmax.xlane.f32.xlu0 %v7440
    %v7442 = vpop.xlane.xlu0 %7441
    %v7443 = vsel %vm296, %v7405, -inf
    %7444 = vmax.xlane.f32.xlu0 %v7443
    %v7445 = vpop.xlane.xlu0 %7444
    %v7446 = vsel %vm296, %v7406, -inf
    %7447 = vmax.xlane.f32.xlu0 %v7446
    %v7448 = vpop.xlane.xlu0 %7447
    %v7449 = vsel %vm296, %v7407, -inf
    %7450 = vmax.xlane.f32.xlu0 %v7449
    %v7451 = vpop.xlane.xlu0 %7450
    %v7452 = vsel %vm296, %v7408, -inf
    %7453 = vmax.xlane.f32.xlu0 %v7452
    %v7454 = vpop.xlane.xlu0 %7453
    %v7455 = vsel %vm296, %v7409, -inf
    %7456 = vmax.xlane.f32.xlu0 %v7455
    %v7457 = vpop.xlane.xlu0 %7456
    %v7458 = vsub.f32 %v7394, %v7412
    %v7459 = vsub.f32 %v7395, %v7415
    %v7460 = vsub.f32 %v7396, %v7418
    %v7461 = vsub.f32 %v7397, %v7421
    %v7462 = vsub.f32 %v7398, %v7424
    %v7463 = vsub.f32 %v7399, %v7427
    %v7464 = vsub.f32 %v7400, %v7430
    %v7465 = vsub.f32 %v7401, %v7433
    %v7466 = vsub.f32 %v7402, %v7436
    %v7467 = vsub.f32 %v7403, %v7439
    %v7468 = vsub.f32 %v7404, %v7442
    %v7469 = vsub.f32 %v7405, %v7445
    %v7470 = vsub.f32 %v7406, %v7448
    %v7471 = vsub.f32 %v7407, %v7451
    %v7472 = vsub.f32 %v7408, %v7454
    %v7473 = vsub.f32 %v7409, %v7457
    %v7474 = vmul.f32 %v7458, 1.442695
    %v7475 = vpow.pop %v7474
    %v7476 = vmul.f32 %v7459, 1.442695
    %v7477 = vpow.pop %v7476
    %v7478 = vmul.f32 %v7460, 1.442695
    %v7479 = vpow.pop %v7478
    %v7480 = vmul.f32 %v7461, 1.442695
    %v7481 = vpow.pop %v7480
    %v7482 = vmul.f32 %v7462, 1.442695
    %v7483 = vpow.pop %v7482
    %v7484 = vmul.f32 %v7463, 1.442695
    %v7485 = vpow.pop %v7484
    %v7486 = vmul.f32 %v7464, 1.442695
    %v7487 = vpow.pop %v7486
    %v7488 = vmul.f32 %v7465, 1.442695
    %v7489 = vpow.pop %v7488
    %v7490 = vmul.f32 %v7466, 1.442695
    %v7491 = vpow.pop %v7490
    %v7492 = vmul.f32 %v7467, 1.442695
    %v7493 = vpow.pop %v7492
    %v7494 = vmul.f32 %v7468, 1.442695
    %v7495 = vpow.pop %v7494
    %v7496 = vmul.f32 %v7469, 1.442695
    %v7497 = vpow.pop %v7496
    %v7498 = vmul.f32 %v7470, 1.442695
    %v7499 = vpow.pop %v7498
    %v7500 = vmul.f32 %v7471, 1.442695
    %v7501 = vpow.pop %v7500
    %v7502 = vmul.f32 %v7472, 1.442695
    %v7503 = vpow.pop %v7502
    %v7504 = vmul.f32 %v7473, 1.442695
    %v7505 = vpow.pop %v7504
    %v7506 = vsel %vm296, %v7475, 0.0
    %7507 = vadd.xlane.f32.xlu0 %v7506
    %v7508 = vpop.xlane.xlu0 %7507
    %v7509 = vsel %vm296, %v7477, 0.0
    %7510 = vadd.xlane.f32.xlu0 %v7509
    %v7511 = vpop.xlane.xlu0 %7510
    %v7512 = vsel %vm296, %v7479, 0.0
    %7513 = vadd.xlane.f32.xlu0 %v7512
    %v7514 = vpop.xlane.xlu0 %7513
    %v7515 = vsel %vm296, %v7481, 0.0
    %7516 = vadd.xlane.f32.xlu0 %v7515
    %v7517 = vpop.xlane.xlu0 %7516
    %v7518 = vsel %vm296, %v7483, 0.0
    %7519 = vadd.xlane.f32.xlu0 %v7518
    %v7520 = vpop.xlane.xlu0 %7519
    %v7521 = vsel %vm296, %v7485, 0.0
    %7522 = vadd.xlane.f32.xlu0 %v7521
    %v7523 = vpop.xlane.xlu0 %7522
    %v7524 = vsel %vm296, %v7487, 0.0
    %7525 = vadd.xlane.f32.xlu0 %v7524
    %v7526 = vpop.xlane.xlu0 %7525
    %v7527 = vsel %vm296, %v7489, 0.0
    %7528 = vadd.xlane.f32.xlu0 %v7527
    %v7529 = vpop.xlane.xlu0 %7528
    %v7530 = vsel %vm296, %v7491, 0.0
    %7531 = vadd.xlane.f32.xlu0 %v7530
    %v7532 = vpop.xlane.xlu0 %7531
    %v7533 = vsel %vm296, %v7493, 0.0
    %7534 = vadd.xlane.f32.xlu0 %v7533
    %v7535 = vpop.xlane.xlu0 %7534
    %v7536 = vsel %vm296, %v7495, 0.0
    %7537 = vadd.xlane.f32.xlu0 %v7536
    %v7538 = vpop.xlane.xlu0 %7537
    %v7539 = vsel %vm296, %v7497, 0.0
    %7540 = vadd.xlane.f32.xlu0 %v7539
    %v7541 = vpop.xlane.xlu0 %7540
    %v7542 = vsel %vm296, %v7499, 0.0
    %7543 = vadd.xlane.f32.xlu0 %v7542
    %v7544 = vpop.xlane.xlu0 %7543
    %v7545 = vsel %vm296, %v7501, 0.0
    %7546 = vadd.xlane.f32.xlu0 %v7545
    %v7547 = vpop.xlane.xlu0 %7546
    %v7548 = vsel %vm296, %v7503, 0.0
    %7549 = vadd.xlane.f32.xlu0 %v7548
    %v7550 = vpop.xlane.xlu0 %7549
    %v7551 = vsel %vm296, %v7505, 0.0
    %7552 = vadd.xlane.f32.xlu0 %v7551
    %v7553 = vpop.xlane.xlu0 %7552
    %v7554 = vrcp.pop %v7508
    %v7555 = vrcp.pop %v7511
    %v7556 = vrcp.pop %v7514
    %v7557 = vrcp.pop %v7517
    %v7558 = vrcp.pop %v7520
    %v7559 = vrcp.pop %v7523
    %v7560 = vrcp.pop %v7526
    %v7561 = vrcp.pop %v7529
    %v7562 = vrcp.pop %v7532
    %v7563 = vrcp.pop %v7535
    %v7564 = vrcp.pop %v7538
    %v7565 = vrcp.pop %v7541
    %v7566 = vrcp.pop %v7544
    %v7567 = vrcp.pop %v7547
    %v7568 = vrcp.pop %v7550
    %v7569 = vrcp.pop %v7553
    %v7570 = vmul.f32 %v7475, %v7554
    %v7571 = vmul.f32 %v7477, %v7555
    %v7572 = vmul.f32 %v7479, %v7556
    %v7573 = vmul.f32 %v7481, %v7557
    %v7574 = vmul.f32 %v7483, %v7558
    %v7575 = vmul.f32 %v7485, %v7559
    %v7576 = vmul.f32 %v7487, %v7560
    %v7577 = vmul.f32 %v7489, %v7561
    %v7578 = vmul.f32 %v7491, %v7562
    %v7579 = vmul.f32 %v7493, %v7563
    %v7580 = vmul.f32 %v7495, %v7564
    %v7581 = vmul.f32 %v7497, %v7565
    %v7582 = vmul.f32 %v7499, %v7566
    %v7583 = vmul.f32 %v7501, %v7567
    %v7584 = vmul.f32 %v7503, %v7568
    %v7585 = vmul.f32 %v7505, %v7569
    %v7586 = vpack.c.bf16 %v7571, %v7570
    %v7587 = vpack.c.bf16 %v7573, %v7572
    %v7588 = vpack.c.bf16 %v7575, %v7574
    %v7589 = vpack.c.bf16 %v7577, %v7576
    %v7590 = vpack.c.bf16 %v7579, %v7578
    %v7591 = vpack.c.bf16 %v7581, %v7580
    %v7592 = vpack.c.bf16 %v7583, %v7582
    %v7593 = vpack.c.bf16 %v7585, %v7584
    %v7595 = vsel %vm296, %v7586, 0
    %v7598 = vsel %vm296, %v7587, 0
    %v7601 = vsel %vm296, %v7588, 0
    %v7604 = vsel %vm296, %v7589, 0
    %7606 = vmatprep.subr.bf16.mxu0 0
    %7607 = vmatpush1.bf16.msra.mxu0 %v7208
    %7608 = vmatprep.subr.bf16.mxu0 0
    %7609 = vmatpush1.bf16.msra.mxu0 %v7209
    %7610 = vmatprep.subr.bf16.mxu0 0
    %7611 = vmatpush1.bf16.msra.mxu0 %v7210
    %7612 = vmatprep.subr.bf16.mxu0 0
    %7613 = vmatpush1.bf16.msra.mxu0 %v7211
    %7614 = vmatprep.subr.bf16.mxu0 0
    %7615 = vmatpush1.bf16.msra.mxu0 0
    %7616 = vmatprep.subr.bf16.mxu0 0
    %7617 = vmatpush1.bf16.msra.mxu0 0
    %7618 = vmatprep.subr.bf16.mxu0 0
    %7619 = vmatpush1.bf16.msra.mxu0 0
    %7620 = vmatprep.subr.bf16.mxu0 0
    %7621 = vmatpush1.bf16.msra.mxu0 0
    %7622 = vmatprep.subr.bf16.mxu0 0
    %7623 = vmatpush1.bf16.msra.mxu0 0
    %7624 = vmatprep.subr.bf16.mxu0 0
    %7625 = vmatpush1.bf16.msra.mxu0 0
    %7626 = vmatprep.subr.bf16.mxu0 0
    %7627 = vmatpush1.bf16.msra.mxu0 0
    %7628 = vmatprep.subr.bf16.mxu0 0
    %7629 = vmatpush1.bf16.msra.mxu0 0
    %7630 = vmatprep.subr.bf16.mxu0 0
    %7631 = vmatpush1.bf16.msra.mxu0 0
    %7632 = vmatprep.subr.bf16.mxu0 0
    %7633 = vmatpush1.bf16.msra.mxu0 0
    %7634 = vmatprep.subr.bf16.mxu0 0
    %7635 = vmatpush1.bf16.msra.mxu0 0
    %7636 = vmatprep.subr.bf16.mxu0 0
    %7637 = vmatpush1.bf16.msra.mxu0 0
    %7638 = vmatprep.mubr.bf16.mxu0 0
    %7639 = vmatmul.mubr.bf16.gmra.mrb[0].mxu0 %v7595
    %v7640 = vpop.f32.mrb[0].mxu0
    %v7641 = vadd.f32 0.0, %v7640
    %v7642 = vpop.f32.mrb[0].mxu0
    %v7643 = vpop.f32.mrb[0].mxu0
    %v7644 = vadd.f32 0.0, %v7643
    %v7645 = vpop.f32.mrb[0].mxu0
    %7646 = vmatprep.mubr.bf16.mxu0 0
    %7647 = vmatmul.mubr.bf16.gmra.mrb[0].mxu0 %v7598
    %v7648 = vpop.f32.mrb[0].mxu0
    %v7649 = vadd.f32 0.0, %v7648
    %v7650 = vpop.f32.mrb[0].mxu0
    %v7651 = vpop.f32.mrb[0].mxu0
    %v7652 = vadd.f32 0.0, %v7651
    %v7653 = vpop.f32.mrb[0].mxu0
    %7654 = vmatprep.mubr.bf16.mxu0 0
    %7655 = vmatmul.mubr.bf16.gmra.mrb[0].mxu0 %v7601
    %v7656 = vpop.f32.mrb[0].mxu0
    %v7657 = vadd.f32 0.0, %v7656
    %v7658 = vpop.f32.mrb[0].mxu0
    %v7659 = vpop.f32.mrb[0].mxu0
    %v7660 = vadd.f32 0.0, %v7659
    %v7661 = vpop.f32.mrb[0].mxu0
    %7662 = vmatprep.mubr.bf16.mxu0 0
    %7663 = vmatmul.mubr.bf16.gmra.mrb[0].mxu0 %v7604
    %v7664 = vpop.f32.mrb[0].mxu0
    %v7665 = vadd.f32 0.0, %v7664
    %v7666 = vpop.f32.mrb[0].mxu0
    %v7667 = vpop.f32.mrb[0].mxu0
    %v7668 = vadd.f32 0.0, %v7667
    %v7669 = vpop.f32.mrb[0].mxu0
    %7670 = vdwg.mxu0
    %v7672 = vsel %vm296, %v7590, 0
    %v7675 = vsel %vm296, %v7591, 0
    %v7678 = vsel %vm296, %v7592, 0
    %v7681 = vsel %vm296, %v7593, 0
    %7683 = vmatprep.subr.bf16.mxu0 0
    %7684 = vmatpush1.bf16.msra.mxu0 %v7212
    %7685 = vmatprep.subr.bf16.mxu0 0
    %7686 = vmatpush1.bf16.msra.mxu0 %v7213
    %7687 = vmatprep.subr.bf16.mxu0 0
    %7688 = vmatpush1.bf16.msra.mxu0 %v7214
    %7689 = vmatprep.subr.bf16.mxu0 0
    %7690 = vmatpush1.bf16.msra.mxu0 %v7215
    %7691 = vmatprep.subr.bf16.mxu0 0
    %7692 = vmatpush1.bf16.msra.mxu0 0
    %7693 = vmatprep.subr.bf16.mxu0 0
    %7694 = vmatpush1.bf16.msra.mxu0 0
    %7695 = vmatprep.subr.bf16.mxu0 0
    %7696 = vmatpush1.bf16.msra.mxu0 0
    %7697 = vmatprep.subr.bf16.mxu0 0
    %7698 = vmatpush1.bf16.msra.mxu0 0
    %7699 = vmatprep.subr.bf16.mxu0 0
    %7700 = vmatpush1.bf16.msra.mxu0 0
    %7701 = vmatprep.subr.bf16.mxu0 0
    %7702 = vmatpush1.bf16.msra.mxu0 0
    %7703 = vmatprep.subr.bf16.mxu0 0
    %7704 = vmatpush1.bf16.msra.mxu0 0
    %7705 = vmatprep.subr.bf16.mxu0 0
    %7706 = vmatpush1.bf16.msra.mxu0 0
    %7707 = vmatprep.subr.bf16.mxu0 0
    %7708 = vmatpush1.bf16.msra.mxu0 0
    %7709 = vmatprep.subr.bf16.mxu0 0
    %7710 = vmatpush1.bf16.msra.mxu0 0
    %7711 = vmatprep.subr.bf16.mxu0 0
    %7712 = vmatpush1.bf16.msra.mxu0 0
    %7713 = vmatprep.subr.bf16.mxu0 0
    %7714 = vmatpush1.bf16.msra.mxu0 0
    %7715 = vmatprep.mubr.bf16.mxu0 0
    %7716 = vmatmul.mubr.bf16.gmra.mrb[0].mxu0 %v7672
    %v7717 = vpop.f32.mrb[0].mxu0
    %v7718 = vadd.f32 0.0, %v7717
    %v7719 = vpop.f32.mrb[0].mxu0
    %v7720 = vpop.f32.mrb[0].mxu0
    %v7721 = vadd.f32 0.0, %v7720
    %v7722 = vpop.f32.mrb[0].mxu0
    %7723 = vmatprep.mubr.bf16.mxu0 0
    %7724 = vmatmul.mubr.bf16.gmra.mrb[0].mxu0 %v7675
    %v7725 = vpop.f32.mrb[0].mxu0
    %v7726 = vadd.f32 0.0, %v7725
    %v7727 = vpop.f32.mrb[0].mxu0
    %v7728 = vpop.f32.mrb[0].mxu0
    %v7729 = vadd.f32 0.0, %v7728
    %v7730 = vpop.f32.mrb[0].mxu0
    %7731 = vmatprep.mubr.bf16.mxu0 0
    %7732 = vmatmul.mubr.bf16.gmra.mrb[0].mxu0 %v7678
    %v7733 = vpop.f32.mrb[0].mxu0
    %v7734 = vadd.f32 0.0, %v7733
    %v7735 = vpop.f32.mrb[0].mxu0
    %v7736 = vpop.f32.mrb[0].mxu0
    %v7737 = vadd.f32 0.0, %v7736
    %v7738 = vpop.f32.mrb[0].mxu0
    %7739 = vmatprep.mubr.bf16.mxu0 0
    %7740 = vmatmul.mubr.bf16.gmra.mrb[0].mxu0 %v7681
    %v7741 = vpop.f32.mrb[0].mxu0
    %v7742 = vadd.f32 0.0, %v7741
    %v7743 = vpop.f32.mrb[0].mxu0
    %v7744 = vpop.f32.mrb[0].mxu0
    %v7745 = vadd.f32 0.0, %v7744
    %v7746 = vpop.f32.mrb[0].mxu0
    %7747 = vdwg.mxu0
    %s7748 = scalar_lea.vmem [#allocation6], 160
    %v7749 = vld [vmem:[%s7748] sm:$0xf]
    %v7750 = vld [vmem:[%s7748 + $0x4] sm:$0xf]
    %v7751 = vld [vmem:[%s7748 + $0x8] sm:$0xf]
    %v7752 = vld [vmem:[%s7748 + $0xc] sm:$0xf]
    %v7753 = vld [vmem:[%s7748 + $0x10] sm:$0xf]
    %v7754 = vld [vmem:[%s7748 + $0x14] sm:$0xf]
    %v7755 = vld [vmem:[%s7748 + $0x18] sm:$0xf]
    %v7756 = vld [vmem:[%s7748 + $0x1c] sm:$0xf]
    %s7757 = scalar_lea.vmem %s5, 5
    %v7758 = vld [vmem:[%s7757] sm:$0x1]
    %v7760 = vlaneseq
    %v7761 = vshrl.u32 %v7760, 7
    %v7762 = vsub.s32 0, %v7761
    %v7763 = vrot.slane %v7758, %v7762
    %v7773 = vunpack.c.l.b16 %v7749
    %v7774 = vunpack.c.l.b16 %v7750
    %v7775 = vunpack.c.l.b16 %v7751
    %v7776 = vunpack.c.l.b16 %v7752
    %v7777 = vunpack.c.l.b16 %v7753
    %v7778 = vunpack.c.l.b16 %v7754
    %v7779 = vunpack.c.l.b16 %v7755
    %v7780 = vunpack.c.l.b16 %v7756
    %v7781 = vpack.c.b16 %v7774, %v7773
    %v7782 = vpack.c.b16 %v7776, %v7775
    %v7783 = vpack.c.b16 %v7778, %v7777
    %v7784 = vpack.c.b16 %v7780, %v7779
    %7789 = vmatprep.subr.bf16.mxu0 0
    %7790 = vmatpush1.bf16.msra.mxu0 %v7781
    %7791 = vmatprep.subr.bf16.mxu0 0
    %7792 = vmatpush1.bf16.msra.mxu0 %v7782
    %7793 = vmatprep.subr.bf16.mxu0 0
    %7794 = vmatpush1.bf16.msra.mxu0 %v7783
    %7795 = vmatprep.subr.bf16.mxu0 0
    %7796 = vmatpush1.bf16.msra.mxu0 %v7784
    %7797 = vmatprep.subr.bf16.mxu0 0
    %7798 = vmatpush1.bf16.msra.mxu0 0
    %7799 = vmatprep.subr.bf16.mxu0 0
    %7800 = vmatpush1.bf16.msra.mxu0 0
    %7801 = vmatprep.subr.bf16.mxu0 0
    %7802 = vmatpush1.bf16.msra.mxu0 0
    %7803 = vmatprep.subr.bf16.mxu0 0
    %7804 = vmatpush1.bf16.msra.mxu0 0
    %7805 = vmatprep.subr.bf16.mxu0 0
    %7806 = vmatpush1.bf16.msra.mxu0 0
    %7807 = vmatprep.subr.bf16.mxu0 0
    %7808 = vmatpush1.bf16.msra.mxu0 0
    %7809 = vmatprep.subr.bf16.mxu0 0
    %7810 = vmatpush1.bf16.msra.mxu0 0
    %7811 = vmatprep.subr.bf16.mxu0 0
    %7812 = vmatpush1.bf16.msra.mxu0 0
    %7813 = vmatprep.subr.bf16.mxu0 0
    %7814 = vmatpush1.bf16.msra.mxu0 0
    %7815 = vmatprep.subr.bf16.mxu0 0
    %7816 = vmatpush1.bf16.msra.mxu0 0
    %7817 = vmatprep.subr.bf16.mxu0 0
    %7818 = vmatpush1.bf16.msra.mxu0 0
    %7819 = vmatprep.subr.bf16.mxu0 0
    %7820 = vmatpush1.bf16.msra.mxu0 0
    %7821 = vmatprep.mubr.bf16.mxu0 0
    %7822 = vmatmul.mubr.bf16.gmra.mrb[0].mxu0 %v6796
    %v7823 = vpop.f32.mrb[0].mxu0
    %v7824 = vadd.f32 %v7763, %v7823
    %v7825 = vpop.f32.mrb[0].mxu0
    %v7826 = vpop.f32.mrb[0].mxu0
    %v7827 = vadd.f32 %v7763, %v7826
    %v7828 = vpop.f32.mrb[0].mxu0
    %7829 = vmatprep.mubr.bf16.mxu0 0
    %7830 = vmatmul.mubr.bf16.gmra.mrb[0].mxu0 %v6799
    %v7831 = vpop.f32.mrb[0].mxu0
    %v7832 = vadd.f32 %v7763, %v7831
    %v7833 = vpop.f32.mrb[0].mxu0
    %v7834 = vpop.f32.mrb[0].mxu0
    %v7835 = vadd.f32 %v7763, %v7834
    %v7836 = vpop.f32.mrb[0].mxu0
    %7837 = vmatprep.mubr.bf16.mxu0 0
    %7838 = vmatmul.mubr.bf16.gmra.mrb[0].mxu0 %v6802
    %v7839 = vpop.f32.mrb[0].mxu0
    %v7840 = vadd.f32 %v7763, %v7839
    %v7841 = vpop.f32.mrb[0].mxu0
    %v7842 = vpop.f32.mrb[0].mxu0
    %v7843 = vadd.f32 %v7763, %v7842
    %v7844 = vpop.f32.mrb[0].mxu0
    %7845 = vmatprep.mubr.bf16.mxu0 0
    %7846 = vmatmul.mubr.bf16.gmra.mrb[0].mxu0 %v6805
    %v7847 = vpop.f32.mrb[0].mxu0
    %v7848 = vadd.f32 %v7763, %v7847
    %v7849 = vpop.f32.mrb[0].mxu0
    %v7850 = vpop.f32.mrb[0].mxu0
    %v7851 = vadd.f32 %v7763, %v7850
    %v7852 = vpop.f32.mrb[0].mxu0
    %7853 = vmatprep.mubr.bf16.mxu0 0
    %7854 = vmatmul.mubr.bf16.gmra.mrb[0].mxu0 %v6808
    %v7855 = vpop.f32.mrb[0].mxu0
    %v7856 = vadd.f32 %v7763, %v7855
    %v7857 = vpop.f32.mrb[0].mxu0
    %v7858 = vpop.f32.mrb[0].mxu0
    %v7859 = vadd.f32 %v7763, %v7858
    %v7860 = vpop.f32.mrb[0].mxu0
    %7861 = vmatprep.mubr.bf16.mxu0 0
    %7862 = vmatmul.mubr.bf16.gmra.mrb[0].mxu0 %v6811
    %v7863 = vpop.f32.mrb[0].mxu0
    %v7864 = vadd.f32 %v7763, %v7863
    %v7865 = vpop.f32.mrb[0].mxu0
    %v7866 = vpop.f32.mrb[0].mxu0
    %v7867 = vadd.f32 %v7763, %v7866
    %v7868 = vpop.f32.mrb[0].mxu0
    %7869 = vmatprep.mubr.bf16.mxu0 0
    %7870 = vmatmul.mubr.bf16.gmra.mrb[0].mxu0 %v6814
    %v7871 = vpop.f32.mrb[0].mxu0
    %v7872 = vadd.f32 %v7763, %v7871
    %v7873 = vpop.f32.mrb[0].mxu0
    %v7874 = vpop.f32.mrb[0].mxu0
    %v7875 = vadd.f32 %v7763, %v7874
    %v7876 = vpop.f32.mrb[0].mxu0
    %7877 = vmatprep.mubr.bf16.mxu0 0
    %7878 = vmatmul.mubr.bf16.gmra.mrb[0].mxu0 %v6817
    %v7879 = vpop.f32.mrb[0].mxu0
    %v7880 = vadd.f32 %v7763, %v7879
    %v7881 = vpop.f32.mrb[0].mxu0
    %v7882 = vpop.f32.mrb[0].mxu0
    %v7883 = vadd.f32 %v7763, %v7882
    %v7884 = vpop.f32.mrb[0].mxu0
    %7885 = vdwg.mxu0
    %s7886 = scalar_lea.vmem [#allocation7], 160
    %v7887 = vld [vmem:[%s7886] sm:$0xf]
    %v7888 = vld [vmem:[%s7886 + $0x4] sm:$0xf]
    %v7889 = vld [vmem:[%s7886 + $0x8] sm:$0xf]
    %v7890 = vld [vmem:[%s7886 + $0xc] sm:$0xf]
    %v7891 = vld [vmem:[%s7886 + $0x10] sm:$0xf]
    %v7892 = vld [vmem:[%s7886 + $0x14] sm:$0xf]
    %v7893 = vld [vmem:[%s7886 + $0x18] sm:$0xf]
    %v7894 = vld [vmem:[%s7886 + $0x1c] sm:$0xf]
    %s7895 = scalar_lea.vmem %s6, 5
    %v7896 = vld [vmem:[%s7895] sm:$0x1]
    %v7898 = vlaneseq
    %v7899 = vshrl.u32 %v7898, 7
    %v7900 = vsub.s32 0, %v7899
    %v7901 = vrot.slane %v7896, %v7900
    %v7911 = vunpack.c.l.b16 %v7887
    %v7912 = vunpack.c.l.b16 %v7888
    %v7913 = vunpack.c.l.b16 %v7889
    %v7914 = vunpack.c.l.b16 %v7890
    %v7915 = vunpack.c.l.b16 %v7891
    %v7916 = vunpack.c.l.b16 %v7892
    %v7917 = vunpack.c.l.b16 %v7893
    %v7918 = vunpack.c.l.b16 %v7894
    %v7919 = vpack.c.b16 %v7912, %v7911
    %v7920 = vpack.c.b16 %v7914, %v7913
    %v7921 = vpack.c.b16 %v7916, %v7915
    %v7922 = vpack.c.b16 %v7918, %v7917
    %7927 = vmatprep.subr.bf16.mxu0 0
    %7928 = vmatpush1.bf16.msra.mxu0 %v7919
    %7929 = vmatprep.subr.bf16.mxu0 0
    %7930 = vmatpush1.bf16.msra.mxu0 %v7920
    %7931 = vmatprep.subr.bf16.mxu0 0
    %7932 = vmatpush1.bf16.msra.mxu0 %v7921
    %7933 = vmatprep.subr.bf16.mxu0 0
    %7934 = vmatpush1.bf16.msra.mxu0 %v7922
    %7935 = vmatprep.subr.bf16.mxu0 0
    %7936 = vmatpush1.bf16.msra.mxu0 0
    %7937 = vmatprep.subr.bf16.mxu0 0
    %7938 = vmatpush1.bf16.msra.mxu0 0
    %7939 = vmatprep.subr.bf16.mxu0 0
    %7940 = vmatpush1.bf16.msra.mxu0 0
    %7941 = vmatprep.subr.bf16.mxu0 0
    %7942 = vmatpush1.bf16.msra.mxu0 0
    %7943 = vmatprep.subr.bf16.mxu0 0
    %7944 = vmatpush1.bf16.msra.mxu0 0
    %7945 = vmatprep.subr.bf16.mxu0 0
    %7946 = vmatpush1.bf16.msra.mxu0 0
    %7947 = vmatprep.subr.bf16.mxu0 0
    %7948 = vmatpush1.bf16.msra.mxu0 0
    %7949 = vmatprep.subr.bf16.mxu0 0
    %7950 = vmatpush1.bf16.msra.mxu0 0
    %7951 = vmatprep.subr.bf16.mxu0 0
    %7952 = vmatpush1.bf16.msra.mxu0 0
    %7953 = vmatprep.subr.bf16.mxu0 0
    %7954 = vmatpush1.bf16.msra.mxu0 0
    %7955 = vmatprep.subr.bf16.mxu0 0
    %7956 = vmatpush1.bf16.msra.mxu0 0
    %7957 = vmatprep.subr.bf16.mxu0 0
    %7958 = vmatpush1.bf16.msra.mxu0 0
    %7959 = vmatprep.mubr.bf16.mxu0 0
    %7960 = vmatmul.mubr.bf16.gmra.mrb[0].mxu0 %v6796
    %v7961 = vpop.f32.mrb[0].mxu0
    %v7962 = vadd.f32 %v7901, %v7961
    %v7963 = vpop.f32.mrb[0].mxu0
    %v7964 = vpop.f32.mrb[0].mxu0
    %v7965 = vadd.f32 %v7901, %v7964
    %v7966 = vpop.f32.mrb[0].mxu0
    %7967 = vmatprep.mubr.bf16.mxu0 0
    %7968 = vmatmul.mubr.bf16.gmra.mrb[0].mxu0 %v6799
    %v7969 = vpop.f32.mrb[0].mxu0
    %v7970 = vadd.f32 %v7901, %v7969
    %v7971 = vpop.f32.mrb[0].mxu0
    %v7972 = vpop.f32.mrb[0].mxu0
    %v7973 = vadd.f32 %v7901, %v7972
    %v7974 = vpop.f32.mrb[0].mxu0
    %7975 = vmatprep.mubr.bf16.mxu0 0
    %7976 = vmatmul.mubr.bf16.gmra.mrb[0].mxu0 %v6802
    %v7977 = vpop.f32.mrb[0].mxu0
    %v7978 = vadd.f32 %v7901, %v7977
    %v7979 = vpop.f32.mrb[0].mxu0
    %v7980 = vpop.f32.mrb[0].mxu0
    %v7981 = vadd.f32 %v7901, %v7980
    %v7982 = vpop.f32.mrb[0].mxu0
    %7983 = vmatprep.mubr.bf16.mxu0 0
    %7984 = vmatmul.mubr.bf16.gmra.mrb[0].mxu0 %v6805
    %v7985 = vpop.f32.mrb[0].mxu0
    %v7986 = vadd.f32 %v7901, %v7985
    %v7987 = vpop.f32.mrb[0].mxu0
    %v7988 = vpop.f32.mrb[0].mxu0
    %v7989 = vadd.f32 %v7901, %v7988
    %v7990 = vpop.f32.mrb[0].mxu0
    %7991 = vmatprep.mubr.bf16.mxu0 0
    %7992 = vmatmul.mubr.bf16.gmra.mrb[0].mxu0 %v6808
    %v7993 = vpop.f32.mrb[0].mxu0
    %v7994 = vadd.f32 %v7901, %v7993
    %v7995 = vpop.f32.mrb[0].mxu0
    %v7996 = vpop.f32.mrb[0].mxu0
    %v7997 = vadd.f32 %v7901, %v7996
    %v7998 = vpop.f32.mrb[0].mxu0
    %7999 = vmatprep.mubr.bf16.mxu0 0
    %8000 = vmatmul.mubr.bf16.gmra.mrb[0].mxu0 %v6811
    %v8001 = vpop.f32.mrb[0].mxu0
    %v8002 = vadd.f32 %v7901, %v8001
    %v8003 = vpop.f32.mrb[0].mxu0
    %v8004 = vpop.f32.mrb[0].mxu0
    %v8005 = vadd.f32 %v7901, %v8004
    %v8006 = vpop.f32.mrb[0].mxu0
    %8007 = vmatprep.mubr.bf16.mxu0 0
    %8008 = vmatmul.mubr.bf16.gmra.mrb[0].mxu0 %v6814
    %v8009 = vpop.f32.mrb[0].mxu0
    %v8010 = vadd.f32 %v7901, %v8009
    %v8011 = vpop.f32.mrb[0].mxu0
    %v8012 = vpop.f32.mrb[0].mxu0
    %v8013 = vadd.f32 %v7901, %v8012
    %v8014 = vpop.f32.mrb[0].mxu0
    %8015 = vmatprep.mubr.bf16.mxu0 0
    %8016 = vmatmul.mubr.bf16.gmra.mrb[0].mxu0 %v6817
    %v8017 = vpop.f32.mrb[0].mxu0
    %v8018 = vadd.f32 %v7901, %v8017
    %v8019 = vpop.f32.mrb[0].mxu0
    %v8020 = vpop.f32.mrb[0].mxu0
    %v8021 = vadd.f32 %v7901, %v8020
    %v8022 = vpop.f32.mrb[0].mxu0
    %8023 = vdwg.mxu0
    %s8024 = scalar_lea.vmem [#allocation9], 160
    %v8025 = vld [vmem:[%s8024] sm:$0xf]
    %v8026 = vld [vmem:[%s8024 + $0x4] sm:$0xf]
    %v8027 = vld [vmem:[%s8024 + $0x8] sm:$0xf]
    %v8028 = vld [vmem:[%s8024 + $0xc] sm:$0xf]
    %v8029 = vld [vmem:[%s8024 + $0x10] sm:$0xf]
    %v8030 = vld [vmem:[%s8024 + $0x14] sm:$0xf]
    %v8031 = vld [vmem:[%s8024 + $0x18] sm:$0xf]
    %v8032 = vld [vmem:[%s8024 + $0x1c] sm:$0xf]
    %s8033 = scalar_lea.vmem %s7, 5
    %v8034 = vld [vmem:[%s8033] sm:$0x1]
    %v8036 = vlaneseq
    %v8037 = vshrl.u32 %v8036, 7
    %v8038 = vsub.s32 0, %v8037
    %v8039 = vrot.slane %v8034, %v8038
    %v8049 = vunpack.c.l.b16 %v8025
    %v8050 = vunpack.c.l.b16 %v8026
    %v8051 = vunpack.c.l.b16 %v8027
    %v8052 = vunpack.c.l.b16 %v8028
    %v8053 = vunpack.c.l.b16 %v8029
    %v8054 = vunpack.c.l.b16 %v8030
    %v8055 = vunpack.c.l.b16 %v8031
    %v8056 = vunpack.c.l.b16 %v8032
    %v8057 = vpack.c.b16 %v8050, %v8049
    %v8058 = vpack.c.b16 %v8052, %v8051
    %v8059 = vpack.c.b16 %v8054, %v8053
    %v8060 = vpack.c.b16 %v8056, %v8055
    %8065 = vmatprep.subr.bf16.mxu0 0
    %8066 = vmatpush1.bf16.msra.mxu0 %v8057
    %8067 = vmatprep.subr.bf16.mxu0 0
    %8068 = vmatpush1.bf16.msra.mxu0 %v8058
    %8069 = vmatprep.subr.bf16.mxu0 0
    %8070 = vmatpush1.bf16.msra.mxu0 %v8059
    %8071 = vmatprep.subr.bf16.mxu0 0
    %8072 = vmatpush1.bf16.msra.mxu0 %v8060
    %8073 = vmatprep.subr.bf16.mxu0 0
    %8074 = vmatpush1.bf16.msra.mxu0 0
    %8075 = vmatprep.subr.bf16.mxu0 0
    %8076 = vmatpush1.bf16.msra.mxu0 0
    %8077 = vmatprep.subr.bf16.mxu0 0
    %8078 = vmatpush1.bf16.msra.mxu0 0
    %8079 = vmatprep.subr.bf16.mxu0 0
    %8080 = vmatpush1.bf16.msra.mxu0 0
    %8081 = vmatprep.subr.bf16.mxu0 0
    %8082 = vmatpush1.bf16.msra.mxu0 0
    %8083 = vmatprep.subr.bf16.mxu0 0
    %8084 = vmatpush1.bf16.msra.mxu0 0
    %8085 = vmatprep.subr.bf16.mxu0 0
    %8086 = vmatpush1.bf16.msra.mxu0 0
    %8087 = vmatprep.subr.bf16.mxu0 0
    %8088 = vmatpush1.bf16.msra.mxu0 0
    %8089 = vmatprep.subr.bf16.mxu0 0
    %8090 = vmatpush1.bf16.msra.mxu0 0
    %8091 = vmatprep.subr.bf16.mxu0 0
    %8092 = vmatpush1.bf16.msra.mxu0 0
    %8093 = vmatprep.subr.bf16.mxu0 0
    %8094 = vmatpush1.bf16.msra.mxu0 0
    %8095 = vmatprep.subr.bf16.mxu0 0
    %8096 = vmatpush1.bf16.msra.mxu0 0
    %8097 = vmatprep.mubr.bf16.mxu0 0
    %8098 = vmatmul.mubr.bf16.gmra.mrb[0].mxu0 %v6796
    %v8099 = vpop.f32.mrb[0].mxu0
    %v8100 = vadd.f32 %v8039, %v8099
    %v8101 = vpop.f32.mrb[0].mxu0
    %v8102 = vpop.f32.mrb[0].mxu0
    %v8103 = vadd.f32 %v8039, %v8102
    %v8104 = vpop.f32.mrb[0].mxu0
    %8105 = vmatprep.mubr.bf16.mxu0 0
    %8106 = vmatmul.mubr.bf16.gmra.mrb[0].mxu0 %v6799
    %v8107 = vpop.f32.mrb[0].mxu0
    %v8108 = vadd.f32 %v8039, %v8107
    %v8109 = vpop.f32.mrb[0].mxu0
    %v8110 = vpop.f32.mrb[0].mxu0
    %v8111 = vadd.f32 %v8039, %v8110
    %v8112 = vpop.f32.mrb[0].mxu0
    %8113 = vmatprep.mubr.bf16.mxu0 0
    %8114 = vmatmul.mubr.bf16.gmra.mrb[0].mxu0 %v6802
    %v8115 = vpop.f32.mrb[0].mxu0
    %v8116 = vadd.f32 %v8039, %v8115
    %v8117 = vpop.f32.mrb[0].mxu0
    %v8118 = vpop.f32.mrb[0].mxu0
    %v8119 = vadd.f32 %v8039, %v8118
    %v8120 = vpop.f32.mrb[0].mxu0
    %8121 = vmatprep.mubr.bf16.mxu0 0
    %8122 = vmatmul.mubr.bf16.gmra.mrb[0].mxu0 %v6805
    %v8123 = vpop.f32.mrb[0].mxu0
    %v8124 = vadd.f32 %v8039, %v8123
    %v8125 = vpop.f32.mrb[0].mxu0
    %v8126 = vpop.f32.mrb[0].mxu0
    %v8127 = vadd.f32 %v8039, %v8126
    %v8128 = vpop.f32.mrb[0].mxu0
    %8129 = vmatprep.mubr.bf16.mxu0 0
    %8130 = vmatmul.mubr.bf16.gmra.mrb[0].mxu0 %v6808
    %v8131 = vpop.f32.mrb[0].mxu0
    %v8132 = vadd.f32 %v8039, %v8131
    %v8133 = vpop.f32.mrb[0].mxu0
    %v8134 = vpop.f32.mrb[0].mxu0
    %v8135 = vadd.f32 %v8039, %v8134
    %v8136 = vpop.f32.mrb[0].mxu0
    %8137 = vmatprep.mubr.bf16.mxu0 0
    %8138 = vmatmul.mubr.bf16.gmra.mrb[0].mxu0 %v6811
    %v8139 = vpop.f32.mrb[0].mxu0
    %v8140 = vadd.f32 %v8039, %v8139
    %v8141 = vpop.f32.mrb[0].mxu0
    %v8142 = vpop.f32.mrb[0].mxu0
    %v8143 = vadd.f32 %v8039, %v8142
    %v8144 = vpop.f32.mrb[0].mxu0
    %8145 = vmatprep.mubr.bf16.mxu0 0
    %8146 = vmatmul.mubr.bf16.gmra.mrb[0].mxu0 %v6814
    %v8147 = vpop.f32.mrb[0].mxu0
    %v8148 = vadd.f32 %v8039, %v8147
    %v8149 = vpop.f32.mrb[0].mxu0
    %v8150 = vpop.f32.mrb[0].mxu0
    %v8151 = vadd.f32 %v8039, %v8150
    %v8152 = vpop.f32.mrb[0].mxu0
    %8153 = vmatprep.mubr.bf16.mxu0 0
    %8154 = vmatmul.mubr.bf16.gmra.mrb[0].mxu0 %v6817
    %v8155 = vpop.f32.mrb[0].mxu0
    %v8156 = vadd.f32 %v8039, %v8155
    %v8157 = vpop.f32.mrb[0].mxu0
    %v8158 = vpop.f32.mrb[0].mxu0
    %v8159 = vadd.f32 %v8039, %v8158
    %v8160 = vpop.f32.mrb[0].mxu0
    %8161 = vdwg.mxu0
    %v8162 = vpack.c.bf16 %v7827, %v7824
    %v8163 = vpack.c.bf16 %v7835, %v7832
    %v8164 = vpack.c.bf16 %v7843, %v7840
    %v8165 = vpack.c.bf16 %v7851, %v7848
    %v8166 = vpack.c.bf16 %v7859, %v7856
    %v8167 = vpack.c.bf16 %v7867, %v7864
    %v8168 = vpack.c.bf16 %v7875, %v7872
    %v8169 = vpack.c.bf16 %v7883, %v7880
    %v8170 = vpack.c.bf16 %v7965, %v7962
    %v8171 = vpack.c.bf16 %v7973, %v7970
    %v8172 = vpack.c.bf16 %v7981, %v7978
    %v8173 = vpack.c.bf16 %v7989, %v7986
    %v8174 = vpack.c.bf16 %v7997, %v7994
    %v8175 = vpack.c.bf16 %v8005, %v8002
    %v8176 = vpack.c.bf16 %v8013, %v8010
    %v8177 = vpack.c.bf16 %v8021, %v8018
    %v8178 = vpack.c.bf16 %v8103, %v8100
    %v8179 = vpack.c.bf16 %v8111, %v8108
    %v8180 = vpack.c.bf16 %v8119, %v8116
    %v8181 = vpack.c.bf16 %v8127, %v8124
    %v8182 = vpack.c.bf16 %v8135, %v8132
    %v8183 = vpack.c.bf16 %v8143, %v8140
    %v8184 = vpack.c.bf16 %v8151, %v8148
    %v8185 = vpack.c.bf16 %v8159, %v8156
    %v8187 = vsel %vm714, %v8162, 0
    %v8190 = vsel %vm714, %v8163, 0
    %v8193 = vsel %vm714, %v8164, 0
    %v8196 = vsel %vm714, %v8165, 0
    %v8199 = vsel %vm714, %v8170, 0
    %v8202 = vsel %vm714, %v8171, 0
    %v8205 = vsel %vm714, %v8172, 0
    %v8208 = vsel %vm714, %v8173, 0
    %8210 = vmatprep.subr.bf16.mxu0 0
    %8211 = vmatpush1.bf16.xpose.msra.mxu0 %v8199
    %8212 = vmatprep.subr.bf16.mxu0 0
    %8213 = vmatpush1.bf16.xpose.msra.mxu0 %v8202
    %8214 = vmatprep.subr.bf16.mxu0 0
    %8215 = vmatpush1.bf16.xpose.msra.mxu0 %v8205
    %8216 = vmatprep.subr.bf16.mxu0 0
    %8217 = vmatpush1.bf16.xpose.msra.mxu0 %v8208
    %8218 = vmatprep.subr.bf16.mxu0 0
    %8219 = vmatpush1.bf16.xpose.msra.mxu0 0
    %8220 = vmatprep.subr.bf16.mxu0 0
    %8221 = vmatpush1.bf16.xpose.msra.mxu0 0
    %8222 = vmatprep.subr.bf16.mxu0 0
    %8223 = vmatpush1.bf16.xpose.msra.mxu0 0
    %8224 = vmatprep.subr.bf16.mxu0 0
    %8225 = vmatpush1.bf16.xpose.msra.mxu0 0
    %8226 = vmatprep.subr.bf16.mxu0 0
    %8227 = vmatpush1.bf16.xpose.msra.mxu0 0
    %8228 = vmatprep.subr.bf16.mxu0 0
    %8229 = vmatpush1.bf16.xpose.msra.mxu0 0
    %8230 = vmatprep.subr.bf16.mxu0 0
    %8231 = vmatpush1.bf16.xpose.msra.mxu0 0
    %8232 = vmatprep.subr.bf16.mxu0 0
    %8233 = vmatpush1.bf16.xpose.msra.mxu0 0
    %8234 = vmatprep.subr.bf16.mxu0 0
    %8235 = vmatpush1.bf16.xpose.msra.mxu0 0
    %8236 = vmatprep.subr.bf16.mxu0 0
    %8237 = vmatpush1.bf16.xpose.msra.mxu0 0
    %8238 = vmatprep.subr.bf16.mxu0 0
    %8239 = vmatpush1.bf16.xpose.msra.mxu0 0
    %8240 = vmatprep.subr.bf16.mxu0 0
    %8241 = vmatpush1.bf16.xpose.msra.mxu0 0
    %8242 = vmatprep.mubr.bf16.mxu0 0
    %8243 = vmatmul.mubr.bf16.gmra.mrb[0].mxu0 %v8187
    %v8244 = vpop.f32.mrb[0].mxu0
    %v8245 = vadd.f32 0.0, %v8244
    %v8246 = vpop.f32.mrb[0].mxu0
    %v8247 = vpop.f32.mrb[0].mxu0
    %v8248 = vadd.f32 0.0, %v8247
    %v8249 = vpop.f32.mrb[0].mxu0
    %8250 = vmatprep.mubr.bf16.mxu0 0
    %8251 = vmatmul.mubr.bf16.gmra.mrb[0].mxu0 %v8190
    %v8252 = vpop.f32.mrb[0].mxu0
    %v8253 = vadd.f32 0.0, %v8252
    %v8254 = vpop.f32.mrb[0].mxu0
    %v8255 = vpop.f32.mrb[0].mxu0
    %v8256 = vadd.f32 0.0, %v8255
    %v8257 = vpop.f32.mrb[0].mxu0
    %8258 = vmatprep.mubr.bf16.mxu0 0
    %8259 = vmatmul.mubr.bf16.gmra.mrb[0].mxu0 %v8193
    %v8260 = vpop.f32.mrb[0].mxu0
    %v8261 = vadd.f32 0.0, %v8260
    %v8262 = vpop.f32.mrb[0].mxu0
    %v8263 = vpop.f32.mrb[0].mxu0
    %v8264 = vadd.f32 0.0, %v8263
    %v8265 = vpop.f32.mrb[0].mxu0
    %8266 = vmatprep.mubr.bf16.mxu0 0
    %8267 = vmatmul.mubr.bf16.gmra.mrb[0].mxu0 %v8196
    %v8268 = vpop.f32.mrb[0].mxu0
    %v8269 = vadd.f32 0.0, %v8268
    %v8270 = vpop.f32.mrb[0].mxu0
    %v8271 = vpop.f32.mrb[0].mxu0
    %v8272 = vadd.f32 0.0, %v8271
    %v8273 = vpop.f32.mrb[0].mxu0
    %8274 = vdwg.mxu0
    %v8276 = vsel %vm714, %v8166, 0
    %v8279 = vsel %vm714, %v8167, 0
    %v8282 = vsel %vm714, %v8168, 0
    %v8285 = vsel %vm714, %v8169, 0
    %v8288 = vsel %vm714, %v8174, 0
    %v8291 = vsel %vm714, %v8175, 0
    %v8294 = vsel %vm714, %v8176, 0
    %v8297 = vsel %vm714, %v8177, 0
    %8299 = vmatprep.subr.bf16.mxu0 0
    %8300 = vmatpush1.bf16.xpose.msra.mxu0 %v8288
    %8301 = vmatprep.subr.bf16.mxu0 0
    %8302 = vmatpush1.bf16.xpose.msra.mxu0 %v8291
    %8303 = vmatprep.subr.bf16.mxu0 0
    %8304 = vmatpush1.bf16.xpose.msra.mxu0 %v8294
    %8305 = vmatprep.subr.bf16.mxu0 0
    %8306 = vmatpush1.bf16.xpose.msra.mxu0 %v8297
    %8307 = vmatprep.subr.bf16.mxu0 0
    %8308 = vmatpush1.bf16.xpose.msra.mxu0 0
    %8309 = vmatprep.subr.bf16.mxu0 0
    %8310 = vmatpush1.bf16.xpose.msra.mxu0 0
    %8311 = vmatprep.subr.bf16.mxu0 0
    %8312 = vmatpush1.bf16.xpose.msra.mxu0 0
    %8313 = vmatprep.subr.bf16.mxu0 0
    %8314 = vmatpush1.bf16.xpose.msra.mxu0 0
    %8315 = vmatprep.subr.bf16.mxu0 0
    %8316 = vmatpush1.bf16.xpose.msra.mxu0 0
    %8317 = vmatprep.subr.bf16.mxu0 0
    %8318 = vmatpush1.bf16.xpose.msra.mxu0 0
    %8319 = vmatprep.subr.bf16.mxu0 0
    %8320 = vmatpush1.bf16.xpose.msra.mxu0 0
    %8321 = vmatprep.subr.bf16.mxu0 0
    %8322 = vmatpush1.bf16.xpose.msra.mxu0 0
    %8323 = vmatprep.subr.bf16.mxu0 0
    %8324 = vmatpush1.bf16.xpose.msra.mxu0 0
    %8325 = vmatprep.subr.bf16.mxu0 0
    %8326 = vmatpush1.bf16.xpose.msra.mxu0 0
    %8327 = vmatprep.subr.bf16.mxu0 0
    %8328 = vmatpush1.bf16.xpose.msra.mxu0 0
    %8329 = vmatprep.subr.bf16.mxu0 0
    %8330 = vmatpush1.bf16.xpose.msra.mxu0 0
    %8331 = vmatprep.mubr.bf16.mxu0 0
    %8332 = vmatmul.mubr.bf16.gmra.mrb[0].mxu0 %v8276
    %v8333 = vpop.f32.mrb[0].mxu0
    %v8334 = vadd.f32 0.0, %v8333
    %v8335 = vpop.f32.mrb[0].mxu0
    %v8336 = vpop.f32.mrb[0].mxu0
    %v8337 = vadd.f32 0.0, %v8336
    %v8338 = vpop.f32.mrb[0].mxu0
    %8339 = vmatprep.mubr.bf16.mxu0 0
    %8340 = vmatmul.mubr.bf16.gmra.mrb[0].mxu0 %v8279
    %v8341 = vpop.f32.mrb[0].mxu0
    %v8342 = vadd.f32 0.0, %v8341
    %v8343 = vpop.f32.mrb[0].mxu0
    %v8344 = vpop.f32.mrb[0].mxu0
    %v8345 = vadd.f32 0.0, %v8344
    %v8346 = vpop.f32.mrb[0].mxu0
    %8347 = vmatprep.mubr.bf16.mxu0 0
    %8348 = vmatmul.mubr.bf16.gmra.mrb[0].mxu0 %v8282
    %v8349 = vpop.f32.mrb[0].mxu0
    %v8350 = vadd.f32 0.0, %v8349
    %v8351 = vpop.f32.mrb[0].mxu0
    %v8352 = vpop.f32.mrb[0].mxu0
    %v8353 = vadd.f32 0.0, %v8352
    %v8354 = vpop.f32.mrb[0].mxu0
    %8355 = vmatprep.mubr.bf16.mxu0 0
    %8356 = vmatmul.mubr.bf16.gmra.mrb[0].mxu0 %v8285
    %v8357 = vpop.f32.mrb[0].mxu0
    %v8358 = vadd.f32 0.0, %v8357
    %v8359 = vpop.f32.mrb[0].mxu0
    %v8360 = vpop.f32.mrb[0].mxu0
    %v8361 = vadd.f32 0.0, %v8360
    %v8362 = vpop.f32.mrb[0].mxu0
    %8363 = vdwg.mxu0
    %v8364 = vmul.f32 %v8245, 0.17677669
    %v8365 = vmul.f32 %v8248, 0.17677669
    %v8366 = vmul.f32 %v8253, 0.17677669
    %v8367 = vmul.f32 %v8256, 0.17677669
    %v8368 = vmul.f32 %v8261, 0.17677669
    %v8369 = vmul.f32 %v8264, 0.17677669
    %v8370 = vmul.f32 %v8269, 0.17677669
    %v8371 = vmul.f32 %v8272, 0.17677669
    %v8372 = vmul.f32 %v8334, 0.17677669
    %v8373 = vmul.f32 %v8337, 0.17677669
    %v8374 = vmul.f32 %v8342, 0.17677669
    %v8375 = vmul.f32 %v8345, 0.17677669
    %v8376 = vmul.f32 %v8350, 0.17677669
    %v8377 = vmul.f32 %v8353, 0.17677669
    %v8378 = vmul.f32 %v8358, 0.17677669
    %v8379 = vmul.f32 %v8361, 0.17677669
    %v8380 = vsel %vm296, %v8364, -inf
    %8381 = vmax.xlane.f32.xlu0 %v8380
    %v8382 = vpop.xlane.xlu0 %8381
    %v8383 = vsel %vm296, %v8365, -inf
    %8384 = vmax.xlane.f32.xlu0 %v8383
    %v8385 = vpop.xlane.xlu0 %8384
    %v8386 = vsel %vm296, %v8366, -inf
    %8387 = vmax.xlane.f32.xlu0 %v8386
    %v8388 = vpop.xlane.xlu0 %8387
    %v8389 = vsel %vm296, %v8367, -inf
    %8390 = vmax.xlane.f32.xlu0 %v8389
    %v8391 = vpop.xlane.xlu0 %8390
    %v8392 = vsel %vm296, %v8368, -inf
    %8393 = vmax.xlane.f32.xlu0 %v8392
    %v8394 = vpop.xlane.xlu0 %8393
    %v8395 = vsel %vm296, %v8369, -inf
    %8396 = vmax.xlane.f32.xlu0 %v8395
    %v8397 = vpop.xlane.xlu0 %8396
    %v8398 = vsel %vm296, %v8370, -inf
    %8399 = vmax.xlane.f32.xlu0 %v8398
    %v8400 = vpop.xlane.xlu0 %8399
    %v8401 = vsel %vm296, %v8371, -inf
    %8402 = vmax.xlane.f32.xlu0 %v8401
    %v8403 = vpop.xlane.xlu0 %8402
    %v8404 = vsel %vm296, %v8372, -inf
    %8405 = vmax.xlane.f32.xlu0 %v8404
    %v8406 = vpop.xlane.xlu0 %8405
    %v8407 = vsel %vm296, %v8373, -inf
    %8408 = vmax.xlane.f32.xlu0 %v8407
    %v8409 = vpop.xlane.xlu0 %8408
    %v8410 = vsel %vm296, %v8374, -inf
    %8411 = vmax.xlane.f32.xlu0 %v8410
    %v8412 = vpop.xlane.xlu0 %8411
    %v8413 = vsel %vm296, %v8375, -inf
    %8414 = vmax.xlane.f32.xlu0 %v8413
    %v8415 = vpop.xlane.xlu0 %8414
    %v8416 = vsel %vm296, %v8376, -inf
    %8417 = vmax.xlane.f32.xlu0 %v8416
    %v8418 = vpop.xlane.xlu0 %8417
    %v8419 = vsel %vm296, %v8377, -inf
    %8420 = vmax.xlane.f32.xlu0 %v8419
    %v8421 = vpop.xlane.xlu0 %8420
    %v8422 = vsel %vm296, %v8378, -inf
    %8423 = vmax.xlane.f32.xlu0 %v8422
    %v8424 = vpop.xlane.xlu0 %8423
    %v8425 = vsel %vm296, %v8379, -inf
    %8426 = vmax.xlane.f32.xlu0 %v8425
    %v8427 = vpop.xlane.xlu0 %8426
    %v8428 = vsub.f32 %v8364, %v8382
    %v8429 = vsub.f32 %v8365, %v8385
    %v8430 = vsub.f32 %v8366, %v8388
    %v8431 = vsub.f32 %v8367, %v8391
    %v8432 = vsub.f32 %v8368, %v8394
    %v8433 = vsub.f32 %v8369, %v8397
    %v8434 = vsub.f32 %v8370, %v8400
    %v8435 = vsub.f32 %v8371, %v8403
    %v8436 = vsub.f32 %v8372, %v8406
    %v8437 = vsub.f32 %v8373, %v8409
    %v8438 = vsub.f32 %v8374, %v8412
    %v8439 = vsub.f32 %v8375, %v8415
    %v8440 = vsub.f32 %v8376, %v8418
    %v8441 = vsub.f32 %v8377, %v8421
    %v8442 = vsub.f32 %v8378, %v8424
    %v8443 = vsub.f32 %v8379, %v8427
    %v8444 = vmul.f32 %v8428, 1.442695
    %v8445 = vpow.pop %v8444
    %v8446 = vmul.f32 %v8429, 1.442695
    %v8447 = vpow.pop %v8446
    %v8448 = vmul.f32 %v8430, 1.442695
    %v8449 = vpow.pop %v8448
    %v8450 = vmul.f32 %v8431, 1.442695
    %v8451 = vpow.pop %v8450
    %v8452 = vmul.f32 %v8432, 1.442695
    %v8453 = vpow.pop %v8452
    %v8454 = vmul.f32 %v8433, 1.442695
    %v8455 = vpow.pop %v8454
    %v8456 = vmul.f32 %v8434, 1.442695
    %v8457 = vpow.pop %v8456
    %v8458 = vmul.f32 %v8435, 1.442695
    %v8459 = vpow.pop %v8458
    %v8460 = vmul.f32 %v8436, 1.442695
    %v8461 = vpow.pop %v8460
    %v8462 = vmul.f32 %v8437, 1.442695
    %v8463 = vpow.pop %v8462
    %v8464 = vmul.f32 %v8438, 1.442695
    %v8465 = vpow.pop %v8464
    %v8466 = vmul.f32 %v8439, 1.442695
    %v8467 = vpow.pop %v8466
    %v8468 = vmul.f32 %v8440, 1.442695
    %v8469 = vpow.pop %v8468
    %v8470 = vmul.f32 %v8441, 1.442695
    %v8471 = vpow.pop %v8470
    %v8472 = vmul.f32 %v8442, 1.442695
    %v8473 = vpow.pop %v8472
    %v8474 = vmul.f32 %v8443, 1.442695
    %v8475 = vpow.pop %v8474
    %v8476 = vsel %vm296, %v8445, 0.0
    %8477 = vadd.xlane.f32.xlu0 %v8476
    %v8478 = vpop.xlane.xlu0 %8477
    %v8479 = vsel %vm296, %v8447, 0.0
    %8480 = vadd.xlane.f32.xlu0 %v8479
    %v8481 = vpop.xlane.xlu0 %8480
    %v8482 = vsel %vm296, %v8449, 0.0
    %8483 = vadd.xlane.f32.xlu0 %v8482
    %v8484 = vpop.xlane.xlu0 %8483
    %v8485 = vsel %vm296, %v8451, 0.0
    %8486 = vadd.xlane.f32.xlu0 %v8485
    %v8487 = vpop.xlane.xlu0 %8486
    %v8488 = vsel %vm296, %v8453, 0.0
    %8489 = vadd.xlane.f32.xlu0 %v8488
    %v8490 = vpop.xlane.xlu0 %8489
    %v8491 = vsel %vm296, %v8455, 0.0
    %8492 = vadd.xlane.f32.xlu0 %v8491
    %v8493 = vpop.xlane.xlu0 %8492
    %v8494 = vsel %vm296, %v8457, 0.0
    %8495 = vadd.xlane.f32.xlu0 %v8494
    %v8496 = vpop.xlane.xlu0 %8495
    %v8497 = vsel %vm296, %v8459, 0.0
    %8498 = vadd.xlane.f32.xlu0 %v8497
    %v8499 = vpop.xlane.xlu0 %8498
    %v8500 = vsel %vm296, %v8461, 0.0
    %8501 = vadd.xlane.f32.xlu0 %v8500
    %v8502 = vpop.xlane.xlu0 %8501
    %v8503 = vsel %vm296, %v8463, 0.0
    %8504 = vadd.xlane.f32.xlu0 %v8503
    %v8505 = vpop.xlane.xlu0 %8504
    %v8506 = vsel %vm296, %v8465, 0.0
    %8507 = vadd.xlane.f32.xlu0 %v8506
    %v8508 = vpop.xlane.xlu0 %8507
    %v8509 = vsel %vm296, %v8467, 0.0
    %8510 = vadd.xlane.f32.xlu0 %v8509
    %v8511 = vpop.xlane.xlu0 %8510
    %v8512 = vsel %vm296, %v8469, 0.0
    %8513 = vadd.xlane.f32.xlu0 %v8512
    %v8514 = vpop.xlane.xlu0 %8513
    %v8515 = vsel %vm296, %v8471, 0.0
    %8516 = vadd.xlane.f32.xlu0 %v8515
    %v8517 = vpop.xlane.xlu0 %8516
    %v8518 = vsel %vm296, %v8473, 0.0
    %8519 = vadd.xlane.f32.xlu0 %v8518
    %v8520 = vpop.xlane.xlu0 %8519
    %v8521 = vsel %vm296, %v8475, 0.0
    %8522 = vadd.xlane.f32.xlu0 %v8521
    %v8523 = vpop.xlane.xlu0 %8522
    %v8524 = vrcp.pop %v8478
    %v8525 = vrcp.pop %v8481
    %v8526 = vrcp.pop %v8484
    %v8527 = vrcp.pop %v8487
    %v8528 = vrcp.pop %v8490
    %v8529 = vrcp.pop %v8493
    %v8530 = vrcp.pop %v8496
    %v8531 = vrcp.pop %v8499
    %v8532 = vrcp.pop %v8502
    %v8533 = vrcp.pop %v8505
    %v8534 = vrcp.pop %v8508
    %v8535 = vrcp.pop %v8511
    %v8536 = vrcp.pop %v8514
    %v8537 = vrcp.pop %v8517
    %v8538 = vrcp.pop %v8520
    %v8539 = vrcp.pop %v8523
    %v8540 = vmul.f32 %v8445, %v8524
    %v8541 = vmul.f32 %v8447, %v8525
    %v8542 = vmul.f32 %v8449, %v8526
    %v8543 = vmul.f32 %v8451, %v8527
    %v8544 = vmul.f32 %v8453, %v8528
    %v8545 = vmul.f32 %v8455, %v8529
    %v8546 = vmul.f32 %v8457, %v8530
    %v8547 = vmul.f32 %v8459, %v8531
    %v8548 = vmul.f32 %v8461, %v8532
    %v8549 = vmul.f32 %v8463, %v8533
    %v8550 = vmul.f32 %v8465, %v8534
    %v8551 = vmul.f32 %v8467, %v8535
    %v8552 = vmul.f32 %v8469, %v8536
    %v8553 = vmul.f32 %v8471, %v8537
    %v8554 = vmul.f32 %v8473, %v8538
    %v8555 = vmul.f32 %v8475, %v8539
    %v8556 = vpack.c.bf16 %v8541, %v8540
    %v8557 = vpack.c.bf16 %v8543, %v8542
    %v8558 = vpack.c.bf16 %v8545, %v8544
    %v8559 = vpack.c.bf16 %v8547, %v8546
    %v8560 = vpack.c.bf16 %v8549, %v8548
    %v8561 = vpack.c.bf16 %v8551, %v8550
    %v8562 = vpack.c.bf16 %v8553, %v8552
    %v8563 = vpack.c.bf16 %v8555, %v8554
    %v8565 = vsel %vm296, %v8556, 0
    %v8568 = vsel %vm296, %v8557, 0
    %v8571 = vsel %vm296, %v8558, 0
    %v8574 = vsel %vm296, %v8559, 0
    %8576 = vmatprep.subr.bf16.mxu0 0
    %8577 = vmatpush1.bf16.msra.mxu0 %v8178
    %8578 = vmatprep.subr.bf16.mxu0 0
    %8579 = vmatpush1.bf16.msra.mxu0 %v8179
    %8580 = vmatprep.subr.bf16.mxu0 0
    %8581 = vmatpush1.bf16.msra.mxu0 %v8180
    %8582 = vmatprep.subr.bf16.mxu0 0
    %8583 = vmatpush1.bf16.msra.mxu0 %v8181
    %8584 = vmatprep.subr.bf16.mxu0 0
    %8585 = vmatpush1.bf16.msra.mxu0 0
    %8586 = vmatprep.subr.bf16.mxu0 0
    %8587 = vmatpush1.bf16.msra.mxu0 0
    %8588 = vmatprep.subr.bf16.mxu0 0
    %8589 = vmatpush1.bf16.msra.mxu0 0
    %8590 = vmatprep.subr.bf16.mxu0 0
    %8591 = vmatpush1.bf16.msra.mxu0 0
    %8592 = vmatprep.subr.bf16.mxu0 0
    %8593 = vmatpush1.bf16.msra.mxu0 0
    %8594 = vmatprep.subr.bf16.mxu0 0
    %8595 = vmatpush1.bf16.msra.mxu0 0
    %8596 = vmatprep.subr.bf16.mxu0 0
    %8597 = vmatpush1.bf16.msra.mxu0 0
    %8598 = vmatprep.subr.bf16.mxu0 0
    %8599 = vmatpush1.bf16.msra.mxu0 0
    %8600 = vmatprep.subr.bf16.mxu0 0
    %8601 = vmatpush1.bf16.msra.mxu0 0
    %8602 = vmatprep.subr.bf16.mxu0 0
    %8603 = vmatpush1.bf16.msra.mxu0 0
    %8604 = vmatprep.subr.bf16.mxu0 0
    %8605 = vmatpush1.bf16.msra.mxu0 0
    %8606 = vmatprep.subr.bf16.mxu0 0
    %8607 = vmatpush1.bf16.msra.mxu0 0
    %8608 = vmatprep.mubr.bf16.mxu0 0
    %8609 = vmatmul.mubr.bf16.gmra.mrb[0].mxu0 %v8565
    %v8610 = vpop.f32.mrb[0].mxu0
    %v8611 = vadd.f32 0.0, %v8610
    %v8612 = vpop.f32.mrb[0].mxu0
    %v8613 = vpop.f32.mrb[0].mxu0
    %v8614 = vadd.f32 0.0, %v8613
    %v8615 = vpop.f32.mrb[0].mxu0
    %8616 = vmatprep.mubr.bf16.mxu0 0
    %8617 = vmatmul.mubr.bf16.gmra.mrb[0].mxu0 %v8568
    %v8618 = vpop.f32.mrb[0].mxu0
    %v8619 = vadd.f32 0.0, %v8618
    %v8620 = vpop.f32.mrb[0].mxu0
    %v8621 = vpop.f32.mrb[0].mxu0
    %v8622 = vadd.f32 0.0, %v8621
    %v8623 = vpop.f32.mrb[0].mxu0
    %8624 = vmatprep.mubr.bf16.mxu0 0
    %8625 = vmatmul.mubr.bf16.gmra.mrb[0].mxu0 %v8571
    %v8626 = vpop.f32.mrb[0].mxu0
    %v8627 = vadd.f32 0.0, %v8626
    %v8628 = vpop.f32.mrb[0].mxu0
    %v8629 = vpop.f32.mrb[0].mxu0
    %v8630 = vadd.f32 0.0, %v8629
    %v8631 = vpop.f32.mrb[0].mxu0
    %8632 = vmatprep.mubr.bf16.mxu0 0
    %8633 = vmatmul.mubr.bf16.gmra.mrb[0].mxu0 %v8574
    %v8634 = vpop.f32.mrb[0].mxu0
    %v8635 = vadd.f32 0.0, %v8634
    %v8636 = vpop.f32.mrb[0].mxu0
    %v8637 = vpop.f32.mrb[0].mxu0
    %v8638 = vadd.f32 0.0, %v8637
    %v8639 = vpop.f32.mrb[0].mxu0
    %8640 = vdwg.mxu0
    %v8642 = vsel %vm296, %v8560, 0
    %v8645 = vsel %vm296, %v8561, 0
    %v8648 = vsel %vm296, %v8562, 0
    %v8651 = vsel %vm296, %v8563, 0
    %8653 = vmatprep.subr.bf16.mxu0 0
    %8654 = vmatpush1.bf16.msra.mxu0 %v8182
    %8655 = vmatprep.subr.bf16.mxu0 0
    %8656 = vmatpush1.bf16.msra.mxu0 %v8183
    %8657 = vmatprep.subr.bf16.mxu0 0
    %8658 = vmatpush1.bf16.msra.mxu0 %v8184
    %8659 = vmatprep.subr.bf16.mxu0 0
    %8660 = vmatpush1.bf16.msra.mxu0 %v8185
    %8661 = vmatprep.subr.bf16.mxu0 0
    %8662 = vmatpush1.bf16.msra.mxu0 0
    %8663 = vmatprep.subr.bf16.mxu0 0
    %8664 = vmatpush1.bf16.msra.mxu0 0
    %8665 = vmatprep.subr.bf16.mxu0 0
    %8666 = vmatpush1.bf16.msra.mxu0 0
    %8667 = vmatprep.subr.bf16.mxu0 0
    %8668 = vmatpush1.bf16.msra.mxu0 0
    %8669 = vmatprep.subr.bf16.mxu0 0
    %8670 = vmatpush1.bf16.msra.mxu0 0
    %8671 = vmatprep.subr.bf16.mxu0 0
    %8672 = vmatpush1.bf16.msra.mxu0 0
    %8673 = vmatprep.subr.bf16.mxu0 0
    %8674 = vmatpush1.bf16.msra.mxu0 0
    %8675 = vmatprep.subr.bf16.mxu0 0
    %8676 = vmatpush1.bf16.msra.mxu0 0
    %8677 = vmatprep.subr.bf16.mxu0 0
    %8678 = vmatpush1.bf16.msra.mxu0 0
    %8679 = vmatprep.subr.bf16.mxu0 0
    %8680 = vmatpush1.bf16.msra.mxu0 0
    %8681 = vmatprep.subr.bf16.mxu0 0
    %8682 = vmatpush1.bf16.msra.mxu0 0
    %8683 = vmatprep.subr.bf16.mxu0 0
    %8684 = vmatpush1.bf16.msra.mxu0 0
    %8685 = vmatprep.mubr.bf16.mxu0 0
    %8686 = vmatmul.mubr.bf16.gmra.mrb[0].mxu0 %v8642
    %v8687 = vpop.f32.mrb[0].mxu0
    %v8688 = vadd.f32 0.0, %v8687
    %v8689 = vpop.f32.mrb[0].mxu0
    %v8690 = vpop.f32.mrb[0].mxu0
    %v8691 = vadd.f32 0.0, %v8690
    %v8692 = vpop.f32.mrb[0].mxu0
    %8693 = vmatprep.mubr.bf16.mxu0 0
    %8694 = vmatmul.mubr.bf16.gmra.mrb[0].mxu0 %v8645
    %v8695 = vpop.f32.mrb[0].mxu0
    %v8696 = vadd.f32 0.0, %v8695
    %v8697 = vpop.f32.mrb[0].mxu0
    %v8698 = vpop.f32.mrb[0].mxu0
    %v8699 = vadd.f32 0.0, %v8698
    %v8700 = vpop.f32.mrb[0].mxu0
    %8701 = vmatprep.mubr.bf16.mxu0 0
    %8702 = vmatmul.mubr.bf16.gmra.mrb[0].mxu0 %v8648
    %v8703 = vpop.f32.mrb[0].mxu0
    %v8704 = vadd.f32 0.0, %v8703
    %v8705 = vpop.f32.mrb[0].mxu0
    %v8706 = vpop.f32.mrb[0].mxu0
    %v8707 = vadd.f32 0.0, %v8706
    %v8708 = vpop.f32.mrb[0].mxu0
    %8709 = vmatprep.mubr.bf16.mxu0 0
    %8710 = vmatmul.mubr.bf16.gmra.mrb[0].mxu0 %v8651
    %v8711 = vpop.f32.mrb[0].mxu0
    %v8712 = vadd.f32 0.0, %v8711
    %v8713 = vpop.f32.mrb[0].mxu0
    %v8714 = vpop.f32.mrb[0].mxu0
    %v8715 = vadd.f32 0.0, %v8714
    %v8716 = vpop.f32.mrb[0].mxu0
    %8717 = vdwg.mxu0
    %8734 = vrot.lane.b32.xlu0 %v8611, 32
    %v8735 = vpop.permute.xlu0 %8734
    %8736 = vrot.lane.b32.xlu0 %v8614, 32
    %v8737 = vpop.permute.xlu0 %8736
    %8738 = vrot.lane.b32.xlu0 %v8619, 32
    %v8739 = vpop.permute.xlu0 %8738
    %8740 = vrot.lane.b32.xlu0 %v8622, 32
    %v8741 = vpop.permute.xlu0 %8740
    %8742 = vrot.lane.b32.xlu0 %v8627, 32
    %v8743 = vpop.permute.xlu0 %8742
    %8744 = vrot.lane.b32.xlu0 %v8630, 32
    %v8745 = vpop.permute.xlu0 %8744
    %8746 = vrot.lane.b32.xlu0 %v8635, 32
    %v8747 = vpop.permute.xlu0 %8746
    %8748 = vrot.lane.b32.xlu0 %v8638, 32
    %v8749 = vpop.permute.xlu0 %8748
    %8750 = vrot.lane.b32.xlu0 %v8688, 32
    %v8751 = vpop.permute.xlu0 %8750
    %8752 = vrot.lane.b32.xlu0 %v8691, 32
    %v8753 = vpop.permute.xlu0 %8752
    %8754 = vrot.lane.b32.xlu0 %v8696, 32
    %v8755 = vpop.permute.xlu0 %8754
    %8756 = vrot.lane.b32.xlu0 %v8699, 32
    %v8757 = vpop.permute.xlu0 %8756
    %8758 = vrot.lane.b32.xlu0 %v8704, 32
    %v8759 = vpop.permute.xlu0 %8758
    %8760 = vrot.lane.b32.xlu0 %v8707, 32
    %v8761 = vpop.permute.xlu0 %8760
    %8762 = vrot.lane.b32.xlu0 %v8712, 32
    %v8763 = vpop.permute.xlu0 %8762
    %8764 = vrot.lane.b32.xlu0 %v8715, 32
    %v8765 = vpop.permute.xlu0 %8764
    %v8782 = vsel %vm714, %v7641, %v8735
    %v8783 = vsel %vm714, %v7644, %v8737
    %v8784 = vsel %vm714, %v7649, %v8739
    %v8785 = vsel %vm714, %v7652, %v8741
    %v8786 = vsel %vm714, %v7657, %v8743
    %v8787 = vsel %vm714, %v7660, %v8745
    %v8788 = vsel %vm714, %v7665, %v8747
    %v8789 = vsel %vm714, %v7668, %v8749
    %v8790 = vsel %vm714, %v7718, %v8751
    %v8791 = vsel %vm714, %v7721, %v8753
    %v8792 = vsel %vm714, %v7726, %v8755
    %v8793 = vsel %vm714, %v7729, %v8757
    %v8794 = vsel %vm714, %v7734, %v8759
    %v8795 = vsel %vm714, %v7737, %v8761
    %v8796 = vsel %vm714, %v7742, %v8763
    %v8797 = vsel %vm714, %v7745, %v8765
    %v8798 = vpack.c.bf16 %v8783, %v8782
    %v8799 = vpack.c.bf16 %v8785, %v8784
    %v8800 = vpack.c.bf16 %v8787, %v8786
    %v8801 = vpack.c.bf16 %v8789, %v8788
    %v8802 = vpack.c.bf16 %v8791, %v8790
    %v8803 = vpack.c.bf16 %v8793, %v8792
    %v8804 = vpack.c.bf16 %v8795, %v8794
    %v8805 = vpack.c.bf16 %v8797, %v8796
    %s8806 = scalar_lea.vmem %s8, 64
    %v8807 = vld [vmem:[%s8806] sm:$0xf]
    %v8808 = vld [vmem:[%s8806 + $0x4] sm:$0xf]
    %v8809 = vld [vmem:[%s8806 + $0x8] sm:$0xf]
    %v8810 = vld [vmem:[%s8806 + $0xc] sm:$0xf]
    %v8811 = vld [vmem:[%s8806 + $0x10] sm:$0xf]
    %v8812 = vld [vmem:[%s8806 + $0x14] sm:$0xf]
    %v8813 = vld [vmem:[%s8806 + $0x18] sm:$0xf]
    %v8814 = vld [vmem:[%s8806 + $0x1c] sm:$0xf]
    %s8815 = scalar_lea.vmem %s9, 2
    %v8816 = vld [vmem:[%s8815] sm:$0x1]
    %v8818 = vlaneseq
    %v8819 = vshrl.u32 %v8818, 7
    %v8820 = vsub.s32 0, %v8819
    %v8821 = vrot.slane %v8816, %v8820
    %v8831 = vunpack.c.l.b16 %v8807
    %v8832 = vunpack.c.l.b16 %v8808
    %v8833 = vunpack.c.l.b16 %v8809
    %v8834 = vunpack.c.l.b16 %v8810
    %v8835 = vunpack.c.l.b16 %v8811
    %v8836 = vunpack.c.l.b16 %v8812
    %v8837 = vunpack.c.l.b16 %v8813
    %v8838 = vunpack.c.l.b16 %v8814
    %v8839 = vpack.c.b16 %v8832, %v8831
    %v8840 = vpack.c.b16 %v8834, %v8833
    %v8841 = vpack.c.b16 %v8836, %v8835
    %v8842 = vpack.c.b16 %v8838, %v8837
    %v8848 = vsel %vm296, %v8798, 0
    %v8851 = vsel %vm296, %v8799, 0
    %v8854 = vsel %vm296, %v8800, 0
    %v8857 = vsel %vm296, %v8801, 0
    %v8860 = vsel %vm296, %v8802, 0
    %v8863 = vsel %vm296, %v8803, 0
    %v8866 = vsel %vm296, %v8804, 0
    %v8869 = vsel %vm296, %v8805, 0
    %8871 = vmatprep.subr.bf16.mxu0 0
    %8872 = vmatpush1.bf16.msra.mxu0 %v8839
    %8873 = vmatprep.subr.bf16.mxu0 0
    %8874 = vmatpush1.bf16.msra.mxu0 %v8840
    %8875 = vmatprep.subr.bf16.mxu0 0
    %8876 = vmatpush1.bf16.msra.mxu0 %v8841
    %8877 = vmatprep.subr.bf16.mxu0 0
    %8878 = vmatpush1.bf16.msra.mxu0 %v8842
    %8879 = vmatprep.subr.bf16.mxu0 0
    %8880 = vmatpush1.bf16.msra.mxu0 0
    %8881 = vmatprep.subr.bf16.mxu0 0
    %8882 = vmatpush1.bf16.msra.mxu0 0
    %8883 = vmatprep.subr.bf16.mxu0 0
    %8884 = vmatpush1.bf16.msra.mxu0 0
    %8885 = vmatprep.subr.bf16.mxu0 0
    %8886 = vmatpush1.bf16.msra.mxu0 0
    %8887 = vmatprep.subr.bf16.mxu0 0
    %8888 = vmatpush1.bf16.msra.mxu0 0
    %8889 = vmatprep.subr.bf16.mxu0 0
    %8890 = vmatpush1.bf16.msra.mxu0 0
    %8891 = vmatprep.subr.bf16.mxu0 0
    %8892 = vmatpush1.bf16.msra.mxu0 0
    %8893 = vmatprep.subr.bf16.mxu0 0
    %8894 = vmatpush1.bf16.msra.mxu0 0
    %8895 = vmatprep.subr.bf16.mxu0 0
    %8896 = vmatpush1.bf16.msra.mxu0 0
    %8897 = vmatprep.subr.bf16.mxu0 0
    %8898 = vmatpush1.bf16.msra.mxu0 0
    %8899 = vmatprep.subr.bf16.mxu0 0
    %8900 = vmatpush1.bf16.msra.mxu0 0
    %8901 = vmatprep.subr.bf16.mxu0 0
    %8902 = vmatpush1.bf16.msra.mxu0 0
    %8903 = vmatprep.mubr.bf16.mxu0 0
    %8904 = vmatmul.mubr.bf16.gmra.mrb[0].mxu0 %v8848
    %v8905 = vpop.f32.mrb[0].mxu0
    %v8906 = vadd.f32 %v8821, %v8905
    %v8907 = vpop.f32.mrb[0].mxu0
    %v8908 = vpop.f32.mrb[0].mxu0
    %v8909 = vadd.f32 %v8821, %v8908
    %v8910 = vpop.f32.mrb[0].mxu0
    %8911 = vmatprep.mubr.bf16.mxu0 0
    %8912 = vmatmul.mubr.bf16.gmra.mrb[0].mxu0 %v8851
    %v8913 = vpop.f32.mrb[0].mxu0
    %v8914 = vadd.f32 %v8821, %v8913
    %v8915 = vpop.f32.mrb[0].mxu0
    %v8916 = vpop.f32.mrb[0].mxu0
    %v8917 = vadd.f32 %v8821, %v8916
    %v8918 = vpop.f32.mrb[0].mxu0
    %8919 = vmatprep.mubr.bf16.mxu0 0
    %8920 = vmatmul.mubr.bf16.gmra.mrb[0].mxu0 %v8854
    %v8921 = vpop.f32.mrb[0].mxu0
    %v8922 = vadd.f32 %v8821, %v8921
    %v8923 = vpop.f32.mrb[0].mxu0
    %v8924 = vpop.f32.mrb[0].mxu0
    %v8925 = vadd.f32 %v8821, %v8924
    %v8926 = vpop.f32.mrb[0].mxu0
    %8927 = vmatprep.mubr.bf16.mxu0 0
    %8928 = vmatmul.mubr.bf16.gmra.mrb[0].mxu0 %v8857
    %v8929 = vpop.f32.mrb[0].mxu0
    %v8930 = vadd.f32 %v8821, %v8929
    %v8931 = vpop.f32.mrb[0].mxu0
    %v8932 = vpop.f32.mrb[0].mxu0
    %v8933 = vadd.f32 %v8821, %v8932
    %v8934 = vpop.f32.mrb[0].mxu0
    %8935 = vmatprep.mubr.bf16.mxu0 0
    %8936 = vmatmul.mubr.bf16.gmra.mrb[0].mxu0 %v8860
    %v8937 = vpop.f32.mrb[0].mxu0
    %v8938 = vadd.f32 %v8821, %v8937
    %v8939 = vpop.f32.mrb[0].mxu0
    %v8940 = vpop.f32.mrb[0].mxu0
    %v8941 = vadd.f32 %v8821, %v8940
    %v8942 = vpop.f32.mrb[0].mxu0
    %8943 = vmatprep.mubr.bf16.mxu0 0
    %8944 = vmatmul.mubr.bf16.gmra.mrb[0].mxu0 %v8863
    %v8945 = vpop.f32.mrb[0].mxu0
    %v8946 = vadd.f32 %v8821, %v8945
    %v8947 = vpop.f32.mrb[0].mxu0
    %v8948 = vpop.f32.mrb[0].mxu0
    %v8949 = vadd.f32 %v8821, %v8948
    %v8950 = vpop.f32.mrb[0].mxu0
    %8951 = vmatprep.mubr.bf16.mxu0 0
    %8952 = vmatmul.mubr.bf16.gmra.mrb[0].mxu0 %v8866
    %v8953 = vpop.f32.mrb[0].mxu0
    %v8954 = vadd.f32 %v8821, %v8953
    %v8955 = vpop.f32.mrb[0].mxu0
    %v8956 = vpop.f32.mrb[0].mxu0
    %v8957 = vadd.f32 %v8821, %v8956
    %v8958 = vpop.f32.mrb[0].mxu0
    %8959 = vmatprep.mubr.bf16.mxu0 0
    %8960 = vmatmul.mubr.bf16.gmra.mrb[0].mxu0 %v8869
    %v8961 = vpop.f32.mrb[0].mxu0
    %v8962 = vadd.f32 %v8821, %v8961
    %v8963 = vpop.f32.mrb[0].mxu0
    %v8964 = vpop.f32.mrb[0].mxu0
    %v8965 = vadd.f32 %v8821, %v8964
    %v8966 = vpop.f32.mrb[0].mxu0
    %8967 = vdwg.mxu0
    %v8968 = vadd.f32 %v8906, %v6730
    %v8969 = vadd.f32 %v8909, %v6731
    %v8970 = vadd.f32 %v8914, %v6732
    %v8971 = vadd.f32 %v8917, %v6733
    %v8972 = vadd.f32 %v8922, %v6734
    %v8973 = vadd.f32 %v8925, %v6735
    %v8974 = vadd.f32 %v8930, %v6736
    %v8975 = vadd.f32 %v8933, %v6737
    %v8976 = vadd.f32 %v8938, %v6738
    %v8977 = vadd.f32 %v8941, %v6739
    %v8978 = vadd.f32 %v8946, %v6740
    %v8979 = vadd.f32 %v8949, %v6741
    %v8980 = vadd.f32 %v8954, %v6742
    %v8981 = vadd.f32 %v8957, %v6743
    %v8982 = vadd.f32 %v8962, %v6744
    %v8983 = vadd.f32 %v8965, %v6745
    %s8984 = scalar_lea.vmem %s10, 2
    %v8985 = vld [vmem:[%s8984] sm:$0x1]
    %s8986 = scalar_lea.vmem %s11, 2
    %v8987 = vld [vmem:[%s8986] sm:$0x1]
    %v8988 = vsel %vm296, %v8968, 0.0
    %8989 = vadd.xlane.f32.xlu0 %v8988
    %v8990 = vpop.xlane.xlu0 %8989
    %v8991 = vsel %vm296, %v8969, 0.0
    %8992 = vadd.xlane.f32.xlu0 %v8991
    %v8993 = vpop.xlane.xlu0 %8992
    %v8994 = vsel %vm296, %v8970, 0.0
    %8995 = vadd.xlane.f32.xlu0 %v8994
    %v8996 = vpop.xlane.xlu0 %8995
    %v8997 = vsel %vm296, %v8971, 0.0
    %8998 = vadd.xlane.f32.xlu0 %v8997
    %v8999 = vpop.xlane.xlu0 %8998
    %v9000 = vsel %vm296, %v8972, 0.0
    %9001 = vadd.xlane.f32.xlu0 %v9000
    %v9002 = vpop.xlane.xlu0 %9001
    %v9003 = vsel %vm296, %v8973, 0.0
    %9004 = vadd.xlane.f32.xlu0 %v9003
    %v9005 = vpop.xlane.xlu0 %9004
    %v9006 = vsel %vm296, %v8974, 0.0
    %9007 = vadd.xlane.f32.xlu0 %v9006
    %v9008 = vpop.xlane.xlu0 %9007
    %v9009 = vsel %vm296, %v8975, 0.0
    %9010 = vadd.xlane.f32.xlu0 %v9009
    %v9011 = vpop.xlane.xlu0 %9010
    %v9012 = vsel %vm296, %v8976, 0.0
    %9013 = vadd.xlane.f32.xlu0 %v9012
    %v9014 = vpop.xlane.xlu0 %9013
    %v9015 = vsel %vm296, %v8977, 0.0
    %9016 = vadd.xlane.f32.xlu0 %v9015
    %v9017 = vpop.xlane.xlu0 %9016
    %v9018 = vsel %vm296, %v8978, 0.0
    %9019 = vadd.xlane.f32.xlu0 %v9018
    %v9020 = vpop.xlane.xlu0 %9019
    %v9021 = vsel %vm296, %v8979, 0.0
    %9022 = vadd.xlane.f32.xlu0 %v9021
    %v9023 = vpop.xlane.xlu0 %9022
    %v9024 = vsel %vm296, %v8980, 0.0
    %9025 = vadd.xlane.f32.xlu0 %v9024
    %v9026 = vpop.xlane.xlu0 %9025
    %v9027 = vsel %vm296, %v8981, 0.0
    %9028 = vadd.xlane.f32.xlu0 %v9027
    %v9029 = vpop.xlane.xlu0 %9028
    %v9030 = vsel %vm296, %v8982, 0.0
    %9031 = vadd.xlane.f32.xlu0 %v9030
    %v9032 = vpop.xlane.xlu0 %9031
    %v9033 = vsel %vm296, %v8983, 0.0
    %9034 = vadd.xlane.f32.xlu0 %v9033
    %v9035 = vpop.xlane.xlu0 %9034
    %v9036 = vmul.f32 %v8990, %v2531
    %v9037 = vmul.f32 %v8993, %v2531
    %v9038 = vmul.f32 %v8996, %v2531
    %v9039 = vmul.f32 %v8999, %v2531
    %v9040 = vmul.f32 %v9002, %v2531
    %v9041 = vmul.f32 %v9005, %v2531
    %v9042 = vmul.f32 %v9008, %v2531
    %v9043 = vmul.f32 %v9011, %v2531
    %v9044 = vmul.f32 %v9014, %v2531
    %v9045 = vmul.f32 %v9017, %v2531
    %v9046 = vmul.f32 %v9020, %v2531
    %v9047 = vmul.f32 %v9023, %v2531
    %v9048 = vmul.f32 %v9026, %v2531
    %v9049 = vmul.f32 %v9029, %v2531
    %v9050 = vmul.f32 %v9032, %v2531
    %v9051 = vmul.f32 %v9035, %v2531
    %v9052 = vsub.f32 %v8968, %v9036
    %v9053 = vsub.f32 %v8969, %v9037
    %v9054 = vsub.f32 %v8970, %v9038
    %v9055 = vsub.f32 %v8971, %v9039
    %v9056 = vsub.f32 %v8972, %v9040
    %v9057 = vsub.f32 %v8973, %v9041
    %v9058 = vsub.f32 %v8974, %v9042
    %v9059 = vsub.f32 %v8975, %v9043
    %v9060 = vsub.f32 %v8976, %v9044
    %v9061 = vsub.f32 %v8977, %v9045
    %v9062 = vsub.f32 %v8978, %v9046
    %v9063 = vsub.f32 %v8979, %v9047
    %v9064 = vsub.f32 %v8980, %v9048
    %v9065 = vsub.f32 %v8981, %v9049
    %v9066 = vsub.f32 %v8982, %v9050
    %v9067 = vsub.f32 %v8983, %v9051
    %v9068 = vmul.f32 %v9052, %v9052
    %v9069 = vmul.f32 %v9053, %v9053
    %v9070 = vmul.f32 %v9054, %v9054
    %v9071 = vmul.f32 %v9055, %v9055
    %v9072 = vmul.f32 %v9056, %v9056
    %v9073 = vmul.f32 %v9057, %v9057
    %v9074 = vmul.f32 %v9058, %v9058
    %v9075 = vmul.f32 %v9059, %v9059
    %v9076 = vmul.f32 %v9060, %v9060
    %v9077 = vmul.f32 %v9061, %v9061
    %v9078 = vmul.f32 %v9062, %v9062
    %v9079 = vmul.f32 %v9063, %v9063
    %v9080 = vmul.f32 %v9064, %v9064
    %v9081 = vmul.f32 %v9065, %v9065
    %v9082 = vmul.f32 %v9066, %v9066
    %v9083 = vmul.f32 %v9067, %v9067
    %v9084 = vsel %vm296, %v9068, 0.0
    %9085 = vadd.xlane.f32.xlu0 %v9084
    %v9086 = vpop.xlane.xlu0 %9085
    %v9087 = vsel %vm296, %v9069, 0.0
    %9088 = vadd.xlane.f32.xlu0 %v9087
    %v9089 = vpop.xlane.xlu0 %9088
    %v9090 = vsel %vm296, %v9070, 0.0
    %9091 = vadd.xlane.f32.xlu0 %v9090
    %v9092 = vpop.xlane.xlu0 %9091
    %v9093 = vsel %vm296, %v9071, 0.0
    %9094 = vadd.xlane.f32.xlu0 %v9093
    %v9095 = vpop.xlane.xlu0 %9094
    %v9096 = vsel %vm296, %v9072, 0.0
    %9097 = vadd.xlane.f32.xlu0 %v9096
    %v9098 = vpop.xlane.xlu0 %9097
    %v9099 = vsel %vm296, %v9073, 0.0
    %9100 = vadd.xlane.f32.xlu0 %v9099
    %v9101 = vpop.xlane.xlu0 %9100
    %v9102 = vsel %vm296, %v9074, 0.0
    %9103 = vadd.xlane.f32.xlu0 %v9102
    %v9104 = vpop.xlane.xlu0 %9103
    %v9105 = vsel %vm296, %v9075, 0.0
    %9106 = vadd.xlane.f32.xlu0 %v9105
    %v9107 = vpop.xlane.xlu0 %9106
    %v9108 = vsel %vm296, %v9076, 0.0
    %9109 = vadd.xlane.f32.xlu0 %v9108
    %v9110 = vpop.xlane.xlu0 %9109
    %v9111 = vsel %vm296, %v9077, 0.0
    %9112 = vadd.xlane.f32.xlu0 %v9111
    %v9113 = vpop.xlane.xlu0 %9112
    %v9114 = vsel %vm296, %v9078, 0.0
    %9115 = vadd.xlane.f32.xlu0 %v9114
    %v9116 = vpop.xlane.xlu0 %9115
    %v9117 = vsel %vm296, %v9079, 0.0
    %9118 = vadd.xlane.f32.xlu0 %v9117
    %v9119 = vpop.xlane.xlu0 %9118
    %v9120 = vsel %vm296, %v9080, 0.0
    %9121 = vadd.xlane.f32.xlu0 %v9120
    %v9122 = vpop.xlane.xlu0 %9121
    %v9123 = vsel %vm296, %v9081, 0.0
    %9124 = vadd.xlane.f32.xlu0 %v9123
    %v9125 = vpop.xlane.xlu0 %9124
    %v9126 = vsel %vm296, %v9082, 0.0
    %9127 = vadd.xlane.f32.xlu0 %v9126
    %v9128 = vpop.xlane.xlu0 %9127
    %v9129 = vsel %vm296, %v9083, 0.0
    %9130 = vadd.xlane.f32.xlu0 %v9129
    %v9131 = vpop.xlane.xlu0 %9130
    %v9132 = vmul.f32 %v9086, %v2531
    %v9133 = vmul.f32 %v9089, %v2531
    %v9134 = vmul.f32 %v9092, %v2531
    %v9135 = vmul.f32 %v9095, %v2531
    %v9136 = vmul.f32 %v9098, %v2531
    %v9137 = vmul.f32 %v9101, %v2531
    %v9138 = vmul.f32 %v9104, %v2531
    %v9139 = vmul.f32 %v9107, %v2531
    %v9140 = vmul.f32 %v9110, %v2531
    %v9141 = vmul.f32 %v9113, %v2531
    %v9142 = vmul.f32 %v9116, %v2531
    %v9143 = vmul.f32 %v9119, %v2531
    %v9144 = vmul.f32 %v9122, %v2531
    %v9145 = vmul.f32 %v9125, %v2531
    %v9146 = vmul.f32 %v9128, %v2531
    %v9147 = vmul.f32 %v9131, %v2531
    %v9148 = vadd.f32 %v9132, 1e-05
    %v9149 = vadd.f32 %v9133, 1e-05
    %v9150 = vadd.f32 %v9134, 1e-05
    %v9151 = vadd.f32 %v9135, 1e-05
    %v9152 = vadd.f32 %v9136, 1e-05
    %v9153 = vadd.f32 %v9137, 1e-05
    %v9154 = vadd.f32 %v9138, 1e-05
    %v9155 = vadd.f32 %v9139, 1e-05
    %v9156 = vadd.f32 %v9140, 1e-05
    %v9157 = vadd.f32 %v9141, 1e-05
    %v9158 = vadd.f32 %v9142, 1e-05
    %v9159 = vadd.f32 %v9143, 1e-05
    %v9160 = vadd.f32 %v9144, 1e-05
    %v9161 = vadd.f32 %v9145, 1e-05
    %v9162 = vadd.f32 %v9146, 1e-05
    %v9163 = vadd.f32 %v9147, 1e-05
    %v9164 = vrsqrt.pop %v9148
    %v9165 = vrsqrt.pop %v9149
    %v9166 = vrsqrt.pop %v9150
    %v9167 = vrsqrt.pop %v9151
    %v9168 = vrsqrt.pop %v9152
    %v9169 = vrsqrt.pop %v9153
    %v9170 = vrsqrt.pop %v9154
    %v9171 = vrsqrt.pop %v9155
    %v9172 = vrsqrt.pop %v9156
    %v9173 = vrsqrt.pop %v9157
    %v9174 = vrsqrt.pop %v9158
    %v9175 = vrsqrt.pop %v9159
    %v9176 = vrsqrt.pop %v9160
    %v9177 = vrsqrt.pop %v9161
    %v9178 = vrsqrt.pop %v9162
    %v9179 = vrsqrt.pop %v9163
    %v9180 = vmul.f32 %v9052, %v9164
    %v9181 = vmul.f32 %v9053, %v9165
    %v9182 = vmul.f32 %v9054, %v9166
    %v9183 = vmul.f32 %v9055, %v9167
    %v9184 = vmul.f32 %v9056, %v9168
    %v9185 = vmul.f32 %v9057, %v9169
    %v9186 = vmul.f32 %v9058, %v9170
    %v9187 = vmul.f32 %v9059, %v9171
    %v9188 = vmul.f32 %v9060, %v9172
    %v9189 = vmul.f32 %v9061, %v9173
    %v9190 = vmul.f32 %v9062, %v9174
    %v9191 = vmul.f32 %v9063, %v9175
    %v9192 = vmul.f32 %v9064, %v9176
    %v9193 = vmul.f32 %v9065, %v9177
    %v9194 = vmul.f32 %v9066, %v9178
    %v9195 = vmul.f32 %v9067, %v9179
    %v9197 = vlaneseq
    %v9198 = vshrl.u32 %v9197, 7
    %v9199 = vsub.s32 0, %v9198
    %v9200 = vrot.slane %v8985, %v9199
    %v9202 = vmul.f32 %v9180, %v9200
    %v9203 = vmul.f32 %v9181, %v9200
    %v9204 = vmul.f32 %v9182, %v9200
    %v9205 = vmul.f32 %v9183, %v9200
    %v9206 = vmul.f32 %v9184, %v9200
    %v9207 = vmul.f32 %v9185, %v9200
    %v9208 = vmul.f32 %v9186, %v9200
    %v9209 = vmul.f32 %v9187, %v9200
    %v9210 = vmul.f32 %v9188, %v9200
    %v9211 = vmul.f32 %v9189, %v9200
    %v9212 = vmul.f32 %v9190, %v9200
    %v9213 = vmul.f32 %v9191, %v9200
    %v9214 = vmul.f32 %v9192, %v9200
    %v9215 = vmul.f32 %v9193, %v9200
    %v9216 = vmul.f32 %v9194, %v9200
    %v9217 = vmul.f32 %v9195, %v9200
    %v9219 = vlaneseq
    %v9220 = vshrl.u32 %v9219, 7
    %v9221 = vsub.s32 0, %v9220
    %v9222 = vrot.slane %v8987, %v9221
    %v9224 = vadd.f32 %v9202, %v9222
    %v9225 = vadd.f32 %v9203, %v9222
    %v9226 = vadd.f32 %v9204, %v9222
    %v9227 = vadd.f32 %v9205, %v9222
    %v9228 = vadd.f32 %v9206, %v9222
    %v9229 = vadd.f32 %v9207, %v9222
    %v9230 = vadd.f32 %v9208, %v9222
    %v9231 = vadd.f32 %v9209, %v9222
    %v9232 = vadd.f32 %v9210, %v9222
    %v9233 = vadd.f32 %v9211, %v9222
    %v9234 = vadd.f32 %v9212, %v9222
    %v9235 = vadd.f32 %v9213, %v9222
    %v9236 = vadd.f32 %v9214, %v9222
    %v9237 = vadd.f32 %v9215, %v9222
    %v9238 = vadd.f32 %v9216, %v9222
    %v9239 = vadd.f32 %v9217, %v9222
    %v9240 = vpack.c.bf16 %v9225, %v9224
    %v9241 = vpack.c.bf16 %v9227, %v9226
    %v9242 = vpack.c.bf16 %v9229, %v9228
    %v9243 = vpack.c.bf16 %v9231, %v9230
    %v9244 = vpack.c.bf16 %v9233, %v9232
    %v9245 = vpack.c.bf16 %v9235, %v9234
    %v9246 = vpack.c.bf16 %v9237, %v9236
    %v9247 = vpack.c.bf16 %v9239, %v9238
    %s9248 = scalar_lea.vmem %s12, 128
    %v9249 = vld [vmem:[%s9248] sm:$0xff]
    %v9250 = vld [vmem:[%s9248 + $0x8] sm:$0xff]
    %v9251 = vld [vmem:[%s9248 + $0x10] sm:$0xff]
    %v9252 = vld [vmem:[%s9248 + $0x18] sm:$0xff]
    %v9253 = vld [vmem:[%s9248 + $0x20] sm:$0xff]
    %v9254 = vld [vmem:[%s9248 + $0x28] sm:$0xff]
    %v9255 = vld [vmem:[%s9248 + $0x30] sm:$0xff]
    %v9256 = vld [vmem:[%s9248 + $0x38] sm:$0xff]
    %s9257 = scalar_lea.vmem %s13, 4
    %v9258 = vld [vmem:[%s9257] sm:$0x3]
    %v9260 = vlaneseq
    %v9261 = vshrl.u32 %v9260, 7
    %v9262 = vsub.s32 0, %v9261
    %v9263 = vrot.slane %v9258, %v9262
    %v9264 = vlaneseq
    %v9265 = vshrl.u32 %v9264, 7
    %v9266 = vsub.s32 1, %v9265
    %v9267 = vrot.slane %v9258, %v9266
    %v9278 = vunpack.c.l.b16 %v9249
    %v9279 = vunpack.c.h.b16 %v9249
    %v9280 = vunpack.c.l.b16 %v9250
    %v9281 = vunpack.c.h.b16 %v9250
    %v9282 = vunpack.c.l.b16 %v9251
    %v9283 = vunpack.c.h.b16 %v9251
    %v9284 = vunpack.c.l.b16 %v9252
    %v9285 = vunpack.c.h.b16 %v9252
    %v9286 = vunpack.c.l.b16 %v9253
    %v9287 = vunpack.c.h.b16 %v9253
    %v9288 = vunpack.c.l.b16 %v9254
    %v9289 = vunpack.c.h.b16 %v9254
    %v9290 = vunpack.c.l.b16 %v9255
    %v9291 = vunpack.c.h.b16 %v9255
    %v9292 = vunpack.c.l.b16 %v9256
    %v9293 = vunpack.c.h.b16 %v9256
    %v9294 = vpack.c.b16 %v9280, %v9278
    %v9295 = vpack.c.b16 %v9281, %v9279
    %v9296 = vpack.c.b16 %v9284, %v9282
    %v9297 = vpack.c.b16 %v9285, %v9283
    %v9298 = vpack.c.b16 %v9288, %v9286
    %v9299 = vpack.c.b16 %v9289, %v9287
    %v9300 = vpack.c.b16 %v9292, %v9290
    %v9301 = vpack.c.b16 %v9293, %v9291
    %v9311 = vsel %vm296, %v9240, 0
    %v9314 = vsel %vm296, %v9241, 0
    %v9317 = vsel %vm296, %v9242, 0
    %v9320 = vsel %vm296, %v9243, 0
    %v9323 = vsel %vm296, %v9244, 0
    %v9326 = vsel %vm296, %v9245, 0
    %v9329 = vsel %vm296, %v9246, 0
    %v9332 = vsel %vm296, %v9247, 0
    %9334 = vmatprep.subr.bf16.mxu0 %v9295
    %9335 = vmatpush1.bf16.msra.mxu0 %v9294
    %9336 = vmatprep.subr.bf16.mxu0 %v9297
    %9337 = vmatpush1.bf16.msra.mxu0 %v9296
    %9338 = vmatprep.subr.bf16.mxu0 %v9299
    %9339 = vmatpush1.bf16.msra.mxu0 %v9298
    %9340 = vmatprep.subr.bf16.mxu0 %v9301
    %9341 = vmatpush1.bf16.msra.mxu0 %v9300
    %9342 = vmatprep.subr.bf16.mxu0 0
    %9343 = vmatpush1.bf16.msra.mxu0 0
    %9344 = vmatprep.subr.bf16.mxu0 0
    %9345 = vmatpush1.bf16.msra.mxu0 0
    %9346 = vmatprep.subr.bf16.mxu0 0
    %9347 = vmatpush1.bf16.msra.mxu0 0
    %9348 = vmatprep.subr.bf16.mxu0 0
    %9349 = vmatpush1.bf16.msra.mxu0 0
    %9350 = vmatprep.subr.bf16.mxu0 0
    %9351 = vmatpush1.bf16.msra.mxu0 0
    %9352 = vmatprep.subr.bf16.mxu0 0
    %9353 = vmatpush1.bf16.msra.mxu0 0
    %9354 = vmatprep.subr.bf16.mxu0 0
    %9355 = vmatpush1.bf16.msra.mxu0 0
    %9356 = vmatprep.subr.bf16.mxu0 0
    %9357 = vmatpush1.bf16.msra.mxu0 0
    %9358 = vmatprep.subr.bf16.mxu0 0
    %9359 = vmatpush1.bf16.msra.mxu0 0
    %9360 = vmatprep.subr.bf16.mxu0 0
    %9361 = vmatpush1.bf16.msra.mxu0 0
    %9362 = vmatprep.subr.bf16.mxu0 0
    %9363 = vmatpush1.bf16.msra.mxu0 0
    %9364 = vmatprep.subr.bf16.mxu0 0
    %9365 = vmatpush1.bf16.msra.mxu0 0
    %9366 = vmatprep.mubr.bf16.mxu0 0
    %9367 = vmatmul.mubr.bf16.gmra.mrb[0].mxu0 %v9311
    %v9368 = vpop.f32.mrb[0].mxu0
    %v9369 = vadd.f32 %v9263, %v9368
    %v9370 = vpop.f32.mrb[0].mxu0
    %v9371 = vadd.f32 %v9267, %v9370
    %v9372 = vpop.f32.mrb[0].mxu0
    %v9373 = vadd.f32 %v9263, %v9372
    %v9374 = vpop.f32.mrb[0].mxu0
    %v9375 = vadd.f32 %v9267, %v9374
    %9376 = vmatprep.mubr.bf16.mxu0 0
    %9377 = vmatmul.mubr.bf16.gmra.mrb[0].mxu0 %v9314
    %v9378 = vpop.f32.mrb[0].mxu0
    %v9379 = vadd.f32 %v9263, %v9378
    %v9380 = vpop.f32.mrb[0].mxu0
    %v9381 = vadd.f32 %v9267, %v9380
    %v9382 = vpop.f32.mrb[0].mxu0
    %v9383 = vadd.f32 %v9263, %v9382
    %v9384 = vpop.f32.mrb[0].mxu0
    %v9385 = vadd.f32 %v9267, %v9384
    %9386 = vmatprep.mubr.bf16.mxu0 0
    %9387 = vmatmul.mubr.bf16.gmra.mrb[0].mxu0 %v9317
    %v9388 = vpop.f32.mrb[0].mxu0
    %v9389 = vadd.f32 %v9263, %v9388
    %v9390 = vpop.f32.mrb[0].mxu0
    %v9391 = vadd.f32 %v9267, %v9390
    %v9392 = vpop.f32.mrb[0].mxu0
    %v9393 = vadd.f32 %v9263, %v9392
    %v9394 = vpop.f32.mrb[0].mxu0
    %v9395 = vadd.f32 %v9267, %v9394
    %9396 = vmatprep.mubr.bf16.mxu0 0
    %9397 = vmatmul.mubr.bf16.gmra.mrb[0].mxu0 %v9320
    %v9398 = vpop.f32.mrb[0].mxu0
    %v9399 = vadd.f32 %v9263, %v9398
    %v9400 = vpop.f32.mrb[0].mxu0
    %v9401 = vadd.f32 %v9267, %v9400
    %v9402 = vpop.f32.mrb[0].mxu0
    %v9403 = vadd.f32 %v9263, %v9402
    %v9404 = vpop.f32.mrb[0].mxu0
    %v9405 = vadd.f32 %v9267, %v9404
    %9406 = vmatprep.mubr.bf16.mxu0 0
    %9407 = vmatmul.mubr.bf16.gmra.mrb[0].mxu0 %v9323
    %v9408 = vpop.f32.mrb[0].mxu0
    %v9409 = vadd.f32 %v9263, %v9408
    %v9410 = vpop.f32.mrb[0].mxu0
    %v9411 = vadd.f32 %v9267, %v9410
    %v9412 = vpop.f32.mrb[0].mxu0
    %v9413 = vadd.f32 %v9263, %v9412
    %v9414 = vpop.f32.mrb[0].mxu0
    %v9415 = vadd.f32 %v9267, %v9414
    %9416 = vmatprep.mubr.bf16.mxu0 0
    %9417 = vmatmul.mubr.bf16.gmra.mrb[0].mxu0 %v9326
    %v9418 = vpop.f32.mrb[0].mxu0
    %v9419 = vadd.f32 %v9263, %v9418
    %v9420 = vpop.f32.mrb[0].mxu0
    %v9421 = vadd.f32 %v9267, %v9420
    %v9422 = vpop.f32.mrb[0].mxu0
    %v9423 = vadd.f32 %v9263, %v9422
    %v9424 = vpop.f32.mrb[0].mxu0
    %v9425 = vadd.f32 %v9267, %v9424
    %9426 = vmatprep.mubr.bf16.mxu0 0
    %9427 = vmatmul.mubr.bf16.gmra.mrb[0].mxu0 %v9329
    %v9428 = vpop.f32.mrb[0].mxu0
    %v9429 = vadd.f32 %v9263, %v9428
    %v9430 = vpop.f32.mrb[0].mxu0
    %v9431 = vadd.f32 %v9267, %v9430
    %v9432 = vpop.f32.mrb[0].mxu0
    %v9433 = vadd.f32 %v9263, %v9432
    %v9434 = vpop.f32.mrb[0].mxu0
    %v9435 = vadd.f32 %v9267, %v9434
    %9436 = vmatprep.mubr.bf16.mxu0 0
    %9437 = vmatmul.mubr.bf16.gmra.mrb[0].mxu0 %v9332
    %v9438 = vpop.f32.mrb[0].mxu0
    %v9439 = vadd.f32 %v9263, %v9438
    %v9440 = vpop.f32.mrb[0].mxu0
    %v9441 = vadd.f32 %v9267, %v9440
    %v9442 = vpop.f32.mrb[0].mxu0
    %v9443 = vadd.f32 %v9263, %v9442
    %v9444 = vpop.f32.mrb[0].mxu0
    %v9445 = vadd.f32 %v9267, %v9444
    %9446 = vdwg.mxu0
    %v9447 = vmax.f32 %v9369, 0.0
    %v9448 = vmax.f32 %v9371, 0.0
    %v9449 = vmax.f32 %v9373, 0.0
    %v9450 = vmax.f32 %v9375, 0.0
    %v9451 = vmax.f32 %v9379, 0.0
    %v9452 = vmax.f32 %v9381, 0.0
    %v9453 = vmax.f32 %v9383, 0.0
    %v9454 = vmax.f32 %v9385, 0.0
    %v9455 = vmax.f32 %v9389, 0.0
    %v9456 = vmax.f32 %v9391, 0.0
    %v9457 = vmax.f32 %v9393, 0.0
    %v9458 = vmax.f32 %v9395, 0.0
    %v9459 = vmax.f32 %v9399, 0.0
    %v9460 = vmax.f32 %v9401, 0.0
    %v9461 = vmax.f32 %v9403, 0.0
    %v9462 = vmax.f32 %v9405, 0.0
    %v9463 = vmax.f32 %v9409, 0.0
    %v9464 = vmax.f32 %v9411, 0.0
    %v9465 = vmax.f32 %v9413, 0.0
    %v9466 = vmax.f32 %v9415, 0.0
    %v9467 = vmax.f32 %v9419, 0.0
    %v9468 = vmax.f32 %v9421, 0.0
    %v9469 = vmax.f32 %v9423, 0.0
    %v9470 = vmax.f32 %v9425, 0.0
    %v9471 = vmax.f32 %v9429, 0.0
    %v9472 = vmax.f32 %v9431, 0.0
    %v9473 = vmax.f32 %v9433, 0.0
    %v9474 = vmax.f32 %v9435, 0.0
    %v9475 = vmax.f32 %v9439, 0.0
    %v9476 = vmax.f32 %v9441, 0.0
    %v9477 = vmax.f32 %v9443, 0.0
    %v9478 = vmax.f32 %v9445, 0.0
    %v9479 = vpack.c.bf16 %v9449, %v9447
    %v9480 = vpack.c.bf16 %v9450, %v9448
    %v9481 = vpack.c.bf16 %v9453, %v9451
    %v9482 = vpack.c.bf16 %v9454, %v9452
    %v9483 = vpack.c.bf16 %v9457, %v9455
    %v9484 = vpack.c.bf16 %v9458, %v9456
    %v9485 = vpack.c.bf16 %v9461, %v9459
    %v9486 = vpack.c.bf16 %v9462, %v9460
    %v9487 = vpack.c.bf16 %v9465, %v9463
    %v9488 = vpack.c.bf16 %v9466, %v9464
    %v9489 = vpack.c.bf16 %v9469, %v9467
    %v9490 = vpack.c.bf16 %v9470, %v9468
    %v9491 = vpack.c.bf16 %v9473, %v9471
    %v9492 = vpack.c.bf16 %v9474, %v9472
    %v9493 = vpack.c.bf16 %v9477, %v9475
    %v9494 = vpack.c.bf16 %v9478, %v9476
    %s9495 = scalar_lea.vmem %s14, 256
    %v9496 = vld [vmem:[%s9495] sm:$0xf]
    %v9497 = vld [vmem:[%s9495 + $0x4] sm:$0xf]
    %v9498 = vld [vmem:[%s9495 + $0x8] sm:$0xf]
    %v9499 = vld [vmem:[%s9495 + $0xc] sm:$0xf]
    %v9500 = vld [vmem:[%s9495 + $0x10] sm:$0xf]
    %v9501 = vld [vmem:[%s9495 + $0x14] sm:$0xf]
    %v9502 = vld [vmem:[%s9495 + $0x18] sm:$0xf]
    %v9503 = vld [vmem:[%s9495 + $0x1c] sm:$0xf]
    %v9504 = vld [vmem:[%s9495 + $0x20] sm:$0xf]
    %v9505 = vld [vmem:[%s9495 + $0x24] sm:$0xf]
    %v9506 = vld [vmem:[%s9495 + $0x28] sm:$0xf]
    %v9507 = vld [vmem:[%s9495 + $0x2c] sm:$0xf]
    %v9508 = vld [vmem:[%s9495 + $0x30] sm:$0xf]
    %v9509 = vld [vmem:[%s9495 + $0x34] sm:$0xf]
    %v9510 = vld [vmem:[%s9495 + $0x38] sm:$0xf]
    %v9511 = vld [vmem:[%s9495 + $0x3c] sm:$0xf]
    %v9512 = vld [vmem:[%s9495 + $0x40] sm:$0xf]
    %v9513 = vld [vmem:[%s9495 + $0x44] sm:$0xf]
    %v9514 = vld [vmem:[%s9495 + $0x48] sm:$0xf]
    %v9515 = vld [vmem:[%s9495 + $0x4c] sm:$0xf]
    %v9516 = vld [vmem:[%s9495 + $0x50] sm:$0xf]
    %v9517 = vld [vmem:[%s9495 + $0x54] sm:$0xf]
    %v9518 = vld [vmem:[%s9495 + $0x58] sm:$0xf]
    %v9519 = vld [vmem:[%s9495 + $0x5c] sm:$0xf]
    %v9520 = vld [vmem:[%s9495 + $0x60] sm:$0xf]
    %v9521 = vld [vmem:[%s9495 + $0x64] sm:$0xf]
    %v9522 = vld [vmem:[%s9495 + $0x68] sm:$0xf]
    %v9523 = vld [vmem:[%s9495 + $0x6c] sm:$0xf]
    %v9524 = vld [vmem:[%s9495 + $0x70] sm:$0xf]
    %v9525 = vld [vmem:[%s9495 + $0x74] sm:$0xf]
    %v9526 = vld [vmem:[%s9495 + $0x78] sm:$0xf]
    %v9527 = vld [vmem:[%s9495 + $0x7c] sm:$0xf]
    %s9528 = scalar_lea.vmem %s15, 2
    %v9529 = vld [vmem:[%s9528] sm:$0x1]
    %v9531 = vlaneseq
    %v9532 = vshrl.u32 %v9531, 7
    %v9533 = vsub.s32 0, %v9532
    %v9534 = vrot.slane %v9529, %v9533
    %v9568 = vunpack.c.l.b16 %v9496
    %v9569 = vunpack.c.l.b16 %v9497
    %v9570 = vunpack.c.l.b16 %v9498
    %v9571 = vunpack.c.l.b16 %v9499
    %v9572 = vunpack.c.l.b16 %v9500
    %v9573 = vunpack.c.l.b16 %v9501
    %v9574 = vunpack.c.l.b16 %v9502
    %v9575 = vunpack.c.l.b16 %v9503
    %v9576 = vunpack.c.l.b16 %v9504
    %v9577 = vunpack.c.l.b16 %v9505
    %v9578 = vunpack.c.l.b16 %v9506
    %v9579 = vunpack.c.l.b16 %v9507
    %v9580 = vunpack.c.l.b16 %v9508
    %v9581 = vunpack.c.l.b16 %v9509
    %v9582 = vunpack.c.l.b16 %v9510
    %v9583 = vunpack.c.l.b16 %v9511
    %v9584 = vunpack.c.l.b16 %v9512
    %v9585 = vunpack.c.l.b16 %v9513
    %v9586 = vunpack.c.l.b16 %v9514
    %v9587 = vunpack.c.l.b16 %v9515
    %v9588 = vunpack.c.l.b16 %v9516
    %v9589 = vunpack.c.l.b16 %v9517
    %v9590 = vunpack.c.l.b16 %v9518
    %v9591 = vunpack.c.l.b16 %v9519
    %v9592 = vunpack.c.l.b16 %v9520
    %v9593 = vunpack.c.l.b16 %v9521
    %v9594 = vunpack.c.l.b16 %v9522
    %v9595 = vunpack.c.l.b16 %v9523
    %v9596 = vunpack.c.l.b16 %v9524
    %v9597 = vunpack.c.l.b16 %v9525
    %v9598 = vunpack.c.l.b16 %v9526
    %v9599 = vunpack.c.l.b16 %v9527
    %v9600 = vpack.c.b16 %v9569, %v9568
    %v9601 = vpack.c.b16 %v9571, %v9570
    %v9602 = vpack.c.b16 %v9573, %v9572
    %v9603 = vpack.c.b16 %v9575, %v9574
    %v9604 = vpack.c.b16 %v9577, %v9576
    %v9605 = vpack.c.b16 %v9579, %v9578
    %v9606 = vpack.c.b16 %v9581, %v9580
    %v9607 = vpack.c.b16 %v9583, %v9582
    %v9608 = vpack.c.b16 %v9585, %v9584
    %v9609 = vpack.c.b16 %v9587, %v9586
    %v9610 = vpack.c.b16 %v9589, %v9588
    %v9611 = vpack.c.b16 %v9591, %v9590
    %v9612 = vpack.c.b16 %v9593, %v9592
    %v9613 = vpack.c.b16 %v9595, %v9594
    %v9614 = vpack.c.b16 %v9597, %v9596
    %v9615 = vpack.c.b16 %v9599, %v9598
    %9632 = vmatprep.subr.bf16.mxu0 0
    %9633 = vmatpush1.bf16.msra.mxu0 %v9600
    %9634 = vmatprep.subr.bf16.mxu0 0
    %9635 = vmatpush1.bf16.msra.mxu0 %v9601
    %9636 = vmatprep.subr.bf16.mxu0 0
    %9637 = vmatpush1.bf16.msra.mxu0 %v9602
    %9638 = vmatprep.subr.bf16.mxu0 0
    %9639 = vmatpush1.bf16.msra.mxu0 %v9603
    %9640 = vmatprep.subr.bf16.mxu0 0
    %9641 = vmatpush1.bf16.msra.mxu0 %v9604
    %9642 = vmatprep.subr.bf16.mxu0 0
    %9643 = vmatpush1.bf16.msra.mxu0 %v9605
    %9644 = vmatprep.subr.bf16.mxu0 0
    %9645 = vmatpush1.bf16.msra.mxu0 %v9606
    %9646 = vmatprep.subr.bf16.mxu0 0
    %9647 = vmatpush1.bf16.msra.mxu0 %v9607
    %9648 = vmatprep.subr.bf16.mxu0 0
    %9649 = vmatpush1.bf16.msra.mxu0 %v9608
    %9650 = vmatprep.subr.bf16.mxu0 0
    %9651 = vmatpush1.bf16.msra.mxu0 %v9609
    %9652 = vmatprep.subr.bf16.mxu0 0
    %9653 = vmatpush1.bf16.msra.mxu0 %v9610
    %9654 = vmatprep.subr.bf16.mxu0 0
    %9655 = vmatpush1.bf16.msra.mxu0 %v9611
    %9656 = vmatprep.subr.bf16.mxu0 0
    %9657 = vmatpush1.bf16.msra.mxu0 %v9612
    %9658 = vmatprep.subr.bf16.mxu0 0
    %9659 = vmatpush1.bf16.msra.mxu0 %v9613
    %9660 = vmatprep.subr.bf16.mxu0 0
    %9661 = vmatpush1.bf16.msra.mxu0 %v9614
    %9662 = vmatprep.subr.bf16.mxu0 0
    %9663 = vmatpush1.bf16.msra.mxu0 %v9615
    %9664 = vmatprep.mubr.bf16.mxu0 %v9480
    %9665 = vmatmul.mubr.bf16.gmra.mrb[0].mxu0 %v9479
    %v9666 = vpop.f32.mrb[0].mxu0
    %v9667 = vadd.f32 %v9534, %v9666
    %v9668 = vpop.f32.mrb[0].mxu0
    %v9669 = vpop.f32.mrb[0].mxu0
    %v9670 = vadd.f32 %v9534, %v9669
    %v9671 = vpop.f32.mrb[0].mxu0
    %9672 = vmatprep.mubr.bf16.mxu0 %v9482
    %9673 = vmatmul.mubr.bf16.gmra.mrb[0].mxu0 %v9481
    %v9674 = vpop.f32.mrb[0].mxu0
    %v9675 = vadd.f32 %v9534, %v9674
    %v9676 = vpop.f32.mrb[0].mxu0
    %v9677 = vpop.f32.mrb[0].mxu0
    %v9678 = vadd.f32 %v9534, %v9677
    %v9679 = vpop.f32.mrb[0].mxu0
    %9680 = vmatprep.mubr.bf16.mxu0 %v9484
    %9681 = vmatmul.mubr.bf16.gmra.mrb[0].mxu0 %v9483
    %v9682 = vpop.f32.mrb[0].mxu0
    %v9683 = vadd.f32 %v9534, %v9682
    %v9684 = vpop.f32.mrb[0].mxu0
    %v9685 = vpop.f32.mrb[0].mxu0
    %v9686 = vadd.f32 %v9534, %v9685
    %v9687 = vpop.f32.mrb[0].mxu0
    %9688 = vmatprep.mubr.bf16.mxu0 %v9486
    %9689 = vmatmul.mubr.bf16.gmra.mrb[0].mxu0 %v9485
    %v9690 = vpop.f32.mrb[0].mxu0
    %v9691 = vadd.f32 %v9534, %v9690
    %v9692 = vpop.f32.mrb[0].mxu0
    %v9693 = vpop.f32.mrb[0].mxu0
    %v9694 = vadd.f32 %v9534, %v9693
    %v9695 = vpop.f32.mrb[0].mxu0
    %9696 = vmatprep.mubr.bf16.mxu0 %v9488
    %9697 = vmatmul.mubr.bf16.gmra.mrb[0].mxu0 %v9487
    %v9698 = vpop.f32.mrb[0].mxu0
    %v9699 = vadd.f32 %v9534, %v9698
    %v9700 = vpop.f32.mrb[0].mxu0
    %v9701 = vpop.f32.mrb[0].mxu0
    %v9702 = vadd.f32 %v9534, %v9701
    %v9703 = vpop.f32.mrb[0].mxu0
    %9704 = vmatprep.mubr.bf16.mxu0 %v9490
    %9705 = vmatmul.mubr.bf16.gmra.mrb[0].mxu0 %v9489
    %v9706 = vpop.f32.mrb[0].mxu0
    %v9707 = vadd.f32 %v9534, %v9706
    %v9708 = vpop.f32.mrb[0].mxu0
    %v9709 = vpop.f32.mrb[0].mxu0
    %v9710 = vadd.f32 %v9534, %v9709
    %v9711 = vpop.f32.mrb[0].mxu0
    %9712 = vmatprep.mubr.bf16.mxu0 %v9492
    %9713 = vmatmul.mubr.bf16.gmra.mrb[0].mxu0 %v9491
    %v9714 = vpop.f32.mrb[0].mxu0
    %v9715 = vadd.f32 %v9534, %v9714
    %v9716 = vpop.f32.mrb[0].mxu0
    %v9717 = vpop.f32.mrb[0].mxu0
    %v9718 = vadd.f32 %v9534, %v9717
    %v9719 = vpop.f32.mrb[0].mxu0
    %9720 = vmatprep.mubr.bf16.mxu0 %v9494
    %9721 = vmatmul.mubr.bf16.gmra.mrb[0].mxu0 %v9493
    %v9722 = vpop.f32.mrb[0].mxu0
    %v9723 = vadd.f32 %v9534, %v9722
    %v9724 = vpop.f32.mrb[0].mxu0
    %v9725 = vpop.f32.mrb[0].mxu0
    %v9726 = vadd.f32 %v9534, %v9725
    %v9727 = vpop.f32.mrb[0].mxu0
    %9728 = vdwg.mxu0
    %v9729 = vadd.f32 %v9667, %v9224
    %v9730 = vadd.f32 %v9670, %v9225
    %v9731 = vadd.f32 %v9675, %v9226
    %v9732 = vadd.f32 %v9678, %v9227
    %v9733 = vadd.f32 %v9683, %v9228
    %v9734 = vadd.f32 %v9686, %v9229
    %v9735 = vadd.f32 %v9691, %v9230
    %v9736 = vadd.f32 %v9694, %v9231
    %v9737 = vadd.f32 %v9699, %v9232
    %v9738 = vadd.f32 %v9702, %v9233
    %v9739 = vadd.f32 %v9707, %v9234
    %v9740 = vadd.f32 %v9710, %v9235
    %v9741 = vadd.f32 %v9715, %v9236
    %v9742 = vadd.f32 %v9718, %v9237
    %v9743 = vadd.f32 %v9723, %v9238
    %v9744 = vadd.f32 %v9726, %v9239
    %s9745 = scalar_lea.vmem %s16, 2
    %v9746 = vld [vmem:[%s9745] sm:$0x1]
    %s9747 = scalar_lea.vmem %s17, 2
    %v9748 = vld [vmem:[%s9747] sm:$0x1]
    %v9749 = vsel %vm296, %v9729, 0.0
    %9750 = vadd.xlane.f32.xlu0 %v9749
    %v9751 = vpop.xlane.xlu0 %9750
    %v9752 = vsel %vm296, %v9730, 0.0
    %9753 = vadd.xlane.f32.xlu0 %v9752
    %v9754 = vpop.xlane.xlu0 %9753
    %v9755 = vsel %vm296, %v9731, 0.0
    %9756 = vadd.xlane.f32.xlu0 %v9755
    %v9757 = vpop.xlane.xlu0 %9756
    %v9758 = vsel %vm296, %v9732, 0.0
    %9759 = vadd.xlane.f32.xlu0 %v9758
    %v9760 = vpop.xlane.xlu0 %9759
    %v9761 = vsel %vm296, %v9733, 0.0
    %9762 = vadd.xlane.f32.xlu0 %v9761
    %v9763 = vpop.xlane.xlu0 %9762
    %v9764 = vsel %vm296, %v9734, 0.0
    %9765 = vadd.xlane.f32.xlu0 %v9764
    %v9766 = vpop.xlane.xlu0 %9765
    %v9767 = vsel %vm296, %v9735, 0.0
    %9768 = vadd.xlane.f32.xlu0 %v9767
    %v9769 = vpop.xlane.xlu0 %9768
    %v9770 = vsel %vm296, %v9736, 0.0
    %9771 = vadd.xlane.f32.xlu0 %v9770
    %v9772 = vpop.xlane.xlu0 %9771
    %v9773 = vsel %vm296, %v9737, 0.0
    %9774 = vadd.xlane.f32.xlu0 %v9773
    %v9775 = vpop.xlane.xlu0 %9774
    %v9776 = vsel %vm296, %v9738, 0.0
    %9777 = vadd.xlane.f32.xlu0 %v9776
    %v9778 = vpop.xlane.xlu0 %9777
    %v9779 = vsel %vm296, %v9739, 0.0
    %9780 = vadd.xlane.f32.xlu0 %v9779
    %v9781 = vpop.xlane.xlu0 %9780
    %v9782 = vsel %vm296, %v9740, 0.0
    %9783 = vadd.xlane.f32.xlu0 %v9782
    %v9784 = vpop.xlane.xlu0 %9783
    %v9785 = vsel %vm296, %v9741, 0.0
    %9786 = vadd.xlane.f32.xlu0 %v9785
    %v9787 = vpop.xlane.xlu0 %9786
    %v9788 = vsel %vm296, %v9742, 0.0
    %9789 = vadd.xlane.f32.xlu0 %v9788
    %v9790 = vpop.xlane.xlu0 %9789
    %v9791 = vsel %vm296, %v9743, 0.0
    %9792 = vadd.xlane.f32.xlu0 %v9791
    %v9793 = vpop.xlane.xlu0 %9792
    %v9794 = vsel %vm296, %v9744, 0.0
    %9795 = vadd.xlane.f32.xlu0 %v9794
    %v9796 = vpop.xlane.xlu0 %9795
    %v9797 = vmul.f32 %v9751, %v2531
    %v9798 = vmul.f32 %v9754, %v2531
    %v9799 = vmul.f32 %v9757, %v2531
    %v9800 = vmul.f32 %v9760, %v2531
    %v9801 = vmul.f32 %v9763, %v2531
    %v9802 = vmul.f32 %v9766, %v2531
    %v9803 = vmul.f32 %v9769, %v2531
    %v9804 = vmul.f32 %v9772, %v2531
    %v9805 = vmul.f32 %v9775, %v2531
    %v9806 = vmul.f32 %v9778, %v2531
    %v9807 = vmul.f32 %v9781, %v2531
    %v9808 = vmul.f32 %v9784, %v2531
    %v9809 = vmul.f32 %v9787, %v2531
    %v9810 = vmul.f32 %v9790, %v2531
    %v9811 = vmul.f32 %v9793, %v2531
    %v9812 = vmul.f32 %v9796, %v2531
    %v9813 = vsub.f32 %v9729, %v9797
    %v9814 = vsub.f32 %v9730, %v9798
    %v9815 = vsub.f32 %v9731, %v9799
    %v9816 = vsub.f32 %v9732, %v9800
    %v9817 = vsub.f32 %v9733, %v9801
    %v9818 = vsub.f32 %v9734, %v9802
    %v9819 = vsub.f32 %v9735, %v9803
    %v9820 = vsub.f32 %v9736, %v9804
    %v9821 = vsub.f32 %v9737, %v9805
    %v9822 = vsub.f32 %v9738, %v9806
    %v9823 = vsub.f32 %v9739, %v9807
    %v9824 = vsub.f32 %v9740, %v9808
    %v9825 = vsub.f32 %v9741, %v9809
    %v9826 = vsub.f32 %v9742, %v9810
    %v9827 = vsub.f32 %v9743, %v9811
    %v9828 = vsub.f32 %v9744, %v9812
    %v9829 = vmul.f32 %v9813, %v9813
    %v9830 = vmul.f32 %v9814, %v9814
    %v9831 = vmul.f32 %v9815, %v9815
    %v9832 = vmul.f32 %v9816, %v9816
    %v9833 = vmul.f32 %v9817, %v9817
    %v9834 = vmul.f32 %v9818, %v9818
    %v9835 = vmul.f32 %v9819, %v9819
    %v9836 = vmul.f32 %v9820, %v9820
    %v9837 = vmul.f32 %v9821, %v9821
    %v9838 = vmul.f32 %v9822, %v9822
    %v9839 = vmul.f32 %v9823, %v9823
    %v9840 = vmul.f32 %v9824, %v9824
    %v9841 = vmul.f32 %v9825, %v9825
    %v9842 = vmul.f32 %v9826, %v9826
    %v9843 = vmul.f32 %v9827, %v9827
    %v9844 = vmul.f32 %v9828, %v9828
    %v9845 = vsel %vm296, %v9829, 0.0
    %9846 = vadd.xlane.f32.xlu0 %v9845
    %v9847 = vpop.xlane.xlu0 %9846
    %v9848 = vsel %vm296, %v9830, 0.0
    %9849 = vadd.xlane.f32.xlu0 %v9848
    %v9850 = vpop.xlane.xlu0 %9849
    %v9851 = vsel %vm296, %v9831, 0.0
    %9852 = vadd.xlane.f32.xlu0 %v9851
    %v9853 = vpop.xlane.xlu0 %9852
    %v9854 = vsel %vm296, %v9832, 0.0
    %9855 = vadd.xlane.f32.xlu0 %v9854
    %v9856 = vpop.xlane.xlu0 %9855
    %v9857 = vsel %vm296, %v9833, 0.0
    %9858 = vadd.xlane.f32.xlu0 %v9857
    %v9859 = vpop.xlane.xlu0 %9858
    %v9860 = vsel %vm296, %v9834, 0.0
    %9861 = vadd.xlane.f32.xlu0 %v9860
    %v9862 = vpop.xlane.xlu0 %9861
    %v9863 = vsel %vm296, %v9835, 0.0
    %9864 = vadd.xlane.f32.xlu0 %v9863
    %v9865 = vpop.xlane.xlu0 %9864
    %v9866 = vsel %vm296, %v9836, 0.0
    %9867 = vadd.xlane.f32.xlu0 %v9866
    %v9868 = vpop.xlane.xlu0 %9867
    %v9869 = vsel %vm296, %v9837, 0.0
    %9870 = vadd.xlane.f32.xlu0 %v9869
    %v9871 = vpop.xlane.xlu0 %9870
    %v9872 = vsel %vm296, %v9838, 0.0
    %9873 = vadd.xlane.f32.xlu0 %v9872
    %v9874 = vpop.xlane.xlu0 %9873
    %v9875 = vsel %vm296, %v9839, 0.0
    %9876 = vadd.xlane.f32.xlu0 %v9875
    %v9877 = vpop.xlane.xlu0 %9876
    %v9878 = vsel %vm296, %v9840, 0.0
    %9879 = vadd.xlane.f32.xlu0 %v9878
    %v9880 = vpop.xlane.xlu0 %9879
    %v9881 = vsel %vm296, %v9841, 0.0
    %9882 = vadd.xlane.f32.xlu0 %v9881
    %v9883 = vpop.xlane.xlu0 %9882
    %v9884 = vsel %vm296, %v9842, 0.0
    %9885 = vadd.xlane.f32.xlu0 %v9884
    %v9886 = vpop.xlane.xlu0 %9885
    %v9887 = vsel %vm296, %v9843, 0.0
    %9888 = vadd.xlane.f32.xlu0 %v9887
    %v9889 = vpop.xlane.xlu0 %9888
    %v9890 = vsel %vm296, %v9844, 0.0
    %9891 = vadd.xlane.f32.xlu0 %v9890
    %v9892 = vpop.xlane.xlu0 %9891
    %v9893 = vmul.f32 %v9847, %v2531
    %v9894 = vmul.f32 %v9850, %v2531
    %v9895 = vmul.f32 %v9853, %v2531
    %v9896 = vmul.f32 %v9856, %v2531
    %v9897 = vmul.f32 %v9859, %v2531
    %v9898 = vmul.f32 %v9862, %v2531
    %v9899 = vmul.f32 %v9865, %v2531
    %v9900 = vmul.f32 %v9868, %v2531
    %v9901 = vmul.f32 %v9871, %v2531
    %v9902 = vmul.f32 %v9874, %v2531
    %v9903 = vmul.f32 %v9877, %v2531
    %v9904 = vmul.f32 %v9880, %v2531
    %v9905 = vmul.f32 %v9883, %v2531
    %v9906 = vmul.f32 %v9886, %v2531
    %v9907 = vmul.f32 %v9889, %v2531
    %v9908 = vmul.f32 %v9892, %v2531
    %v9909 = vadd.f32 %v9893, 1e-05
    %v9910 = vadd.f32 %v9894, 1e-05
    %v9911 = vadd.f32 %v9895, 1e-05
    %v9912 = vadd.f32 %v9896, 1e-05
    %v9913 = vadd.f32 %v9897, 1e-05
    %v9914 = vadd.f32 %v9898, 1e-05
    %v9915 = vadd.f32 %v9899, 1e-05
    %v9916 = vadd.f32 %v9900, 1e-05
    %v9917 = vadd.f32 %v9901, 1e-05
    %v9918 = vadd.f32 %v9902, 1e-05
    %v9919 = vadd.f32 %v9903, 1e-05
    %v9920 = vadd.f32 %v9904, 1e-05
    %v9921 = vadd.f32 %v9905, 1e-05
    %v9922 = vadd.f32 %v9906, 1e-05
    %v9923 = vadd.f32 %v9907, 1e-05
    %v9924 = vadd.f32 %v9908, 1e-05
    %v9925 = vrsqrt.pop %v9909
    %v9926 = vrsqrt.pop %v9910
    %v9927 = vrsqrt.pop %v9911
    %v9928 = vrsqrt.pop %v9912
    %v9929 = vrsqrt.pop %v9913
    %v9930 = vrsqrt.pop %v9914
    %v9931 = vrsqrt.pop %v9915
    %v9932 = vrsqrt.pop %v9916
    %v9933 = vrsqrt.pop %v9917
    %v9934 = vrsqrt.pop %v9918
    %v9935 = vrsqrt.pop %v9919
    %v9936 = vrsqrt.pop %v9920
    %v9937 = vrsqrt.pop %v9921
    %v9938 = vrsqrt.pop %v9922
    %v9939 = vrsqrt.pop %v9923
    %v9940 = vrsqrt.pop %v9924
    %v9941 = vmul.f32 %v9813, %v9925
    %v9942 = vmul.f32 %v9814, %v9926
    %v9943 = vmul.f32 %v9815, %v9927
    %v9944 = vmul.f32 %v9816, %v9928
    %v9945 = vmul.f32 %v9817, %v9929
    %v9946 = vmul.f32 %v9818, %v9930
    %v9947 = vmul.f32 %v9819, %v9931
    %v9948 = vmul.f32 %v9820, %v9932
    %v9949 = vmul.f32 %v9821, %v9933
    %v9950 = vmul.f32 %v9822, %v9934
    %v9951 = vmul.f32 %v9823, %v9935
    %v9952 = vmul.f32 %v9824, %v9936
    %v9953 = vmul.f32 %v9825, %v9937
    %v9954 = vmul.f32 %v9826, %v9938
    %v9955 = vmul.f32 %v9827, %v9939
    %v9956 = vmul.f32 %v9828, %v9940
    %v9958 = vlaneseq
    %v9959 = vshrl.u32 %v9958, 7
    %v9960 = vsub.s32 0, %v9959
    %v9961 = vrot.slane %v9746, %v9960
    %v9963 = vmul.f32 %v9941, %v9961
    %v9964 = vmul.f32 %v9942, %v9961
    %v9965 = vmul.f32 %v9943, %v9961
    %v9966 = vmul.f32 %v9944, %v9961
    %v9967 = vmul.f32 %v9945, %v9961
    %v9968 = vmul.f32 %v9946, %v9961
    %v9969 = vmul.f32 %v9947, %v9961
    %v9970 = vmul.f32 %v9948, %v9961
    %v9971 = vmul.f32 %v9949, %v9961
    %v9972 = vmul.f32 %v9950, %v9961
    %v9973 = vmul.f32 %v9951, %v9961
    %v9974 = vmul.f32 %v9952, %v9961
    %v9975 = vmul.f32 %v9953, %v9961
    %v9976 = vmul.f32 %v9954, %v9961
    %v9977 = vmul.f32 %v9955, %v9961
    %v9978 = vmul.f32 %v9956, %v9961
    %v9980 = vlaneseq
    %v9981 = vshrl.u32 %v9980, 7
    %v9982 = vsub.s32 0, %v9981
    %v9983 = vrot.slane %v9748, %v9982
    %v9985 = vadd.f32 %v9963, %v9983
    %v9986 = vadd.f32 %v9964, %v9983
    %v9987 = vadd.f32 %v9965, %v9983
    %v9988 = vadd.f32 %v9966, %v9983
    %v9989 = vadd.f32 %v9967, %v9983
    %v9990 = vadd.f32 %v9968, %v9983
    %v9991 = vadd.f32 %v9969, %v9983
    %v9992 = vadd.f32 %v9970, %v9983
    %v9993 = vadd.f32 %v9971, %v9983
    %v9994 = vadd.f32 %v9972, %v9983
    %v9995 = vadd.f32 %v9973, %v9983
    %v9996 = vadd.f32 %v9974, %v9983
    %v9997 = vadd.f32 %v9975, %v9983
    %v9998 = vadd.f32 %v9976, %v9983
    %v9999 = vadd.f32 %v9977, %v9983
    %v10000 = vadd.f32 %v9978, %v9983
    %v10001 = vld [vmem:[%s18] sm:$0x1]
    %v10002 = vld [vmem:[%s19] sm:$0x1]
    %v10003 = vsel %vm296, %v9985, 0.0
    %10004 = vadd.xlane.f32.xlu0 %v10003
    %v10005 = vpop.xlane.xlu0 %10004
    %v10006 = vsel %vm296, %v9986, 0.0
    %10007 = vadd.xlane.f32.xlu0 %v10006
    %v10008 = vpop.xlane.xlu0 %10007
    %v10009 = vsel %vm296, %v9987, 0.0
    %10010 = vadd.xlane.f32.xlu0 %v10009
    %v10011 = vpop.xlane.xlu0 %10010
    %v10012 = vsel %vm296, %v9988, 0.0
    %10013 = vadd.xlane.f32.xlu0 %v10012
    %v10014 = vpop.xlane.xlu0 %10013
    %v10015 = vsel %vm296, %v9989, 0.0
    %10016 = vadd.xlane.f32.xlu0 %v10015
    %v10017 = vpop.xlane.xlu0 %10016
    %v10018 = vsel %vm296, %v9990, 0.0
    %10019 = vadd.xlane.f32.xlu0 %v10018
    %v10020 = vpop.xlane.xlu0 %10019
    %v10021 = vsel %vm296, %v9991, 0.0
    %10022 = vadd.xlane.f32.xlu0 %v10021
    %v10023 = vpop.xlane.xlu0 %10022
    %v10024 = vsel %vm296, %v9992, 0.0
    %10025 = vadd.xlane.f32.xlu0 %v10024
    %v10026 = vpop.xlane.xlu0 %10025
    %v10027 = vsel %vm296, %v9993, 0.0
    %10028 = vadd.xlane.f32.xlu0 %v10027
    %v10029 = vpop.xlane.xlu0 %10028
    %v10030 = vsel %vm296, %v9994, 0.0
    %10031 = vadd.xlane.f32.xlu0 %v10030
    %v10032 = vpop.xlane.xlu0 %10031
    %v10033 = vsel %vm296, %v9995, 0.0
    %10034 = vadd.xlane.f32.xlu0 %v10033
    %v10035 = vpop.xlane.xlu0 %10034
    %v10036 = vsel %vm296, %v9996, 0.0
    %10037 = vadd.xlane.f32.xlu0 %v10036
    %v10038 = vpop.xlane.xlu0 %10037
    %v10039 = vsel %vm296, %v9997, 0.0
    %10040 = vadd.xlane.f32.xlu0 %v10039
    %v10041 = vpop.xlane.xlu0 %10040
    %v10042 = vsel %vm296, %v9998, 0.0
    %10043 = vadd.xlane.f32.xlu0 %v10042
    %v10044 = vpop.xlane.xlu0 %10043
    %v10045 = vsel %vm296, %v9999, 0.0
    %10046 = vadd.xlane.f32.xlu0 %v10045
    %v10047 = vpop.xlane.xlu0 %10046
    %v10048 = vsel %vm296, %v10000, 0.0
    %10049 = vadd.xlane.f32.xlu0 %v10048
    %v10050 = vpop.xlane.xlu0 %10049
    %v10051 = vmul.f32 %v10005, %v2531
    %v10052 = vmul.f32 %v10008, %v2531
    %v10053 = vmul.f32 %v10011, %v2531
    %v10054 = vmul.f32 %v10014, %v2531
    %v10055 = vmul.f32 %v10017, %v2531
    %v10056 = vmul.f32 %v10020, %v2531
    %v10057 = vmul.f32 %v10023, %v2531
    %v10058 = vmul.f32 %v10026, %v2531
    %v10059 = vmul.f32 %v10029, %v2531
    %v10060 = vmul.f32 %v10032, %v2531
    %v10061 = vmul.f32 %v10035, %v2531
    %v10062 = vmul.f32 %v10038, %v2531
    %v10063 = vmul.f32 %v10041, %v2531
    %v10064 = vmul.f32 %v10044, %v2531
    %v10065 = vmul.f32 %v10047, %v2531
    %v10066 = vmul.f32 %v10050, %v2531
    %v10067 = vsub.f32 %v9985, %v10051
    %v10068 = vsub.f32 %v9986, %v10052
    %v10069 = vsub.f32 %v9987, %v10053
    %v10070 = vsub.f32 %v9988, %v10054
    %v10071 = vsub.f32 %v9989, %v10055
    %v10072 = vsub.f32 %v9990, %v10056
    %v10073 = vsub.f32 %v9991, %v10057
    %v10074 = vsub.f32 %v9992, %v10058
    %v10075 = vsub.f32 %v9993, %v10059
    %v10076 = vsub.f32 %v9994, %v10060
    %v10077 = vsub.f32 %v9995, %v10061
    %v10078 = vsub.f32 %v9996, %v10062
    %v10079 = vsub.f32 %v9997, %v10063
    %v10080 = vsub.f32 %v9998, %v10064
    %v10081 = vsub.f32 %v9999, %v10065
    %v10082 = vsub.f32 %v10000, %v10066
    %v10083 = vmul.f32 %v10067, %v10067
    %v10084 = vmul.f32 %v10068, %v10068
    %v10085 = vmul.f32 %v10069, %v10069
    %v10086 = vmul.f32 %v10070, %v10070
    %v10087 = vmul.f32 %v10071, %v10071
    %v10088 = vmul.f32 %v10072, %v10072
    %v10089 = vmul.f32 %v10073, %v10073
    %v10090 = vmul.f32 %v10074, %v10074
    %v10091 = vmul.f32 %v10075, %v10075
    %v10092 = vmul.f32 %v10076, %v10076
    %v10093 = vmul.f32 %v10077, %v10077
    %v10094 = vmul.f32 %v10078, %v10078
    %v10095 = vmul.f32 %v10079, %v10079
    %v10096 = vmul.f32 %v10080, %v10080
    %v10097 = vmul.f32 %v10081, %v10081
    %v10098 = vmul.f32 %v10082, %v10082
    %v10099 = vsel %vm296, %v10083, 0.0
    %10100 = vadd.xlane.f32.xlu0 %v10099
    %v10101 = vpop.xlane.xlu0 %10100
    %v10102 = vsel %vm296, %v10084, 0.0
    %10103 = vadd.xlane.f32.xlu0 %v10102
    %v10104 = vpop.xlane.xlu0 %10103
    %v10105 = vsel %vm296, %v10085, 0.0
    %10106 = vadd.xlane.f32.xlu0 %v10105
    %v10107 = vpop.xlane.xlu0 %10106
    %v10108 = vsel %vm296, %v10086, 0.0
    %10109 = vadd.xlane.f32.xlu0 %v10108
    %v10110 = vpop.xlane.xlu0 %10109
    %v10111 = vsel %vm296, %v10087, 0.0
    %10112 = vadd.xlane.f32.xlu0 %v10111
    %v10113 = vpop.xlane.xlu0 %10112
    %v10114 = vsel %vm296, %v10088, 0.0
    %10115 = vadd.xlane.f32.xlu0 %v10114
    %v10116 = vpop.xlane.xlu0 %10115
    %v10117 = vsel %vm296, %v10089, 0.0
    %10118 = vadd.xlane.f32.xlu0 %v10117
    %v10119 = vpop.xlane.xlu0 %10118
    %v10120 = vsel %vm296, %v10090, 0.0
    %10121 = vadd.xlane.f32.xlu0 %v10120
    %v10122 = vpop.xlane.xlu0 %10121
    %v10123 = vsel %vm296, %v10091, 0.0
    %10124 = vadd.xlane.f32.xlu0 %v10123
    %v10125 = vpop.xlane.xlu0 %10124
    %v10126 = vsel %vm296, %v10092, 0.0
    %10127 = vadd.xlane.f32.xlu0 %v10126
    %v10128 = vpop.xlane.xlu0 %10127
    %v10129 = vsel %vm296, %v10093, 0.0
    %10130 = vadd.xlane.f32.xlu0 %v10129
    %v10131 = vpop.xlane.xlu0 %10130
    %v10132 = vsel %vm296, %v10094, 0.0
    %10133 = vadd.xlane.f32.xlu0 %v10132
    %v10134 = vpop.xlane.xlu0 %10133
    %v10135 = vsel %vm296, %v10095, 0.0
    %10136 = vadd.xlane.f32.xlu0 %v10135
    %v10137 = vpop.xlane.xlu0 %10136
    %v10138 = vsel %vm296, %v10096, 0.0
    %10139 = vadd.xlane.f32.xlu0 %v10138
    %v10140 = vpop.xlane.xlu0 %10139
    %v10141 = vsel %vm296, %v10097, 0.0
    %10142 = vadd.xlane.f32.xlu0 %v10141
    %v10143 = vpop.xlane.xlu0 %10142
    %v10144 = vsel %vm296, %v10098, 0.0
    %10145 = vadd.xlane.f32.xlu0 %v10144
    %v10146 = vpop.xlane.xlu0 %10145
    %v10147 = vmul.f32 %v10101, %v2531
    %v10148 = vmul.f32 %v10104, %v2531
    %v10149 = vmul.f32 %v10107, %v2531
    %v10150 = vmul.f32 %v10110, %v2531
    %v10151 = vmul.f32 %v10113, %v2531
    %v10152 = vmul.f32 %v10116, %v2531
    %v10153 = vmul.f32 %v10119, %v2531
    %v10154 = vmul.f32 %v10122, %v2531
    %v10155 = vmul.f32 %v10125, %v2531
    %v10156 = vmul.f32 %v10128, %v2531
    %v10157 = vmul.f32 %v10131, %v2531
    %v10158 = vmul.f32 %v10134, %v2531
    %v10159 = vmul.f32 %v10137, %v2531
    %v10160 = vmul.f32 %v10140, %v2531
    %v10161 = vmul.f32 %v10143, %v2531
    %v10162 = vmul.f32 %v10146, %v2531
    %v10163 = vadd.f32 %v10147, 1e-06
    %v10164 = vadd.f32 %v10148, 1e-06
    %v10165 = vadd.f32 %v10149, 1e-06
    %v10166 = vadd.f32 %v10150, 1e-06
    %v10167 = vadd.f32 %v10151, 1e-06
    %v10168 = vadd.f32 %v10152, 1e-06
    %v10169 = vadd.f32 %v10153, 1e-06
    %v10170 = vadd.f32 %v10154, 1e-06
    %v10171 = vadd.f32 %v10155, 1e-06
    %v10172 = vadd.f32 %v10156, 1e-06
    %v10173 = vadd.f32 %v10157, 1e-06
    %v10174 = vadd.f32 %v10158, 1e-06
    %v10175 = vadd.f32 %v10159, 1e-06
    %v10176 = vadd.f32 %v10160, 1e-06
    %v10177 = vadd.f32 %v10161, 1e-06
    %v10178 = vadd.f32 %v10162, 1e-06
    %v10179 = vrsqrt.pop %v10163
    %v10180 = vrsqrt.pop %v10164
    %v10181 = vrsqrt.pop %v10165
    %v10182 = vrsqrt.pop %v10166
    %v10183 = vrsqrt.pop %v10167
    %v10184 = vrsqrt.pop %v10168
    %v10185 = vrsqrt.pop %v10169
    %v10186 = vrsqrt.pop %v10170
    %v10187 = vrsqrt.pop %v10171
    %v10188 = vrsqrt.pop %v10172
    %v10189 = vrsqrt.pop %v10173
    %v10190 = vrsqrt.pop %v10174
    %v10191 = vrsqrt.pop %v10175
    %v10192 = vrsqrt.pop %v10176
    %v10193 = vrsqrt.pop %v10177
    %v10194 = vrsqrt.pop %v10178
    %v10195 = vmul.f32 %v10067, %v10179
    %v10196 = vmul.f32 %v10068, %v10180
    %v10197 = vmul.f32 %v10069, %v10181
    %v10198 = vmul.f32 %v10070, %v10182
    %v10199 = vmul.f32 %v10071, %v10183
    %v10200 = vmul.f32 %v10072, %v10184
    %v10201 = vmul.f32 %v10073, %v10185
    %v10202 = vmul.f32 %v10074, %v10186
    %v10203 = vmul.f32 %v10075, %v10187
    %v10204 = vmul.f32 %v10076, %v10188
    %v10205 = vmul.f32 %v10077, %v10189
    %v10206 = vmul.f32 %v10078, %v10190
    %v10207 = vmul.f32 %v10079, %v10191
    %v10208 = vmul.f32 %v10080, %v10192
    %v10209 = vmul.f32 %v10081, %v10193
    %v10210 = vmul.f32 %v10082, %v10194
    %v10212 = vlaneseq
    %v10213 = vshrl.u32 %v10212, 7
    %v10214 = vsub.s32 0, %v10213
    %v10215 = vrot.slane %v10001, %v10214
    %v10217 = vmul.f32 %v10195, %v10215
    %v10218 = vmul.f32 %v10196, %v10215
    %v10219 = vmul.f32 %v10197, %v10215
    %v10220 = vmul.f32 %v10198, %v10215
    %v10221 = vmul.f32 %v10199, %v10215
    %v10222 = vmul.f32 %v10200, %v10215
    %v10223 = vmul.f32 %v10201, %v10215
    %v10224 = vmul.f32 %v10202, %v10215
    %v10225 = vmul.f32 %v10203, %v10215
    %v10226 = vmul.f32 %v10204, %v10215
    %v10227 = vmul.f32 %v10205, %v10215
    %v10228 = vmul.f32 %v10206, %v10215
    %v10229 = vmul.f32 %v10207, %v10215
    %v10230 = vmul.f32 %v10208, %v10215
    %v10231 = vmul.f32 %v10209, %v10215
    %v10232 = vmul.f32 %v10210, %v10215
    %v10234 = vlaneseq
    %v10235 = vshrl.u32 %v10234, 7
    %v10236 = vsub.s32 0, %v10235
    %v10237 = vrot.slane %v10002, %v10236
    %v10239 = vadd.f32 %v10217, %v10237
    %v10240 = vadd.f32 %v10218, %v10237
    %v10241 = vadd.f32 %v10219, %v10237
    %v10242 = vadd.f32 %v10220, %v10237
    %v10243 = vadd.f32 %v10221, %v10237
    %v10244 = vadd.f32 %v10222, %v10237
    %v10245 = vadd.f32 %v10223, %v10237
    %v10246 = vadd.f32 %v10224, %v10237
    %v10247 = vadd.f32 %v10225, %v10237
    %v10248 = vadd.f32 %v10226, %v10237
    %v10249 = vadd.f32 %v10227, %v10237
    %v10250 = vadd.f32 %v10228, %v10237
    %v10251 = vadd.f32 %v10229, %v10237
    %v10252 = vadd.f32 %v10230, %v10237
    %v10253 = vadd.f32 %v10231, %v10237
    %v10254 = vadd.f32 %v10232, %v10237
    %v10255 = vpack.c.bf16 %v10240, %v10239
    %v10256 = vpack.c.bf16 %v10242, %v10241
    %v10257 = vpack.c.bf16 %v10244, %v10243
    %v10258 = vpack.c.bf16 %v10246, %v10245
    %v10259 = vpack.c.bf16 %v10248, %v10247
    %v10260 = vpack.c.bf16 %v10250, %v10249
    %v10261 = vpack.c.bf16 %v10252, %v10251
    %v10262 = vpack.c.bf16 %v10254, %v10253
    %v10263 = vld [vmem:[#allocation12] sm:$0xf]
    %v10264 = vld [vmem:[#allocation12 + $0x4] sm:$0xf]
    %v10265 = vld [vmem:[#allocation12 + $0x8] sm:$0xf]
    %v10266 = vld [vmem:[#allocation12 + $0xc] sm:$0xf]
    %v10267 = vld [vmem:[#allocation12 + $0x10] sm:$0xf]
    %v10268 = vld [vmem:[#allocation12 + $0x14] sm:$0xf]
    %v10269 = vld [vmem:[#allocation12 + $0x18] sm:$0xf]
    %v10270 = vld [vmem:[#allocation12 + $0x1c] sm:$0xf]
    %v10271 = vld [vmem:[%s22] sm:$0x1]
    %v10273 = vlaneseq
    %v10274 = vshrl.u32 %v10273, 7
    %v10275 = vsub.s32 0, %v10274
    %v10276 = vrot.slane %v10271, %v10275
    %v10286 = vunpack.c.l.b16 %v10263
    %v10287 = vunpack.c.l.b16 %v10264
    %v10288 = vunpack.c.l.b16 %v10265
    %v10289 = vunpack.c.l.b16 %v10266
    %v10290 = vunpack.c.l.b16 %v10267
    %v10291 = vunpack.c.l.b16 %v10268
    %v10292 = vunpack.c.l.b16 %v10269
    %v10293 = vunpack.c.l.b16 %v10270
    %v10294 = vpack.c.b16 %v10287, %v10286
    %v10295 = vpack.c.b16 %v10289, %v10288
    %v10296 = vpack.c.b16 %v10291, %v10290
    %v10297 = vpack.c.b16 %v10293, %v10292
    %v10303 = vsel %vm296, %v10255, 0
    %v10306 = vsel %vm296, %v10256, 0
    %v10309 = vsel %vm296, %v10257, 0
    %v10312 = vsel %vm296, %v10258, 0
    %v10315 = vsel %vm296, %v10259, 0
    %v10318 = vsel %vm296, %v10260, 0
    %v10321 = vsel %vm296, %v10261, 0
    %v10324 = vsel %vm296, %v10262, 0
    %10326 = vmatprep.subr.bf16.mxu0 0
    %10327 = vmatpush1.bf16.msra.mxu0 %v10294
    %10328 = vmatprep.subr.bf16.mxu0 0
    %10329 = vmatpush1.bf16.msra.mxu0 %v10295
    %10330 = vmatprep.subr.bf16.mxu0 0
    %10331 = vmatpush1.bf16.msra.mxu0 %v10296
    %10332 = vmatprep.subr.bf16.mxu0 0
    %10333 = vmatpush1.bf16.msra.mxu0 %v10297
    %10334 = vmatprep.subr.bf16.mxu0 0
    %10335 = vmatpush1.bf16.msra.mxu0 0
    %10336 = vmatprep.subr.bf16.mxu0 0
    %10337 = vmatpush1.bf16.msra.mxu0 0
    %10338 = vmatprep.subr.bf16.mxu0 0
    %10339 = vmatpush1.bf16.msra.mxu0 0
    %10340 = vmatprep.subr.bf16.mxu0 0
    %10341 = vmatpush1.bf16.msra.mxu0 0
    %10342 = vmatprep.subr.bf16.mxu0 0
    %10343 = vmatpush1.bf16.msra.mxu0 0
    %10344 = vmatprep.subr.bf16.mxu0 0
    %10345 = vmatpush1.bf16.msra.mxu0 0
    %10346 = vmatprep.subr.bf16.mxu0 0
    %10347 = vmatpush1.bf16.msra.mxu0 0
    %10348 = vmatprep.subr.bf16.mxu0 0
    %10349 = vmatpush1.bf16.msra.mxu0 0
    %10350 = vmatprep.subr.bf16.mxu0 0
    %10351 = vmatpush1.bf16.msra.mxu0 0
    %10352 = vmatprep.subr.bf16.mxu0 0
    %10353 = vmatpush1.bf16.msra.mxu0 0
    %10354 = vmatprep.subr.bf16.mxu0 0
    %10355 = vmatpush1.bf16.msra.mxu0 0
    %10356 = vmatprep.subr.bf16.mxu0 0
    %10357 = vmatpush1.bf16.msra.mxu0 0
    %10358 = vmatprep.mubr.bf16.mxu0 0
    %10359 = vmatmul.mubr.bf16.gmra.mrb[0].mxu0 %v10303
    %v10360 = vpop.f32.mrb[0].mxu0
    %v10361 = vadd.f32 %v10276, %v10360
    %v10362 = vpop.f32.mrb[0].mxu0
    %v10363 = vpop.f32.mrb[0].mxu0
    %v10364 = vadd.f32 %v10276, %v10363
    %v10365 = vpop.f32.mrb[0].mxu0
    %10366 = vmatprep.mubr.bf16.mxu0 0
    %10367 = vmatmul.mubr.bf16.gmra.mrb[0].mxu0 %v10306
    %v10368 = vpop.f32.mrb[0].mxu0
    %v10369 = vadd.f32 %v10276, %v10368
    %v10370 = vpop.f32.mrb[0].mxu0
    %v10371 = vpop.f32.mrb[0].mxu0
    %v10372 = vadd.f32 %v10276, %v10371
    %v10373 = vpop.f32.mrb[0].mxu0
    %10374 = vmatprep.mubr.bf16.mxu0 0
    %10375 = vmatmul.mubr.bf16.gmra.mrb[0].mxu0 %v10309
    %v10376 = vpop.f32.mrb[0].mxu0
    %v10377 = vadd.f32 %v10276, %v10376
    %v10378 = vpop.f32.mrb[0].mxu0
    %v10379 = vpop.f32.mrb[0].mxu0
    %v10380 = vadd.f32 %v10276, %v10379
    %v10381 = vpop.f32.mrb[0].mxu0
    %10382 = vmatprep.mubr.bf16.mxu0 0
    %10383 = vmatmul.mubr.bf16.gmra.mrb[0].mxu0 %v10312
    %v10384 = vpop.f32.mrb[0].mxu0
    %v10385 = vadd.f32 %v10276, %v10384
    %v10386 = vpop.f32.mrb[0].mxu0
    %v10387 = vpop.f32.mrb[0].mxu0
    %v10388 = vadd.f32 %v10276, %v10387
    %v10389 = vpop.f32.mrb[0].mxu0
    %10390 = vmatprep.mubr.bf16.mxu0 0
    %10391 = vmatmul.mubr.bf16.gmra.mrb[0].mxu0 %v10315
    %v10392 = vpop.f32.mrb[0].mxu0
    %v10393 = vadd.f32 %v10276, %v10392
    %v10394 = vpop.f32.mrb[0].mxu0
    %v10395 = vpop.f32.mrb[0].mxu0
    %v10396 = vadd.f32 %v10276, %v10395
    %v10397 = vpop.f32.mrb[0].mxu0
    %10398 = vmatprep.mubr.bf16.mxu0 0
    %10399 = vmatmul.mubr.bf16.gmra.mrb[0].mxu0 %v10318
    %v10400 = vpop.f32.mrb[0].mxu0
    %v10401 = vadd.f32 %v10276, %v10400
    %v10402 = vpop.f32.mrb[0].mxu0
    %v10403 = vpop.f32.mrb[0].mxu0
    %v10404 = vadd.f32 %v10276, %v10403
    %v10405 = vpop.f32.mrb[0].mxu0
    %10406 = vmatprep.mubr.bf16.mxu0 0
    %10407 = vmatmul.mubr.bf16.gmra.mrb[0].mxu0 %v10321
    %v10408 = vpop.f32.mrb[0].mxu0
    %v10409 = vadd.f32 %v10276, %v10408
    %v10410 = vpop.f32.mrb[0].mxu0
    %v10411 = vpop.f32.mrb[0].mxu0
    %v10412 = vadd.f32 %v10276, %v10411
    %v10413 = vpop.f32.mrb[0].mxu0
    %10414 = vmatprep.mubr.bf16.mxu0 0
    %10415 = vmatmul.mubr.bf16.gmra.mrb[0].mxu0 %v10324
    %v10416 = vpop.f32.mrb[0].mxu0
    %v10417 = vadd.f32 %v10276, %v10416
    %v10418 = vpop.f32.mrb[0].mxu0
    %v10419 = vpop.f32.mrb[0].mxu0
    %v10420 = vadd.f32 %v10276, %v10419
    %v10421 = vpop.f32.mrb[0].mxu0
    %10422 = vdwg.mxu0
    %v10423 = vld [vmem:[#allocation10] sm:$0xff]
    %v10424 = vld [vmem:[#allocation10 + $0x8] sm:$0xff]
    %v10425 = vld [vmem:[#allocation10 + $0x10] sm:$0xff]
    %v10426 = vld [vmem:[#allocation10 + $0x18] sm:$0xff]
    %v10427 = vld [vmem:[#allocation10 + $0x20] sm:$0xff]
    %v10428 = vld [vmem:[#allocation10 + $0x28] sm:$0xff]
    %v10429 = vld [vmem:[#allocation10 + $0x30] sm:$0xff]
    %v10430 = vld [vmem:[#allocation10 + $0x38] sm:$0xff]
    %v10431 = vadd.f32 %v10361, %v10423
    %v10432 = vadd.f32 %v10364, %v10424
    %v10433 = vadd.f32 %v10369, %v10425
    %v10434 = vadd.f32 %v10372, %v10426
    %v10435 = vadd.f32 %v10377, %v10427
    %v10436 = vadd.f32 %v10380, %v10428
    %v10437 = vadd.f32 %v10385, %v10429
    %v10438 = vadd.f32 %v10388, %v10430
    %v10439 = vadd.f32 %v10393, %v10423
    %v10440 = vadd.f32 %v10396, %v10424
    %v10441 = vadd.f32 %v10401, %v10425
    %v10442 = vadd.f32 %v10404, %v10426
    %v10443 = vadd.f32 %v10409, %v10427
    %v10444 = vadd.f32 %v10412, %v10428
    %v10445 = vadd.f32 %v10417, %v10429
    %v10446 = vadd.f32 %v10420, %v10430
    %v10447 = vtanh.pop %v10431
    %v10448 = vtanh.pop %v10432
    %v10449 = vtanh.pop %v10433
    %v10450 = vtanh.pop %v10434
    %v10451 = vtanh.pop %v10435
    %v10452 = vtanh.pop %v10436
    %v10453 = vtanh.pop %v10437
    %v10454 = vtanh.pop %v10438
    %v10455 = vtanh.pop %v10439
    %v10456 = vtanh.pop %v10440
    %v10457 = vtanh.pop %v10441
    %v10458 = vtanh.pop %v10442
    %v10459 = vtanh.pop %v10443
    %v10460 = vtanh.pop %v10444
    %v10461 = vtanh.pop %v10445
    %v10462 = vtanh.pop %v10446
    %v10463 = vpack.c.bf16 %v10448, %v10447
    %v10464 = vpack.c.bf16 %v10450, %v10449
    %v10465 = vpack.c.bf16 %v10452, %v10451
    %v10466 = vpack.c.bf16 %v10454, %v10453
    %v10467 = vpack.c.bf16 %v10456, %v10455
    %v10468 = vpack.c.bf16 %v10458, %v10457
    %v10469 = vpack.c.bf16 %v10460, %v10459
    %v10470 = vpack.c.bf16 %v10462, %v10461
    %v10471 = vld [vmem:[#allocation13] sm:$0xf]
    %v10472 = vld [vmem:[#allocation13 + $0x4] sm:$0xf]
    %v10473 = vld [vmem:[#allocation13 + $0x8] sm:$0xf]
    %v10474 = vld [vmem:[#allocation13 + $0xc] sm:$0xf]
    %v10475 = vld [vmem:[#allocation13 + $0x10] sm:$0xf]
    %v10476 = vld [vmem:[#allocation13 + $0x14] sm:$0xf]
    %v10477 = vld [vmem:[#allocation13 + $0x18] sm:$0xf]
    %v10478 = vld [vmem:[#allocation13 + $0x1c] sm:$0xf]
    %v10479 = vld [vmem:[%s24] sm:$0x1]
    %v10481 = vlaneseq
    %v10482 = vshrl.u32 %v10481, 7
    %v10483 = vsub.s32 0, %v10482
    %v10484 = vrot.slane %v10479, %v10483
    %v10494 = vunpack.c.l.b16 %v10471
    %v10495 = vunpack.c.l.b16 %v10472
    %v10496 = vunpack.c.l.b16 %v10473
    %v10497 = vunpack.c.l.b16 %v10474
    %v10498 = vunpack.c.l.b16 %v10475
    %v10499 = vunpack.c.l.b16 %v10476
    %v10500 = vunpack.c.l.b16 %v10477
    %v10501 = vunpack.c.l.b16 %v10478
    %v10502 = vpack.c.b16 %v10495, %v10494
    %v10503 = vpack.c.b16 %v10497, %v10496
    %v10504 = vpack.c.b16 %v10499, %v10498
    %v10505 = vpack.c.b16 %v10501, %v10500
    %v10511 = vsel %vm296, %v10463, 0
    %v10514 = vsel %vm296, %v10464, 0
    %v10517 = vsel %vm296, %v10465, 0
    %v10520 = vsel %vm296, %v10466, 0
    %v10523 = vsel %vm296, %v10467, 0
    %v10526 = vsel %vm296, %v10468, 0
    %v10529 = vsel %vm296, %v10469, 0
    %v10532 = vsel %vm296, %v10470, 0
    %10534 = vmatprep.subr.bf16.mxu0 0
    %10535 = vmatpush1.bf16.msra.mxu0 %v10502
    %10536 = vmatprep.subr.bf16.mxu0 0
    %10537 = vmatpush1.bf16.msra.mxu0 %v10503
    %10538 = vmatprep.subr.bf16.mxu0 0
    %10539 = vmatpush1.bf16.msra.mxu0 %v10504
    %10540 = vmatprep.subr.bf16.mxu0 0
    %10541 = vmatpush1.bf16.msra.mxu0 %v10505
    %10542 = vmatprep.subr.bf16.mxu0 0
    %10543 = vmatpush1.bf16.msra.mxu0 0
    %10544 = vmatprep.subr.bf16.mxu0 0
    %10545 = vmatpush1.bf16.msra.mxu0 0
    %10546 = vmatprep.subr.bf16.mxu0 0
    %10547 = vmatpush1.bf16.msra.mxu0 0
    %10548 = vmatprep.subr.bf16.mxu0 0
    %10549 = vmatpush1.bf16.msra.mxu0 0
    %10550 = vmatprep.subr.bf16.mxu0 0
    %10551 = vmatpush1.bf16.msra.mxu0 0
    %10552 = vmatprep.subr.bf16.mxu0 0
    %10553 = vmatpush1.bf16.msra.mxu0 0
    %10554 = vmatprep.subr.bf16.mxu0 0
    %10555 = vmatpush1.bf16.msra.mxu0 0
    %10556 = vmatprep.subr.bf16.mxu0 0
    %10557 = vmatpush1.bf16.msra.mxu0 0
    %10558 = vmatprep.subr.bf16.mxu0 0
    %10559 = vmatpush1.bf16.msra.mxu0 0
    %10560 = vmatprep.subr.bf16.mxu0 0
    %10561 = vmatpush1.bf16.msra.mxu0 0
    %10562 = vmatprep.subr.bf16.mxu0 0
    %10563 = vmatpush1.bf16.msra.mxu0 0
    %10564 = vmatprep.subr.bf16.mxu0 0
    %10565 = vmatpush1.bf16.msra.mxu0 0
    %10566 = vmatprep.mubr.bf16.mxu0 0
    %10567 = vmatmul.mubr.bf16.gmra.mrb[0].mxu0 %v10511
    %v10568 = vpop.f32.mrb[0].mxu0
    %v10569 = vadd.f32 %v10484, %v10568
    %v10570 = vpop.f32.mrb[0].mxu0
    %v10571 = vpop.f32.mrb[0].mxu0
    %v10572 = vadd.f32 %v10484, %v10571
    %v10573 = vpop.f32.mrb[0].mxu0
    %10574 = vmatprep.mubr.bf16.mxu0 0
    %10575 = vmatmul.mubr.bf16.gmra.mrb[0].mxu0 %v10514
    %v10576 = vpop.f32.mrb[0].mxu0
    %v10577 = vadd.f32 %v10484, %v10576
    %v10578 = vpop.f32.mrb[0].mxu0
    %v10579 = vpop.f32.mrb[0].mxu0
    %v10580 = vadd.f32 %v10484, %v10579
    %v10581 = vpop.f32.mrb[0].mxu0
    %10582 = vmatprep.mubr.bf16.mxu0 0
    %10583 = vmatmul.mubr.bf16.gmra.mrb[0].mxu0 %v10517
    %v10584 = vpop.f32.mrb[0].mxu0
    %v10585 = vadd.f32 %v10484, %v10584
    %v10586 = vpop.f32.mrb[0].mxu0
    %v10587 = vpop.f32.mrb[0].mxu0
    %v10588 = vadd.f32 %v10484, %v10587
    %v10589 = vpop.f32.mrb[0].mxu0
    %10590 = vmatprep.mubr.bf16.mxu0 0
    %10591 = vmatmul.mubr.bf16.gmra.mrb[0].mxu0 %v10520
    %v10592 = vpop.f32.mrb[0].mxu0
    %v10593 = vadd.f32 %v10484, %v10592
    %v10594 = vpop.f32.mrb[0].mxu0
    %v10595 = vpop.f32.mrb[0].mxu0
    %v10596 = vadd.f32 %v10484, %v10595
    %v10597 = vpop.f32.mrb[0].mxu0
    %10598 = vmatprep.mubr.bf16.mxu0 0
    %10599 = vmatmul.mubr.bf16.gmra.mrb[0].mxu0 %v10523
    %v10600 = vpop.f32.mrb[0].mxu0
    %v10601 = vadd.f32 %v10484, %v10600
    %v10602 = vpop.f32.mrb[0].mxu0
    %v10603 = vpop.f32.mrb[0].mxu0
    %v10604 = vadd.f32 %v10484, %v10603
    %v10605 = vpop.f32.mrb[0].mxu0
    %10606 = vmatprep.mubr.bf16.mxu0 0
    %10607 = vmatmul.mubr.bf16.gmra.mrb[0].mxu0 %v10526
    %v10608 = vpop.f32.mrb[0].mxu0
    %v10609 = vadd.f32 %v10484, %v10608
    %v10610 = vpop.f32.mrb[0].mxu0
    %v10611 = vpop.f32.mrb[0].mxu0
    %v10612 = vadd.f32 %v10484, %v10611
    %v10613 = vpop.f32.mrb[0].mxu0
    %10614 = vmatprep.mubr.bf16.mxu0 0
    %10615 = vmatmul.mubr.bf16.gmra.mrb[0].mxu0 %v10529
    %v10616 = vpop.f32.mrb[0].mxu0
    %v10617 = vadd.f32 %v10484, %v10616
    %v10618 = vpop.f32.mrb[0].mxu0
    %v10619 = vpop.f32.mrb[0].mxu0
    %v10620 = vadd.f32 %v10484, %v10619
    %v10621 = vpop.f32.mrb[0].mxu0
    %10622 = vmatprep.mubr.bf16.mxu0 0
    %10623 = vmatmul.mubr.bf16.gmra.mrb[0].mxu0 %v10532
    %v10624 = vpop.f32.mrb[0].mxu0
    %v10625 = vadd.f32 %v10484, %v10624
    %v10626 = vpop.f32.mrb[0].mxu0
    %v10627 = vpop.f32.mrb[0].mxu0
    %v10628 = vadd.f32 %v10484, %v10627
    %v10629 = vpop.f32.mrb[0].mxu0
    %10630 = vdwg.mxu0
    %v10631 = vsel %vm714, %v10569, -inf
    %v10632 = vsel %vm714, %v10572, -inf
    %v10633 = vsel %vm714, %v10577, -inf
    %v10634 = vmax.f32 %v10631, %v10633
    %v10635 = vsel %vm714, %v10580, -inf
    %v10636 = vmax.f32 %v10632, %v10635
    %v10637 = vsel %vm714, %v10585, -inf
    %v10638 = vmax.f32 %v10634, %v10637
    %v10639 = vsel %vm714, %v10588, -inf
    %v10640 = vmax.f32 %v10636, %v10639
    %v10641 = vsel %vm714, %v10593, -inf
    %v10642 = vmax.f32 %v10638, %v10641
    %v10643 = vsel %vm714, %v10596, -inf
    %v10644 = vmax.f32 %v10640, %v10643
    %v10645 = vmax.f32 %v10642, %v10644
    %v10646 = vrot.slane %v10645, 4
    %v10647 = vmax.f32 %v10645, %v10646
    %v10648 = vrot.slane %v10647, 2
    %v10649 = vmax.f32 %v10647, %v10648
    %v10650 = vrot.slane %v10649, 1
    %v10651 = vmax.f32 %v10649, %v10650
    %v10652 = vsel %vm714, %v10601, -inf
    %v10653 = vsel %vm714, %v10604, -inf
    %v10654 = vsel %vm714, %v10609, -inf
    %v10655 = vmax.f32 %v10652, %v10654
    %v10656 = vsel %vm714, %v10612, -inf
    %v10657 = vmax.f32 %v10653, %v10656
    %v10658 = vsel %vm714, %v10617, -inf
    %v10659 = vmax.f32 %v10655, %v10658
    %v10660 = vsel %vm714, %v10620, -inf
    %v10661 = vmax.f32 %v10657, %v10660
    %v10662 = vsel %vm714, %v10625, -inf
    %v10663 = vmax.f32 %v10659, %v10662
    %v10664 = vsel %vm714, %v10628, -inf
    %v10665 = vmax.f32 %v10661, %v10664
    %v10666 = vmax.f32 %v10663, %v10665
    %v10667 = vrot.slane %v10666, 4
    %v10668 = vmax.f32 %v10666, %v10667
    %v10669 = vrot.slane %v10668, 2
    %v10670 = vmax.f32 %v10668, %v10669
    %v10671 = vrot.slane %v10670, 1
    %v10672 = vmax.f32 %v10670, %v10671
    %v10673 = vsub.f32 %v10569, %v10651
    %v10674 = vsub.f32 %v10572, %v10651
    %v10675 = vsub.f32 %v10577, %v10651
    %v10676 = vsub.f32 %v10580, %v10651
    %v10677 = vsub.f32 %v10585, %v10651
    %v10678 = vsub.f32 %v10588, %v10651
    %v10679 = vsub.f32 %v10593, %v10651
    %v10680 = vsub.f32 %v10596, %v10651
    %v10681 = vsub.f32 %v10601, %v10672
    %v10682 = vsub.f32 %v10604, %v10672
    %v10683 = vsub.f32 %v10609, %v10672
    %v10684 = vsub.f32 %v10612, %v10672
    %v10685 = vsub.f32 %v10617, %v10672
    %v10686 = vsub.f32 %v10620, %v10672
    %v10687 = vsub.f32 %v10625, %v10672
    %v10688 = vsub.f32 %v10628, %v10672
    %v10689 = vmul.f32 %v10673, 1.442695
    %v10690 = vpow.pop %v10689
    %v10691 = vmul.f32 %v10674, 1.442695
    %v10692 = vpow.pop %v10691
    %v10693 = vmul.f32 %v10675, 1.442695
    %v10694 = vpow.pop %v10693
    %v10695 = vmul.f32 %v10676, 1.442695
    %v10696 = vpow.pop %v10695
    %v10697 = vmul.f32 %v10677, 1.442695
    %v10698 = vpow.pop %v10697
    %v10699 = vmul.f32 %v10678, 1.442695
    %v10700 = vpow.pop %v10699
    %v10701 = vmul.f32 %v10679, 1.442695
    %v10702 = vpow.pop %v10701
    %v10703 = vmul.f32 %v10680, 1.442695
    %v10704 = vpow.pop %v10703
    %v10705 = vmul.f32 %v10681, 1.442695
    %v10706 = vpow.pop %v10705
    %v10707 = vmul.f32 %v10682, 1.442695
    %v10708 = vpow.pop %v10707
    %v10709 = vmul.f32 %v10683, 1.442695
    %v10710 = vpow.pop %v10709
    %v10711 = vmul.f32 %v10684, 1.442695
    %v10712 = vpow.pop %v10711
    %v10713 = vmul.f32 %v10685, 1.442695
    %v10714 = vpow.pop %v10713
    %v10715 = vmul.f32 %v10686, 1.442695
    %v10716 = vpow.pop %v10715
    %v10717 = vmul.f32 %v10687, 1.442695
    %v10718 = vpow.pop %v10717
    %v10719 = vmul.f32 %v10688, 1.442695
    %v10720 = vpow.pop %v10719
    %v10721 = vsel %vm714, %v10690, 0.0
    %v10722 = vsel %vm714, %v10692, 0.0
    %v10723 = vadd.f32 %v10721, %v10722
    %v10724 = vsel %vm714, %v10694, 0.0
    %v10725 = vadd.f32 %v10723, %v10724
    %v10726 = vsel %vm714, %v10696, 0.0
    %v10727 = vadd.f32 %v10725, %v10726
    %v10728 = vsel %vm714, %v10698, 0.0
    %v10729 = vadd.f32 %v10727, %v10728
    %v10730 = vsel %vm714, %v10700, 0.0
    %v10731 = vadd.f32 %v10729, %v10730
    %v10732 = vsel %vm714, %v10702, 0.0
    %v10733 = vadd.f32 %v10731, %v10732
    %v10734 = vsel %vm714, %v10704, 0.0
    %v10735 = vadd.f32 %v10733, %v10734
    %v10736 = vrot.slane %v10735, 4
    %v10737 = vadd.f32 %v10735, %v10736
    %v10738 = vrot.slane %v10737, 2
    %v10739 = vadd.f32 %v10737, %v10738
    %v10740 = vrot.slane %v10739, 1
    %v10741 = vadd.f32 %v10739, %v10740
    %v10742 = vsel %vm714, %v10706, 0.0
    %v10743 = vsel %vm714, %v10708, 0.0
    %v10744 = vadd.f32 %v10742, %v10743
    %v10745 = vsel %vm714, %v10710, 0.0
    %v10746 = vadd.f32 %v10744, %v10745
    %v10747 = vsel %vm714, %v10712, 0.0
    %v10748 = vadd.f32 %v10746, %v10747
    %v10749 = vsel %vm714, %v10714, 0.0
    %v10750 = vadd.f32 %v10748, %v10749
    %v10751 = vsel %vm714, %v10716, 0.0
    %v10752 = vadd.f32 %v10750, %v10751
    %v10753 = vsel %vm714, %v10718, 0.0
    %v10754 = vadd.f32 %v10752, %v10753
    %v10755 = vsel %vm714, %v10720, 0.0
    %v10756 = vadd.f32 %v10754, %v10755
    %v10757 = vrot.slane %v10756, 4
    %v10758 = vadd.f32 %v10756, %v10757
    %v10759 = vrot.slane %v10758, 2
    %v10760 = vadd.f32 %v10758, %v10759
    %v10761 = vrot.slane %v10760, 1
    %v10762 = vadd.f32 %v10760, %v10761
    %v10763 = vrcp.pop %v10741
    %v10764 = vmul.f32 %v10690, %v10763
    %v10765 = vmul.f32 %v10692, %v10763
    %v10766 = vmul.f32 %v10694, %v10763
    %v10767 = vmul.f32 %v10696, %v10763
    %v10768 = vmul.f32 %v10698, %v10763
    %v10769 = vmul.f32 %v10700, %v10763
    %v10770 = vmul.f32 %v10702, %v10763
    %v10771 = vmul.f32 %v10704, %v10763
    %v10772 = vrcp.pop %v10762
    %v10773 = vmul.f32 %v10706, %v10772
    %v10774 = vmul.f32 %v10708, %v10772
    %v10775 = vmul.f32 %v10710, %v10772
    %v10776 = vmul.f32 %v10712, %v10772
    %v10777 = vmul.f32 %v10714, %v10772
    %v10778 = vmul.f32 %v10716, %v10772
    %v10779 = vmul.f32 %v10718, %v10772
    %v10780 = vmul.f32 %v10720, %v10772
    %v10781 = vpack.c.bf16 %v10765, %v10764
    %v10782 = vpack.c.bf16 %v10767, %v10766
    %v10783 = vpack.c.bf16 %v10769, %v10768
    %v10784 = vpack.c.bf16 %v10771, %v10770
    %v10785 = vpack.c.bf16 %v10774, %v10773
    %v10786 = vpack.c.bf16 %v10776, %v10775
    %v10787 = vpack.c.bf16 %v10778, %v10777
    %v10788 = vpack.c.bf16 %v10780, %v10779
    %10789 = vxpose.xlu0.c.b16.start [1/8] %v10781, 128
    %10790 = vxpose.xlu0.c.b16.cont [2/8] %v10782, 128
    %10791 = vxpose.xlu0.c.b16.cont [3/8] %v10783, 128
    %10792 = vxpose.xlu0.c.b16.cont [4/8] %v10784, 128
    %10793 = vxpose.xlu0.c.b16.cont [5/8] 0, 128
    %10794 = vxpose.xlu0.c.b16.cont [6/8] 0, 128
    %10795 = vxpose.xlu0.c.b16.cont [7/8] 0, 128
    %10796 = vxpose.xlu0.c.b16.end [8/8] 0, 128
    %v10797 = vpop.trf.xlu0
    %v10798 = vpop.trf.xlu0
    %v10799 = vpop.trf.xlu0
    %v10800 = vpop.trf.xlu0
    %v10801 = vpop.trf.xlu0
    %v10802 = vpop.trf.xlu0
    %v10803 = vpop.trf.xlu0
    %v10804 = vpop.trf.xlu0
    %v10806 = vsel %vm296, %v10797, 0
    %v10809 = vsel %vm296, %v10798, 0
    %10811 = vmatprep.subr.bf16.mxu0 0
    %10812 = vmatpush1.bf16.msra.mxu0 %v10255
    %10813 = vmatprep.subr.bf16.mxu0 0
    %10814 = vmatpush1.bf16.msra.mxu0 %v10256
    %10815 = vmatprep.subr.bf16.mxu0 0
    %10816 = vmatpush1.bf16.msra.mxu0 %v10257
    %10817 = vmatprep.subr.bf16.mxu0 0
    %10818 = vmatpush1.bf16.msra.mxu0 %v10258
    %10819 = vmatprep.subr.bf16.mxu0 0
    %10820 = vmatpush1.bf16.msra.mxu0 0
    %10821 = vmatprep.subr.bf16.mxu0 0
    %10822 = vmatpush1.bf16.msra.mxu0 0
    %10823 = vmatprep.subr.bf16.mxu0 0
    %10824 = vmatpush1.bf16.msra.mxu0 0
    %10825 = vmatprep.subr.bf16.mxu0 0
    %10826 = vmatpush1.bf16.msra.mxu0 0
    %10827 = vmatprep.subr.bf16.mxu0 0
    %10828 = vmatpush1.bf16.msra.mxu0 0
    %10829 = vmatprep.subr.bf16.mxu0 0
    %10830 = vmatpush1.bf16.msra.mxu0 0
    %10831 = vmatprep.subr.bf16.mxu0 0
    %10832 = vmatpush1.bf16.msra.mxu0 0
    %10833 = vmatprep.subr.bf16.mxu0 0
    %10834 = vmatpush1.bf16.msra.mxu0 0
    %10835 = vmatprep.subr.bf16.mxu0 0
    %10836 = vmatpush1.bf16.msra.mxu0 0
    %10837 = vmatprep.subr.bf16.mxu0 0
    %10838 = vmatpush1.bf16.msra.mxu0 0
    %10839 = vmatprep.subr.bf16.mxu0 0
    %10840 = vmatpush1.bf16.msra.mxu0 0
    %10841 = vmatprep.subr.bf16.mxu0 0
    %10842 = vmatpush1.bf16.msra.mxu0 0
    %10843 = vmatprep.mubr.bf16.mxu0 0
    %10844 = vmatmul.mubr.bf16.gmra.mrb[0].mxu0 %v10806
    %v10845 = vpop.f32.mrb[0].mxu0
    %v10846 = vadd.f32 0.0, %v10845
    %v10847 = vpop.f32.mrb[0].mxu0
    %v10848 = vpop.f32.mrb[0].mxu0
    %v10849 = vadd.f32 0.0, %v10848
    %v10850 = vpop.f32.mrb[0].mxu0
    %10851 = vmatprep.mubr.bf16.mxu0 0
    %10852 = vmatmul.mubr.bf16.gmra.mrb[0].mxu0 %v10809
    %v10853 = vpop.f32.mrb[0].mxu0
    %v10854 = vadd.f32 0.0, %v10853
    %v10855 = vpop.f32.mrb[0].mxu0
    %v10856 = vpop.f32.mrb[0].mxu0
    %v10857 = vadd.f32 0.0, %v10856
    %v10858 = vpop.f32.mrb[0].mxu0
    %10859 = vdwg.mxu0
    %10860 = vxpose.xlu0.c.b16.start [1/8] %v10785, 128
    %10861 = vxpose.xlu0.c.b16.cont [2/8] %v10786, 128
    %10862 = vxpose.xlu0.c.b16.cont [3/8] %v10787, 128
    %10863 = vxpose.xlu0.c.b16.cont [4/8] %v10788, 128
    %10864 = vxpose.xlu0.c.b16.cont [5/8] 0, 128
    %10865 = vxpose.xlu0.c.b16.cont [6/8] 0, 128
    %10866 = vxpose.xlu0.c.b16.cont [7/8] 0, 128
    %10867 = vxpose.xlu0.c.b16.end [8/8] 0, 128
    %v10868 = vpop.trf.xlu0
    %v10869 = vpop.trf.xlu0
    %v10870 = vpop.trf.xlu0
    %v10871 = vpop.trf.xlu0
    %v10872 = vpop.trf.xlu0
    %v10873 = vpop.trf.xlu0
    %v10874 = vpop.trf.xlu0
    %v10875 = vpop.trf.xlu0
    %v10877 = vsel %vm296, %v10868, 0
    %v10880 = vsel %vm296, %v10869, 0
    %10882 = vmatprep.subr.bf16.mxu0 0
    %10883 = vmatpush1.bf16.msra.mxu0 %v10259
    %10884 = vmatprep.subr.bf16.mxu0 0
    %10885 = vmatpush1.bf16.msra.mxu0 %v10260
    %10886 = vmatprep.subr.bf16.mxu0 0
    %10887 = vmatpush1.bf16.msra.mxu0 %v10261
    %10888 = vmatprep.subr.bf16.mxu0 0
    %10889 = vmatpush1.bf16.msra.mxu0 %v10262
    %10890 = vmatprep.subr.bf16.mxu0 0
    %10891 = vmatpush1.bf16.msra.mxu0 0
    %10892 = vmatprep.subr.bf16.mxu0 0
    %10893 = vmatpush1.bf16.msra.mxu0 0
    %10894 = vmatprep.subr.bf16.mxu0 0
    %10895 = vmatpush1.bf16.msra.mxu0 0
    %10896 = vmatprep.subr.bf16.mxu0 0
    %10897 = vmatpush1.bf16.msra.mxu0 0
    %10898 = vmatprep.subr.bf16.mxu0 0
    %10899 = vmatpush1.bf16.msra.mxu0 0
    %10900 = vmatprep.subr.bf16.mxu0 0
    %10901 = vmatpush1.bf16.msra.mxu0 0
    %10902 = vmatprep.subr.bf16.mxu0 0
    %10903 = vmatpush1.bf16.msra.mxu0 0
    %10904 = vmatprep.subr.bf16.mxu0 0
    %10905 = vmatpush1.bf16.msra.mxu0 0
    %10906 = vmatprep.subr.bf16.mxu0 0
    %10907 = vmatpush1.bf16.msra.mxu0 0
    %10908 = vmatprep.subr.bf16.mxu0 0
    %10909 = vmatpush1.bf16.msra.mxu0 0
    %10910 = vmatprep.subr.bf16.mxu0 0
    %10911 = vmatpush1.bf16.msra.mxu0 0
    %10912 = vmatprep.subr.bf16.mxu0 0
    %10913 = vmatpush1.bf16.msra.mxu0 0
    %10914 = vmatprep.mubr.bf16.mxu0 0
    %10915 = vmatmul.mubr.bf16.gmra.mrb[0].mxu0 %v10877
    %v10916 = vpop.f32.mrb[0].mxu0
    %v10917 = vadd.f32 0.0, %v10916
    %v10918 = vpop.f32.mrb[0].mxu0
    %v10919 = vpop.f32.mrb[0].mxu0
    %v10920 = vadd.f32 0.0, %v10919
    %v10921 = vpop.f32.mrb[0].mxu0
    %10922 = vmatprep.mubr.bf16.mxu0 0
    %10923 = vmatmul.mubr.bf16.gmra.mrb[0].mxu0 %v10880
    %v10924 = vpop.f32.mrb[0].mxu0
    %v10925 = vadd.f32 0.0, %v10924
    %v10926 = vpop.f32.mrb[0].mxu0
    %v10927 = vpop.f32.mrb[0].mxu0
    %v10928 = vadd.f32 0.0, %v10927
    %v10929 = vpop.f32.mrb[0].mxu0
    %10930 = vdwg.mxu0
    %v10931 = vpack.c.bf16 %v10849, %v10846
    %v10932 = vpack.c.bf16 %v10857, %v10854
    %v10933 = vpack.c.bf16 %v10920, %v10917
    %v10934 = vpack.c.bf16 %v10928, %v10925
    %v10935 = vld [vmem:[#allocation15] sm:$0xf]
    %v10936 = vld [vmem:[#allocation15 + $0x4] sm:$0xf]
    %v10937 = vld [vmem:[#allocation15 + $0x8] sm:$0xf]
    %v10938 = vld [vmem:[#allocation15 + $0xc] sm:$0xf]
    %v10939 = vld [vmem:[#allocation15 + $0x10] sm:$0xf]
    %v10940 = vld [vmem:[#allocation15 + $0x14] sm:$0xf]
    %v10941 = vld [vmem:[#allocation15 + $0x18] sm:$0xf]
    %v10942 = vld [vmem:[#allocation15 + $0x1c] sm:$0xf]
    %v10943 = vld [vmem:[%s26] sm:$0x1]
    %v10945 = vlaneseq
    %v10946 = vshrl.u32 %v10945, 7
    %v10947 = vsub.s32 0, %v10946
    %v10948 = vrot.slane %v10943, %v10947
    %v10958 = vunpack.c.l.b16 %v10935
    %v10959 = vunpack.c.l.b16 %v10936
    %v10960 = vunpack.c.l.b16 %v10937
    %v10961 = vunpack.c.l.b16 %v10938
    %v10962 = vunpack.c.l.b16 %v10939
    %v10963 = vunpack.c.l.b16 %v10940
    %v10964 = vunpack.c.l.b16 %v10941
    %v10965 = vunpack.c.l.b16 %v10942
    %v10966 = vpack.c.b16 %v10959, %v10958
    %v10967 = vpack.c.b16 %v10961, %v10960
    %v10968 = vpack.c.b16 %v10963, %v10962
    %v10969 = vpack.c.b16 %v10965, %v10964
    %v10975 = vsel %vm296, %v10931, 0
    %v10978 = vsel %vm296, %v10932, 0
    %v10981 = vsel %vm296, %v10933, 0
    %v10984 = vsel %vm296, %v10934, 0
    %10986 = vmatprep.subr.bf16.mxu0 0
    %10987 = vmatpush1.bf16.msra.mxu0 %v10966
    %10988 = vmatprep.subr.bf16.mxu0 0
    %10989 = vmatpush1.bf16.msra.mxu0 %v10967
    %10990 = vmatprep.subr.bf16.mxu0 0
    %10991 = vmatpush1.bf16.msra.mxu0 %v10968
    %10992 = vmatprep.subr.bf16.mxu0 0
    %10993 = vmatpush1.bf16.msra.mxu0 %v10969
    %10994 = vmatprep.subr.bf16.mxu0 0
    %10995 = vmatpush1.bf16.msra.mxu0 0
    %10996 = vmatprep.subr.bf16.mxu0 0
    %10997 = vmatpush1.bf16.msra.mxu0 0
    %10998 = vmatprep.subr.bf16.mxu0 0
    %10999 = vmatpush1.bf16.msra.mxu0 0
    %11000 = vmatprep.subr.bf16.mxu0 0
    %11001 = vmatpush1.bf16.msra.mxu0 0
    %11002 = vmatprep.subr.bf16.mxu0 0
    %11003 = vmatpush1.bf16.msra.mxu0 0
    %11004 = vmatprep.subr.bf16.mxu0 0
    %11005 = vmatpush1.bf16.msra.mxu0 0
    %11006 = vmatprep.subr.bf16.mxu0 0
    %11007 = vmatpush1.bf16.msra.mxu0 0
    %11008 = vmatprep.subr.bf16.mxu0 0
    %11009 = vmatpush1.bf16.msra.mxu0 0
    %11010 = vmatprep.subr.bf16.mxu0 0
    %11011 = vmatpush1.bf16.msra.mxu0 0
    %11012 = vmatprep.subr.bf16.mxu0 0
    %11013 = vmatpush1.bf16.msra.mxu0 0
    %11014 = vmatprep.subr.bf16.mxu0 0
    %11015 = vmatpush1.bf16.msra.mxu0 0
    %11016 = vmatprep.subr.bf16.mxu0 0
    %11017 = vmatpush1.bf16.msra.mxu0 0
    %11018 = vmatprep.mubr.bf16.mxu0 0
    %11019 = vmatmul.mubr.bf16.gmra.mrb[0].mxu0 %v10975
    %v11020 = vpop.f32.mrb[0].mxu0
    %v11021 = vadd.f32 %v10948, %v11020
    %v11022 = vpop.f32.mrb[0].mxu0
    %v11023 = vpop.f32.mrb[0].mxu0
    %v11024 = vadd.f32 %v10948, %v11023
    %v11025 = vpop.f32.mrb[0].mxu0
    %11026 = vmatprep.mubr.bf16.mxu0 0
    %11027 = vmatmul.mubr.bf16.gmra.mrb[0].mxu0 %v10978
    %v11028 = vpop.f32.mrb[0].mxu0
    %v11029 = vadd.f32 %v10948, %v11028
    %v11030 = vpop.f32.mrb[0].mxu0
    %v11031 = vpop.f32.mrb[0].mxu0
    %v11032 = vadd.f32 %v10948, %v11031
    %v11033 = vpop.f32.mrb[0].mxu0
    %11034 = vmatprep.mubr.bf16.mxu0 0
    %11035 = vmatmul.mubr.bf16.gmra.mrb[0].mxu0 %v10981
    %v11036 = vpop.f32.mrb[0].mxu0
    %v11037 = vadd.f32 %v10948, %v11036
    %v11038 = vpop.f32.mrb[0].mxu0
    %v11039 = vpop.f32.mrb[0].mxu0
    %v11040 = vadd.f32 %v10948, %v11039
    %v11041 = vpop.f32.mrb[0].mxu0
    %11042 = vmatprep.mubr.bf16.mxu0 0
    %11043 = vmatmul.mubr.bf16.gmra.mrb[0].mxu0 %v10984
    %v11044 = vpop.f32.mrb[0].mxu0
    %v11045 = vadd.f32 %v10948, %v11044
    %v11046 = vpop.f32.mrb[0].mxu0
    %v11047 = vpop.f32.mrb[0].mxu0
    %v11048 = vadd.f32 %v10948, %v11047
    %v11049 = vpop.f32.mrb[0].mxu0
    %11050 = vdwg.mxu0
    %11051 = vst [vmem:[%s27] sm:$0xff] %v11021
    %11052 = vst [vmem:[%s27 + $0x8] sm:$0xff] %v11024
    %11053 = vst [vmem:[%s27 + $0x10] sm:$0xff] %v11029
    %11054 = vst [vmem:[%s27 + $0x18] sm:$0xff] %v11032
    %11055 = vst [vmem:[%s27 + $0x20] sm:$0xff] %v11037
    %11056 = vst [vmem:[%s27 + $0x28] sm:$0xff] %v11040
    %11057 = vst [vmem:[%s27 + $0x30] sm:$0xff] %v11045
    %11058 = vst [vmem:[%s27 + $0x38] sm:$0xff] %v11048
    // Predicated region
    $region146: #{_lambda_.1} parent=1 // pred_check
      _
    $region147: #{_lambda_.1} parent=1 // pred_check_branch
      %11060 = sbr.rel (0) target = $region149
    $region148: #{_lambda_.1} parent=1 // pred_region
      _
    $region149: #{_lambda_.1} parent=1 // pred_fallthru
      _
    // Predicated region
    $region150: #{_lambda_.1} parent=1 // pred_check
      _
    $region151: #{_lambda_.1} parent=1 // pred_check_branch
      %11062 = sbr.rel (0) target = $region153
    $region152: #{_lambda_.1} parent=1 // pred_region
      _
    $region153: #{_lambda_.1} parent=1 // pred_fallthru
      _
    %11063 = vsyncpa [#allocation3], 1
    %11064 = vsyncpa [#allocation5], 1
    %11065 = vsyncpa [#allocation8], 1
    %11066 = vsyncpa [#allocation11], 1
    %11067 = vsyncpa [#allocation14], 1

</llo_original>
